<compile_context>
chip_gen: v7x
topology: tpu7x:2x2x1
jax: 0.10.0
libtpu: 0.0.40
codegen_flags: <defaults>
</compile_context>

<pallas_src>
import functools

import jax
import jax.numpy as jnp
from jax.experimental import pallas as pl
from jax.experimental.pallas import tpu as pltpu

HIDDEN = 50
NUM_LAYERS = 3

H_PAD = 128      # hidden padded to one full lane tile; gate tile g at cols [g*128, g*128+H)
B_PAD_MIN = 8    # sublane granularity

# PyTorch gate order is [i, f, g, o]; kernel-private tile order is [i, f, o, g]
# (three sigmoids contiguous, tanh last).  src gate idx -> dest 128-lane tile.
GATE_TILE = (0, 1, 3, 2)


def _round_up(x, m):
    return ((x + m - 1) // m) * m


# ----------------------------------------------------------------------------
# Fused kernel: 3 wavefront-interleaved LSTM layers + FC head.
# ----------------------------------------------------------------------------
def fused_lstm_fc_kernel(x_ref, wih0_ref, whh0_ref, w12_hbm, b_ref, wfc_ref,
                         bfc_ref, out_ref, w1_vmem, w2_vmem, dma_sem, gx0_scr,
                         *, T, Bp, Hp):
    # Kick off the layer-1/2 fused-weight DMAs immediately; they overlap the
    # hoisted layer-0 projection and the first wavefront steps.
    cp1 = pltpu.make_async_copy(w12_hbm.at[0], w1_vmem, dma_sem.at[0])
    cp2 = pltpu.make_async_copy(w12_hbm.at[1], w2_vmem, dma_sem.at[1])
    cp1.start()
    cp2.start()

    # Hoisted layer-0 input projection (+ bias): one (T*Bp, Fp) @ (Fp, 4*Hp)
    # matmul, off the recurrent critical path.
    gx0_scr[...] = (
        jnp.dot(x_ref[...], wih0_ref[...], preferred_element_type=jnp.float32)
        + b_ref[0]
    )

    def lstm_cell(gates, c):
        # Private gate order [i, f, o, g]: one wide sigmoid, one tanh.
        sig = jax.nn.sigmoid(gates[:, :3 * Hp])
        i_g = sig[:, 0 * Hp:1 * Hp]
        f_g = sig[:, 1 * Hp:2 * Hp]
        o_g = sig[:, 2 * Hp:3 * Hp]
        g_g = jnp.tanh(gates[:, 3 * Hp:4 * Hp])
        c_new = f_g * c + i_g * g_g
        h_new = o_g * jnp.tanh(c_new)
        return h_new, c_new

    zeros = jnp.zeros((Bp, Hp), jnp.float32)
    h = [zeros, zeros, zeros]
    c = [zeros, zeros, zeros]

    # Wavefront: at super-step s, layer 0 does timestep s, layer 1 does s-1,
    # layer 2 does s-2.  Each layer reads the *carried* h of the layer below
    # (its output from the previous super-step), so the three chains are
    # independent within a super-step and the scheduler can interleave them.
    for s in range(T + NUM_LAYERS - 1):
        nh = list(h)
        nc = list(c)

        if s < T:                                   # layer 0, timestep s
            gates0 = gx0_scr[pl.ds(s * Bp, Bp), :] + jnp.dot(
                h[0], whh0_ref[...], preferred_element_type=jnp.float32)
            nh[0], nc[0] = lstm_cell(gates0, c[0])

        if 1 <= s <= T:                             # layer 1, timestep s-1
            if s == 1:
                cp1.wait()
            gates1 = jnp.dot(
                jnp.concatenate([h[0], h[1]], axis=1), w1_vmem[...],
                preferred_element_type=jnp.float32) + b_ref[1]
            nh[1], nc[1] = lstm_cell(gates1, c[1])

        if 2 <= s:                                  # layer 2, timestep s-2
            if s == 2:
                cp2.wait()
            gates2 = jnp.dot(
                jnp.concatenate([h[1], h[2]], axis=1), w2_vmem[...],
                preferred_element_type=jnp.float32) + b_ref[2]
            nh[2], nc[2] = lstm_cell(gates2, c[2])

        h, c = nh, nc

    # FC head as a reduction over H (degenerate N=1 MXU matmul avoided);
    # lane-dense (Bp, 128) store.
    fc = jnp.sum(h[2] * wfc_ref[...], axis=-1, keepdims=True) + bfc_ref[0, 0]
    out_ref[...] = jnp.broadcast_to(fc, out_ref.shape)


def fused_forward(x_flat, wih0, whh0, w12, b, wfc, bfc, *, T, Bp):
    Hp = H_PAD
    Fp = x_flat.shape[1]
    kernel = functools.partial(fused_lstm_fc_kernel, T=T, Bp=Bp, Hp=Hp)
    return pl.pallas_call(
        kernel,
        out_shape=jax.ShapeDtypeStruct((Bp, Hp), jnp.float32),
        grid=(1,),
        in_specs=[
            pl.BlockSpec((T * Bp, Fp), lambda i: (0, 0)),           # x
            pl.BlockSpec(wih0.shape, lambda i: (0, 0)),             # layer-0 W_ih (de-padded)
            pl.BlockSpec(whh0.shape, lambda i: (0, 0)),             # layer-0 W_hh
            pl.BlockSpec(memory_space=pl.ANY),                      # layer-1/2 fused weights (HBM)
            pl.BlockSpec(b.shape, lambda i: (0, 0, 0)),             # biases
            pl.BlockSpec(wfc.shape, lambda i: (0, 0)),              # FC weight row
            pl.BlockSpec(memory_space=pltpu.MemorySpace.SMEM),      # FC bias scalar
        ],
        out_specs=pl.BlockSpec((Bp, Hp), lambda i: (0, 0)),
        scratch_shapes=[
            pltpu.VMEM((2 * Hp, 4 * Hp), jnp.float32),   # layer-1 [[W_ih],[W_hh]]
            pltpu.VMEM((2 * Hp, 4 * Hp), jnp.float32),   # layer-2 [[W_ih],[W_hh]]
            pltpu.SemaphoreType.DMA((2,)),
            pltpu.VMEM((T * Bp, 4 * Hp), jnp.float32),   # hoisted layer-0 x-projection
        ],
        compiler_params=pltpu.CompilerParams(
            dimension_semantics=("arbitrary",)),
    )(x_flat, wih0, whh0, w12, b, wfc, bfc)


# ----------------------------------------------------------------------------
# Parameter construction (PyTorch-style uniform(-1/sqrt(H), 1/sqrt(H)))
# Logical layout: w_ih (Din, 4H), w_hh (H, 4H), bias (1, 4H), w_fc (H, 1),
# gate order [i, f, g, o] (PyTorch).
# ----------------------------------------------------------------------------
def init_params(key, input_size, hidden, num_layers):
    bound = 1.0 / jnp.sqrt(jnp.float32(hidden))
    params = []
    for layer in range(num_layers):
        d_in = input_size if layer == 0 else hidden
        key, k1, k2, k3, k4 = jax.random.split(key, 5)
        w_ih = jax.random.uniform(k1, (d_in, 4 * hidden), jnp.float32, -bound, bound)
        w_hh = jax.random.uniform(k2, (hidden, 4 * hidden), jnp.float32, -bound, bound)
        b_ih = jax.random.uniform(k3, (4 * hidden,), jnp.float32, -bound, bound)
        b_hh = jax.random.uniform(k4, (4 * hidden,), jnp.float32, -bound, bound)
        params.append((w_ih, w_hh, (b_ih + b_hh).reshape(1, 4 * hidden)))
    key, k5, k6 = jax.random.split(key, 3)
    w_fc = jax.random.uniform(k5, (hidden, 1), jnp.float32, -bound, bound)
    b_fc = jax.random.uniform(k6, (1, 1), jnp.float32, -bound, bound)
    return params, (w_fc, b_fc)


# ----------------------------------------------------------------------------
# Pack / pad parameters into the kernel's lane-aligned, gate-permuted layout.
# ----------------------------------------------------------------------------
def _pad_gate_cols(w2d, H, Hp):
    """(R, 4H) PyTorch [i,f,g,o] -> (R, 4*Hp) private [i,f,o,g]; pads are zero."""
    R = w2d.shape[0]
    out = jnp.zeros((R, 4 * Hp), w2d.dtype)
    for src, dst in enumerate(GATE_TILE):
        out = out.at[:, dst * Hp:dst * Hp + H].set(w2d[:, src * H:(src + 1) * H])
    return out


def _pad_rows(w2d, Rp):
    return jnp.pad(w2d, ((0, Rp - w2d.shape[0]), (0, 0)))


def pack_params(lstm_params, fc_params):
    H, Hp = HIDDEN, H_PAD
    (w_ih0, w_hh0, b0), l1, l2 = lstm_params
    Fp = _round_up(w_ih0.shape[0], 8)                       # features 4 -> 8 sublanes only
    wih0 = _pad_rows(_pad_gate_cols(w_ih0, H, Hp), Fp)      # (Fp, 4*Hp)
    whh0 = _pad_rows(_pad_gate_cols(w_hh0, H, Hp), Hp)      # (Hp, 4*Hp)

    def stack_layer(w_ih, w_hh):
        # Fused per-step weight: rows 0..Hp-1 multiply the previous layer's h,
        # rows Hp..2Hp-1 multiply this layer's own h.
        return jnp.concatenate(
            [_pad_rows(_pad_gate_cols(w_ih, H, Hp), Hp),
             _pad_rows(_pad_gate_cols(w_hh, H, Hp), Hp)], axis=0)   # (2*Hp, 4*Hp)

    w12 = jnp.stack([stack_layer(l1[0], l1[1]),
                     stack_layer(l2[0], l2[1])])            # (2, 2*Hp, 4*Hp)
    b = jnp.stack([_pad_gate_cols(b0, H, Hp),
                   _pad_gate_cols(l1[2], H, Hp),
                   _pad_gate_cols(l2[2], H, Hp)])           # (3, 1, 4*Hp)

    w_fc, b_fc = fc_params
    wfc_p = jnp.zeros((1, Hp), jnp.float32).at[0, :H].set(w_fc[:, 0])
    return (wih0, whh0, w12, b, wfc_p, b_fc.reshape(1, 1).astype(jnp.float32))


# ----------------------------------------------------------------------------
# Full forward pass (eval semantics). x_btd: (B, T, F), batch_first.
# ----------------------------------------------------------------------------
@jax.jit
def model_forward(x_btd, packed_params):
    wih0, whh0, w12, b, wfc, bfc = packed_params
    B, T, F = x_btd.shape
    Fp = wih0.shape[0]
    Bp = _round_up(max(B, B_PAD_MIN), B_PAD_MIN)
    x = jnp.transpose(x_btd, (1, 0, 2)).astype(jnp.float32)      # (T, B, F)
    x = jnp.pad(x, ((0, 0), (0, Bp - B), (0, Fp - F)))           # (T, Bp, Fp)
    x = x.reshape(T * Bp, Fp)
    out_pad = fused_forward(x, wih0, whh0, w12, b, wfc, bfc, T=T, Bp=Bp)
    return out_pad[:B, :1]                                       # (B, 1)


# ----------------------------------------------------------------------------
# Pure-JAX reference for correctness checking (unpadded logical weights).
# ----------------------------------------------------------------------------
def reference_forward(x_btd, lstm_params, fc_params):
    H = HIDDEN
    x = jnp.transpose(x_btd, (1, 0, 2)).astype(jnp.float32)   # (T, B, F)
    for (w_ih, w_hh, bias) in lstm_params:
        T, B, _ = x.shape
        h = jnp.zeros((B, H), jnp.float32)
        c = jnp.zeros((B, H), jnp.float32)
        outs = []
        for t in range(T):
            gates = x[t] @ w_ih + h @ w_hh + bias
            i_g = jax.nn.sigmoid(gates[:, 0 * H:1 * H])
            f_g = jax.nn.sigmoid(gates[:, 1 * H:2 * H])
            g_g = jnp.tanh(gates[:, 2 * H:3 * H])
            o_g = jax.nn.sigmoid(gates[:, 3 * H:4 * H])
            c = f_g * c + i_g * g_g
            h = o_g * jnp.tanh(c)
            outs.append(h)
        x = jnp.stack(outs, axis=0)
    w_fc, b_fc = fc_params
    h_last = x[-1]
    return jnp.sum(h_last * w_fc[:, 0], axis=-1, keepdims=True) + b_fc


if __name__ == "__main__":
    # Small, module-consistent shapes: batch=2, seq=8, features=4, hidden=50.
    B, T, F = 2, 8, 4

    key = jax.random.PRNGKey(0)
    key, kx = jax.random.split(key)
    x = jax.random.normal(kx, (B, T, F), jnp.float32)

    lstm_params, fc_params = init_params(key, F, HIDDEN, NUM_LAYERS)
    packed = pack_params(lstm_params, fc_params)

    out = model_forward(x, packed)
    out = jax.block_until_ready(out)

    ref = reference_forward(x, lstm_params, fc_params)
    assert out.shape == (B, 1)
    assert jnp.allclose(out, ref, atol=1e-4, rtol=1e-4), (out, ref)

    print("KERNEL_OK")
</pallas_src>

<mosaic_0001>
module attributes {stable_mosaic.version = 11 : i64} {
  func.func @fused_lstm_fc_kernel(%arg0: i32, %arg1: memref<64x8xf32, #tpu.memory_space<vmem>>, %arg2: memref<8x512xf32, #tpu.memory_space<vmem>>, %arg3: memref<128x512xf32, #tpu.memory_space<vmem>>, %arg4: memref<2x256x512xf32, #tpu.memory_space<any>>, %arg5: memref<3x1x512xf32, #tpu.memory_space<vmem>>, %arg6: memref<1x128xf32, #tpu.memory_space<vmem>>, %arg7: memref<1x1xf32, #tpu.memory_space<smem>>, %arg8: memref<8x128xf32, #tpu.memory_space<vmem>>, %arg9: memref<256x512xf32, #tpu.memory_space<vmem>>, %arg10: memref<256x512xf32, #tpu.memory_space<vmem>>, %arg11: memref<2x!tpu.dma_semaphore, #tpu.memory_space<semaphore_mem>>, %arg12: memref<64x512xf32, #tpu.memory_space<vmem>>) attributes {dimension_semantics = [#tpu.dimension_semantics<arbitrary>], iteration_bounds = array<i64: 1>, scalar_prefetch = 0 : i64, scratch_operands = 4 : i64, tpu.core_type = #tpu.core_type<tc>, window_params = [{pipeline_mode = #tpu.pipeline_mode<synchronous>, transform_indices = @transform_0, window_bounds = array<i64: 64, 8>}, {pipeline_mode = #tpu.pipeline_mode<synchronous>, transform_indices = @transform_1, window_bounds = array<i64: 8, 512>}, {pipeline_mode = #tpu.pipeline_mode<synchronous>, transform_indices = @transform_2, window_bounds = array<i64: 128, 512>}, {}, {pipeline_mode = #tpu.pipeline_mode<synchronous>, transform_indices = @transform_4, window_bounds = array<i64: 3, 1, 512>}, {pipeline_mode = #tpu.pipeline_mode<synchronous>, transform_indices = @transform_5, window_bounds = array<i64: 1, 128>}, {transform_indices = @transform_6, window_bounds = array<i64: 1, 1>}, {pipeline_mode = #tpu.pipeline_mode<synchronous>, transform_indices = @transform_7, window_bounds = array<i64: 8, 128>}]} {
    %c0_i32 = arith.constant 0 : i32
    %c0_i32_0 = arith.constant 0 : i32
    %c0_i32_1 = arith.constant 0 : i32
    %c0_i32_2 = arith.constant 0 : i32
    %0 = tpu.memref_slice %arg4[%c0_i32, %c0_i32_1, %c0_i32_2] : memref<2x256x512xf32, #tpu.memory_space<any>> -> memref<1x256x512xf32, #tpu.memory_space<any>>
    %1 = tpu.memref_squeeze %0 : memref<1x256x512xf32, #tpu.memory_space<any>> -> memref<256x512xf32, #tpu.memory_space<any>>
    %2 = tpu.memref_slice %arg11[%c0_i32_0] : memref<2x!tpu.dma_semaphore, #tpu.memory_space<semaphore_mem>> -> memref<1x!tpu.dma_semaphore, #tpu.memory_space<semaphore_mem>>
    %3 = tpu.memref_squeeze %2 : memref<1x!tpu.dma_semaphore, #tpu.memory_space<semaphore_mem>> -> memref<!tpu.dma_semaphore, #tpu.memory_space<semaphore_mem>>
    tpu.enqueue_dma source(%1 : memref<256x512xf32, #tpu.memory_space<any>>) target(%arg9 : memref<256x512xf32, #tpu.memory_space<vmem>>) target_semaphore(%3 : memref<!tpu.dma_semaphore, #tpu.memory_space<semaphore_mem>>)
    %c1_i32 = arith.constant 1 : i32
    %c1_i32_3 = arith.constant 1 : i32
    %c0_i32_4 = arith.constant 0 : i32
    %c0_i32_5 = arith.constant 0 : i32
    %4 = tpu.memref_slice %arg4[%c1_i32, %c0_i32_4, %c0_i32_5] : memref<2x256x512xf32, #tpu.memory_space<any>> -> memref<1x256x512xf32, #tpu.memory_space<any>>
    %5 = tpu.memref_squeeze %4 : memref<1x256x512xf32, #tpu.memory_space<any>> -> memref<256x512xf32, #tpu.memory_space<any>>
    %6 = tpu.memref_slice %arg11[%c1_i32_3] : memref<2x!tpu.dma_semaphore, #tpu.memory_space<semaphore_mem>> -> memref<1x!tpu.dma_semaphore, #tpu.memory_space<semaphore_mem>>
    %7 = tpu.memref_squeeze %6 : memref<1x!tpu.dma_semaphore, #tpu.memory_space<semaphore_mem>> -> memref<!tpu.dma_semaphore, #tpu.memory_space<semaphore_mem>>
    tpu.enqueue_dma source(%5 : memref<256x512xf32, #tpu.memory_space<any>>) target(%arg10 : memref<256x512xf32, #tpu.memory_space<vmem>>) target_semaphore(%7 : memref<!tpu.dma_semaphore, #tpu.memory_space<semaphore_mem>>)
    %c0 = arith.constant 0 : index
    %c0_6 = arith.constant 0 : index
    %8 = vector.load %arg1[%c0, %c0_6] : memref<64x8xf32, #tpu.memory_space<vmem>>, vector<64x8xf32>
    %c0_7 = arith.constant 0 : index
    %c0_8 = arith.constant 0 : index
    %9 = vector.load %arg2[%c0_7, %c0_8] : memref<8x512xf32, #tpu.memory_space<vmem>>, vector<8x512xf32>
    %cst = arith.constant dense<0.000000e+00> : vector<64x512xf32>
    %10 = tpu.matmul %8, %9, %cst {dimension_numbers = #tpu.dot_dimension_numbers<[1], [0], [0], [1], [0, 0, 1, 1], [], []>} : vector<64x8xf32>, vector<8x512xf32>, vector<64x512xf32> -> vector<64x512xf32>
    %c0_9 = arith.constant 0 : index
    %c0_10 = arith.constant 0 : index
    %c0_11 = arith.constant 0 : index
    %11 = vector.load %arg5[%c0_9, %c0_10, %c0_11] : memref<3x1x512xf32, #tpu.memory_space<vmem>>, vector<1x1x512xf32>
    %12 = vector.shape_cast %11 : vector<1x1x512xf32> to vector<1x512xf32>
    %13 = vector.broadcast %12 : vector<1x512xf32> to vector<64x512xf32>
    %14 = arith.addf %10, %13 : vector<64x512xf32>
    %c0_12 = arith.constant 0 : index
    %c0_13 = arith.constant 0 : index
    %15 = vector.load %arg12[%c0_12, %c0_13] : memref<64x512xf32, #tpu.memory_space<vmem>>, vector<64x512xf32>
    tpu.vector_store %arg12[%c0_12, %c0_13], %14 {strides = array<i32>} : memref<64x512xf32, #tpu.memory_space<vmem>>, vector<64x512xf32>,
    %cst_14 = arith.constant 0.000000e+00 : f32
    %16 = vector.broadcast %cst_14 : f32 to vector<8x128xf32>
    %c0_15 = arith.constant 0 : index
    %c0_16 = arith.constant 0 : index
    %17 = vector.load %arg12[%c0_15, %c0_16] : memref<64x512xf32, #tpu.memory_space<vmem>>, vector<8x512xf32>
    %c0_17 = arith.constant 0 : index
    %c0_18 = arith.constant 0 : index
    %18 = vector.load %arg3[%c0_17, %c0_18] : memref<128x512xf32, #tpu.memory_space<vmem>>, vector<128x512xf32>
    %cst_19 = arith.constant dense<0.000000e+00> : vector<8x512xf32>
    %19 = tpu.matmul %16, %18, %cst_19 {dimension_numbers = #tpu.dot_dimension_numbers<[1], [0], [0], [1], [0, 0, 1, 1], [], []>} : vector<8x128xf32>, vector<128x512xf32>, vector<8x512xf32> -> vector<8x512xf32>
    %20 = arith.addf %17, %19 : vector<8x512xf32>
    %21 = vector.extract_strided_slice %20 {offsets = [0, 0], sizes = [8, 384], strides = [1, 1]} : vector<8x512xf32> to vector<8x384xf32>
    %22 = arith.negf %21 : vector<8x384xf32>
    %23 = math.exp %22 : vector<8x384xf32>
    %cst_20 = arith.constant 1.000000e+00 : f32
    %24 = vector.broadcast %cst_20 : f32 to vector<8x384xf32>
    %25 = arith.addf %24, %23 : vector<8x384xf32>
    %26 = arith.divf %24, %25 : vector<8x384xf32>
    %27 = vector.extract_strided_slice %26 {offsets = [0, 0], sizes = [8, 128], strides = [1, 1]} : vector<8x384xf32> to vector<8x128xf32>
    %28 = vector.extract_strided_slice %26 {offsets = [0, 128], sizes = [8, 128], strides = [1, 1]} : vector<8x384xf32> to vector<8x128xf32>
    %29 = vector.extract_strided_slice %26 {offsets = [0, 256], sizes = [8, 128], strides = [1, 1]} : vector<8x384xf32> to vector<8x128xf32>
    %30 = vector.extract_strided_slice %20 {offsets = [0, 384], sizes = [8, 128], strides = [1, 1]} : vector<8x512xf32> to vector<8x128xf32>
    %31 = math.tanh %30 : vector<8x128xf32>
    %32 = arith.mulf %28, %16 : vector<8x128xf32>
    %33 = arith.mulf %27, %31 : vector<8x128xf32>
    %34 = arith.addf %32, %33 : vector<8x128xf32>
    %35 = math.tanh %34 : vector<8x128xf32>
    %36 = arith.mulf %29, %35 : vector<8x128xf32>
    %c8 = arith.constant 8 : index
    %c0_21 = arith.constant 0 : index
    %37 = vector.load %arg12[%c8, %c0_21] : memref<64x512xf32, #tpu.memory_space<vmem>>, vector<8x512xf32>
    %c0_22 = arith.constant 0 : index
    %c0_23 = arith.constant 0 : index
    %38 = vector.load %arg3[%c0_22, %c0_23] : memref<128x512xf32, #tpu.memory_space<vmem>>, vector<128x512xf32>
    %cst_24 = arith.constant dense<0.000000e+00> : vector<8x512xf32>
    %39 = tpu.matmul %36, %38, %cst_24 {dimension_numbers = #tpu.dot_dimension_numbers<[1], [0], [0], [1], [0, 0, 1, 1], [], []>} : vector<8x128xf32>, vector<128x512xf32>, vector<8x512xf32> -> vector<8x512xf32>
    %40 = arith.addf %37, %39 : vector<8x512xf32>
    %41 = vector.extract_strided_slice %40 {offsets = [0, 0], sizes = [8, 384], strides = [1, 1]} : vector<8x512xf32> to vector<8x384xf32>
    %42 = arith.negf %41 : vector<8x384xf32>
    %43 = math.exp %42 : vector<8x384xf32>
    %cst_25 = arith.constant 1.000000e+00 : f32
    %44 = vector.broadcast %cst_25 : f32 to vector<8x384xf32>
    %45 = arith.addf %44, %43 : vector<8x384xf32>
    %46 = arith.divf %44, %45 : vector<8x384xf32>
    %47 = vector.extract_strided_slice %46 {offsets = [0, 0], sizes = [8, 128], strides = [1, 1]} : vector<8x384xf32> to vector<8x128xf32>
    %48 = vector.extract_strided_slice %46 {offsets = [0, 128], sizes = [8, 128], strides = [1, 1]} : vector<8x384xf32> to vector<8x128xf32>
    %49 = vector.extract_strided_slice %46 {offsets = [0, 256], sizes = [8, 128], strides = [1, 1]} : vector<8x384xf32> to vector<8x128xf32>
    %50 = vector.extract_strided_slice %40 {offsets = [0, 384], sizes = [8, 128], strides = [1, 1]} : vector<8x512xf32> to vector<8x128xf32>
    %51 = math.tanh %50 : vector<8x128xf32>
    %52 = arith.mulf %48, %34 : vector<8x128xf32>
    %53 = arith.mulf %47, %51 : vector<8x128xf32>
    %54 = arith.addf %52, %53 : vector<8x128xf32>
    %55 = math.tanh %54 : vector<8x128xf32>
    %56 = arith.mulf %49, %55 : vector<8x128xf32>
    %c0_i32_26 = arith.constant 0 : i32
    %c0_i32_27 = arith.constant 0 : i32
    %c0_i32_28 = arith.constant 0 : i32
    %c0_i32_29 = arith.constant 0 : i32
    %57 = tpu.memref_slice %arg4[%c0_i32_26, %c0_i32_28, %c0_i32_29] : memref<2x256x512xf32, #tpu.memory_space<any>> -> memref<1x256x512xf32, #tpu.memory_space<any>>
    %58 = tpu.memref_squeeze %57 : memref<1x256x512xf32, #tpu.memory_space<any>> -> memref<256x512xf32, #tpu.memory_space<any>>
    %59 = tpu.memref_slice %arg11[%c0_i32_27] : memref<2x!tpu.dma_semaphore, #tpu.memory_space<semaphore_mem>> -> memref<1x!tpu.dma_semaphore, #tpu.memory_space<semaphore_mem>>
    %60 = tpu.memref_squeeze %59 : memref<1x!tpu.dma_semaphore, #tpu.memory_space<semaphore_mem>> -> memref<!tpu.dma_semaphore, #tpu.memory_space<semaphore_mem>>
    tpu.wait_dma2 semaphore(%60 : memref<!tpu.dma_semaphore, #tpu.memory_space<semaphore_mem>>) src(%58 : memref<256x512xf32, #tpu.memory_space<any>>) dst(%arg9 : memref<256x512xf32, #tpu.memory_space<vmem>>)
    %61 = tpu.concatenate %36, %16 in 1 : vector<8x128xf32>, vector<8x128xf32> -> vector<8x256xf32>
    %c0_30 = arith.constant 0 : index
    %c0_31 = arith.constant 0 : index
    %62 = vector.load %arg9[%c0_30, %c0_31] : memref<256x512xf32, #tpu.memory_space<vmem>>, vector<256x512xf32>
    %cst_32 = arith.constant dense<0.000000e+00> : vector<8x512xf32>
    %63 = tpu.matmul %61, %62, %cst_32 {dimension_numbers = #tpu.dot_dimension_numbers<[1], [0], [0], [1], [0, 0, 1, 1], [], []>} : vector<8x256xf32>, vector<256x512xf32>, vector<8x512xf32> -> vector<8x512xf32>
    %c1 = arith.constant 1 : index
    %c0_33 = arith.constant 0 : index
    %c0_34 = arith.constant 0 : index
    %64 = vector.load %arg5[%c1, %c0_33, %c0_34] : memref<3x1x512xf32, #tpu.memory_space<vmem>>, vector<1x1x512xf32>
    %65 = vector.shape_cast %64 : vector<1x1x512xf32> to vector<1x512xf32>
    %66 = vector.broadcast %65 : vector<1x512xf32> to vector<8x512xf32>
    %67 = arith.addf %63, %66 : vector<8x512xf32>
    %68 = vector.extract_strided_slice %67 {offsets = [0, 0], sizes = [8, 384], strides = [1, 1]} : vector<8x512xf32> to vector<8x384xf32>
    %69 = arith.negf %68 : vector<8x384xf32>
    %70 = math.exp %69 : vector<8x384xf32>
    %cst_35 = arith.constant 1.000000e+00 : f32
    %71 = vector.broadcast %cst_35 : f32 to vector<8x384xf32>
    %72 = arith.addf %71, %70 : vector<8x384xf32>
    %73 = arith.divf %71, %72 : vector<8x384xf32>
    %74 = vector.extract_strided_slice %73 {offsets = [0, 0], sizes = [8, 128], strides = [1, 1]} : vector<8x384xf32> to vector<8x128xf32>
    %75 = vector.extract_strided_slice %73 {offsets = [0, 128], sizes = [8, 128], strides = [1, 1]} : vector<8x384xf32> to vector<8x128xf32>
    %76 = vector.extract_strided_slice %73 {offsets = [0, 256], sizes = [8, 128], strides = [1, 1]} : vector<8x384xf32> to vector<8x128xf32>
    %77 = vector.extract_strided_slice %67 {offsets = [0, 384], sizes = [8, 128], strides = [1, 1]} : vector<8x512xf32> to vector<8x128xf32>
    %78 = math.tanh %77 : vector<8x128xf32>
    %79 = arith.mulf %75, %16 : vector<8x128xf32>
    %80 = arith.mulf %74, %78 : vector<8x128xf32>
    %81 = arith.addf %79, %80 : vector<8x128xf32>
    %82 = math.tanh %81 : vector<8x128xf32>
    %83 = arith.mulf %76, %82 : vector<8x128xf32>
    %c16 = arith.constant 16 : index
    %c0_36 = arith.constant 0 : index
    %84 = vector.load %arg12[%c16, %c0_36] : memref<64x512xf32, #tpu.memory_space<vmem>>, vector<8x512xf32>
    %c0_37 = arith.constant 0 : index
    %c0_38 = arith.constant 0 : index
    %85 = vector.load %arg3[%c0_37, %c0_38] : memref<128x512xf32, #tpu.memory_space<vmem>>, vector<128x512xf32>
    %cst_39 = arith.constant dense<0.000000e+00> : vector<8x512xf32>
    %86 = tpu.matmul %56, %85, %cst_39 {dimension_numbers = #tpu.dot_dimension_numbers<[1], [0], [0], [1], [0, 0, 1, 1], [], []>} : vector<8x128xf32>, vector<128x512xf32>, vector<8x512xf32> -> vector<8x512xf32>
    %87 = arith.addf %84, %86 : vector<8x512xf32>
    %88 = vector.extract_strided_slice %87 {offsets = [0, 0], sizes = [8, 384], strides = [1, 1]} : vector<8x512xf32> to vector<8x384xf32>
    %89 = arith.negf %88 : vector<8x384xf32>
    %90 = math.exp %89 : vector<8x384xf32>
    %cst_40 = arith.constant 1.000000e+00 : f32
    %91 = vector.broadcast %cst_40 : f32 to vector<8x384xf32>
    %92 = arith.addf %91, %90 : vector<8x384xf32>
    %93 = arith.divf %91, %92 : vector<8x384xf32>
    %94 = vector.extract_strided_slice %93 {offsets = [0, 0], sizes = [8, 128], strides = [1, 1]} : vector<8x384xf32> to vector<8x128xf32>
    %95 = vector.extract_strided_slice %93 {offsets = [0, 128], sizes = [8, 128], strides = [1, 1]} : vector<8x384xf32> to vector<8x128xf32>
    %96 = vector.extract_strided_slice %93 {offsets = [0, 256], sizes = [8, 128], strides = [1, 1]} : vector<8x384xf32> to vector<8x128xf32>
    %97 = vector.extract_strided_slice %87 {offsets = [0, 384], sizes = [8, 128], strides = [1, 1]} : vector<8x512xf32> to vector<8x128xf32>
    %98 = math.tanh %97 : vector<8x128xf32>
    %99 = arith.mulf %95, %54 : vector<8x128xf32>
    %100 = arith.mulf %94, %98 : vector<8x128xf32>
    %101 = arith.addf %99, %100 : vector<8x128xf32>
    %102 = math.tanh %101 : vector<8x128xf32>
    %103 = arith.mulf %96, %102 : vector<8x128xf32>
    %104 = tpu.concatenate %56, %83 in 1 : vector<8x128xf32>, vector<8x128xf32> -> vector<8x256xf32>
    %c0_41 = arith.constant 0 : index
    %c0_42 = arith.constant 0 : index
    %105 = vector.load %arg9[%c0_41, %c0_42] : memref<256x512xf32, #tpu.memory_space<vmem>>, vector<256x512xf32>
    %cst_43 = arith.constant dense<0.000000e+00> : vector<8x512xf32>
    %106 = tpu.matmul %104, %105, %cst_43 {dimension_numbers = #tpu.dot_dimension_numbers<[1], [0], [0], [1], [0, 0, 1, 1], [], []>} : vector<8x256xf32>, vector<256x512xf32>, vector<8x512xf32> -> vector<8x512xf32>
    %c1_44 = arith.constant 1 : index
    %c0_45 = arith.constant 0 : index
    %c0_46 = arith.constant 0 : index
    %107 = vector.load %arg5[%c1_44, %c0_45, %c0_46] : memref<3x1x512xf32, #tpu.memory_space<vmem>>, vector<1x1x512xf32>
    %108 = vector.shape_cast %107 : vector<1x1x512xf32> to vector<1x512xf32>
    %109 = vector.broadcast %108 : vector<1x512xf32> to vector<8x512xf32>
    %110 = arith.addf %106, %109 : vector<8x512xf32>
    %111 = vector.extract_strided_slice %110 {offsets = [0, 0], sizes = [8, 384], strides = [1, 1]} : vector<8x512xf32> to vector<8x384xf32>
    %112 = arith.negf %111 : vector<8x384xf32>
    %113 = math.exp %112 : vector<8x384xf32>
    %cst_47 = arith.constant 1.000000e+00 : f32
    %114 = vector.broadcast %cst_47 : f32 to vector<8x384xf32>
    %115 = arith.addf %114, %113 : vector<8x384xf32>
    %116 = arith.divf %114, %115 : vector<8x384xf32>
    %117 = vector.extract_strided_slice %116 {offsets = [0, 0], sizes = [8, 128], strides = [1, 1]} : vector<8x384xf32> to vector<8x128xf32>
    %118 = vector.extract_strided_slice %116 {offsets = [0, 128], sizes = [8, 128], strides = [1, 1]} : vector<8x384xf32> to vector<8x128xf32>
    %119 = vector.extract_strided_slice %116 {offsets = [0, 256], sizes = [8, 128], strides = [1, 1]} : vector<8x384xf32> to vector<8x128xf32>
    %120 = vector.extract_strided_slice %110 {offsets = [0, 384], sizes = [8, 128], strides = [1, 1]} : vector<8x512xf32> to vector<8x128xf32>
    %121 = math.tanh %120 : vector<8x128xf32>
    %122 = arith.mulf %118, %81 : vector<8x128xf32>
    %123 = arith.mulf %117, %121 : vector<8x128xf32>
    %124 = arith.addf %122, %123 : vector<8x128xf32>
    %125 = math.tanh %124 : vector<8x128xf32>
    %126 = arith.mulf %119, %125 : vector<8x128xf32>
    %c1_i32_48 = arith.constant 1 : i32
    %c1_i32_49 = arith.constant 1 : i32
    %c0_i32_50 = arith.constant 0 : i32
    %c0_i32_51 = arith.constant 0 : i32
    %127 = tpu.memref_slice %arg4[%c1_i32_48, %c0_i32_50, %c0_i32_51] : memref<2x256x512xf32, #tpu.memory_space<any>> -> memref<1x256x512xf32, #tpu.memory_space<any>>
    %128 = tpu.memref_squeeze %127 : memref<1x256x512xf32, #tpu.memory_space<any>> -> memref<256x512xf32, #tpu.memory_space<any>>
    %129 = tpu.memref_slice %arg11[%c1_i32_49] : memref<2x!tpu.dma_semaphore, #tpu.memory_space<semaphore_mem>> -> memref<1x!tpu.dma_semaphore, #tpu.memory_space<semaphore_mem>>
    %130 = tpu.memref_squeeze %129 : memref<1x!tpu.dma_semaphore, #tpu.memory_space<semaphore_mem>> -> memref<!tpu.dma_semaphore, #tpu.memory_space<semaphore_mem>>
    tpu.wait_dma2 semaphore(%130 : memref<!tpu.dma_semaphore, #tpu.memory_space<semaphore_mem>>) src(%128 : memref<256x512xf32, #tpu.memory_space<any>>) dst(%arg10 : memref<256x512xf32, #tpu.memory_space<vmem>>)
    %131 = tpu.concatenate %83, %16 in 1 : vector<8x128xf32>, vector<8x128xf32> -> vector<8x256xf32>
    %c0_52 = arith.constant 0 : index
    %c0_53 = arith.constant 0 : index
    %132 = vector.load %arg10[%c0_52, %c0_53] : memref<256x512xf32, #tpu.memory_space<vmem>>, vector<256x512xf32>
    %cst_54 = arith.constant dense<0.000000e+00> : vector<8x512xf32>
    %133 = tpu.matmul %131, %132, %cst_54 {dimension_numbers = #tpu.dot_dimension_numbers<[1], [0], [0], [1], [0, 0, 1, 1], [], []>} : vector<8x256xf32>, vector<256x512xf32>, vector<8x512xf32> -> vector<8x512xf32>
    %c2 = arith.constant 2 : index
    %c0_55 = arith.constant 0 : index
    %c0_56 = arith.constant 0 : index
    %134 = vector.load %arg5[%c2, %c0_55, %c0_56] : memref<3x1x512xf32, #tpu.memory_space<vmem>>, vector<1x1x512xf32>
    %135 = vector.shape_cast %134 : vector<1x1x512xf32> to vector<1x512xf32>
    %136 = vector.broadcast %135 : vector<1x512xf32> to vector<8x512xf32>
    %137 = arith.addf %133, %136 : vector<8x512xf32>
    %138 = vector.extract_strided_slice %137 {offsets = [0, 0], sizes = [8, 384], strides = [1, 1]} : vector<8x512xf32> to vector<8x384xf32>
    %139 = arith.negf %138 : vector<8x384xf32>
    %140 = math.exp %139 : vector<8x384xf32>
    %cst_57 = arith.constant 1.000000e+00 : f32
    %141 = vector.broadcast %cst_57 : f32 to vector<8x384xf32>
    %142 = arith.addf %141, %140 : vector<8x384xf32>
    %143 = arith.divf %141, %142 : vector<8x384xf32>
    %144 = vector.extract_strided_slice %143 {offsets = [0, 0], sizes = [8, 128], strides = [1, 1]} : vector<8x384xf32> to vector<8x128xf32>
    %145 = vector.extract_strided_slice %143 {offsets = [0, 128], sizes = [8, 128], strides = [1, 1]} : vector<8x384xf32> to vector<8x128xf32>
    %146 = vector.extract_strided_slice %143 {offsets = [0, 256], sizes = [8, 128], strides = [1, 1]} : vector<8x384xf32> to vector<8x128xf32>
    %147 = vector.extract_strided_slice %137 {offsets = [0, 384], sizes = [8, 128], strides = [1, 1]} : vector<8x512xf32> to vector<8x128xf32>
    %148 = math.tanh %147 : vector<8x128xf32>
    %149 = arith.mulf %145, %16 : vector<8x128xf32>
    %150 = arith.mulf %144, %148 : vector<8x128xf32>
    %151 = arith.addf %149, %150 : vector<8x128xf32>
    %152 = math.tanh %151 : vector<8x128xf32>
    %153 = arith.mulf %146, %152 : vector<8x128xf32>
    %c24 = arith.constant 24 : index
    %c0_58 = arith.constant 0 : index
    %154 = vector.load %arg12[%c24, %c0_58] : memref<64x512xf32, #tpu.memory_space<vmem>>, vector<8x512xf32>
    %c0_59 = arith.constant 0 : index
    %c0_60 = arith.constant 0 : index
    %155 = vector.load %arg3[%c0_59, %c0_60] : memref<128x512xf32, #tpu.memory_space<vmem>>, vector<128x512xf32>
    %cst_61 = arith.constant dense<0.000000e+00> : vector<8x512xf32>
    %156 = tpu.matmul %103, %155, %cst_61 {dimension_numbers = #tpu.dot_dimension_numbers<[1], [0], [0], [1], [0, 0, 1, 1], [], []>} : vector<8x128xf32>, vector<128x512xf32>, vector<8x512xf32> -> vector<8x512xf32>
    %157 = arith.addf %154, %156 : vector<8x512xf32>
    %158 = vector.extract_strided_slice %157 {offsets = [0, 0], sizes = [8, 384], strides = [1, 1]} : vector<8x512xf32> to vector<8x384xf32>
    %159 = arith.negf %158 : vector<8x384xf32>
    %160 = math.exp %159 : vector<8x384xf32>
    %cst_62 = arith.constant 1.000000e+00 : f32
    %161 = vector.broadcast %cst_62 : f32 to vector<8x384xf32>
    %162 = arith.addf %161, %160 : vector<8x384xf32>
    %163 = arith.divf %161, %162 : vector<8x384xf32>
    %164 = vector.extract_strided_slice %163 {offsets = [0, 0], sizes = [8, 128], strides = [1, 1]} : vector<8x384xf32> to vector<8x128xf32>
    %165 = vector.extract_strided_slice %163 {offsets = [0, 128], sizes = [8, 128], strides = [1, 1]} : vector<8x384xf32> to vector<8x128xf32>
    %166 = vector.extract_strided_slice %163 {offsets = [0, 256], sizes = [8, 128], strides = [1, 1]} : vector<8x384xf32> to vector<8x128xf32>
    %167 = vector.extract_strided_slice %157 {offsets = [0, 384], sizes = [8, 128], strides = [1, 1]} : vector<8x512xf32> to vector<8x128xf32>
    %168 = math.tanh %167 : vector<8x128xf32>
    %169 = arith.mulf %165, %101 : vector<8x128xf32>
    %170 = arith.mulf %164, %168 : vector<8x128xf32>
    %171 = arith.addf %169, %170 : vector<8x128xf32>
    %172 = math.tanh %171 : vector<8x128xf32>
    %173 = arith.mulf %166, %172 : vector<8x128xf32>
    %174 = tpu.concatenate %103, %126 in 1 : vector<8x128xf32>, vector<8x128xf32> -> vector<8x256xf32>
    %c0_63 = arith.constant 0 : index
    %c0_64 = arith.constant 0 : index
    %175 = vector.load %arg9[%c0_63, %c0_64] : memref<256x512xf32, #tpu.memory_space<vmem>>, vector<256x512xf32>
    %cst_65 = arith.constant dense<0.000000e+00> : vector<8x512xf32>
    %176 = tpu.matmul %174, %175, %cst_65 {dimension_numbers = #tpu.dot_dimension_numbers<[1], [0], [0], [1], [0, 0, 1, 1], [], []>} : vector<8x256xf32>, vector<256x512xf32>, vector<8x512xf32> -> vector<8x512xf32>
    %c1_66 = arith.constant 1 : index
    %c0_67 = arith.constant 0 : index
    %c0_68 = arith.constant 0 : index
    %177 = vector.load %arg5[%c1_66, %c0_67, %c0_68] : memref<3x1x512xf32, #tpu.memory_space<vmem>>, vector<1x1x512xf32>
    %178 = vector.shape_cast %177 : vector<1x1x512xf32> to vector<1x512xf32>
    %179 = vector.broadcast %178 : vector<1x512xf32> to vector<8x512xf32>
    %180 = arith.addf %176, %179 : vector<8x512xf32>
    %181 = vector.extract_strided_slice %180 {offsets = [0, 0], sizes = [8, 384], strides = [1, 1]} : vector<8x512xf32> to vector<8x384xf32>
    %182 = arith.negf %181 : vector<8x384xf32>
    %183 = math.exp %182 : vector<8x384xf32>
    %cst_69 = arith.constant 1.000000e+00 : f32
    %184 = vector.broadcast %cst_69 : f32 to vector<8x384xf32>
    %185 = arith.addf %184, %183 : vector<8x384xf32>
    %186 = arith.divf %184, %185 : vector<8x384xf32>
    %187 = vector.extract_strided_slice %186 {offsets = [0, 0], sizes = [8, 128], strides = [1, 1]} : vector<8x384xf32> to vector<8x128xf32>
    %188 = vector.extract_strided_slice %186 {offsets = [0, 128], sizes = [8, 128], strides = [1, 1]} : vector<8x384xf32> to vector<8x128xf32>
    %189 = vector.extract_strided_slice %186 {offsets = [0, 256], sizes = [8, 128], strides = [1, 1]} : vector<8x384xf32> to vector<8x128xf32>
    %190 = vector.extract_strided_slice %180 {offsets = [0, 384], sizes = [8, 128], strides = [1, 1]} : vector<8x512xf32> to vector<8x128xf32>
    %191 = math.tanh %190 : vector<8x128xf32>
    %192 = arith.mulf %188, %124 : vector<8x128xf32>
    %193 = arith.mulf %187, %191 : vector<8x128xf32>
    %194 = arith.addf %192, %193 : vector<8x128xf32>
    %195 = math.tanh %194 : vector<8x128xf32>
    %196 = arith.mulf %189, %195 : vector<8x128xf32>
    %197 = tpu.concatenate %126, %153 in 1 : vector<8x128xf32>, vector<8x128xf32> -> vector<8x256xf32>
    %c0_70 = arith.constant 0 : index
    %c0_71 = arith.constant 0 : index
    %198 = vector.load %arg10[%c0_70, %c0_71] : memref<256x512xf32, #tpu.memory_space<vmem>>, vector<256x512xf32>
    %cst_72 = arith.constant dense<0.000000e+00> : vector<8x512xf32>
    %199 = tpu.matmul %197, %198, %cst_72 {dimension_numbers = #tpu.dot_dimension_numbers<[1], [0], [0], [1], [0, 0, 1, 1], [], []>} : vector<8x256xf32>, vector<256x512xf32>, vector<8x512xf32> -> vector<8x512xf32>
    %c2_73 = arith.constant 2 : index
    %c0_74 = arith.constant 0 : index
    %c0_75 = arith.constant 0 : index
    %200 = vector.load %arg5[%c2_73, %c0_74, %c0_75] : memref<3x1x512xf32, #tpu.memory_space<vmem>>, vector<1x1x512xf32>
    %201 = vector.shape_cast %200 : vector<1x1x512xf32> to vector<1x512xf32>
    %202 = vector.broadcast %201 : vector<1x512xf32> to vector<8x512xf32>
    %203 = arith.addf %199, %202 : vector<8x512xf32>
    %204 = vector.extract_strided_slice %203 {offsets = [0, 0], sizes = [8, 384], strides = [1, 1]} : vector<8x512xf32> to vector<8x384xf32>
    %205 = arith.negf %204 : vector<8x384xf32>
    %206 = math.exp %205 : vector<8x384xf32>
    %cst_76 = arith.constant 1.000000e+00 : f32
    %207 = vector.broadcast %cst_76 : f32 to vector<8x384xf32>
    %208 = arith.addf %207, %206 : vector<8x384xf32>
    %209 = arith.divf %207, %208 : vector<8x384xf32>
    %210 = vector.extract_strided_slice %209 {offsets = [0, 0], sizes = [8, 128], strides = [1, 1]} : vector<8x384xf32> to vector<8x128xf32>
    %211 = vector.extract_strided_slice %209 {offsets = [0, 128], sizes = [8, 128], strides = [1, 1]} : vector<8x384xf32> to vector<8x128xf32>
    %212 = vector.extract_strided_slice %209 {offsets = [0, 256], sizes = [8, 128], strides = [1, 1]} : vector<8x384xf32> to vector<8x128xf32>
    %213 = vector.extract_strided_slice %203 {offsets = [0, 384], sizes = [8, 128], strides = [1, 1]} : vector<8x512xf32> to vector<8x128xf32>
    %214 = math.tanh %213 : vector<8x128xf32>
    %215 = arith.mulf %211, %151 : vector<8x128xf32>
    %216 = arith.mulf %210, %214 : vector<8x128xf32>
    %217 = arith.addf %215, %216 : vector<8x128xf32>
    %218 = math.tanh %217 : vector<8x128xf32>
    %219 = arith.mulf %212, %218 : vector<8x128xf32>
    %c32 = arith.constant 32 : index
    %c0_77 = arith.constant 0 : index
    %220 = vector.load %arg12[%c32, %c0_77] : memref<64x512xf32, #tpu.memory_space<vmem>>, vector<8x512xf32>
    %c0_78 = arith.constant 0 : index
    %c0_79 = arith.constant 0 : index
    %221 = vector.load %arg3[%c0_78, %c0_79] : memref<128x512xf32, #tpu.memory_space<vmem>>, vector<128x512xf32>
    %cst_80 = arith.constant dense<0.000000e+00> : vector<8x512xf32>
    %222 = tpu.matmul %173, %221, %cst_80 {dimension_numbers = #tpu.dot_dimension_numbers<[1], [0], [0], [1], [0, 0, 1, 1], [], []>} : vector<8x128xf32>, vector<128x512xf32>, vector<8x512xf32> -> vector<8x512xf32>
    %223 = arith.addf %220, %222 : vector<8x512xf32>
    %224 = vector.extract_strided_slice %223 {offsets = [0, 0], sizes = [8, 384], strides = [1, 1]} : vector<8x512xf32> to vector<8x384xf32>
    %225 = arith.negf %224 : vector<8x384xf32>
    %226 = math.exp %225 : vector<8x384xf32>
    %cst_81 = arith.constant 1.000000e+00 : f32
    %227 = vector.broadcast %cst_81 : f32 to vector<8x384xf32>
    %228 = arith.addf %227, %226 : vector<8x384xf32>
    %229 = arith.divf %227, %228 : vector<8x384xf32>
    %230 = vector.extract_strided_slice %229 {offsets = [0, 0], sizes = [8, 128], strides = [1, 1]} : vector<8x384xf32> to vector<8x128xf32>
    %231 = vector.extract_strided_slice %229 {offsets = [0, 128], sizes = [8, 128], strides = [1, 1]} : vector<8x384xf32> to vector<8x128xf32>
    %232 = vector.extract_strided_slice %229 {offsets = [0, 256], sizes = [8, 128], strides = [1, 1]} : vector<8x384xf32> to vector<8x128xf32>
    %233 = vector.extract_strided_slice %223 {offsets = [0, 384], sizes = [8, 128], strides = [1, 1]} : vector<8x512xf32> to vector<8x128xf32>
    %234 = math.tanh %233 : vector<8x128xf32>
    %235 = arith.mulf %231, %171 : vector<8x128xf32>
    %236 = arith.mulf %230, %234 : vector<8x128xf32>
    %237 = arith.addf %235, %236 : vector<8x128xf32>
    %238 = math.tanh %237 : vector<8x128xf32>
    %239 = arith.mulf %232, %238 : vector<8x128xf32>
    %240 = tpu.concatenate %173, %196 in 1 : vector<8x128xf32>, vector<8x128xf32> -> vector<8x256xf32>
    %c0_82 = arith.constant 0 : index
    %c0_83 = arith.constant 0 : index
    %241 = vector.load %arg9[%c0_82, %c0_83] : memref<256x512xf32, #tpu.memory_space<vmem>>, vector<256x512xf32>
    %cst_84 = arith.constant dense<0.000000e+00> : vector<8x512xf32>
    %242 = tpu.matmul %240, %241, %cst_84 {dimension_numbers = #tpu.dot_dimension_numbers<[1], [0], [0], [1], [0, 0, 1, 1], [], []>} : vector<8x256xf32>, vector<256x512xf32>, vector<8x512xf32> -> vector<8x512xf32>
    %c1_85 = arith.constant 1 : index
    %c0_86 = arith.constant 0 : index
    %c0_87 = arith.constant 0 : index
    %243 = vector.load %arg5[%c1_85, %c0_86, %c0_87] : memref<3x1x512xf32, #tpu.memory_space<vmem>>, vector<1x1x512xf32>
    %244 = vector.shape_cast %243 : vector<1x1x512xf32> to vector<1x512xf32>
    %245 = vector.broadcast %244 : vector<1x512xf32> to vector<8x512xf32>
    %246 = arith.addf %242, %245 : vector<8x512xf32>
    %247 = vector.extract_strided_slice %246 {offsets = [0, 0], sizes = [8, 384], strides = [1, 1]} : vector<8x512xf32> to vector<8x384xf32>
    %248 = arith.negf %247 : vector<8x384xf32>
    %249 = math.exp %248 : vector<8x384xf32>
    %cst_88 = arith.constant 1.000000e+00 : f32
    %250 = vector.broadcast %cst_88 : f32 to vector<8x384xf32>
    %251 = arith.addf %250, %249 : vector<8x384xf32>
    %252 = arith.divf %250, %251 : vector<8x384xf32>
    %253 = vector.extract_strided_slice %252 {offsets = [0, 0], sizes = [8, 128], strides = [1, 1]} : vector<8x384xf32> to vector<8x128xf32>
    %254 = vector.extract_strided_slice %252 {offsets = [0, 128], sizes = [8, 128], strides = [1, 1]} : vector<8x384xf32> to vector<8x128xf32>
    %255 = vector.extract_strided_slice %252 {offsets = [0, 256], sizes = [8, 128], strides = [1, 1]} : vector<8x384xf32> to vector<8x128xf32>
    %256 = vector.extract_strided_slice %246 {offsets = [0, 384], sizes = [8, 128], strides = [1, 1]} : vector<8x512xf32> to vector<8x128xf32>
    %257 = math.tanh %256 : vector<8x128xf32>
    %258 = arith.mulf %254, %194 : vector<8x128xf32>
    %259 = arith.mulf %253, %257 : vector<8x128xf32>
    %260 = arith.addf %258, %259 : vector<8x128xf32>
    %261 = math.tanh %260 : vector<8x128xf32>
    %262 = arith.mulf %255, %261 : vector<8x128xf32>
    %263 = tpu.concatenate %196, %219 in 1 : vector<8x128xf32>, vector<8x128xf32> -> vector<8x256xf32>
    %c0_89 = arith.constant 0 : index
    %c0_90 = arith.constant 0 : index
    %264 = vector.load %arg10[%c0_89, %c0_90] : memref<256x512xf32, #tpu.memory_space<vmem>>, vector<256x512xf32>
    %cst_91 = arith.constant dense<0.000000e+00> : vector<8x512xf32>
    %265 = tpu.matmul %263, %264, %cst_91 {dimension_numbers = #tpu.dot_dimension_numbers<[1], [0], [0], [1], [0, 0, 1, 1], [], []>} : vector<8x256xf32>, vector<256x512xf32>, vector<8x512xf32> -> vector<8x512xf32>
    %c2_92 = arith.constant 2 : index
    %c0_93 = arith.constant 0 : index
    %c0_94 = arith.constant 0 : index
    %266 = vector.load %arg5[%c2_92, %c0_93, %c0_94] : memref<3x1x512xf32, #tpu.memory_space<vmem>>, vector<1x1x512xf32>
    %267 = vector.shape_cast %266 : vector<1x1x512xf32> to vector<1x512xf32>
    %268 = vector.broadcast %267 : vector<1x512xf32> to vector<8x512xf32>
    %269 = arith.addf %265, %268 : vector<8x512xf32>
    %270 = vector.extract_strided_slice %269 {offsets = [0, 0], sizes = [8, 384], strides = [1, 1]} : vector<8x512xf32> to vector<8x384xf32>
    %271 = arith.negf %270 : vector<8x384xf32>
    %272 = math.exp %271 : vector<8x384xf32>
    %cst_95 = arith.constant 1.000000e+00 : f32
    %273 = vector.broadcast %cst_95 : f32 to vector<8x384xf32>
    %274 = arith.addf %273, %272 : vector<8x384xf32>
    %275 = arith.divf %273, %274 : vector<8x384xf32>
    %276 = vector.extract_strided_slice %275 {offsets = [0, 0], sizes = [8, 128], strides = [1, 1]} : vector<8x384xf32> to vector<8x128xf32>
    %277 = vector.extract_strided_slice %275 {offsets = [0, 128], sizes = [8, 128], strides = [1, 1]} : vector<8x384xf32> to vector<8x128xf32>
    %278 = vector.extract_strided_slice %275 {offsets = [0, 256], sizes = [8, 128], strides = [1, 1]} : vector<8x384xf32> to vector<8x128xf32>
    %279 = vector.extract_strided_slice %269 {offsets = [0, 384], sizes = [8, 128], strides = [1, 1]} : vector<8x512xf32> to vector<8x128xf32>
    %280 = math.tanh %279 : vector<8x128xf32>
    %281 = arith.mulf %277, %217 : vector<8x128xf32>
    %282 = arith.mulf %276, %280 : vector<8x128xf32>
    %283 = arith.addf %281, %282 : vector<8x128xf32>
    %284 = math.tanh %283 : vector<8x128xf32>
    %285 = arith.mulf %278, %284 : vector<8x128xf32>
    %c40 = arith.constant 40 : index
    %c0_96 = arith.constant 0 : index
    %286 = vector.load %arg12[%c40, %c0_96] : memref<64x512xf32, #tpu.memory_space<vmem>>, vector<8x512xf32>
    %c0_97 = arith.constant 0 : index
    %c0_98 = arith.constant 0 : index
    %287 = vector.load %arg3[%c0_97, %c0_98] : memref<128x512xf32, #tpu.memory_space<vmem>>, vector<128x512xf32>
    %cst_99 = arith.constant dense<0.000000e+00> : vector<8x512xf32>
    %288 = tpu.matmul %239, %287, %cst_99 {dimension_numbers = #tpu.dot_dimension_numbers<[1], [0], [0], [1], [0, 0, 1, 1], [], []>} : vector<8x128xf32>, vector<128x512xf32>, vector<8x512xf32> -> vector<8x512xf32>
    %289 = arith.addf %286, %288 : vector<8x512xf32>
    %290 = vector.extract_strided_slice %289 {offsets = [0, 0], sizes = [8, 384], strides = [1, 1]} : vector<8x512xf32> to vector<8x384xf32>
    %291 = arith.negf %290 : vector<8x384xf32>
    %292 = math.exp %291 : vector<8x384xf32>
    %cst_100 = arith.constant 1.000000e+00 : f32
    %293 = vector.broadcast %cst_100 : f32 to vector<8x384xf32>
    %294 = arith.addf %293, %292 : vector<8x384xf32>
    %295 = arith.divf %293, %294 : vector<8x384xf32>
    %296 = vector.extract_strided_slice %295 {offsets = [0, 0], sizes = [8, 128], strides = [1, 1]} : vector<8x384xf32> to vector<8x128xf32>
    %297 = vector.extract_strided_slice %295 {offsets = [0, 128], sizes = [8, 128], strides = [1, 1]} : vector<8x384xf32> to vector<8x128xf32>
    %298 = vector.extract_strided_slice %295 {offsets = [0, 256], sizes = [8, 128], strides = [1, 1]} : vector<8x384xf32> to vector<8x128xf32>
    %299 = vector.extract_strided_slice %289 {offsets = [0, 384], sizes = [8, 128], strides = [1, 1]} : vector<8x512xf32> to vector<8x128xf32>
    %300 = math.tanh %299 : vector<8x128xf32>
    %301 = arith.mulf %297, %237 : vector<8x128xf32>
    %302 = arith.mulf %296, %300 : vector<8x128xf32>
    %303 = arith.addf %301, %302 : vector<8x128xf32>
    %304 = math.tanh %303 : vector<8x128xf32>
    %305 = arith.mulf %298, %304 : vector<8x128xf32>
    %306 = tpu.concatenate %239, %262 in 1 : vector<8x128xf32>, vector<8x128xf32> -> vector<8x256xf32>
    %c0_101 = arith.constant 0 : index
    %c0_102 = arith.constant 0 : index
    %307 = vector.load %arg9[%c0_101, %c0_102] : memref<256x512xf32, #tpu.memory_space<vmem>>, vector<256x512xf32>
    %cst_103 = arith.constant dense<0.000000e+00> : vector<8x512xf32>
    %308 = tpu.matmul %306, %307, %cst_103 {dimension_numbers = #tpu.dot_dimension_numbers<[1], [0], [0], [1], [0, 0, 1, 1], [], []>} : vector<8x256xf32>, vector<256x512xf32>, vector<8x512xf32> -> vector<8x512xf32>
    %c1_104 = arith.constant 1 : index
    %c0_105 = arith.constant 0 : index
    %c0_106 = arith.constant 0 : index
    %309 = vector.load %arg5[%c1_104, %c0_105, %c0_106] : memref<3x1x512xf32, #tpu.memory_space<vmem>>, vector<1x1x512xf32>
    %310 = vector.shape_cast %309 : vector<1x1x512xf32> to vector<1x512xf32>
    %311 = vector.broadcast %310 : vector<1x512xf32> to vector<8x512xf32>
    %312 = arith.addf %308, %311 : vector<8x512xf32>
    %313 = vector.extract_strided_slice %312 {offsets = [0, 0], sizes = [8, 384], strides = [1, 1]} : vector<8x512xf32> to vector<8x384xf32>
    %314 = arith.negf %313 : vector<8x384xf32>
    %315 = math.exp %314 : vector<8x384xf32>
    %cst_107 = arith.constant 1.000000e+00 : f32
    %316 = vector.broadcast %cst_107 : f32 to vector<8x384xf32>
    %317 = arith.addf %316, %315 : vector<8x384xf32>
    %318 = arith.divf %316, %317 : vector<8x384xf32>
    %319 = vector.extract_strided_slice %318 {offsets = [0, 0], sizes = [8, 128], strides = [1, 1]} : vector<8x384xf32> to vector<8x128xf32>
    %320 = vector.extract_strided_slice %318 {offsets = [0, 128], sizes = [8, 128], strides = [1, 1]} : vector<8x384xf32> to vector<8x128xf32>
    %321 = vector.extract_strided_slice %318 {offsets = [0, 256], sizes = [8, 128], strides = [1, 1]} : vector<8x384xf32> to vector<8x128xf32>
    %322 = vector.extract_strided_slice %312 {offsets = [0, 384], sizes = [8, 128], strides = [1, 1]} : vector<8x512xf32> to vector<8x128xf32>
    %323 = math.tanh %322 : vector<8x128xf32>
    %324 = arith.mulf %320, %260 : vector<8x128xf32>
    %325 = arith.mulf %319, %323 : vector<8x128xf32>
    %326 = arith.addf %324, %325 : vector<8x128xf32>
    %327 = math.tanh %326 : vector<8x128xf32>
    %328 = arith.mulf %321, %327 : vector<8x128xf32>
    %329 = tpu.concatenate %262, %285 in 1 : vector<8x128xf32>, vector<8x128xf32> -> vector<8x256xf32>
    %c0_108 = arith.constant 0 : index
    %c0_109 = arith.constant 0 : index
    %330 = vector.load %arg10[%c0_108, %c0_109] : memref<256x512xf32, #tpu.memory_space<vmem>>, vector<256x512xf32>
    %cst_110 = arith.constant dense<0.000000e+00> : vector<8x512xf32>
    %331 = tpu.matmul %329, %330, %cst_110 {dimension_numbers = #tpu.dot_dimension_numbers<[1], [0], [0], [1], [0, 0, 1, 1], [], []>} : vector<8x256xf32>, vector<256x512xf32>, vector<8x512xf32> -> vector<8x512xf32>
    %c2_111 = arith.constant 2 : index
    %c0_112 = arith.constant 0 : index
    %c0_113 = arith.constant 0 : index
    %332 = vector.load %arg5[%c2_111, %c0_112, %c0_113] : memref<3x1x512xf32, #tpu.memory_space<vmem>>, vector<1x1x512xf32>
    %333 = vector.shape_cast %332 : vector<1x1x512xf32> to vector<1x512xf32>
    %334 = vector.broadcast %333 : vector<1x512xf32> to vector<8x512xf32>
    %335 = arith.addf %331, %334 : vector<8x512xf32>
    %336 = vector.extract_strided_slice %335 {offsets = [0, 0], sizes = [8, 384], strides = [1, 1]} : vector<8x512xf32> to vector<8x384xf32>
    %337 = arith.negf %336 : vector<8x384xf32>
    %338 = math.exp %337 : vector<8x384xf32>
    %cst_114 = arith.constant 1.000000e+00 : f32
    %339 = vector.broadcast %cst_114 : f32 to vector<8x384xf32>
    %340 = arith.addf %339, %338 : vector<8x384xf32>
    %341 = arith.divf %339, %340 : vector<8x384xf32>
    %342 = vector.extract_strided_slice %341 {offsets = [0, 0], sizes = [8, 128], strides = [1, 1]} : vector<8x384xf32> to vector<8x128xf32>
    %343 = vector.extract_strided_slice %341 {offsets = [0, 128], sizes = [8, 128], strides = [1, 1]} : vector<8x384xf32> to vector<8x128xf32>
    %344 = vector.extract_strided_slice %341 {offsets = [0, 256], sizes = [8, 128], strides = [1, 1]} : vector<8x384xf32> to vector<8x128xf32>
    %345 = vector.extract_strided_slice %335 {offsets = [0, 384], sizes = [8, 128], strides = [1, 1]} : vector<8x512xf32> to vector<8x128xf32>
    %346 = math.tanh %345 : vector<8x128xf32>
    %347 = arith.mulf %343, %283 : vector<8x128xf32>
    %348 = arith.mulf %342, %346 : vector<8x128xf32>
    %349 = arith.addf %347, %348 : vector<8x128xf32>
    %350 = math.tanh %349 : vector<8x128xf32>
    %351 = arith.mulf %344, %350 : vector<8x128xf32>
    %c48 = arith.constant 48 : index
    %c0_115 = arith.constant 0 : index
    %352 = vector.load %arg12[%c48, %c0_115] : memref<64x512xf32, #tpu.memory_space<vmem>>, vector<8x512xf32>
    %c0_116 = arith.constant 0 : index
    %c0_117 = arith.constant 0 : index
    %353 = vector.load %arg3[%c0_116, %c0_117] : memref<128x512xf32, #tpu.memory_space<vmem>>, vector<128x512xf32>
    %cst_118 = arith.constant dense<0.000000e+00> : vector<8x512xf32>
    %354 = tpu.matmul %305, %353, %cst_118 {dimension_numbers = #tpu.dot_dimension_numbers<[1], [0], [0], [1], [0, 0, 1, 1], [], []>} : vector<8x128xf32>, vector<128x512xf32>, vector<8x512xf32> -> vector<8x512xf32>
    %355 = arith.addf %352, %354 : vector<8x512xf32>
    %356 = vector.extract_strided_slice %355 {offsets = [0, 0], sizes = [8, 384], strides = [1, 1]} : vector<8x512xf32> to vector<8x384xf32>
    %357 = arith.negf %356 : vector<8x384xf32>
    %358 = math.exp %357 : vector<8x384xf32>
    %cst_119 = arith.constant 1.000000e+00 : f32
    %359 = vector.broadcast %cst_119 : f32 to vector<8x384xf32>
    %360 = arith.addf %359, %358 : vector<8x384xf32>
    %361 = arith.divf %359, %360 : vector<8x384xf32>
    %362 = vector.extract_strided_slice %361 {offsets = [0, 0], sizes = [8, 128], strides = [1, 1]} : vector<8x384xf32> to vector<8x128xf32>
    %363 = vector.extract_strided_slice %361 {offsets = [0, 128], sizes = [8, 128], strides = [1, 1]} : vector<8x384xf32> to vector<8x128xf32>
    %364 = vector.extract_strided_slice %361 {offsets = [0, 256], sizes = [8, 128], strides = [1, 1]} : vector<8x384xf32> to vector<8x128xf32>
    %365 = vector.extract_strided_slice %355 {offsets = [0, 384], sizes = [8, 128], strides = [1, 1]} : vector<8x512xf32> to vector<8x128xf32>
    %366 = math.tanh %365 : vector<8x128xf32>
    %367 = arith.mulf %363, %303 : vector<8x128xf32>
    %368 = arith.mulf %362, %366 : vector<8x128xf32>
    %369 = arith.addf %367, %368 : vector<8x128xf32>
    %370 = math.tanh %369 : vector<8x128xf32>
    %371 = arith.mulf %364, %370 : vector<8x128xf32>
    %372 = tpu.concatenate %305, %328 in 1 : vector<8x128xf32>, vector<8x128xf32> -> vector<8x256xf32>
    %c0_120 = arith.constant 0 : index
    %c0_121 = arith.constant 0 : index
    %373 = vector.load %arg9[%c0_120, %c0_121] : memref<256x512xf32, #tpu.memory_space<vmem>>, vector<256x512xf32>
    %cst_122 = arith.constant dense<0.000000e+00> : vector<8x512xf32>
    %374 = tpu.matmul %372, %373, %cst_122 {dimension_numbers = #tpu.dot_dimension_numbers<[1], [0], [0], [1], [0, 0, 1, 1], [], []>} : vector<8x256xf32>, vector<256x512xf32>, vector<8x512xf32> -> vector<8x512xf32>
    %c1_123 = arith.constant 1 : index
    %c0_124 = arith.constant 0 : index
    %c0_125 = arith.constant 0 : index
    %375 = vector.load %arg5[%c1_123, %c0_124, %c0_125] : memref<3x1x512xf32, #tpu.memory_space<vmem>>, vector<1x1x512xf32>
    %376 = vector.shape_cast %375 : vector<1x1x512xf32> to vector<1x512xf32>
    %377 = vector.broadcast %376 : vector<1x512xf32> to vector<8x512xf32>
    %378 = arith.addf %374, %377 : vector<8x512xf32>
    %379 = vector.extract_strided_slice %378 {offsets = [0, 0], sizes = [8, 384], strides = [1, 1]} : vector<8x512xf32> to vector<8x384xf32>
    %380 = arith.negf %379 : vector<8x384xf32>
    %381 = math.exp %380 : vector<8x384xf32>
    %cst_126 = arith.constant 1.000000e+00 : f32
    %382 = vector.broadcast %cst_126 : f32 to vector<8x384xf32>
    %383 = arith.addf %382, %381 : vector<8x384xf32>
    %384 = arith.divf %382, %383 : vector<8x384xf32>
    %385 = vector.extract_strided_slice %384 {offsets = [0, 0], sizes = [8, 128], strides = [1, 1]} : vector<8x384xf32> to vector<8x128xf32>
    %386 = vector.extract_strided_slice %384 {offsets = [0, 128], sizes = [8, 128], strides = [1, 1]} : vector<8x384xf32> to vector<8x128xf32>
    %387 = vector.extract_strided_slice %384 {offsets = [0, 256], sizes = [8, 128], strides = [1, 1]} : vector<8x384xf32> to vector<8x128xf32>
    %388 = vector.extract_strided_slice %378 {offsets = [0, 384], sizes = [8, 128], strides = [1, 1]} : vector<8x512xf32> to vector<8x128xf32>
    %389 = math.tanh %388 : vector<8x128xf32>
    %390 = arith.mulf %386, %326 : vector<8x128xf32>
    %391 = arith.mulf %385, %389 : vector<8x128xf32>
    %392 = arith.addf %390, %391 : vector<8x128xf32>
    %393 = math.tanh %392 : vector<8x128xf32>
    %394 = arith.mulf %387, %393 : vector<8x128xf32>
    %395 = tpu.concatenate %328, %351 in 1 : vector<8x128xf32>, vector<8x128xf32> -> vector<8x256xf32>
    %c0_127 = arith.constant 0 : index
    %c0_128 = arith.constant 0 : index
    %396 = vector.load %arg10[%c0_127, %c0_128] : memref<256x512xf32, #tpu.memory_space<vmem>>, vector<256x512xf32>
    %cst_129 = arith.constant dense<0.000000e+00> : vector<8x512xf32>
    %397 = tpu.matmul %395, %396, %cst_129 {dimension_numbers = #tpu.dot_dimension_numbers<[1], [0], [0], [1], [0, 0, 1, 1], [], []>} : vector<8x256xf32>, vector<256x512xf32>, vector<8x512xf32> -> vector<8x512xf32>
    %c2_130 = arith.constant 2 : index
    %c0_131 = arith.constant 0 : index
    %c0_132 = arith.constant 0 : index
    %398 = vector.load %arg5[%c2_130, %c0_131, %c0_132] : memref<3x1x512xf32, #tpu.memory_space<vmem>>, vector<1x1x512xf32>
    %399 = vector.shape_cast %398 : vector<1x1x512xf32> to vector<1x512xf32>
    %400 = vector.broadcast %399 : vector<1x512xf32> to vector<8x512xf32>
    %401 = arith.addf %397, %400 : vector<8x512xf32>
    %402 = vector.extract_strided_slice %401 {offsets = [0, 0], sizes = [8, 384], strides = [1, 1]} : vector<8x512xf32> to vector<8x384xf32>
    %403 = arith.negf %402 : vector<8x384xf32>
    %404 = math.exp %403 : vector<8x384xf32>
    %cst_133 = arith.constant 1.000000e+00 : f32
    %405 = vector.broadcast %cst_133 : f32 to vector<8x384xf32>
    %406 = arith.addf %405, %404 : vector<8x384xf32>
    %407 = arith.divf %405, %406 : vector<8x384xf32>
    %408 = vector.extract_strided_slice %407 {offsets = [0, 0], sizes = [8, 128], strides = [1, 1]} : vector<8x384xf32> to vector<8x128xf32>
    %409 = vector.extract_strided_slice %407 {offsets = [0, 128], sizes = [8, 128], strides = [1, 1]} : vector<8x384xf32> to vector<8x128xf32>
    %410 = vector.extract_strided_slice %407 {offsets = [0, 256], sizes = [8, 128], strides = [1, 1]} : vector<8x384xf32> to vector<8x128xf32>
    %411 = vector.extract_strided_slice %401 {offsets = [0, 384], sizes = [8, 128], strides = [1, 1]} : vector<8x512xf32> to vector<8x128xf32>
    %412 = math.tanh %411 : vector<8x128xf32>
    %413 = arith.mulf %409, %349 : vector<8x128xf32>
    %414 = arith.mulf %408, %412 : vector<8x128xf32>
    %415 = arith.addf %413, %414 : vector<8x128xf32>
    %416 = math.tanh %415 : vector<8x128xf32>
    %417 = arith.mulf %410, %416 : vector<8x128xf32>
    %c56 = arith.constant 56 : index
    %c0_134 = arith.constant 0 : index
    %418 = vector.load %arg12[%c56, %c0_134] : memref<64x512xf32, #tpu.memory_space<vmem>>, vector<8x512xf32>
    %c0_135 = arith.constant 0 : index
    %c0_136 = arith.constant 0 : index
    %419 = vector.load %arg3[%c0_135, %c0_136] : memref<128x512xf32, #tpu.memory_space<vmem>>, vector<128x512xf32>
    %cst_137 = arith.constant dense<0.000000e+00> : vector<8x512xf32>
    %420 = tpu.matmul %371, %419, %cst_137 {dimension_numbers = #tpu.dot_dimension_numbers<[1], [0], [0], [1], [0, 0, 1, 1], [], []>} : vector<8x128xf32>, vector<128x512xf32>, vector<8x512xf32> -> vector<8x512xf32>
    %421 = arith.addf %418, %420 : vector<8x512xf32>
    %422 = vector.extract_strided_slice %421 {offsets = [0, 0], sizes = [8, 384], strides = [1, 1]} : vector<8x512xf32> to vector<8x384xf32>
    %423 = arith.negf %422 : vector<8x384xf32>
    %424 = math.exp %423 : vector<8x384xf32>
    %cst_138 = arith.constant 1.000000e+00 : f32
    %425 = vector.broadcast %cst_138 : f32 to vector<8x384xf32>
    %426 = arith.addf %425, %424 : vector<8x384xf32>
    %427 = arith.divf %425, %426 : vector<8x384xf32>
    %428 = vector.extract_strided_slice %427 {offsets = [0, 0], sizes = [8, 128], strides = [1, 1]} : vector<8x384xf32> to vector<8x128xf32>
    %429 = vector.extract_strided_slice %427 {offsets = [0, 128], sizes = [8, 128], strides = [1, 1]} : vector<8x384xf32> to vector<8x128xf32>
    %430 = vector.extract_strided_slice %427 {offsets = [0, 256], sizes = [8, 128], strides = [1, 1]} : vector<8x384xf32> to vector<8x128xf32>
    %431 = vector.extract_strided_slice %421 {offsets = [0, 384], sizes = [8, 128], strides = [1, 1]} : vector<8x512xf32> to vector<8x128xf32>
    %432 = math.tanh %431 : vector<8x128xf32>
    %433 = arith.mulf %429, %369 : vector<8x128xf32>
    %434 = arith.mulf %428, %432 : vector<8x128xf32>
    %435 = arith.addf %433, %434 : vector<8x128xf32>
    %436 = math.tanh %435 : vector<8x128xf32>
    %437 = arith.mulf %430, %436 : vector<8x128xf32>
    %438 = tpu.concatenate %371, %394 in 1 : vector<8x128xf32>, vector<8x128xf32> -> vector<8x256xf32>
    %c0_139 = arith.constant 0 : index
    %c0_140 = arith.constant 0 : index
    %439 = vector.load %arg9[%c0_139, %c0_140] : memref<256x512xf32, #tpu.memory_space<vmem>>, vector<256x512xf32>
    %cst_141 = arith.constant dense<0.000000e+00> : vector<8x512xf32>
    %440 = tpu.matmul %438, %439, %cst_141 {dimension_numbers = #tpu.dot_dimension_numbers<[1], [0], [0], [1], [0, 0, 1, 1], [], []>} : vector<8x256xf32>, vector<256x512xf32>, vector<8x512xf32> -> vector<8x512xf32>
    %c1_142 = arith.constant 1 : index
    %c0_143 = arith.constant 0 : index
    %c0_144 = arith.constant 0 : index
    %441 = vector.load %arg5[%c1_142, %c0_143, %c0_144] : memref<3x1x512xf32, #tpu.memory_space<vmem>>, vector<1x1x512xf32>
    %442 = vector.shape_cast %441 : vector<1x1x512xf32> to vector<1x512xf32>
    %443 = vector.broadcast %442 : vector<1x512xf32> to vector<8x512xf32>
    %444 = arith.addf %440, %443 : vector<8x512xf32>
    %445 = vector.extract_strided_slice %444 {offsets = [0, 0], sizes = [8, 384], strides = [1, 1]} : vector<8x512xf32> to vector<8x384xf32>
    %446 = arith.negf %445 : vector<8x384xf32>
    %447 = math.exp %446 : vector<8x384xf32>
    %cst_145 = arith.constant 1.000000e+00 : f32
    %448 = vector.broadcast %cst_145 : f32 to vector<8x384xf32>
    %449 = arith.addf %448, %447 : vector<8x384xf32>
    %450 = arith.divf %448, %449 : vector<8x384xf32>
    %451 = vector.extract_strided_slice %450 {offsets = [0, 0], sizes = [8, 128], strides = [1, 1]} : vector<8x384xf32> to vector<8x128xf32>
    %452 = vector.extract_strided_slice %450 {offsets = [0, 128], sizes = [8, 128], strides = [1, 1]} : vector<8x384xf32> to vector<8x128xf32>
    %453 = vector.extract_strided_slice %450 {offsets = [0, 256], sizes = [8, 128], strides = [1, 1]} : vector<8x384xf32> to vector<8x128xf32>
    %454 = vector.extract_strided_slice %444 {offsets = [0, 384], sizes = [8, 128], strides = [1, 1]} : vector<8x512xf32> to vector<8x128xf32>
    %455 = math.tanh %454 : vector<8x128xf32>
    %456 = arith.mulf %452, %392 : vector<8x128xf32>
    %457 = arith.mulf %451, %455 : vector<8x128xf32>
    %458 = arith.addf %456, %457 : vector<8x128xf32>
    %459 = math.tanh %458 : vector<8x128xf32>
    %460 = arith.mulf %453, %459 : vector<8x128xf32>
    %461 = tpu.concatenate %394, %417 in 1 : vector<8x128xf32>, vector<8x128xf32> -> vector<8x256xf32>
    %c0_146 = arith.constant 0 : index
    %c0_147 = arith.constant 0 : index
    %462 = vector.load %arg10[%c0_146, %c0_147] : memref<256x512xf32, #tpu.memory_space<vmem>>, vector<256x512xf32>
    %cst_148 = arith.constant dense<0.000000e+00> : vector<8x512xf32>
    %463 = tpu.matmul %461, %462, %cst_148 {dimension_numbers = #tpu.dot_dimension_numbers<[1], [0], [0], [1], [0, 0, 1, 1], [], []>} : vector<8x256xf32>, vector<256x512xf32>, vector<8x512xf32> -> vector<8x512xf32>
    %c2_149 = arith.constant 2 : index
    %c0_150 = arith.constant 0 : index
    %c0_151 = arith.constant 0 : index
    %464 = vector.load %arg5[%c2_149, %c0_150, %c0_151] : memref<3x1x512xf32, #tpu.memory_space<vmem>>, vector<1x1x512xf32>
    %465 = vector.shape_cast %464 : vector<1x1x512xf32> to vector<1x512xf32>
    %466 = vector.broadcast %465 : vector<1x512xf32> to vector<8x512xf32>
    %467 = arith.addf %463, %466 : vector<8x512xf32>
    %468 = vector.extract_strided_slice %467 {offsets = [0, 0], sizes = [8, 384], strides = [1, 1]} : vector<8x512xf32> to vector<8x384xf32>
    %469 = arith.negf %468 : vector<8x384xf32>
    %470 = math.exp %469 : vector<8x384xf32>
    %cst_152 = arith.constant 1.000000e+00 : f32
    %471 = vector.broadcast %cst_152 : f32 to vector<8x384xf32>
    %472 = arith.addf %471, %470 : vector<8x384xf32>
    %473 = arith.divf %471, %472 : vector<8x384xf32>
    %474 = vector.extract_strided_slice %473 {offsets = [0, 0], sizes = [8, 128], strides = [1, 1]} : vector<8x384xf32> to vector<8x128xf32>
    %475 = vector.extract_strided_slice %473 {offsets = [0, 128], sizes = [8, 128], strides = [1, 1]} : vector<8x384xf32> to vector<8x128xf32>
    %476 = vector.extract_strided_slice %473 {offsets = [0, 256], sizes = [8, 128], strides = [1, 1]} : vector<8x384xf32> to vector<8x128xf32>
    %477 = vector.extract_strided_slice %467 {offsets = [0, 384], sizes = [8, 128], strides = [1, 1]} : vector<8x512xf32> to vector<8x128xf32>
    %478 = math.tanh %477 : vector<8x128xf32>
    %479 = arith.mulf %475, %415 : vector<8x128xf32>
    %480 = arith.mulf %474, %478 : vector<8x128xf32>
    %481 = arith.addf %479, %480 : vector<8x128xf32>
    %482 = math.tanh %481 : vector<8x128xf32>
    %483 = arith.mulf %476, %482 : vector<8x128xf32>
    %484 = tpu.concatenate %437, %460 in 1 : vector<8x128xf32>, vector<8x128xf32> -> vector<8x256xf32>
    %c0_153 = arith.constant 0 : index
    %c0_154 = arith.constant 0 : index
    %485 = vector.load %arg9[%c0_153, %c0_154] : memref<256x512xf32, #tpu.memory_space<vmem>>, vector<256x512xf32>
    %cst_155 = arith.constant dense<0.000000e+00> : vector<8x512xf32>
    %486 = tpu.matmul %484, %485, %cst_155 {dimension_numbers = #tpu.dot_dimension_numbers<[1], [0], [0], [1], [0, 0, 1, 1], [], []>} : vector<8x256xf32>, vector<256x512xf32>, vector<8x512xf32> -> vector<8x512xf32>
    %c1_156 = arith.constant 1 : index
    %c0_157 = arith.constant 0 : index
    %c0_158 = arith.constant 0 : index
    %487 = vector.load %arg5[%c1_156, %c0_157, %c0_158] : memref<3x1x512xf32, #tpu.memory_space<vmem>>, vector<1x1x512xf32>
    %488 = vector.shape_cast %487 : vector<1x1x512xf32> to vector<1x512xf32>
    %489 = vector.broadcast %488 : vector<1x512xf32> to vector<8x512xf32>
    %490 = arith.addf %486, %489 : vector<8x512xf32>
    %491 = vector.extract_strided_slice %490 {offsets = [0, 0], sizes = [8, 384], strides = [1, 1]} : vector<8x512xf32> to vector<8x384xf32>
    %492 = arith.negf %491 : vector<8x384xf32>
    %493 = math.exp %492 : vector<8x384xf32>
    %cst_159 = arith.constant 1.000000e+00 : f32
    %494 = vector.broadcast %cst_159 : f32 to vector<8x384xf32>
    %495 = arith.addf %494, %493 : vector<8x384xf32>
    %496 = arith.divf %494, %495 : vector<8x384xf32>
    %497 = vector.extract_strided_slice %496 {offsets = [0, 0], sizes = [8, 128], strides = [1, 1]} : vector<8x384xf32> to vector<8x128xf32>
    %498 = vector.extract_strided_slice %496 {offsets = [0, 128], sizes = [8, 128], strides = [1, 1]} : vector<8x384xf32> to vector<8x128xf32>
    %499 = vector.extract_strided_slice %496 {offsets = [0, 256], sizes = [8, 128], strides = [1, 1]} : vector<8x384xf32> to vector<8x128xf32>
    %500 = vector.extract_strided_slice %490 {offsets = [0, 384], sizes = [8, 128], strides = [1, 1]} : vector<8x512xf32> to vector<8x128xf32>
    %501 = math.tanh %500 : vector<8x128xf32>
    %502 = arith.mulf %498, %458 : vector<8x128xf32>
    %503 = arith.mulf %497, %501 : vector<8x128xf32>
    %504 = arith.addf %502, %503 : vector<8x128xf32>
    %505 = math.tanh %504 : vector<8x128xf32>
    %506 = arith.mulf %499, %505 : vector<8x128xf32>
    %507 = tpu.concatenate %460, %483 in 1 : vector<8x128xf32>, vector<8x128xf32> -> vector<8x256xf32>
    %c0_160 = arith.constant 0 : index
    %c0_161 = arith.constant 0 : index
    %508 = vector.load %arg10[%c0_160, %c0_161] : memref<256x512xf32, #tpu.memory_space<vmem>>, vector<256x512xf32>
    %cst_162 = arith.constant dense<0.000000e+00> : vector<8x512xf32>
    %509 = tpu.matmul %507, %508, %cst_162 {dimension_numbers = #tpu.dot_dimension_numbers<[1], [0], [0], [1], [0, 0, 1, 1], [], []>} : vector<8x256xf32>, vector<256x512xf32>, vector<8x512xf32> -> vector<8x512xf32>
    %c2_163 = arith.constant 2 : index
    %c0_164 = arith.constant 0 : index
    %c0_165 = arith.constant 0 : index
    %510 = vector.load %arg5[%c2_163, %c0_164, %c0_165] : memref<3x1x512xf32, #tpu.memory_space<vmem>>, vector<1x1x512xf32>
    %511 = vector.shape_cast %510 : vector<1x1x512xf32> to vector<1x512xf32>
    %512 = vector.broadcast %511 : vector<1x512xf32> to vector<8x512xf32>
    %513 = arith.addf %509, %512 : vector<8x512xf32>
    %514 = vector.extract_strided_slice %513 {offsets = [0, 0], sizes = [8, 384], strides = [1, 1]} : vector<8x512xf32> to vector<8x384xf32>
    %515 = arith.negf %514 : vector<8x384xf32>
    %516 = math.exp %515 : vector<8x384xf32>
    %cst_166 = arith.constant 1.000000e+00 : f32
    %517 = vector.broadcast %cst_166 : f32 to vector<8x384xf32>
    %518 = arith.addf %517, %516 : vector<8x384xf32>
    %519 = arith.divf %517, %518 : vector<8x384xf32>
    %520 = vector.extract_strided_slice %519 {offsets = [0, 0], sizes = [8, 128], strides = [1, 1]} : vector<8x384xf32> to vector<8x128xf32>
    %521 = vector.extract_strided_slice %519 {offsets = [0, 128], sizes = [8, 128], strides = [1, 1]} : vector<8x384xf32> to vector<8x128xf32>
    %522 = vector.extract_strided_slice %519 {offsets = [0, 256], sizes = [8, 128], strides = [1, 1]} : vector<8x384xf32> to vector<8x128xf32>
    %523 = vector.extract_strided_slice %513 {offsets = [0, 384], sizes = [8, 128], strides = [1, 1]} : vector<8x512xf32> to vector<8x128xf32>
    %524 = math.tanh %523 : vector<8x128xf32>
    %525 = arith.mulf %521, %481 : vector<8x128xf32>
    %526 = arith.mulf %520, %524 : vector<8x128xf32>
    %527 = arith.addf %525, %526 : vector<8x128xf32>
    %528 = math.tanh %527 : vector<8x128xf32>
    %529 = arith.mulf %522, %528 : vector<8x128xf32>
    %530 = tpu.concatenate %506, %529 in 1 : vector<8x128xf32>, vector<8x128xf32> -> vector<8x256xf32>
    %c0_167 = arith.constant 0 : index
    %c0_168 = arith.constant 0 : index
    %531 = vector.load %arg10[%c0_167, %c0_168] : memref<256x512xf32, #tpu.memory_space<vmem>>, vector<256x512xf32>
    %cst_169 = arith.constant dense<0.000000e+00> : vector<8x512xf32>
    %532 = tpu.matmul %530, %531, %cst_169 {dimension_numbers = #tpu.dot_dimension_numbers<[1], [0], [0], [1], [0, 0, 1, 1], [], []>} : vector<8x256xf32>, vector<256x512xf32>, vector<8x512xf32> -> vector<8x512xf32>
    %c2_170 = arith.constant 2 : index
    %c0_171 = arith.constant 0 : index
    %c0_172 = arith.constant 0 : index
    %533 = vector.load %arg5[%c2_170, %c0_171, %c0_172] : memref<3x1x512xf32, #tpu.memory_space<vmem>>, vector<1x1x512xf32>
    %534 = vector.shape_cast %533 : vector<1x1x512xf32> to vector<1x512xf32>
    %535 = vector.broadcast %534 : vector<1x512xf32> to vector<8x512xf32>
    %536 = arith.addf %532, %535 : vector<8x512xf32>
    %537 = vector.extract_strided_slice %536 {offsets = [0, 0], sizes = [8, 384], strides = [1, 1]} : vector<8x512xf32> to vector<8x384xf32>
    %538 = arith.negf %537 : vector<8x384xf32>
    %539 = math.exp %538 : vector<8x384xf32>
    %cst_173 = arith.constant 1.000000e+00 : f32
    %540 = vector.broadcast %cst_173 : f32 to vector<8x384xf32>
    %541 = arith.addf %540, %539 : vector<8x384xf32>
    %542 = arith.divf %540, %541 : vector<8x384xf32>
    %543 = vector.extract_strided_slice %542 {offsets = [0, 0], sizes = [8, 128], strides = [1, 1]} : vector<8x384xf32> to vector<8x128xf32>
    %544 = vector.extract_strided_slice %542 {offsets = [0, 128], sizes = [8, 128], strides = [1, 1]} : vector<8x384xf32> to vector<8x128xf32>
    %545 = vector.extract_strided_slice %542 {offsets = [0, 256], sizes = [8, 128], strides = [1, 1]} : vector<8x384xf32> to vector<8x128xf32>
    %546 = vector.extract_strided_slice %536 {offsets = [0, 384], sizes = [8, 128], strides = [1, 1]} : vector<8x512xf32> to vector<8x128xf32>
    %547 = math.tanh %546 : vector<8x128xf32>
    %548 = arith.mulf %544, %527 : vector<8x128xf32>
    %549 = arith.mulf %543, %547 : vector<8x128xf32>
    %550 = arith.addf %548, %549 : vector<8x128xf32>
    %551 = math.tanh %550 : vector<8x128xf32>
    %552 = arith.mulf %545, %551 : vector<8x128xf32>
    %c0_174 = arith.constant 0 : index
    %c0_175 = arith.constant 0 : index
    %553 = vector.load %arg6[%c0_174, %c0_175] : memref<1x128xf32, #tpu.memory_space<vmem>>, vector<1x128xf32>
    %554 = vector.broadcast %553 : vector<1x128xf32> to vector<8x128xf32>
    %555 = arith.mulf %552, %554 : vector<8x128xf32>
    %cst_176 = arith.constant dense<0.000000e+00> : vector<8xf32>
    %556 = vector.multi_reduction <add>, %555, %cst_176 [1] : vector<8x128xf32> to vector<8xf32>
    %557 = vector.shape_cast %556 : vector<8xf32> to vector<8x1xf32>
    %c0_177 = arith.constant 0 : index
    %c0_178 = arith.constant 0 : index
    %558 = memref.load %arg7[%c0_177, %c0_178] : memref<1x1xf32, #tpu.memory_space<smem>>
    %559 = vector.broadcast %558 : f32 to vector<8x1xf32>
    %560 = arith.addf %557, %559 : vector<8x1xf32>
    %561 = vector.shape_cast %560 : vector<8x1xf32> to vector<8x1xf32>
    %562 = vector.broadcast %561 : vector<8x1xf32> to vector<8x128xf32>
    %c0_179 = arith.constant 0 : index
    %c0_180 = arith.constant 0 : index
    %563 = vector.load %arg8[%c0_179, %c0_180] : memref<8x128xf32, #tpu.memory_space<vmem>>, vector<8x128xf32>
    tpu.vector_store %arg8[%c0_179, %c0_180], %562 {strides = array<i32>} : memref<8x128xf32, #tpu.memory_space<vmem>>, vector<8x128xf32>,
    return
  }
  func.func @transform_0(%arg0: i32) -> (i32, i32) {
    %c0_i32 = arith.constant 0 : i32
    %c0_i32_0 = arith.constant 0 : i32
    %c0_i32_1 = arith.constant 0 : i32
    return %c0_i32, %c0_i32_0 : i32, i32
  }
  func.func @transform_1(%arg0: i32) -> (i32, i32) {
    %c0_i32 = arith.constant 0 : i32
    %c0_i32_0 = arith.constant 0 : i32
    %c0_i32_1 = arith.constant 0 : i32
    return %c0_i32, %c0_i32_0 : i32, i32
  }
  func.func @transform_2(%arg0: i32) -> (i32, i32) {
    %c0_i32 = arith.constant 0 : i32
    %c0_i32_0 = arith.constant 0 : i32
    %c0_i32_1 = arith.constant 0 : i32
    return %c0_i32, %c0_i32_0 : i32, i32
  }
  func.func @transform_4(%arg0: i32) -> (i32, i32, i32) {
    %c0_i32 = arith.constant 0 : i32
    %c0_i32_0 = arith.constant 0 : i32
    %c0_i32_1 = arith.constant 0 : i32
    %c0_i32_2 = arith.constant 0 : i32
    return %c0_i32, %c0_i32_0, %c0_i32_1 : i32, i32, i32
  }
  func.func @transform_5(%arg0: i32) -> (i32, i32) {
    %c0_i32 = arith.constant 0 : i32
    %c0_i32_0 = arith.constant 0 : i32
    %c0_i32_1 = arith.constant 0 : i32
    return %c0_i32, %c0_i32_0 : i32, i32
  }
  func.func @transform_6(%arg0: i32) -> (i32, i32) {
    %c0_i32 = arith.constant 0 : i32
    %c0_i32_0 = arith.constant 0 : i32
    %c0_i32_1 = arith.constant 0 : i32
    return %c0_i32, %c0_i32_0 : i32, i32
  }
  func.func @transform_7(%arg0: i32) -> (i32, i32) {
    %c0_i32 = arith.constant 0 : i32
    %c0_i32_0 = arith.constant 0 : i32
    %c0_i32_1 = arith.constant 0 : i32
    return %c0_i32, %c0_i32_0 : i32, i32
  }
}

</mosaic_0001>

<llo_original>
// kernel: model_forward.1
$region0: #{model_forward.1}
  #allocation0 [shape = 'u32[]', space=smem, size = 0x4, offset = 0x4, fixed_abs, tag = 'smem constant byte address 0x4 - core index']
  #allocation1 [shape = 'u32[144,128]{1,0:T(1,128)}', space=vmem, size = 0x12000, scoped, tag = 'internal scratch']
  #allocation2 [shape = 'f32[256,512]{1,0:T(8,128)}', space=vmem, size = 0x80000, scoped, tag = 'scratch operand']
  #allocation3 [shape = 'f32[256,512]{1,0:T(8,128)}', space=vmem, size = 0x80000, scoped, tag = 'scratch operand']
  #allocation4 [shape = 's32[2]{0}', space=sflag, size = 0x8, scoped, tag = 'scratch operand']
  #allocation5 [shape = 'f32[64,512]{1,0:T(8,128)}', space=vmem, size = 0x20000, scoped, tag = 'scratch operand']
  #allocation6 [shape = 'f32[1,1]{1,0:T(1,128)S(6)}', space=smem, size = 0x200, scoped, tag = 'scoped memory for model_forward.1']
  #allocation9 [shape = 's32[]', space=sflag, size = 0x4, offset = 0, fixed_abs, tag = 'sflag constant byte address 0x0 - dummy sync flag']
  #allocation10 [shape = 's32[]', space=sflag, size = 0x4, offset = 0, fixed_abs, tag = 'sflag constant byte address 0x0 - dummy sync flag']
  #allocation11 [shape = 'u32[]', space=smem, size = 0x4, offset = 0x44, fixed_abs, tag = 'smem constant byte address 0x44 - assertion arg 0']
  #allocation12 [shape = 'u32[]', space=smem, size = 0x4, offset = 0x48, fixed_abs, tag = 'smem constant byte address 0x48 - assertion arg 1']
  #allocation13 [shape = 's32[]', space=sflag, size = 0x4, offset = 0, fixed_abs, tag = 'sflag constant byte address 0x0 - dummy sync flag']
  #allocation14 [shape = 's32[]', space=sflag, size = 0x4, offset = 0, fixed_abs, tag = 'sflag constant byte address 0x0 - dummy sync flag']
  %s0 = inlined_call_operand.vmem [shape: f32[64,8], index: 0, kind: input, shape index: {}]
  %s1 = inlined_call_operand.vmem [shape: f32[8,512], index: 1, kind: input, shape index: {}]
  %s2 = inlined_call_operand.hbm [shape: f32[128,512], index: 2, kind: input, shape index: {}]
  %s3 = inlined_call_operand.hbm [shape: f32[2,256,512], index: 3, kind: input, shape index: {}]
  %s4 = inlined_call_operand.vmem [shape: f32[3,1,512], index: 4, kind: input, shape index: {}]
  %s5 = inlined_call_operand.vmem [shape: f32[1,128], index: 5, kind: input, shape index: {}]
  %s6 = inlined_call_operand.<no memory space> [shape: f32[1,1], index: 6, kind: input, shape index: {}]
  %s7 = inlined_call_operand.vmem [shape: f32[8,128], index: 7, kind: output, shape index: {}]
  %s8 = sld [smem:[#allocation0]]
  $region46: #{model_forward.1} parent=0
    _
  %s10 = ssub.s32 1, %s8
  %s11 = scalar_select 0, %s10, %s8
  %12 = sst [smem:[#allocation6]] %s6
  $region1: #{model_forward.1} parent=0
    #allocation7 [shape = 'u8[262144]{0}', space=vmem, size = 0x40000, scoped, tag = 'input window, operand 2, single buffered']
    #allocation8 [shape = 's32[1]{0}', space=sflag, size = 0x4, scoped, tag = 'scoped memory for model_forward.1']
    %13 = vsyncpa [#allocation8], 0
    // Predicated region
    $region2: #{model_forward.1} parent=1 // pred_check
      _
    $region3: #{model_forward.1} parent=1 // pred_check_branch
      %15 = sbr.rel (0) target = $region5
    $region4: #{model_forward.1} parent=1 // pred_region
      _
    $region5: #{model_forward.1} parent=1 // pred_fallthru
      _
    // Predicated region
    $region6: #{model_forward.1} parent=1 // pred_check
      _
    $region7: #{model_forward.1} parent=1 // pred_check_branch
      %17 = sbr.rel (0) target = $region9
    $region8: #{model_forward.1} parent=1 // pred_region
      _
    $region9: #{model_forward.1} parent=1 // pred_fallthru
      _
    // Predicated region
    $region10: #{model_forward.1} parent=1 // pred_check
      _
    $region11: #{model_forward.1} parent=1 // pred_check_branch
      %19 = sbr.rel (0) target = $region13
    $region12: #{model_forward.1} parent=1 // pred_region
      %s21 = ssub.s32 8192, 8192
      %22 = vsyncadd [#allocation8], %s21
      %s23 = sshll.u32 [#allocation7], 4
      %s24 = int_to_ptr.vmem [resolvable:$true] %s23
      %29 = dma.hbm_to_vmem [thread:$0]  %s2, 8192, %s24, [#allocation8], 512, 512, 32
    $region13: #{model_forward.1} parent=1 // pred_fallthru
      _
    // Predicated region
    $region14: #{model_forward.1} parent=1 // pred_check
      _
    $region15: #{model_forward.1} parent=1 // pred_check_branch
      %31 = sbr.rel (0) target = $region17
    $region16: #{model_forward.1} parent=1 // pred_region
      _
    $region17: #{model_forward.1} parent=1 // pred_fallthru
      _
    // Predicated region
    $region18: #{model_forward.1} parent=1 // pred_check
      _
    $region19: #{model_forward.1} parent=1 // pred_check_branch
      %33 = sbr.rel (0) target = $region21
    $region20: #{model_forward.1} parent=1 // pred_region
      _
    $region21: #{model_forward.1} parent=1 // pred_fallthru
      _
    // Predicated region
    $region22: #{model_forward.1} parent=1 // pred_check
      _
    $region23: #{model_forward.1} parent=1 // pred_check_branch
      %35 = sbr.rel (0) target = $region25
    $region24: #{model_forward.1} parent=1 // pred_region
      _
    $region25: #{model_forward.1} parent=1 // pred_fallthru
      _
    // Predicated region
    $region26: #{model_forward.1} parent=1 // pred_check
      _
    $region27: #{model_forward.1} parent=1 // pred_check_branch
      %37 = sbr.rel (0) target = $region29
    $region28: #{model_forward.1} parent=1 // pred_region
      %38 = dma.done [#allocation8], 8192
    $region29: #{model_forward.1} parent=1 // pred_fallthru
      _
    // Predicated region
    $region30: #{model_forward.1} parent=1 // pred_check
      _
    $region31: #{model_forward.1} parent=1 // pred_check_branch
      %40 = sbr.rel target = $region33
    $region32: #{model_forward.1} parent=1 // pred_region
      %41 = sst [smem:[#allocation11]] [#allocation10]
      %42 = sst [smem:[#allocation12]] [#allocation9]
    $region33: #{model_forward.1} parent=1 // pred_fallthru
      _
    %44 = shalt.err (0)
    %s46 = sshll.u32 [#allocation2], 4
    %s47 = int_to_ptr.vmem [resolvable:$true] %s46
    %49 = dma.hbm_to_vmem [thread:$0]  %s3, 16384, %s47, [#allocation4]
    %s50 = scalar_lea.hbm %s3, 16384
    %s51 = scalar_lea.sflag [#allocation4], 1
    // Predicated region
    $region34: #{model_forward.1} parent=1 // pred_check
      _
    $region35: #{model_forward.1} parent=1 // pred_check_branch
      %53 = sbr.rel target = $region37
    $region36: #{model_forward.1} parent=1 // pred_region
      %54 = sst [smem:[#allocation11]] [#allocation14]
      %55 = sst [smem:[#allocation12]] [#allocation13]
    $region37: #{model_forward.1} parent=1 // pred_fallthru
      _
    %57 = shalt.err (0)
    %s59 = sshll.u32 [#allocation3], 4
    %s60 = int_to_ptr.vmem [resolvable:$true] %s59
    %62 = dma.hbm_to_vmem [thread:$0]  %s50, 16384, %s60, %s51
    %v63 = vld [vmem:[%s0] sm:$0xff]
    %v64 = vld [vmem:[%s0 + $0x8] sm:$0xff]
    %v65 = vld [vmem:[%s0 + $0x10] sm:$0xff]
    %v66 = vld [vmem:[%s0 + $0x18] sm:$0xff]
    %v67 = vld [vmem:[%s0 + $0x20] sm:$0xff]
    %v68 = vld [vmem:[%s0 + $0x28] sm:$0xff]
    %v69 = vld [vmem:[%s0 + $0x30] sm:$0xff]
    %v70 = vld [vmem:[%s0 + $0x38] sm:$0xff]
    %v71 = vld [vmem:[%s1] sm:$0xff]
    %v72 = vld [vmem:[%s1 + $0x8] sm:$0xff]
    %v73 = vld [vmem:[%s1 + $0x10] sm:$0xff]
    %v74 = vld [vmem:[%s1 + $0x18] sm:$0xff]
    %v75 = vld [vmem:[%s4] sm:$0xf]
    %v77 = vlaneseq
    %v78 = vshrl.u32 %v77, 7
    %v79 = vsub.s32 0, %v78
    %v80 = vrot.slane %v75, %v79
    %v81 = vlaneseq
    %v82 = vshrl.u32 %v81, 7
    %v83 = vsub.s32 1, %v82
    %v84 = vrot.slane %v75, %v83
    %v85 = vlaneseq
    %v86 = vshrl.u32 %v85, 7
    %v87 = vsub.s32 2, %v86
    %v88 = vrot.slane %v75, %v87
    %v89 = vlaneseq
    %v90 = vshrl.u32 %v89, 7
    %v91 = vsub.s32 3, %v90
    %v92 = vrot.slane %v75, %v91
    %vm97 = vcmask 64512
    %v99 = vsel %vm97, %v63, 0
    %v102 = vsel %vm97, %v64, 0
    %v105 = vsel %vm97, %v65, 0
    %v108 = vsel %vm97, %v66, 0
    %v111 = vsel %vm97, %v67, 0
    %v114 = vsel %vm97, %v68, 0
    %v117 = vsel %vm97, %v69, 0
    %v120 = vsel %vm97, %v70, 0
    %122 = vmatprep.subr.mxu0 %v72
    %123 = vmatpush1.msra.mxu0 %v71
    %124 = vmatprep.subr.mxu0 0.0
    %125 = vmatpush1.msra.mxu0 0.0
    %126 = vmatprep.subr.mxu0 0.0
    %127 = vmatpush1.msra.mxu0 0.0
    %128 = vmatprep.subr.mxu0 0.0
    %129 = vmatpush1.msra.mxu0 0.0
    %130 = vmatprep.subr.mxu0 0.0
    %131 = vmatpush1.msra.mxu0 0.0
    %132 = vmatprep.subr.mxu0 0.0
    %133 = vmatpush1.msra.mxu0 0.0
    %134 = vmatprep.subr.mxu0 0.0
    %135 = vmatpush1.msra.mxu0 0.0
    %136 = vmatprep.subr.mxu0 0.0
    %137 = vmatpush1.msra.mxu0 0.0
    %138 = vmatprep.subr.mxu0 0.0
    %139 = vmatpush1.msra.mxu0 0.0
    %140 = vmatprep.subr.mxu0 0.0
    %141 = vmatpush1.msra.mxu0 0.0
    %142 = vmatprep.subr.mxu0 0.0
    %143 = vmatpush1.msra.mxu0 0.0
    %144 = vmatprep.subr.mxu0 0.0
    %145 = vmatpush1.msra.mxu0 0.0
    %146 = vmatprep.subr.mxu0 0.0
    %147 = vmatpush1.msra.mxu0 0.0
    %148 = vmatprep.subr.mxu0 0.0
    %149 = vmatpush1.msra.mxu0 0.0
    %150 = vmatprep.subr.mxu0 0.0
    %151 = vmatpush1.msra.mxu0 0.0
    %152 = vmatprep.subr.mxu0 0.0
    %153 = vmatpush1.msra.mxu0 0.0
    %154 = vmatprep.subr.mxu0 0.0
    %155 = vmatpush1.msra.mxu0 0.0
    %156 = vmatprep.subr.mxu0 0.0
    %157 = vmatpush1.msra.mxu0 0.0
    %158 = vmatprep.subr.mxu0 0.0
    %159 = vmatpush1.msra.mxu0 0.0
    %160 = vmatprep.subr.mxu0 0.0
    %161 = vmatpush1.msra.mxu0 0.0
    %162 = vmatprep.subr.mxu0 0.0
    %163 = vmatpush1.msra.mxu0 0.0
    %164 = vmatprep.subr.mxu0 0.0
    %165 = vmatpush1.msra.mxu0 0.0
    %166 = vmatprep.subr.mxu0 0.0
    %167 = vmatpush1.msra.mxu0 0.0
    %168 = vmatprep.subr.mxu0 0.0
    %169 = vmatpush1.msra.mxu0 0.0
    %170 = vmatprep.subr.mxu0 0.0
    %171 = vmatpush1.msra.mxu0 0.0
    %172 = vmatprep.subr.mxu0 0.0
    %173 = vmatpush1.msra.mxu0 0.0
    %174 = vmatprep.subr.mxu0 0.0
    %175 = vmatpush1.msra.mxu0 0.0
    %176 = vmatprep.subr.mxu0 0.0
    %177 = vmatpush1.msra.mxu0 0.0
    %178 = vmatprep.subr.mxu0 0.0
    %179 = vmatpush1.msra.mxu0 0.0
    %180 = vmatprep.subr.mxu0 0.0
    %181 = vmatpush1.msra.mxu0 0.0
    %182 = vmatprep.subr.mxu0 0.0
    %183 = vmatpush1.msra.mxu0 0.0
    %184 = vmatprep.subr.mxu0 0.0
    %185 = vmatpush1.msra.mxu0 0.0
    %186 = vmatprep.mubr.f32.mxu0 0.0
    %187 = vmatmul.mubr.f32.gmra.mrb[0].mxu0 %v99
    %v188 = vpop.f32.mrb[0].mxu0
    %v189 = vadd.f32 %v80, %v188
    %v190 = vpop.f32.mrb[0].mxu0
    %v191 = vadd.f32 %v84, %v190
    %192 = vmatprep.mubr.f32.mxu0 0.0
    %193 = vmatmul.mubr.f32.gmra.mrb[0].mxu0 %v102
    %v194 = vpop.f32.mrb[0].mxu0
    %v195 = vadd.f32 %v80, %v194
    %v196 = vpop.f32.mrb[0].mxu0
    %v197 = vadd.f32 %v84, %v196
    %198 = vmatprep.mubr.f32.mxu0 0.0
    %199 = vmatmul.mubr.f32.gmra.mrb[0].mxu0 %v105
    %v200 = vpop.f32.mrb[0].mxu0
    %v201 = vadd.f32 %v80, %v200
    %v202 = vpop.f32.mrb[0].mxu0
    %v203 = vadd.f32 %v84, %v202
    %204 = vmatprep.mubr.f32.mxu0 0.0
    %205 = vmatmul.mubr.f32.gmra.mrb[0].mxu0 %v108
    %v206 = vpop.f32.mrb[0].mxu0
    %v207 = vadd.f32 %v80, %v206
    %v208 = vpop.f32.mrb[0].mxu0
    %v209 = vadd.f32 %v84, %v208
    %210 = vmatprep.mubr.f32.mxu0 0.0
    %211 = vmatmul.mubr.f32.gmra.mrb[0].mxu0 %v111
    %v212 = vpop.f32.mrb[0].mxu0
    %v213 = vadd.f32 %v80, %v212
    %v214 = vpop.f32.mrb[0].mxu0
    %v215 = vadd.f32 %v84, %v214
    %216 = vmatprep.mubr.f32.mxu0 0.0
    %217 = vmatmul.mubr.f32.gmra.mrb[0].mxu0 %v114
    %v218 = vpop.f32.mrb[0].mxu0
    %v219 = vadd.f32 %v80, %v218
    %v220 = vpop.f32.mrb[0].mxu0
    %v221 = vadd.f32 %v84, %v220
    %222 = vmatprep.mubr.f32.mxu0 0.0
    %223 = vmatmul.mubr.f32.gmra.mrb[0].mxu0 %v117
    %v224 = vpop.f32.mrb[0].mxu0
    %v225 = vadd.f32 %v80, %v224
    %v226 = vpop.f32.mrb[0].mxu0
    %v227 = vadd.f32 %v84, %v226
    %228 = vmatprep.mubr.f32.mxu0 0.0
    %229 = vmatmul.mubr.f32.gmra.mrb[0].mxu0 %v120
    %v230 = vpop.f32.mrb[0].mxu0
    %v231 = vadd.f32 %v80, %v230
    %v232 = vpop.f32.mrb[0].mxu0
    %v233 = vadd.f32 %v84, %v232
    %234 = vdwg.mxu0
    %235 = vmatprep.subr.mxu0 %v74
    %236 = vmatpush1.msra.mxu0 %v73
    %237 = vmatprep.subr.mxu0 0.0
    %238 = vmatpush1.msra.mxu0 0.0
    %239 = vmatprep.subr.mxu0 0.0
    %240 = vmatpush1.msra.mxu0 0.0
    %241 = vmatprep.subr.mxu0 0.0
    %242 = vmatpush1.msra.mxu0 0.0
    %243 = vmatprep.subr.mxu0 0.0
    %244 = vmatpush1.msra.mxu0 0.0
    %245 = vmatprep.subr.mxu0 0.0
    %246 = vmatpush1.msra.mxu0 0.0
    %247 = vmatprep.subr.mxu0 0.0
    %248 = vmatpush1.msra.mxu0 0.0
    %249 = vmatprep.subr.mxu0 0.0
    %250 = vmatpush1.msra.mxu0 0.0
    %251 = vmatprep.subr.mxu0 0.0
    %252 = vmatpush1.msra.mxu0 0.0
    %253 = vmatprep.subr.mxu0 0.0
    %254 = vmatpush1.msra.mxu0 0.0
    %255 = vmatprep.subr.mxu0 0.0
    %256 = vmatpush1.msra.mxu0 0.0
    %257 = vmatprep.subr.mxu0 0.0
    %258 = vmatpush1.msra.mxu0 0.0
    %259 = vmatprep.subr.mxu0 0.0
    %260 = vmatpush1.msra.mxu0 0.0
    %261 = vmatprep.subr.mxu0 0.0
    %262 = vmatpush1.msra.mxu0 0.0
    %263 = vmatprep.subr.mxu0 0.0
    %264 = vmatpush1.msra.mxu0 0.0
    %265 = vmatprep.subr.mxu0 0.0
    %266 = vmatpush1.msra.mxu0 0.0
    %267 = vmatprep.subr.mxu0 0.0
    %268 = vmatpush1.msra.mxu0 0.0
    %269 = vmatprep.subr.mxu0 0.0
    %270 = vmatpush1.msra.mxu0 0.0
    %271 = vmatprep.subr.mxu0 0.0
    %272 = vmatpush1.msra.mxu0 0.0
    %273 = vmatprep.subr.mxu0 0.0
    %274 = vmatpush1.msra.mxu0 0.0
    %275 = vmatprep.subr.mxu0 0.0
    %276 = vmatpush1.msra.mxu0 0.0
    %277 = vmatprep.subr.mxu0 0.0
    %278 = vmatpush1.msra.mxu0 0.0
    %279 = vmatprep.subr.mxu0 0.0
    %280 = vmatpush1.msra.mxu0 0.0
    %281 = vmatprep.subr.mxu0 0.0
    %282 = vmatpush1.msra.mxu0 0.0
    %283 = vmatprep.subr.mxu0 0.0
    %284 = vmatpush1.msra.mxu0 0.0
    %285 = vmatprep.subr.mxu0 0.0
    %286 = vmatpush1.msra.mxu0 0.0
    %287 = vmatprep.subr.mxu0 0.0
    %288 = vmatpush1.msra.mxu0 0.0
    %289 = vmatprep.subr.mxu0 0.0
    %290 = vmatpush1.msra.mxu0 0.0
    %291 = vmatprep.subr.mxu0 0.0
    %292 = vmatpush1.msra.mxu0 0.0
    %293 = vmatprep.subr.mxu0 0.0
    %294 = vmatpush1.msra.mxu0 0.0
    %295 = vmatprep.subr.mxu0 0.0
    %296 = vmatpush1.msra.mxu0 0.0
    %297 = vmatprep.subr.mxu0 0.0
    %298 = vmatpush1.msra.mxu0 0.0
    %299 = vmatprep.mubr.f32.mxu0 0.0
    %300 = vmatmul.mubr.f32.gmra.mrb[0].mxu0 %v99
    %v301 = vpop.f32.mrb[0].mxu0
    %v302 = vadd.f32 %v88, %v301
    %v303 = vpop.f32.mrb[0].mxu0
    %v304 = vadd.f32 %v92, %v303
    %305 = vmatprep.mubr.f32.mxu0 0.0
    %306 = vmatmul.mubr.f32.gmra.mrb[0].mxu0 %v102
    %v307 = vpop.f32.mrb[0].mxu0
    %v308 = vadd.f32 %v88, %v307
    %v309 = vpop.f32.mrb[0].mxu0
    %v310 = vadd.f32 %v92, %v309
    %311 = vmatprep.mubr.f32.mxu0 0.0
    %312 = vmatmul.mubr.f32.gmra.mrb[0].mxu0 %v105
    %v313 = vpop.f32.mrb[0].mxu0
    %v314 = vadd.f32 %v88, %v313
    %v315 = vpop.f32.mrb[0].mxu0
    %v316 = vadd.f32 %v92, %v315
    %317 = vmatprep.mubr.f32.mxu0 0.0
    %318 = vmatmul.mubr.f32.gmra.mrb[0].mxu0 %v108
    %v319 = vpop.f32.mrb[0].mxu0
    %v320 = vadd.f32 %v88, %v319
    %v321 = vpop.f32.mrb[0].mxu0
    %v322 = vadd.f32 %v92, %v321
    %323 = vmatprep.mubr.f32.mxu0 0.0
    %324 = vmatmul.mubr.f32.gmra.mrb[0].mxu0 %v111
    %v325 = vpop.f32.mrb[0].mxu0
    %v326 = vadd.f32 %v88, %v325
    %v327 = vpop.f32.mrb[0].mxu0
    %v328 = vadd.f32 %v92, %v327
    %329 = vmatprep.mubr.f32.mxu0 0.0
    %330 = vmatmul.mubr.f32.gmra.mrb[0].mxu0 %v114
    %v331 = vpop.f32.mrb[0].mxu0
    %v332 = vadd.f32 %v88, %v331
    %v333 = vpop.f32.mrb[0].mxu0
    %v334 = vadd.f32 %v92, %v333
    %335 = vmatprep.mubr.f32.mxu0 0.0
    %336 = vmatmul.mubr.f32.gmra.mrb[0].mxu0 %v117
    %v337 = vpop.f32.mrb[0].mxu0
    %v338 = vadd.f32 %v88, %v337
    %v339 = vpop.f32.mrb[0].mxu0
    %v340 = vadd.f32 %v92, %v339
    %341 = vmatprep.mubr.f32.mxu0 0.0
    %342 = vmatmul.mubr.f32.gmra.mrb[0].mxu0 %v120
    %v343 = vpop.f32.mrb[0].mxu0
    %v344 = vadd.f32 %v88, %v343
    %v345 = vpop.f32.mrb[0].mxu0
    %v346 = vadd.f32 %v92, %v345
    %347 = vdwg.mxu0
    %348 = vst [vmem:[#allocation5] sm:$0xff] %v189
    %349 = vst [vmem:[#allocation5 + $0x8] sm:$0xff] %v191
    %350 = vst [vmem:[#allocation5 + $0x10] sm:$0xff] %v302
    %351 = vst [vmem:[#allocation5 + $0x18] sm:$0xff] %v304
    %352 = vst [vmem:[#allocation5 + $0x20] sm:$0xff] %v195
    %353 = vst [vmem:[#allocation5 + $0x28] sm:$0xff] %v197
    %354 = vst [vmem:[#allocation5 + $0x30] sm:$0xff] %v308
    %355 = vst [vmem:[#allocation5 + $0x38] sm:$0xff] %v310
    %356 = vst [vmem:[#allocation5 + $0x40] sm:$0xff] %v201
    %357 = vst [vmem:[#allocation5 + $0x48] sm:$0xff] %v203
    %358 = vst [vmem:[#allocation5 + $0x50] sm:$0xff] %v314
    %359 = vst [vmem:[#allocation5 + $0x58] sm:$0xff] %v316
    %360 = vst [vmem:[#allocation5 + $0x60] sm:$0xff] %v207
    %361 = vst [vmem:[#allocation5 + $0x68] sm:$0xff] %v209
    %362 = vst [vmem:[#allocation5 + $0x70] sm:$0xff] %v320
    %363 = vst [vmem:[#allocation5 + $0x78] sm:$0xff] %v322
    %364 = vst [vmem:[#allocation5 + $0x80] sm:$0xff] %v213
    %365 = vst [vmem:[#allocation5 + $0x88] sm:$0xff] %v215
    %366 = vst [vmem:[#allocation5 + $0x90] sm:$0xff] %v326
    %367 = vst [vmem:[#allocation5 + $0x98] sm:$0xff] %v328
    %368 = vst [vmem:[#allocation5 + $0xa0] sm:$0xff] %v219
    %369 = vst [vmem:[#allocation5 + $0xa8] sm:$0xff] %v221
    %370 = vst [vmem:[#allocation5 + $0xb0] sm:$0xff] %v332
    %371 = vst [vmem:[#allocation5 + $0xb8] sm:$0xff] %v334
    %372 = vst [vmem:[#allocation5 + $0xc0] sm:$0xff] %v225
    %373 = vst [vmem:[#allocation5 + $0xc8] sm:$0xff] %v227
    %374 = vst [vmem:[#allocation5 + $0xd0] sm:$0xff] %v338
    %375 = vst [vmem:[#allocation5 + $0xd8] sm:$0xff] %v340
    %376 = vst [vmem:[#allocation5 + $0xe0] sm:$0xff] %v231
    %377 = vst [vmem:[#allocation5 + $0xe8] sm:$0xff] %v233
    %378 = vst [vmem:[#allocation5 + $0xf0] sm:$0xff] %v344
    %379 = vst [vmem:[#allocation5 + $0xf8] sm:$0xff] %v346
    %v380 = vld [vmem:[#allocation5] sm:$0xff]
    %v381 = vld [vmem:[#allocation5 + $0x8] sm:$0xff]
    %v382 = vld [vmem:[#allocation5 + $0x10] sm:$0xff]
    %v383 = vld [vmem:[#allocation5 + $0x18] sm:$0xff]
    %v384 = vld [vmem:[#allocation7] sm:$0xff]
    %v385 = vld [vmem:[#allocation7 + $0x8] sm:$0xff]
    %v386 = vld [vmem:[#allocation7 + $0x10] sm:$0xff]
    %v387 = vld [vmem:[#allocation7 + $0x18] sm:$0xff]
    %v388 = vld [vmem:[#allocation7 + $0x20] sm:$0xff]
    %v389 = vld [vmem:[#allocation7 + $0x28] sm:$0xff]
    %v390 = vld [vmem:[#allocation7 + $0x30] sm:$0xff]
    %v391 = vld [vmem:[#allocation7 + $0x38] sm:$0xff]
    %v392 = vld [vmem:[#allocation7 + $0x40] sm:$0xff]
    %v393 = vld [vmem:[#allocation7 + $0x48] sm:$0xff]
    %v394 = vld [vmem:[#allocation7 + $0x50] sm:$0xff]
    %v395 = vld [vmem:[#allocation7 + $0x58] sm:$0xff]
    %v396 = vld [vmem:[#allocation7 + $0x60] sm:$0xff]
    %v397 = vld [vmem:[#allocation7 + $0x68] sm:$0xff]
    %v398 = vld [vmem:[#allocation7 + $0x70] sm:$0xff]
    %v399 = vld [vmem:[#allocation7 + $0x78] sm:$0xff]
    %v400 = vld [vmem:[#allocation7 + $0x80] sm:$0xff]
    %v401 = vld [vmem:[#allocation7 + $0x88] sm:$0xff]
    %v402 = vld [vmem:[#allocation7 + $0x90] sm:$0xff]
    %v403 = vld [vmem:[#allocation7 + $0x98] sm:$0xff]
    %v404 = vld [vmem:[#allocation7 + $0xa0] sm:$0xff]
    %v405 = vld [vmem:[#allocation7 + $0xa8] sm:$0xff]
    %v406 = vld [vmem:[#allocation7 + $0xb0] sm:$0xff]
    %v407 = vld [vmem:[#allocation7 + $0xb8] sm:$0xff]
    %v408 = vld [vmem:[#allocation7 + $0xc0] sm:$0xff]
    %v409 = vld [vmem:[#allocation7 + $0xc8] sm:$0xff]
    %v410 = vld [vmem:[#allocation7 + $0xd0] sm:$0xff]
    %v411 = vld [vmem:[#allocation7 + $0xd8] sm:$0xff]
    %v412 = vld [vmem:[#allocation7 + $0xe0] sm:$0xff]
    %v413 = vld [vmem:[#allocation7 + $0xe8] sm:$0xff]
    %v414 = vld [vmem:[#allocation7 + $0xf0] sm:$0xff]
    %v415 = vld [vmem:[#allocation7 + $0xf8] sm:$0xff]
    %v416 = vld [vmem:[#allocation7 + $0x100] sm:$0xff]
    %v417 = vld [vmem:[#allocation7 + $0x108] sm:$0xff]
    %v418 = vld [vmem:[#allocation7 + $0x110] sm:$0xff]
    %v419 = vld [vmem:[#allocation7 + $0x118] sm:$0xff]
    %v420 = vld [vmem:[#allocation7 + $0x120] sm:$0xff]
    %v421 = vld [vmem:[#allocation7 + $0x128] sm:$0xff]
    %v422 = vld [vmem:[#allocation7 + $0x130] sm:$0xff]
    %v423 = vld [vmem:[#allocation7 + $0x138] sm:$0xff]
    %v424 = vld [vmem:[#allocation7 + $0x140] sm:$0xff]
    %v425 = vld [vmem:[#allocation7 + $0x148] sm:$0xff]
    %v426 = vld [vmem:[#allocation7 + $0x150] sm:$0xff]
    %v427 = vld [vmem:[#allocation7 + $0x158] sm:$0xff]
    %v428 = vld [vmem:[#allocation7 + $0x160] sm:$0xff]
    %v429 = vld [vmem:[#allocation7 + $0x168] sm:$0xff]
    %v430 = vld [vmem:[#allocation7 + $0x170] sm:$0xff]
    %v431 = vld [vmem:[#allocation7 + $0x178] sm:$0xff]
    %v432 = vld [vmem:[#allocation7 + $0x180] sm:$0xff]
    %v433 = vld [vmem:[#allocation7 + $0x188] sm:$0xff]
    %v434 = vld [vmem:[#allocation7 + $0x190] sm:$0xff]
    %v435 = vld [vmem:[#allocation7 + $0x198] sm:$0xff]
    %v436 = vld [vmem:[#allocation7 + $0x1a0] sm:$0xff]
    %v437 = vld [vmem:[#allocation7 + $0x1a8] sm:$0xff]
    %v438 = vld [vmem:[#allocation7 + $0x1b0] sm:$0xff]
    %v439 = vld [vmem:[#allocation7 + $0x1b8] sm:$0xff]
    %v440 = vld [vmem:[#allocation7 + $0x1c0] sm:$0xff]
    %v441 = vld [vmem:[#allocation7 + $0x1c8] sm:$0xff]
    %v442 = vld [vmem:[#allocation7 + $0x1d0] sm:$0xff]
    %v443 = vld [vmem:[#allocation7 + $0x1d8] sm:$0xff]
    %v444 = vld [vmem:[#allocation7 + $0x1e0] sm:$0xff]
    %v445 = vld [vmem:[#allocation7 + $0x1e8] sm:$0xff]
    %v446 = vld [vmem:[#allocation7 + $0x1f0] sm:$0xff]
    %v447 = vld [vmem:[#allocation7 + $0x1f8] sm:$0xff]
    %448 = vmatprep.subr.mxu0 %v385
    %449 = vmatpush1.msra.mxu0 %v384
    %450 = vmatprep.subr.mxu0 %v389
    %451 = vmatpush1.msra.mxu0 %v388
    %452 = vmatprep.subr.mxu0 %v393
    %453 = vmatpush1.msra.mxu0 %v392
    %454 = vmatprep.subr.mxu0 %v397
    %455 = vmatpush1.msra.mxu0 %v396
    %456 = vmatprep.subr.mxu0 %v401
    %457 = vmatpush1.msra.mxu0 %v400
    %458 = vmatprep.subr.mxu0 %v405
    %459 = vmatpush1.msra.mxu0 %v404
    %460 = vmatprep.subr.mxu0 %v409
    %461 = vmatpush1.msra.mxu0 %v408
    %462 = vmatprep.subr.mxu0 %v413
    %463 = vmatpush1.msra.mxu0 %v412
    %464 = vmatprep.subr.mxu0 %v417
    %465 = vmatpush1.msra.mxu0 %v416
    %466 = vmatprep.subr.mxu0 %v421
    %467 = vmatpush1.msra.mxu0 %v420
    %468 = vmatprep.subr.mxu0 %v425
    %469 = vmatpush1.msra.mxu0 %v424
    %470 = vmatprep.subr.mxu0 %v429
    %471 = vmatpush1.msra.mxu0 %v428
    %472 = vmatprep.subr.mxu0 %v433
    %473 = vmatpush1.msra.mxu0 %v432
    %474 = vmatprep.subr.mxu0 %v437
    %475 = vmatpush1.msra.mxu0 %v436
    %476 = vmatprep.subr.mxu0 %v441
    %477 = vmatpush1.msra.mxu0 %v440
    %478 = vmatprep.subr.mxu0 %v445
    %479 = vmatpush1.msra.mxu0 %v444
    %480 = vmatprep.subr.mxu0 0.0
    %481 = vmatpush1.msra.mxu0 0.0
    %482 = vmatprep.subr.mxu0 0.0
    %483 = vmatpush1.msra.mxu0 0.0
    %484 = vmatprep.subr.mxu0 0.0
    %485 = vmatpush1.msra.mxu0 0.0
    %486 = vmatprep.subr.mxu0 0.0
    %487 = vmatpush1.msra.mxu0 0.0
    %488 = vmatprep.subr.mxu0 0.0
    %489 = vmatpush1.msra.mxu0 0.0
    %490 = vmatprep.subr.mxu0 0.0
    %491 = vmatpush1.msra.mxu0 0.0
    %492 = vmatprep.subr.mxu0 0.0
    %493 = vmatpush1.msra.mxu0 0.0
    %494 = vmatprep.subr.mxu0 0.0
    %495 = vmatpush1.msra.mxu0 0.0
    %496 = vmatprep.subr.mxu0 0.0
    %497 = vmatpush1.msra.mxu0 0.0
    %498 = vmatprep.subr.mxu0 0.0
    %499 = vmatpush1.msra.mxu0 0.0
    %500 = vmatprep.subr.mxu0 0.0
    %501 = vmatpush1.msra.mxu0 0.0
    %502 = vmatprep.subr.mxu0 0.0
    %503 = vmatpush1.msra.mxu0 0.0
    %504 = vmatprep.subr.mxu0 0.0
    %505 = vmatpush1.msra.mxu0 0.0
    %506 = vmatprep.subr.mxu0 0.0
    %507 = vmatpush1.msra.mxu0 0.0
    %508 = vmatprep.subr.mxu0 0.0
    %509 = vmatpush1.msra.mxu0 0.0
    %510 = vmatprep.subr.mxu0 0.0
    %511 = vmatpush1.msra.mxu0 0.0
    %512 = vmatprep.mubr.f32.mxu0 0.0
    %513 = vmatmul.mubr.f32.gmra.mrb[0].mxu0 0.0
    %v514 = vpop.f32.mrb[0].mxu0
    %v515 = vadd.f32 0.0, %v514
    %v516 = vpop.f32.mrb[0].mxu0
    %v517 = vadd.f32 0.0, %v516
    %518 = vdwg.mxu0
    %519 = vmatprep.subr.mxu0 %v387
    %520 = vmatpush1.msra.mxu0 %v386
    %521 = vmatprep.subr.mxu0 %v391
    %522 = vmatpush1.msra.mxu0 %v390
    %523 = vmatprep.subr.mxu0 %v395
    %524 = vmatpush1.msra.mxu0 %v394
    %525 = vmatprep.subr.mxu0 %v399
    %526 = vmatpush1.msra.mxu0 %v398
    %527 = vmatprep.subr.mxu0 %v403
    %528 = vmatpush1.msra.mxu0 %v402
    %529 = vmatprep.subr.mxu0 %v407
    %530 = vmatpush1.msra.mxu0 %v406
    %531 = vmatprep.subr.mxu0 %v411
    %532 = vmatpush1.msra.mxu0 %v410
    %533 = vmatprep.subr.mxu0 %v415
    %534 = vmatpush1.msra.mxu0 %v414
    %535 = vmatprep.subr.mxu0 %v419
    %536 = vmatpush1.msra.mxu0 %v418
    %537 = vmatprep.subr.mxu0 %v423
    %538 = vmatpush1.msra.mxu0 %v422
    %539 = vmatprep.subr.mxu0 %v427
    %540 = vmatpush1.msra.mxu0 %v426
    %541 = vmatprep.subr.mxu0 %v431
    %542 = vmatpush1.msra.mxu0 %v430
    %543 = vmatprep.subr.mxu0 %v435
    %544 = vmatpush1.msra.mxu0 %v434
    %545 = vmatprep.subr.mxu0 %v439
    %546 = vmatpush1.msra.mxu0 %v438
    %547 = vmatprep.subr.mxu0 %v443
    %548 = vmatpush1.msra.mxu0 %v442
    %549 = vmatprep.subr.mxu0 %v447
    %550 = vmatpush1.msra.mxu0 %v446
    %551 = vmatprep.subr.mxu0 0.0
    %552 = vmatpush1.msra.mxu0 0.0
    %553 = vmatprep.subr.mxu0 0.0
    %554 = vmatpush1.msra.mxu0 0.0
    %555 = vmatprep.subr.mxu0 0.0
    %556 = vmatpush1.msra.mxu0 0.0
    %557 = vmatprep.subr.mxu0 0.0
    %558 = vmatpush1.msra.mxu0 0.0
    %559 = vmatprep.subr.mxu0 0.0
    %560 = vmatpush1.msra.mxu0 0.0
    %561 = vmatprep.subr.mxu0 0.0
    %562 = vmatpush1.msra.mxu0 0.0
    %563 = vmatprep.subr.mxu0 0.0
    %564 = vmatpush1.msra.mxu0 0.0
    %565 = vmatprep.subr.mxu0 0.0
    %566 = vmatpush1.msra.mxu0 0.0
    %567 = vmatprep.subr.mxu0 0.0
    %568 = vmatpush1.msra.mxu0 0.0
    %569 = vmatprep.subr.mxu0 0.0
    %570 = vmatpush1.msra.mxu0 0.0
    %571 = vmatprep.subr.mxu0 0.0
    %572 = vmatpush1.msra.mxu0 0.0
    %573 = vmatprep.subr.mxu0 0.0
    %574 = vmatpush1.msra.mxu0 0.0
    %575 = vmatprep.subr.mxu0 0.0
    %576 = vmatpush1.msra.mxu0 0.0
    %577 = vmatprep.subr.mxu0 0.0
    %578 = vmatpush1.msra.mxu0 0.0
    %579 = vmatprep.subr.mxu0 0.0
    %580 = vmatpush1.msra.mxu0 0.0
    %581 = vmatprep.subr.mxu0 0.0
    %582 = vmatpush1.msra.mxu0 0.0
    %583 = vmatprep.mubr.f32.mxu0 0.0
    %584 = vmatmul.mubr.f32.gmra.mrb[0].mxu0 0.0
    %v585 = vpop.f32.mrb[0].mxu0
    %v586 = vadd.f32 0.0, %v585
    %v587 = vpop.f32.mrb[0].mxu0
    %v588 = vadd.f32 0.0, %v587
    %589 = vdwg.mxu0
    %v590 = vadd.f32 %v380, %v515
    %v591 = vadd.f32 %v381, %v517
    %v592 = vadd.f32 %v382, %v586
    %v593 = vadd.f32 %v383, %v588
    %v594 = vxor.u32 %v590, 2147483648
    %v595 = vxor.u32 %v591, 2147483648
    %v596 = vxor.u32 %v592, 2147483648
    %v597 = vmul.f32 %v594, 1.442695
    %v598 = vpow.pop %v597
    %v599 = vmul.f32 %v595, 1.442695
    %v600 = vpow.pop %v599
    %v601 = vmul.f32 %v596, 1.442695
    %v602 = vpow.pop %v601
    %v603 = vadd.f32 %v598, 1.0
    %v604 = vadd.f32 %v600, 1.0
    %v605 = vadd.f32 %v602, 1.0
    %v606 = vrcp.pop %v603
    %v607 = vmul.f32 1.0, %v606
    %v608 = vrcp.pop %v604
    %v609 = vmul.f32 1.0, %v608
    %v610 = vrcp.pop %v605
    %v611 = vmul.f32 1.0, %v610
    %v612 = vtanh.pop %v593
    %v613 = vmul.f32 %v609, 0.0
    %v614 = vmul.f32 %v607, %v612
    %v615 = vadd.f32 %v613, %v614
    %v616 = vtanh.pop %v615
    %v617 = vmul.f32 %v611, %v616
    %v618 = vld [vmem:[#allocation5 + $0x20] sm:$0xff]
    %v619 = vld [vmem:[#allocation5 + $0x28] sm:$0xff]
    %v620 = vld [vmem:[#allocation5 + $0x30] sm:$0xff]
    %v621 = vld [vmem:[#allocation5 + $0x38] sm:$0xff]
    %622 = vmatprep.subr.mxu0 %v385
    %623 = vmatpush1.msra.mxu0 %v384
    %624 = vmatprep.subr.mxu0 %v389
    %625 = vmatpush1.msra.mxu0 %v388
    %626 = vmatprep.subr.mxu0 %v393
    %627 = vmatpush1.msra.mxu0 %v392
    %628 = vmatprep.subr.mxu0 %v397
    %629 = vmatpush1.msra.mxu0 %v396
    %630 = vmatprep.subr.mxu0 %v401
    %631 = vmatpush1.msra.mxu0 %v400
    %632 = vmatprep.subr.mxu0 %v405
    %633 = vmatpush1.msra.mxu0 %v404
    %634 = vmatprep.subr.mxu0 %v409
    %635 = vmatpush1.msra.mxu0 %v408
    %636 = vmatprep.subr.mxu0 %v413
    %637 = vmatpush1.msra.mxu0 %v412
    %638 = vmatprep.subr.mxu0 %v417
    %639 = vmatpush1.msra.mxu0 %v416
    %640 = vmatprep.subr.mxu0 %v421
    %641 = vmatpush1.msra.mxu0 %v420
    %642 = vmatprep.subr.mxu0 %v425
    %643 = vmatpush1.msra.mxu0 %v424
    %644 = vmatprep.subr.mxu0 %v429
    %645 = vmatpush1.msra.mxu0 %v428
    %646 = vmatprep.subr.mxu0 %v433
    %647 = vmatpush1.msra.mxu0 %v432
    %648 = vmatprep.subr.mxu0 %v437
    %649 = vmatpush1.msra.mxu0 %v436
    %650 = vmatprep.subr.mxu0 %v441
    %651 = vmatpush1.msra.mxu0 %v440
    %652 = vmatprep.subr.mxu0 %v445
    %653 = vmatpush1.msra.mxu0 %v444
    %654 = vmatprep.subr.mxu0 0.0
    %655 = vmatpush1.msra.mxu0 0.0
    %656 = vmatprep.subr.mxu0 0.0
    %657 = vmatpush1.msra.mxu0 0.0
    %658 = vmatprep.subr.mxu0 0.0
    %659 = vmatpush1.msra.mxu0 0.0
    %660 = vmatprep.subr.mxu0 0.0
    %661 = vmatpush1.msra.mxu0 0.0
    %662 = vmatprep.subr.mxu0 0.0
    %663 = vmatpush1.msra.mxu0 0.0
    %664 = vmatprep.subr.mxu0 0.0
    %665 = vmatpush1.msra.mxu0 0.0
    %666 = vmatprep.subr.mxu0 0.0
    %667 = vmatpush1.msra.mxu0 0.0
    %668 = vmatprep.subr.mxu0 0.0
    %669 = vmatpush1.msra.mxu0 0.0
    %670 = vmatprep.subr.mxu0 0.0
    %671 = vmatpush1.msra.mxu0 0.0
    %672 = vmatprep.subr.mxu0 0.0
    %673 = vmatpush1.msra.mxu0 0.0
    %674 = vmatprep.subr.mxu0 0.0
    %675 = vmatpush1.msra.mxu0 0.0
    %676 = vmatprep.subr.mxu0 0.0
    %677 = vmatpush1.msra.mxu0 0.0
    %678 = vmatprep.subr.mxu0 0.0
    %679 = vmatpush1.msra.mxu0 0.0
    %680 = vmatprep.subr.mxu0 0.0
    %681 = vmatpush1.msra.mxu0 0.0
    %682 = vmatprep.subr.mxu0 0.0
    %683 = vmatpush1.msra.mxu0 0.0
    %684 = vmatprep.subr.mxu0 0.0
    %685 = vmatpush1.msra.mxu0 0.0
    %686 = vmatprep.mubr.f32.mxu0 0.0
    %687 = vmatmul.mubr.f32.gmra.mrb[0].mxu0 %v617
    %v688 = vpop.f32.mrb[0].mxu0
    %v689 = vadd.f32 0.0, %v688
    %v690 = vpop.f32.mrb[0].mxu0
    %v691 = vadd.f32 0.0, %v690
    %692 = vdwg.mxu0
    %693 = vmatprep.subr.mxu0 %v387
    %694 = vmatpush1.msra.mxu0 %v386
    %695 = vmatprep.subr.mxu0 %v391
    %696 = vmatpush1.msra.mxu0 %v390
    %697 = vmatprep.subr.mxu0 %v395
    %698 = vmatpush1.msra.mxu0 %v394
    %699 = vmatprep.subr.mxu0 %v399
    %700 = vmatpush1.msra.mxu0 %v398
    %701 = vmatprep.subr.mxu0 %v403
    %702 = vmatpush1.msra.mxu0 %v402
    %703 = vmatprep.subr.mxu0 %v407
    %704 = vmatpush1.msra.mxu0 %v406
    %705 = vmatprep.subr.mxu0 %v411
    %706 = vmatpush1.msra.mxu0 %v410
    %707 = vmatprep.subr.mxu0 %v415
    %708 = vmatpush1.msra.mxu0 %v414
    %709 = vmatprep.subr.mxu0 %v419
    %710 = vmatpush1.msra.mxu0 %v418
    %711 = vmatprep.subr.mxu0 %v423
    %712 = vmatpush1.msra.mxu0 %v422
    %713 = vmatprep.subr.mxu0 %v427
    %714 = vmatpush1.msra.mxu0 %v426
    %715 = vmatprep.subr.mxu0 %v431
    %716 = vmatpush1.msra.mxu0 %v430
    %717 = vmatprep.subr.mxu0 %v435
    %718 = vmatpush1.msra.mxu0 %v434
    %719 = vmatprep.subr.mxu0 %v439
    %720 = vmatpush1.msra.mxu0 %v438
    %721 = vmatprep.subr.mxu0 %v443
    %722 = vmatpush1.msra.mxu0 %v442
    %723 = vmatprep.subr.mxu0 %v447
    %724 = vmatpush1.msra.mxu0 %v446
    %725 = vmatprep.subr.mxu0 0.0
    %726 = vmatpush1.msra.mxu0 0.0
    %727 = vmatprep.subr.mxu0 0.0
    %728 = vmatpush1.msra.mxu0 0.0
    %729 = vmatprep.subr.mxu0 0.0
    %730 = vmatpush1.msra.mxu0 0.0
    %731 = vmatprep.subr.mxu0 0.0
    %732 = vmatpush1.msra.mxu0 0.0
    %733 = vmatprep.subr.mxu0 0.0
    %734 = vmatpush1.msra.mxu0 0.0
    %735 = vmatprep.subr.mxu0 0.0
    %736 = vmatpush1.msra.mxu0 0.0
    %737 = vmatprep.subr.mxu0 0.0
    %738 = vmatpush1.msra.mxu0 0.0
    %739 = vmatprep.subr.mxu0 0.0
    %740 = vmatpush1.msra.mxu0 0.0
    %741 = vmatprep.subr.mxu0 0.0
    %742 = vmatpush1.msra.mxu0 0.0
    %743 = vmatprep.subr.mxu0 0.0
    %744 = vmatpush1.msra.mxu0 0.0
    %745 = vmatprep.subr.mxu0 0.0
    %746 = vmatpush1.msra.mxu0 0.0
    %747 = vmatprep.subr.mxu0 0.0
    %748 = vmatpush1.msra.mxu0 0.0
    %749 = vmatprep.subr.mxu0 0.0
    %750 = vmatpush1.msra.mxu0 0.0
    %751 = vmatprep.subr.mxu0 0.0
    %752 = vmatpush1.msra.mxu0 0.0
    %753 = vmatprep.subr.mxu0 0.0
    %754 = vmatpush1.msra.mxu0 0.0
    %755 = vmatprep.subr.mxu0 0.0
    %756 = vmatpush1.msra.mxu0 0.0
    %757 = vmatprep.mubr.f32.mxu0 0.0
    %758 = vmatmul.mubr.f32.gmra.mrb[0].mxu0 %v617
    %v759 = vpop.f32.mrb[0].mxu0
    %v760 = vadd.f32 0.0, %v759
    %v761 = vpop.f32.mrb[0].mxu0
    %v762 = vadd.f32 0.0, %v761
    %763 = vdwg.mxu0
    %v764 = vadd.f32 %v618, %v689
    %v765 = vadd.f32 %v619, %v691
    %v766 = vadd.f32 %v620, %v760
    %v767 = vadd.f32 %v621, %v762
    %v768 = vxor.u32 %v764, 2147483648
    %v769 = vxor.u32 %v765, 2147483648
    %v770 = vxor.u32 %v766, 2147483648
    %v771 = vmul.f32 %v768, 1.442695
    %v772 = vpow.pop %v771
    %v773 = vmul.f32 %v769, 1.442695
    %v774 = vpow.pop %v773
    %v775 = vmul.f32 %v770, 1.442695
    %v776 = vpow.pop %v775
    %v777 = vadd.f32 %v772, 1.0
    %v778 = vadd.f32 %v774, 1.0
    %v779 = vadd.f32 %v776, 1.0
    %v780 = vrcp.pop %v777
    %v781 = vmul.f32 1.0, %v780
    %v782 = vrcp.pop %v778
    %v783 = vmul.f32 1.0, %v782
    %v784 = vrcp.pop %v779
    %v785 = vmul.f32 1.0, %v784
    %v786 = vtanh.pop %v767
    %v787 = vmul.f32 %v783, %v615
    %v788 = vmul.f32 %v781, %v786
    %v789 = vadd.f32 %v787, %v788
    %v790 = vtanh.pop %v789
    %v791 = vmul.f32 %v785, %v790
    %s792 = smul.u32 8, 32
    %s793 = smul.u32 %s792, 4
    %s794 = sshll.u32 %s793, 4
    %795 = dma.done [#allocation4], %s794
    %v796 = vld [vmem:[#allocation2] sm:$0xff]
    %v797 = vld [vmem:[#allocation2 + $0x8] sm:$0xff]
    %v798 = vld [vmem:[#allocation2 + $0x10] sm:$0xff]
    %v799 = vld [vmem:[#allocation2 + $0x18] sm:$0xff]
    %v800 = vld [vmem:[#allocation2 + $0x20] sm:$0xff]
    %v801 = vld [vmem:[#allocation2 + $0x28] sm:$0xff]
    %v802 = vld [vmem:[#allocation2 + $0x30] sm:$0xff]
    %v803 = vld [vmem:[#allocation2 + $0x38] sm:$0xff]
    %v804 = vld [vmem:[#allocation2 + $0x40] sm:$0xff]
    %v805 = vld [vmem:[#allocation2 + $0x48] sm:$0xff]
    %v806 = vld [vmem:[#allocation2 + $0x50] sm:$0xff]
    %v807 = vld [vmem:[#allocation2 + $0x58] sm:$0xff]
    %v808 = vld [vmem:[#allocation2 + $0x60] sm:$0xff]
    %v809 = vld [vmem:[#allocation2 + $0x68] sm:$0xff]
    %v810 = vld [vmem:[#allocation2 + $0x70] sm:$0xff]
    %v811 = vld [vmem:[#allocation2 + $0x78] sm:$0xff]
    %v812 = vld [vmem:[#allocation2 + $0x80] sm:$0xff]
    %v813 = vld [vmem:[#allocation2 + $0x88] sm:$0xff]
    %v814 = vld [vmem:[#allocation2 + $0x90] sm:$0xff]
    %v815 = vld [vmem:[#allocation2 + $0x98] sm:$0xff]
    %v816 = vld [vmem:[#allocation2 + $0xa0] sm:$0xff]
    %v817 = vld [vmem:[#allocation2 + $0xa8] sm:$0xff]
    %v818 = vld [vmem:[#allocation2 + $0xb0] sm:$0xff]
    %v819 = vld [vmem:[#allocation2 + $0xb8] sm:$0xff]
    %v820 = vld [vmem:[#allocation2 + $0xc0] sm:$0xff]
    %v821 = vld [vmem:[#allocation2 + $0xc8] sm:$0xff]
    %v822 = vld [vmem:[#allocation2 + $0xd0] sm:$0xff]
    %v823 = vld [vmem:[#allocation2 + $0xd8] sm:$0xff]
    %v824 = vld [vmem:[#allocation2 + $0xe0] sm:$0xff]
    %v825 = vld [vmem:[#allocation2 + $0xe8] sm:$0xff]
    %v826 = vld [vmem:[#allocation2 + $0xf0] sm:$0xff]
    %v827 = vld [vmem:[#allocation2 + $0xf8] sm:$0xff]
    %v828 = vld [vmem:[#allocation2 + $0x100] sm:$0xff]
    %v829 = vld [vmem:[#allocation2 + $0x108] sm:$0xff]
    %v830 = vld [vmem:[#allocation2 + $0x110] sm:$0xff]
    %v831 = vld [vmem:[#allocation2 + $0x118] sm:$0xff]
    %v832 = vld [vmem:[#allocation2 + $0x120] sm:$0xff]
    %v833 = vld [vmem:[#allocation2 + $0x128] sm:$0xff]
    %v834 = vld [vmem:[#allocation2 + $0x130] sm:$0xff]
    %v835 = vld [vmem:[#allocation2 + $0x138] sm:$0xff]
    %v836 = vld [vmem:[#allocation2 + $0x140] sm:$0xff]
    %v837 = vld [vmem:[#allocation2 + $0x148] sm:$0xff]
    %v838 = vld [vmem:[#allocation2 + $0x150] sm:$0xff]
    %v839 = vld [vmem:[#allocation2 + $0x158] sm:$0xff]
    %v840 = vld [vmem:[#allocation2 + $0x160] sm:$0xff]
    %v841 = vld [vmem:[#allocation2 + $0x168] sm:$0xff]
    %v842 = vld [vmem:[#allocation2 + $0x170] sm:$0xff]
    %v843 = vld [vmem:[#allocation2 + $0x178] sm:$0xff]
    %v844 = vld [vmem:[#allocation2 + $0x180] sm:$0xff]
    %v845 = vld [vmem:[#allocation2 + $0x188] sm:$0xff]
    %v846 = vld [vmem:[#allocation2 + $0x190] sm:$0xff]
    %v847 = vld [vmem:[#allocation2 + $0x198] sm:$0xff]
    %v848 = vld [vmem:[#allocation2 + $0x1a0] sm:$0xff]
    %v849 = vld [vmem:[#allocation2 + $0x1a8] sm:$0xff]
    %v850 = vld [vmem:[#allocation2 + $0x1b0] sm:$0xff]
    %v851 = vld [vmem:[#allocation2 + $0x1b8] sm:$0xff]
    %v852 = vld [vmem:[#allocation2 + $0x1c0] sm:$0xff]
    %v853 = vld [vmem:[#allocation2 + $0x1c8] sm:$0xff]
    %v854 = vld [vmem:[#allocation2 + $0x1d0] sm:$0xff]
    %v855 = vld [vmem:[#allocation2 + $0x1d8] sm:$0xff]
    %v856 = vld [vmem:[#allocation2 + $0x1e0] sm:$0xff]
    %v857 = vld [vmem:[#allocation2 + $0x1e8] sm:$0xff]
    %v858 = vld [vmem:[#allocation2 + $0x1f0] sm:$0xff]
    %v859 = vld [vmem:[#allocation2 + $0x1f8] sm:$0xff]
    %v860 = vld [vmem:[#allocation2 + $0x200] sm:$0xff]
    %v861 = vld [vmem:[#allocation2 + $0x208] sm:$0xff]
    %v862 = vld [vmem:[#allocation2 + $0x210] sm:$0xff]
    %v863 = vld [vmem:[#allocation2 + $0x218] sm:$0xff]
    %v864 = vld [vmem:[#allocation2 + $0x220] sm:$0xff]
    %v865 = vld [vmem:[#allocation2 + $0x228] sm:$0xff]
    %v866 = vld [vmem:[#allocation2 + $0x230] sm:$0xff]
    %v867 = vld [vmem:[#allocation2 + $0x238] sm:$0xff]
    %v868 = vld [vmem:[#allocation2 + $0x240] sm:$0xff]
    %v869 = vld [vmem:[#allocation2 + $0x248] sm:$0xff]
    %v870 = vld [vmem:[#allocation2 + $0x250] sm:$0xff]
    %v871 = vld [vmem:[#allocation2 + $0x258] sm:$0xff]
    %v872 = vld [vmem:[#allocation2 + $0x260] sm:$0xff]
    %v873 = vld [vmem:[#allocation2 + $0x268] sm:$0xff]
    %v874 = vld [vmem:[#allocation2 + $0x270] sm:$0xff]
    %v875 = vld [vmem:[#allocation2 + $0x278] sm:$0xff]
    %v876 = vld [vmem:[#allocation2 + $0x280] sm:$0xff]
    %v877 = vld [vmem:[#allocation2 + $0x288] sm:$0xff]
    %v878 = vld [vmem:[#allocation2 + $0x290] sm:$0xff]
    %v879 = vld [vmem:[#allocation2 + $0x298] sm:$0xff]
    %v880 = vld [vmem:[#allocation2 + $0x2a0] sm:$0xff]
    %v881 = vld [vmem:[#allocation2 + $0x2a8] sm:$0xff]
    %v882 = vld [vmem:[#allocation2 + $0x2b0] sm:$0xff]
    %v883 = vld [vmem:[#allocation2 + $0x2b8] sm:$0xff]
    %v884 = vld [vmem:[#allocation2 + $0x2c0] sm:$0xff]
    %v885 = vld [vmem:[#allocation2 + $0x2c8] sm:$0xff]
    %v886 = vld [vmem:[#allocation2 + $0x2d0] sm:$0xff]
    %v887 = vld [vmem:[#allocation2 + $0x2d8] sm:$0xff]
    %v888 = vld [vmem:[#allocation2 + $0x2e0] sm:$0xff]
    %v889 = vld [vmem:[#allocation2 + $0x2e8] sm:$0xff]
    %v890 = vld [vmem:[#allocation2 + $0x2f0] sm:$0xff]
    %v891 = vld [vmem:[#allocation2 + $0x2f8] sm:$0xff]
    %v892 = vld [vmem:[#allocation2 + $0x300] sm:$0xff]
    %v893 = vld [vmem:[#allocation2 + $0x308] sm:$0xff]
    %v894 = vld [vmem:[#allocation2 + $0x310] sm:$0xff]
    %v895 = vld [vmem:[#allocation2 + $0x318] sm:$0xff]
    %v896 = vld [vmem:[#allocation2 + $0x320] sm:$0xff]
    %v897 = vld [vmem:[#allocation2 + $0x328] sm:$0xff]
    %v898 = vld [vmem:[#allocation2 + $0x330] sm:$0xff]
    %v899 = vld [vmem:[#allocation2 + $0x338] sm:$0xff]
    %v900 = vld [vmem:[#allocation2 + $0x340] sm:$0xff]
    %v901 = vld [vmem:[#allocation2 + $0x348] sm:$0xff]
    %v902 = vld [vmem:[#allocation2 + $0x350] sm:$0xff]
    %v903 = vld [vmem:[#allocation2 + $0x358] sm:$0xff]
    %v904 = vld [vmem:[#allocation2 + $0x360] sm:$0xff]
    %v905 = vld [vmem:[#allocation2 + $0x368] sm:$0xff]
    %v906 = vld [vmem:[#allocation2 + $0x370] sm:$0xff]
    %v907 = vld [vmem:[#allocation2 + $0x378] sm:$0xff]
    %v908 = vld [vmem:[#allocation2 + $0x380] sm:$0xff]
    %v909 = vld [vmem:[#allocation2 + $0x388] sm:$0xff]
    %v910 = vld [vmem:[#allocation2 + $0x390] sm:$0xff]
    %v911 = vld [vmem:[#allocation2 + $0x398] sm:$0xff]
    %v912 = vld [vmem:[#allocation2 + $0x3a0] sm:$0xff]
    %v913 = vld [vmem:[#allocation2 + $0x3a8] sm:$0xff]
    %v914 = vld [vmem:[#allocation2 + $0x3b0] sm:$0xff]
    %v915 = vld [vmem:[#allocation2 + $0x3b8] sm:$0xff]
    %v916 = vld [vmem:[#allocation2 + $0x3c0] sm:$0xff]
    %v917 = vld [vmem:[#allocation2 + $0x3c8] sm:$0xff]
    %v918 = vld [vmem:[#allocation2 + $0x3d0] sm:$0xff]
    %v919 = vld [vmem:[#allocation2 + $0x3d8] sm:$0xff]
    %v920 = vld [vmem:[#allocation2 + $0x3e0] sm:$0xff]
    %v921 = vld [vmem:[#allocation2 + $0x3e8] sm:$0xff]
    %v922 = vld [vmem:[#allocation2 + $0x3f0] sm:$0xff]
    %v923 = vld [vmem:[#allocation2 + $0x3f8] sm:$0xff]
    %s924 = scalar_lea.vmem %s4, 4
    %v925 = vld [vmem:[%s924] sm:$0xf]
    %v927 = vlaneseq
    %v928 = vshrl.u32 %v927, 7
    %v929 = vsub.s32 0, %v928
    %v930 = vrot.slane %v925, %v929
    %v931 = vlaneseq
    %v932 = vshrl.u32 %v931, 7
    %v933 = vsub.s32 1, %v932
    %v934 = vrot.slane %v925, %v933
    %v935 = vlaneseq
    %v936 = vshrl.u32 %v935, 7
    %v937 = vsub.s32 2, %v936
    %v938 = vrot.slane %v925, %v937
    %v939 = vlaneseq
    %v940 = vshrl.u32 %v939, 7
    %v941 = vsub.s32 3, %v940
    %v942 = vrot.slane %v925, %v941
    %947 = vmatprep.subr.mxu0 %v797
    %948 = vmatpush1.msra.mxu0 %v796
    %949 = vmatprep.subr.mxu0 %v801
    %950 = vmatpush1.msra.mxu0 %v800
    %951 = vmatprep.subr.mxu0 %v805
    %952 = vmatpush1.msra.mxu0 %v804
    %953 = vmatprep.subr.mxu0 %v809
    %954 = vmatpush1.msra.mxu0 %v808
    %955 = vmatprep.subr.mxu0 %v813
    %956 = vmatpush1.msra.mxu0 %v812
    %957 = vmatprep.subr.mxu0 %v817
    %958 = vmatpush1.msra.mxu0 %v816
    %959 = vmatprep.subr.mxu0 %v821
    %960 = vmatpush1.msra.mxu0 %v820
    %961 = vmatprep.subr.mxu0 %v825
    %962 = vmatpush1.msra.mxu0 %v824
    %963 = vmatprep.subr.mxu0 %v829
    %964 = vmatpush1.msra.mxu0 %v828
    %965 = vmatprep.subr.mxu0 %v833
    %966 = vmatpush1.msra.mxu0 %v832
    %967 = vmatprep.subr.mxu0 %v837
    %968 = vmatpush1.msra.mxu0 %v836
    %969 = vmatprep.subr.mxu0 %v841
    %970 = vmatpush1.msra.mxu0 %v840
    %971 = vmatprep.subr.mxu0 %v845
    %972 = vmatpush1.msra.mxu0 %v844
    %973 = vmatprep.subr.mxu0 %v849
    %974 = vmatpush1.msra.mxu0 %v848
    %975 = vmatprep.subr.mxu0 %v853
    %976 = vmatpush1.msra.mxu0 %v852
    %977 = vmatprep.subr.mxu0 %v857
    %978 = vmatpush1.msra.mxu0 %v856
    %979 = vmatprep.subr.mxu0 %v861
    %980 = vmatpush1.msra.mxu0 %v860
    %981 = vmatprep.subr.mxu0 %v865
    %982 = vmatpush1.msra.mxu0 %v864
    %983 = vmatprep.subr.mxu0 %v869
    %984 = vmatpush1.msra.mxu0 %v868
    %985 = vmatprep.subr.mxu0 %v873
    %986 = vmatpush1.msra.mxu0 %v872
    %987 = vmatprep.subr.mxu0 %v877
    %988 = vmatpush1.msra.mxu0 %v876
    %989 = vmatprep.subr.mxu0 %v881
    %990 = vmatpush1.msra.mxu0 %v880
    %991 = vmatprep.subr.mxu0 %v885
    %992 = vmatpush1.msra.mxu0 %v884
    %993 = vmatprep.subr.mxu0 %v889
    %994 = vmatpush1.msra.mxu0 %v888
    %995 = vmatprep.subr.mxu0 %v893
    %996 = vmatpush1.msra.mxu0 %v892
    %997 = vmatprep.subr.mxu0 %v897
    %998 = vmatpush1.msra.mxu0 %v896
    %999 = vmatprep.subr.mxu0 %v901
    %1000 = vmatpush1.msra.mxu0 %v900
    %1001 = vmatprep.subr.mxu0 %v905
    %1002 = vmatpush1.msra.mxu0 %v904
    %1003 = vmatprep.subr.mxu0 %v909
    %1004 = vmatpush1.msra.mxu0 %v908
    %1005 = vmatprep.subr.mxu0 %v913
    %1006 = vmatpush1.msra.mxu0 %v912
    %1007 = vmatprep.subr.mxu0 %v917
    %1008 = vmatpush1.msra.mxu0 %v916
    %1009 = vmatprep.subr.mxu0 %v921
    %1010 = vmatpush1.msra.mxu0 %v920
    %1011 = vmatprep.mubr.f32.mxu0 0.0
    %1012 = vmatmul.mubr.f32.gmra.mrb[0].mxu0 %v617
    %v1013 = vpop.f32.mrb[0].mxu0
    %v1014 = vadd.f32 %v930, %v1013
    %v1015 = vpop.f32.mrb[0].mxu0
    %v1016 = vadd.f32 %v934, %v1015
    %1017 = vdwg.mxu0
    %1018 = vmatprep.subr.mxu0 %v799
    %1019 = vmatpush1.msra.mxu0 %v798
    %1020 = vmatprep.subr.mxu0 %v803
    %1021 = vmatpush1.msra.mxu0 %v802
    %1022 = vmatprep.subr.mxu0 %v807
    %1023 = vmatpush1.msra.mxu0 %v806
    %1024 = vmatprep.subr.mxu0 %v811
    %1025 = vmatpush1.msra.mxu0 %v810
    %1026 = vmatprep.subr.mxu0 %v815
    %1027 = vmatpush1.msra.mxu0 %v814
    %1028 = vmatprep.subr.mxu0 %v819
    %1029 = vmatpush1.msra.mxu0 %v818
    %1030 = vmatprep.subr.mxu0 %v823
    %1031 = vmatpush1.msra.mxu0 %v822
    %1032 = vmatprep.subr.mxu0 %v827
    %1033 = vmatpush1.msra.mxu0 %v826
    %1034 = vmatprep.subr.mxu0 %v831
    %1035 = vmatpush1.msra.mxu0 %v830
    %1036 = vmatprep.subr.mxu0 %v835
    %1037 = vmatpush1.msra.mxu0 %v834
    %1038 = vmatprep.subr.mxu0 %v839
    %1039 = vmatpush1.msra.mxu0 %v838
    %1040 = vmatprep.subr.mxu0 %v843
    %1041 = vmatpush1.msra.mxu0 %v842
    %1042 = vmatprep.subr.mxu0 %v847
    %1043 = vmatpush1.msra.mxu0 %v846
    %1044 = vmatprep.subr.mxu0 %v851
    %1045 = vmatpush1.msra.mxu0 %v850
    %1046 = vmatprep.subr.mxu0 %v855
    %1047 = vmatpush1.msra.mxu0 %v854
    %1048 = vmatprep.subr.mxu0 %v859
    %1049 = vmatpush1.msra.mxu0 %v858
    %1050 = vmatprep.subr.mxu0 %v863
    %1051 = vmatpush1.msra.mxu0 %v862
    %1052 = vmatprep.subr.mxu0 %v867
    %1053 = vmatpush1.msra.mxu0 %v866
    %1054 = vmatprep.subr.mxu0 %v871
    %1055 = vmatpush1.msra.mxu0 %v870
    %1056 = vmatprep.subr.mxu0 %v875
    %1057 = vmatpush1.msra.mxu0 %v874
    %1058 = vmatprep.subr.mxu0 %v879
    %1059 = vmatpush1.msra.mxu0 %v878
    %1060 = vmatprep.subr.mxu0 %v883
    %1061 = vmatpush1.msra.mxu0 %v882
    %1062 = vmatprep.subr.mxu0 %v887
    %1063 = vmatpush1.msra.mxu0 %v886
    %1064 = vmatprep.subr.mxu0 %v891
    %1065 = vmatpush1.msra.mxu0 %v890
    %1066 = vmatprep.subr.mxu0 %v895
    %1067 = vmatpush1.msra.mxu0 %v894
    %1068 = vmatprep.subr.mxu0 %v899
    %1069 = vmatpush1.msra.mxu0 %v898
    %1070 = vmatprep.subr.mxu0 %v903
    %1071 = vmatpush1.msra.mxu0 %v902
    %1072 = vmatprep.subr.mxu0 %v907
    %1073 = vmatpush1.msra.mxu0 %v906
    %1074 = vmatprep.subr.mxu0 %v911
    %1075 = vmatpush1.msra.mxu0 %v910
    %1076 = vmatprep.subr.mxu0 %v915
    %1077 = vmatpush1.msra.mxu0 %v914
    %1078 = vmatprep.subr.mxu0 %v919
    %1079 = vmatpush1.msra.mxu0 %v918
    %1080 = vmatprep.subr.mxu0 %v923
    %1081 = vmatpush1.msra.mxu0 %v922
    %1082 = vmatprep.mubr.f32.mxu0 0.0
    %1083 = vmatmul.mubr.f32.gmra.mrb[0].mxu0 %v617
    %v1084 = vpop.f32.mrb[0].mxu0
    %v1085 = vadd.f32 %v938, %v1084
    %v1086 = vpop.f32.mrb[0].mxu0
    %v1087 = vadd.f32 %v942, %v1086
    %1088 = vdwg.mxu0
    %v1089 = vxor.u32 %v1014, 2147483648
    %v1090 = vxor.u32 %v1016, 2147483648
    %v1091 = vxor.u32 %v1085, 2147483648
    %v1092 = vmul.f32 %v1089, 1.442695
    %v1093 = vpow.pop %v1092
    %v1094 = vmul.f32 %v1090, 1.442695
    %v1095 = vpow.pop %v1094
    %v1096 = vmul.f32 %v1091, 1.442695
    %v1097 = vpow.pop %v1096
    %v1098 = vadd.f32 %v1093, 1.0
    %v1099 = vadd.f32 %v1095, 1.0
    %v1100 = vadd.f32 %v1097, 1.0
    %v1101 = vrcp.pop %v1098
    %v1102 = vmul.f32 1.0, %v1101
    %v1103 = vrcp.pop %v1099
    %v1104 = vmul.f32 1.0, %v1103
    %v1105 = vrcp.pop %v1100
    %v1106 = vmul.f32 1.0, %v1105
    %v1107 = vtanh.pop %v1087
    %v1108 = vmul.f32 %v1104, 0.0
    %v1109 = vmul.f32 %v1102, %v1107
    %v1110 = vadd.f32 %v1108, %v1109
    %v1111 = vtanh.pop %v1110
    %v1112 = vmul.f32 %v1106, %v1111
    %v1113 = vld [vmem:[#allocation5 + $0x40] sm:$0xff]
    %v1114 = vld [vmem:[#allocation5 + $0x48] sm:$0xff]
    %v1115 = vld [vmem:[#allocation5 + $0x50] sm:$0xff]
    %v1116 = vld [vmem:[#allocation5 + $0x58] sm:$0xff]
    %v1117 = vld [vmem:[#allocation7] sm:$0xff]
    %v1118 = vld [vmem:[#allocation7 + $0x8] sm:$0xff]
    %v1119 = vld [vmem:[#allocation7 + $0x10] sm:$0xff]
    %v1120 = vld [vmem:[#allocation7 + $0x18] sm:$0xff]
    %v1121 = vld [vmem:[#allocation7 + $0x20] sm:$0xff]
    %v1122 = vld [vmem:[#allocation7 + $0x28] sm:$0xff]
    %v1123 = vld [vmem:[#allocation7 + $0x30] sm:$0xff]
    %v1124 = vld [vmem:[#allocation7 + $0x38] sm:$0xff]
    %v1125 = vld [vmem:[#allocation7 + $0x40] sm:$0xff]
    %v1126 = vld [vmem:[#allocation7 + $0x48] sm:$0xff]
    %v1127 = vld [vmem:[#allocation7 + $0x50] sm:$0xff]
    %v1128 = vld [vmem:[#allocation7 + $0x58] sm:$0xff]
    %v1129 = vld [vmem:[#allocation7 + $0x60] sm:$0xff]
    %v1130 = vld [vmem:[#allocation7 + $0x68] sm:$0xff]
    %v1131 = vld [vmem:[#allocation7 + $0x70] sm:$0xff]
    %v1132 = vld [vmem:[#allocation7 + $0x78] sm:$0xff]
    %v1133 = vld [vmem:[#allocation7 + $0x80] sm:$0xff]
    %v1134 = vld [vmem:[#allocation7 + $0x88] sm:$0xff]
    %v1135 = vld [vmem:[#allocation7 + $0x90] sm:$0xff]
    %v1136 = vld [vmem:[#allocation7 + $0x98] sm:$0xff]
    %v1137 = vld [vmem:[#allocation7 + $0xa0] sm:$0xff]
    %v1138 = vld [vmem:[#allocation7 + $0xa8] sm:$0xff]
    %v1139 = vld [vmem:[#allocation7 + $0xb0] sm:$0xff]
    %v1140 = vld [vmem:[#allocation7 + $0xb8] sm:$0xff]
    %v1141 = vld [vmem:[#allocation7 + $0xc0] sm:$0xff]
    %v1142 = vld [vmem:[#allocation7 + $0xc8] sm:$0xff]
    %v1143 = vld [vmem:[#allocation7 + $0xd0] sm:$0xff]
    %v1144 = vld [vmem:[#allocation7 + $0xd8] sm:$0xff]
    %v1145 = vld [vmem:[#allocation7 + $0xe0] sm:$0xff]
    %v1146 = vld [vmem:[#allocation7 + $0xe8] sm:$0xff]
    %v1147 = vld [vmem:[#allocation7 + $0xf0] sm:$0xff]
    %v1148 = vld [vmem:[#allocation7 + $0xf8] sm:$0xff]
    %v1149 = vld [vmem:[#allocation7 + $0x100] sm:$0xff]
    %v1150 = vld [vmem:[#allocation7 + $0x108] sm:$0xff]
    %v1151 = vld [vmem:[#allocation7 + $0x110] sm:$0xff]
    %v1152 = vld [vmem:[#allocation7 + $0x118] sm:$0xff]
    %v1153 = vld [vmem:[#allocation7 + $0x120] sm:$0xff]
    %v1154 = vld [vmem:[#allocation7 + $0x128] sm:$0xff]
    %v1155 = vld [vmem:[#allocation7 + $0x130] sm:$0xff]
    %v1156 = vld [vmem:[#allocation7 + $0x138] sm:$0xff]
    %v1157 = vld [vmem:[#allocation7 + $0x140] sm:$0xff]
    %v1158 = vld [vmem:[#allocation7 + $0x148] sm:$0xff]
    %v1159 = vld [vmem:[#allocation7 + $0x150] sm:$0xff]
    %v1160 = vld [vmem:[#allocation7 + $0x158] sm:$0xff]
    %v1161 = vld [vmem:[#allocation7 + $0x160] sm:$0xff]
    %v1162 = vld [vmem:[#allocation7 + $0x168] sm:$0xff]
    %v1163 = vld [vmem:[#allocation7 + $0x170] sm:$0xff]
    %v1164 = vld [vmem:[#allocation7 + $0x178] sm:$0xff]
    %v1165 = vld [vmem:[#allocation7 + $0x180] sm:$0xff]
    %v1166 = vld [vmem:[#allocation7 + $0x188] sm:$0xff]
    %v1167 = vld [vmem:[#allocation7 + $0x190] sm:$0xff]
    %v1168 = vld [vmem:[#allocation7 + $0x198] sm:$0xff]
    %v1169 = vld [vmem:[#allocation7 + $0x1a0] sm:$0xff]
    %v1170 = vld [vmem:[#allocation7 + $0x1a8] sm:$0xff]
    %v1171 = vld [vmem:[#allocation7 + $0x1b0] sm:$0xff]
    %v1172 = vld [vmem:[#allocation7 + $0x1b8] sm:$0xff]
    %v1173 = vld [vmem:[#allocation7 + $0x1c0] sm:$0xff]
    %v1174 = vld [vmem:[#allocation7 + $0x1c8] sm:$0xff]
    %v1175 = vld [vmem:[#allocation7 + $0x1d0] sm:$0xff]
    %v1176 = vld [vmem:[#allocation7 + $0x1d8] sm:$0xff]
    %v1177 = vld [vmem:[#allocation7 + $0x1e0] sm:$0xff]
    %v1178 = vld [vmem:[#allocation7 + $0x1e8] sm:$0xff]
    %v1179 = vld [vmem:[#allocation7 + $0x1f0] sm:$0xff]
    %v1180 = vld [vmem:[#allocation7 + $0x1f8] sm:$0xff]
    %1181 = vmatprep.subr.mxu0 %v1118
    %1182 = vmatpush1.msra.mxu0 %v1117
    %1183 = vmatprep.subr.mxu0 %v1122
    %1184 = vmatpush1.msra.mxu0 %v1121
    %1185 = vmatprep.subr.mxu0 %v1126
    %1186 = vmatpush1.msra.mxu0 %v1125
    %1187 = vmatprep.subr.mxu0 %v1130
    %1188 = vmatpush1.msra.mxu0 %v1129
    %1189 = vmatprep.subr.mxu0 %v1134
    %1190 = vmatpush1.msra.mxu0 %v1133
    %1191 = vmatprep.subr.mxu0 %v1138
    %1192 = vmatpush1.msra.mxu0 %v1137
    %1193 = vmatprep.subr.mxu0 %v1142
    %1194 = vmatpush1.msra.mxu0 %v1141
    %1195 = vmatprep.subr.mxu0 %v1146
    %1196 = vmatpush1.msra.mxu0 %v1145
    %1197 = vmatprep.subr.mxu0 %v1150
    %1198 = vmatpush1.msra.mxu0 %v1149
    %1199 = vmatprep.subr.mxu0 %v1154
    %1200 = vmatpush1.msra.mxu0 %v1153
    %1201 = vmatprep.subr.mxu0 %v1158
    %1202 = vmatpush1.msra.mxu0 %v1157
    %1203 = vmatprep.subr.mxu0 %v1162
    %1204 = vmatpush1.msra.mxu0 %v1161
    %1205 = vmatprep.subr.mxu0 %v1166
    %1206 = vmatpush1.msra.mxu0 %v1165
    %1207 = vmatprep.subr.mxu0 %v1170
    %1208 = vmatpush1.msra.mxu0 %v1169
    %1209 = vmatprep.subr.mxu0 %v1174
    %1210 = vmatpush1.msra.mxu0 %v1173
    %1211 = vmatprep.subr.mxu0 %v1178
    %1212 = vmatpush1.msra.mxu0 %v1177
    %1213 = vmatprep.subr.mxu0 0.0
    %1214 = vmatpush1.msra.mxu0 0.0
    %1215 = vmatprep.subr.mxu0 0.0
    %1216 = vmatpush1.msra.mxu0 0.0
    %1217 = vmatprep.subr.mxu0 0.0
    %1218 = vmatpush1.msra.mxu0 0.0
    %1219 = vmatprep.subr.mxu0 0.0
    %1220 = vmatpush1.msra.mxu0 0.0
    %1221 = vmatprep.subr.mxu0 0.0
    %1222 = vmatpush1.msra.mxu0 0.0
    %1223 = vmatprep.subr.mxu0 0.0
    %1224 = vmatpush1.msra.mxu0 0.0
    %1225 = vmatprep.subr.mxu0 0.0
    %1226 = vmatpush1.msra.mxu0 0.0
    %1227 = vmatprep.subr.mxu0 0.0
    %1228 = vmatpush1.msra.mxu0 0.0
    %1229 = vmatprep.subr.mxu0 0.0
    %1230 = vmatpush1.msra.mxu0 0.0
    %1231 = vmatprep.subr.mxu0 0.0
    %1232 = vmatpush1.msra.mxu0 0.0
    %1233 = vmatprep.subr.mxu0 0.0
    %1234 = vmatpush1.msra.mxu0 0.0
    %1235 = vmatprep.subr.mxu0 0.0
    %1236 = vmatpush1.msra.mxu0 0.0
    %1237 = vmatprep.subr.mxu0 0.0
    %1238 = vmatpush1.msra.mxu0 0.0
    %1239 = vmatprep.subr.mxu0 0.0
    %1240 = vmatpush1.msra.mxu0 0.0
    %1241 = vmatprep.subr.mxu0 0.0
    %1242 = vmatpush1.msra.mxu0 0.0
    %1243 = vmatprep.subr.mxu0 0.0
    %1244 = vmatpush1.msra.mxu0 0.0
    %1245 = vmatprep.mubr.f32.mxu0 0.0
    %1246 = vmatmul.mubr.f32.gmra.mrb[0].mxu0 %v791
    %v1247 = vpop.f32.mrb[0].mxu0
    %v1248 = vadd.f32 0.0, %v1247
    %v1249 = vpop.f32.mrb[0].mxu0
    %v1250 = vadd.f32 0.0, %v1249
    %1251 = vdwg.mxu0
    %1252 = vmatprep.subr.mxu0 %v1120
    %1253 = vmatpush1.msra.mxu0 %v1119
    %1254 = vmatprep.subr.mxu0 %v1124
    %1255 = vmatpush1.msra.mxu0 %v1123
    %1256 = vmatprep.subr.mxu0 %v1128
    %1257 = vmatpush1.msra.mxu0 %v1127
    %1258 = vmatprep.subr.mxu0 %v1132
    %1259 = vmatpush1.msra.mxu0 %v1131
    %1260 = vmatprep.subr.mxu0 %v1136
    %1261 = vmatpush1.msra.mxu0 %v1135
    %1262 = vmatprep.subr.mxu0 %v1140
    %1263 = vmatpush1.msra.mxu0 %v1139
    %1264 = vmatprep.subr.mxu0 %v1144
    %1265 = vmatpush1.msra.mxu0 %v1143
    %1266 = vmatprep.subr.mxu0 %v1148
    %1267 = vmatpush1.msra.mxu0 %v1147
    %1268 = vmatprep.subr.mxu0 %v1152
    %1269 = vmatpush1.msra.mxu0 %v1151
    %1270 = vmatprep.subr.mxu0 %v1156
    %1271 = vmatpush1.msra.mxu0 %v1155
    %1272 = vmatprep.subr.mxu0 %v1160
    %1273 = vmatpush1.msra.mxu0 %v1159
    %1274 = vmatprep.subr.mxu0 %v1164
    %1275 = vmatpush1.msra.mxu0 %v1163
    %1276 = vmatprep.subr.mxu0 %v1168
    %1277 = vmatpush1.msra.mxu0 %v1167
    %1278 = vmatprep.subr.mxu0 %v1172
    %1279 = vmatpush1.msra.mxu0 %v1171
    %1280 = vmatprep.subr.mxu0 %v1176
    %1281 = vmatpush1.msra.mxu0 %v1175
    %1282 = vmatprep.subr.mxu0 %v1180
    %1283 = vmatpush1.msra.mxu0 %v1179
    %1284 = vmatprep.subr.mxu0 0.0
    %1285 = vmatpush1.msra.mxu0 0.0
    %1286 = vmatprep.subr.mxu0 0.0
    %1287 = vmatpush1.msra.mxu0 0.0
    %1288 = vmatprep.subr.mxu0 0.0
    %1289 = vmatpush1.msra.mxu0 0.0
    %1290 = vmatprep.subr.mxu0 0.0
    %1291 = vmatpush1.msra.mxu0 0.0
    %1292 = vmatprep.subr.mxu0 0.0
    %1293 = vmatpush1.msra.mxu0 0.0
    %1294 = vmatprep.subr.mxu0 0.0
    %1295 = vmatpush1.msra.mxu0 0.0
    %1296 = vmatprep.subr.mxu0 0.0
    %1297 = vmatpush1.msra.mxu0 0.0
    %1298 = vmatprep.subr.mxu0 0.0
    %1299 = vmatpush1.msra.mxu0 0.0
    %1300 = vmatprep.subr.mxu0 0.0
    %1301 = vmatpush1.msra.mxu0 0.0
    %1302 = vmatprep.subr.mxu0 0.0
    %1303 = vmatpush1.msra.mxu0 0.0
    %1304 = vmatprep.subr.mxu0 0.0
    %1305 = vmatpush1.msra.mxu0 0.0
    %1306 = vmatprep.subr.mxu0 0.0
    %1307 = vmatpush1.msra.mxu0 0.0
    %1308 = vmatprep.subr.mxu0 0.0
    %1309 = vmatpush1.msra.mxu0 0.0
    %1310 = vmatprep.subr.mxu0 0.0
    %1311 = vmatpush1.msra.mxu0 0.0
    %1312 = vmatprep.subr.mxu0 0.0
    %1313 = vmatpush1.msra.mxu0 0.0
    %1314 = vmatprep.subr.mxu0 0.0
    %1315 = vmatpush1.msra.mxu0 0.0
    %1316 = vmatprep.mubr.f32.mxu0 0.0
    %1317 = vmatmul.mubr.f32.gmra.mrb[0].mxu0 %v791
    %v1318 = vpop.f32.mrb[0].mxu0
    %v1319 = vadd.f32 0.0, %v1318
    %v1320 = vpop.f32.mrb[0].mxu0
    %v1321 = vadd.f32 0.0, %v1320
    %1322 = vdwg.mxu0
    %v1323 = vadd.f32 %v1113, %v1248
    %v1324 = vadd.f32 %v1114, %v1250
    %v1325 = vadd.f32 %v1115, %v1319
    %v1326 = vadd.f32 %v1116, %v1321
    %v1327 = vxor.u32 %v1323, 2147483648
    %v1328 = vxor.u32 %v1324, 2147483648
    %v1329 = vxor.u32 %v1325, 2147483648
    %v1330 = vmul.f32 %v1327, 1.442695
    %v1331 = vpow.pop %v1330
    %v1332 = vmul.f32 %v1328, 1.442695
    %v1333 = vpow.pop %v1332
    %v1334 = vmul.f32 %v1329, 1.442695
    %v1335 = vpow.pop %v1334
    %v1336 = vadd.f32 %v1331, 1.0
    %v1337 = vadd.f32 %v1333, 1.0
    %v1338 = vadd.f32 %v1335, 1.0
    %v1339 = vrcp.pop %v1336
    %v1340 = vmul.f32 1.0, %v1339
    %v1341 = vrcp.pop %v1337
    %v1342 = vmul.f32 1.0, %v1341
    %v1343 = vrcp.pop %v1338
    %v1344 = vmul.f32 1.0, %v1343
    %v1345 = vtanh.pop %v1326
    %v1346 = vmul.f32 %v1342, %v789
    %v1347 = vmul.f32 %v1340, %v1345
    %v1348 = vadd.f32 %v1346, %v1347
    %v1349 = vtanh.pop %v1348
    %v1350 = vmul.f32 %v1344, %v1349
    %1351 = vmatprep.subr.mxu0 %v797
    %1352 = vmatpush1.msra.mxu0 %v796
    %1353 = vmatprep.subr.mxu0 %v801
    %1354 = vmatpush1.msra.mxu0 %v800
    %1355 = vmatprep.subr.mxu0 %v805
    %1356 = vmatpush1.msra.mxu0 %v804
    %1357 = vmatprep.subr.mxu0 %v809
    %1358 = vmatpush1.msra.mxu0 %v808
    %1359 = vmatprep.subr.mxu0 %v813
    %1360 = vmatpush1.msra.mxu0 %v812
    %1361 = vmatprep.subr.mxu0 %v817
    %1362 = vmatpush1.msra.mxu0 %v816
    %1363 = vmatprep.subr.mxu0 %v821
    %1364 = vmatpush1.msra.mxu0 %v820
    %1365 = vmatprep.subr.mxu0 %v825
    %1366 = vmatpush1.msra.mxu0 %v824
    %1367 = vmatprep.subr.mxu0 %v829
    %1368 = vmatpush1.msra.mxu0 %v828
    %1369 = vmatprep.subr.mxu0 %v833
    %1370 = vmatpush1.msra.mxu0 %v832
    %1371 = vmatprep.subr.mxu0 %v837
    %1372 = vmatpush1.msra.mxu0 %v836
    %1373 = vmatprep.subr.mxu0 %v841
    %1374 = vmatpush1.msra.mxu0 %v840
    %1375 = vmatprep.subr.mxu0 %v845
    %1376 = vmatpush1.msra.mxu0 %v844
    %1377 = vmatprep.subr.mxu0 %v849
    %1378 = vmatpush1.msra.mxu0 %v848
    %1379 = vmatprep.subr.mxu0 %v853
    %1380 = vmatpush1.msra.mxu0 %v852
    %1381 = vmatprep.subr.mxu0 %v857
    %1382 = vmatpush1.msra.mxu0 %v856
    %1383 = vmatprep.subr.mxu0 %v861
    %1384 = vmatpush1.msra.mxu0 %v860
    %1385 = vmatprep.subr.mxu0 %v865
    %1386 = vmatpush1.msra.mxu0 %v864
    %1387 = vmatprep.subr.mxu0 %v869
    %1388 = vmatpush1.msra.mxu0 %v868
    %1389 = vmatprep.subr.mxu0 %v873
    %1390 = vmatpush1.msra.mxu0 %v872
    %1391 = vmatprep.subr.mxu0 %v877
    %1392 = vmatpush1.msra.mxu0 %v876
    %1393 = vmatprep.subr.mxu0 %v881
    %1394 = vmatpush1.msra.mxu0 %v880
    %1395 = vmatprep.subr.mxu0 %v885
    %1396 = vmatpush1.msra.mxu0 %v884
    %1397 = vmatprep.subr.mxu0 %v889
    %1398 = vmatpush1.msra.mxu0 %v888
    %1399 = vmatprep.subr.mxu0 %v893
    %1400 = vmatpush1.msra.mxu0 %v892
    %1401 = vmatprep.subr.mxu0 %v897
    %1402 = vmatpush1.msra.mxu0 %v896
    %1403 = vmatprep.subr.mxu0 %v901
    %1404 = vmatpush1.msra.mxu0 %v900
    %1405 = vmatprep.subr.mxu0 %v905
    %1406 = vmatpush1.msra.mxu0 %v904
    %1407 = vmatprep.subr.mxu0 %v909
    %1408 = vmatpush1.msra.mxu0 %v908
    %1409 = vmatprep.subr.mxu0 %v913
    %1410 = vmatpush1.msra.mxu0 %v912
    %1411 = vmatprep.subr.mxu0 %v917
    %1412 = vmatpush1.msra.mxu0 %v916
    %1413 = vmatprep.subr.mxu0 %v921
    %1414 = vmatpush1.msra.mxu0 %v920
    %1415 = vmatprep.mubr.f32.mxu0 %v1112
    %1416 = vmatmul.mubr.f32.gmra.mrb[0].mxu0 %v791
    %v1417 = vpop.f32.mrb[0].mxu0
    %v1418 = vadd.f32 %v930, %v1417
    %v1419 = vpop.f32.mrb[0].mxu0
    %v1420 = vadd.f32 %v934, %v1419
    %1421 = vdwg.mxu0
    %1422 = vmatprep.subr.mxu0 %v799
    %1423 = vmatpush1.msra.mxu0 %v798
    %1424 = vmatprep.subr.mxu0 %v803
    %1425 = vmatpush1.msra.mxu0 %v802
    %1426 = vmatprep.subr.mxu0 %v807
    %1427 = vmatpush1.msra.mxu0 %v806
    %1428 = vmatprep.subr.mxu0 %v811
    %1429 = vmatpush1.msra.mxu0 %v810
    %1430 = vmatprep.subr.mxu0 %v815
    %1431 = vmatpush1.msra.mxu0 %v814
    %1432 = vmatprep.subr.mxu0 %v819
    %1433 = vmatpush1.msra.mxu0 %v818
    %1434 = vmatprep.subr.mxu0 %v823
    %1435 = vmatpush1.msra.mxu0 %v822
    %1436 = vmatprep.subr.mxu0 %v827
    %1437 = vmatpush1.msra.mxu0 %v826
    %1438 = vmatprep.subr.mxu0 %v831
    %1439 = vmatpush1.msra.mxu0 %v830
    %1440 = vmatprep.subr.mxu0 %v835
    %1441 = vmatpush1.msra.mxu0 %v834
    %1442 = vmatprep.subr.mxu0 %v839
    %1443 = vmatpush1.msra.mxu0 %v838
    %1444 = vmatprep.subr.mxu0 %v843
    %1445 = vmatpush1.msra.mxu0 %v842
    %1446 = vmatprep.subr.mxu0 %v847
    %1447 = vmatpush1.msra.mxu0 %v846
    %1448 = vmatprep.subr.mxu0 %v851
    %1449 = vmatpush1.msra.mxu0 %v850
    %1450 = vmatprep.subr.mxu0 %v855
    %1451 = vmatpush1.msra.mxu0 %v854
    %1452 = vmatprep.subr.mxu0 %v859
    %1453 = vmatpush1.msra.mxu0 %v858
    %1454 = vmatprep.subr.mxu0 %v863
    %1455 = vmatpush1.msra.mxu0 %v862
    %1456 = vmatprep.subr.mxu0 %v867
    %1457 = vmatpush1.msra.mxu0 %v866
    %1458 = vmatprep.subr.mxu0 %v871
    %1459 = vmatpush1.msra.mxu0 %v870
    %1460 = vmatprep.subr.mxu0 %v875
    %1461 = vmatpush1.msra.mxu0 %v874
    %1462 = vmatprep.subr.mxu0 %v879
    %1463 = vmatpush1.msra.mxu0 %v878
    %1464 = vmatprep.subr.mxu0 %v883
    %1465 = vmatpush1.msra.mxu0 %v882
    %1466 = vmatprep.subr.mxu0 %v887
    %1467 = vmatpush1.msra.mxu0 %v886
    %1468 = vmatprep.subr.mxu0 %v891
    %1469 = vmatpush1.msra.mxu0 %v890
    %1470 = vmatprep.subr.mxu0 %v895
    %1471 = vmatpush1.msra.mxu0 %v894
    %1472 = vmatprep.subr.mxu0 %v899
    %1473 = vmatpush1.msra.mxu0 %v898
    %1474 = vmatprep.subr.mxu0 %v903
    %1475 = vmatpush1.msra.mxu0 %v902
    %1476 = vmatprep.subr.mxu0 %v907
    %1477 = vmatpush1.msra.mxu0 %v906
    %1478 = vmatprep.subr.mxu0 %v911
    %1479 = vmatpush1.msra.mxu0 %v910
    %1480 = vmatprep.subr.mxu0 %v915
    %1481 = vmatpush1.msra.mxu0 %v914
    %1482 = vmatprep.subr.mxu0 %v919
    %1483 = vmatpush1.msra.mxu0 %v918
    %1484 = vmatprep.subr.mxu0 %v923
    %1485 = vmatpush1.msra.mxu0 %v922
    %1486 = vmatprep.mubr.f32.mxu0 %v1112
    %1487 = vmatmul.mubr.f32.gmra.mrb[0].mxu0 %v791
    %v1488 = vpop.f32.mrb[0].mxu0
    %v1489 = vadd.f32 %v938, %v1488
    %v1490 = vpop.f32.mrb[0].mxu0
    %v1491 = vadd.f32 %v942, %v1490
    %1492 = vdwg.mxu0
    %v1493 = vxor.u32 %v1418, 2147483648
    %v1494 = vxor.u32 %v1420, 2147483648
    %v1495 = vxor.u32 %v1489, 2147483648
    %v1496 = vmul.f32 %v1493, 1.442695
    %v1497 = vpow.pop %v1496
    %v1498 = vmul.f32 %v1494, 1.442695
    %v1499 = vpow.pop %v1498
    %v1500 = vmul.f32 %v1495, 1.442695
    %v1501 = vpow.pop %v1500
    %v1502 = vadd.f32 %v1497, 1.0
    %v1503 = vadd.f32 %v1499, 1.0
    %v1504 = vadd.f32 %v1501, 1.0
    %v1505 = vrcp.pop %v1502
    %v1506 = vmul.f32 1.0, %v1505
    %v1507 = vrcp.pop %v1503
    %v1508 = vmul.f32 1.0, %v1507
    %v1509 = vrcp.pop %v1504
    %v1510 = vmul.f32 1.0, %v1509
    %v1511 = vtanh.pop %v1491
    %v1512 = vmul.f32 %v1508, %v1110
    %v1513 = vmul.f32 %v1506, %v1511
    %v1514 = vadd.f32 %v1512, %v1513
    %v1515 = vtanh.pop %v1514
    %v1516 = vmul.f32 %v1510, %v1515
    %s1517 = sshll.u32 %s793, 4
    %1518 = dma.done %s51, %s1517
    %v1519 = vld [vmem:[#allocation3] sm:$0xff]
    %v1520 = vld [vmem:[#allocation3 + $0x8] sm:$0xff]
    %v1521 = vld [vmem:[#allocation3 + $0x10] sm:$0xff]
    %v1522 = vld [vmem:[#allocation3 + $0x18] sm:$0xff]
    %v1523 = vld [vmem:[#allocation3 + $0x20] sm:$0xff]
    %v1524 = vld [vmem:[#allocation3 + $0x28] sm:$0xff]
    %v1525 = vld [vmem:[#allocation3 + $0x30] sm:$0xff]
    %v1526 = vld [vmem:[#allocation3 + $0x38] sm:$0xff]
    %v1527 = vld [vmem:[#allocation3 + $0x40] sm:$0xff]
    %v1528 = vld [vmem:[#allocation3 + $0x48] sm:$0xff]
    %v1529 = vld [vmem:[#allocation3 + $0x50] sm:$0xff]
    %v1530 = vld [vmem:[#allocation3 + $0x58] sm:$0xff]
    %v1531 = vld [vmem:[#allocation3 + $0x60] sm:$0xff]
    %v1532 = vld [vmem:[#allocation3 + $0x68] sm:$0xff]
    %v1533 = vld [vmem:[#allocation3 + $0x70] sm:$0xff]
    %v1534 = vld [vmem:[#allocation3 + $0x78] sm:$0xff]
    %v1535 = vld [vmem:[#allocation3 + $0x80] sm:$0xff]
    %v1536 = vld [vmem:[#allocation3 + $0x88] sm:$0xff]
    %v1537 = vld [vmem:[#allocation3 + $0x90] sm:$0xff]
    %v1538 = vld [vmem:[#allocation3 + $0x98] sm:$0xff]
    %v1539 = vld [vmem:[#allocation3 + $0xa0] sm:$0xff]
    %v1540 = vld [vmem:[#allocation3 + $0xa8] sm:$0xff]
    %v1541 = vld [vmem:[#allocation3 + $0xb0] sm:$0xff]
    %v1542 = vld [vmem:[#allocation3 + $0xb8] sm:$0xff]
    %v1543 = vld [vmem:[#allocation3 + $0xc0] sm:$0xff]
    %v1544 = vld [vmem:[#allocation3 + $0xc8] sm:$0xff]
    %v1545 = vld [vmem:[#allocation3 + $0xd0] sm:$0xff]
    %v1546 = vld [vmem:[#allocation3 + $0xd8] sm:$0xff]
    %v1547 = vld [vmem:[#allocation3 + $0xe0] sm:$0xff]
    %v1548 = vld [vmem:[#allocation3 + $0xe8] sm:$0xff]
    %v1549 = vld [vmem:[#allocation3 + $0xf0] sm:$0xff]
    %v1550 = vld [vmem:[#allocation3 + $0xf8] sm:$0xff]
    %v1551 = vld [vmem:[#allocation3 + $0x100] sm:$0xff]
    %v1552 = vld [vmem:[#allocation3 + $0x108] sm:$0xff]
    %v1553 = vld [vmem:[#allocation3 + $0x110] sm:$0xff]
    %v1554 = vld [vmem:[#allocation3 + $0x118] sm:$0xff]
    %v1555 = vld [vmem:[#allocation3 + $0x120] sm:$0xff]
    %v1556 = vld [vmem:[#allocation3 + $0x128] sm:$0xff]
    %v1557 = vld [vmem:[#allocation3 + $0x130] sm:$0xff]
    %v1558 = vld [vmem:[#allocation3 + $0x138] sm:$0xff]
    %v1559 = vld [vmem:[#allocation3 + $0x140] sm:$0xff]
    %v1560 = vld [vmem:[#allocation3 + $0x148] sm:$0xff]
    %v1561 = vld [vmem:[#allocation3 + $0x150] sm:$0xff]
    %v1562 = vld [vmem:[#allocation3 + $0x158] sm:$0xff]
    %v1563 = vld [vmem:[#allocation3 + $0x160] sm:$0xff]
    %v1564 = vld [vmem:[#allocation3 + $0x168] sm:$0xff]
    %v1565 = vld [vmem:[#allocation3 + $0x170] sm:$0xff]
    %v1566 = vld [vmem:[#allocation3 + $0x178] sm:$0xff]
    %v1567 = vld [vmem:[#allocation3 + $0x180] sm:$0xff]
    %v1568 = vld [vmem:[#allocation3 + $0x188] sm:$0xff]
    %v1569 = vld [vmem:[#allocation3 + $0x190] sm:$0xff]
    %v1570 = vld [vmem:[#allocation3 + $0x198] sm:$0xff]
    %v1571 = vld [vmem:[#allocation3 + $0x1a0] sm:$0xff]
    %v1572 = vld [vmem:[#allocation3 + $0x1a8] sm:$0xff]
    %v1573 = vld [vmem:[#allocation3 + $0x1b0] sm:$0xff]
    %v1574 = vld [vmem:[#allocation3 + $0x1b8] sm:$0xff]
    %v1575 = vld [vmem:[#allocation3 + $0x1c0] sm:$0xff]
    %v1576 = vld [vmem:[#allocation3 + $0x1c8] sm:$0xff]
    %v1577 = vld [vmem:[#allocation3 + $0x1d0] sm:$0xff]
    %v1578 = vld [vmem:[#allocation3 + $0x1d8] sm:$0xff]
    %v1579 = vld [vmem:[#allocation3 + $0x1e0] sm:$0xff]
    %v1580 = vld [vmem:[#allocation3 + $0x1e8] sm:$0xff]
    %v1581 = vld [vmem:[#allocation3 + $0x1f0] sm:$0xff]
    %v1582 = vld [vmem:[#allocation3 + $0x1f8] sm:$0xff]
    %v1583 = vld [vmem:[#allocation3 + $0x200] sm:$0xff]
    %v1584 = vld [vmem:[#allocation3 + $0x208] sm:$0xff]
    %v1585 = vld [vmem:[#allocation3 + $0x210] sm:$0xff]
    %v1586 = vld [vmem:[#allocation3 + $0x218] sm:$0xff]
    %v1587 = vld [vmem:[#allocation3 + $0x220] sm:$0xff]
    %v1588 = vld [vmem:[#allocation3 + $0x228] sm:$0xff]
    %v1589 = vld [vmem:[#allocation3 + $0x230] sm:$0xff]
    %v1590 = vld [vmem:[#allocation3 + $0x238] sm:$0xff]
    %v1591 = vld [vmem:[#allocation3 + $0x240] sm:$0xff]
    %v1592 = vld [vmem:[#allocation3 + $0x248] sm:$0xff]
    %v1593 = vld [vmem:[#allocation3 + $0x250] sm:$0xff]
    %v1594 = vld [vmem:[#allocation3 + $0x258] sm:$0xff]
    %v1595 = vld [vmem:[#allocation3 + $0x260] sm:$0xff]
    %v1596 = vld [vmem:[#allocation3 + $0x268] sm:$0xff]
    %v1597 = vld [vmem:[#allocation3 + $0x270] sm:$0xff]
    %v1598 = vld [vmem:[#allocation3 + $0x278] sm:$0xff]
    %v1599 = vld [vmem:[#allocation3 + $0x280] sm:$0xff]
    %v1600 = vld [vmem:[#allocation3 + $0x288] sm:$0xff]
    %v1601 = vld [vmem:[#allocation3 + $0x290] sm:$0xff]
    %v1602 = vld [vmem:[#allocation3 + $0x298] sm:$0xff]
    %v1603 = vld [vmem:[#allocation3 + $0x2a0] sm:$0xff]
    %v1604 = vld [vmem:[#allocation3 + $0x2a8] sm:$0xff]
    %v1605 = vld [vmem:[#allocation3 + $0x2b0] sm:$0xff]
    %v1606 = vld [vmem:[#allocation3 + $0x2b8] sm:$0xff]
    %v1607 = vld [vmem:[#allocation3 + $0x2c0] sm:$0xff]
    %v1608 = vld [vmem:[#allocation3 + $0x2c8] sm:$0xff]
    %v1609 = vld [vmem:[#allocation3 + $0x2d0] sm:$0xff]
    %v1610 = vld [vmem:[#allocation3 + $0x2d8] sm:$0xff]
    %v1611 = vld [vmem:[#allocation3 + $0x2e0] sm:$0xff]
    %v1612 = vld [vmem:[#allocation3 + $0x2e8] sm:$0xff]
    %v1613 = vld [vmem:[#allocation3 + $0x2f0] sm:$0xff]
    %v1614 = vld [vmem:[#allocation3 + $0x2f8] sm:$0xff]
    %v1615 = vld [vmem:[#allocation3 + $0x300] sm:$0xff]
    %v1616 = vld [vmem:[#allocation3 + $0x308] sm:$0xff]
    %v1617 = vld [vmem:[#allocation3 + $0x310] sm:$0xff]
    %v1618 = vld [vmem:[#allocation3 + $0x318] sm:$0xff]
    %v1619 = vld [vmem:[#allocation3 + $0x320] sm:$0xff]
    %v1620 = vld [vmem:[#allocation3 + $0x328] sm:$0xff]
    %v1621 = vld [vmem:[#allocation3 + $0x330] sm:$0xff]
    %v1622 = vld [vmem:[#allocation3 + $0x338] sm:$0xff]
    %v1623 = vld [vmem:[#allocation3 + $0x340] sm:$0xff]
    %v1624 = vld [vmem:[#allocation3 + $0x348] sm:$0xff]
    %v1625 = vld [vmem:[#allocation3 + $0x350] sm:$0xff]
    %v1626 = vld [vmem:[#allocation3 + $0x358] sm:$0xff]
    %v1627 = vld [vmem:[#allocation3 + $0x360] sm:$0xff]
    %v1628 = vld [vmem:[#allocation3 + $0x368] sm:$0xff]
    %v1629 = vld [vmem:[#allocation3 + $0x370] sm:$0xff]
    %v1630 = vld [vmem:[#allocation3 + $0x378] sm:$0xff]
    %v1631 = vld [vmem:[#allocation3 + $0x380] sm:$0xff]
    %v1632 = vld [vmem:[#allocation3 + $0x388] sm:$0xff]
    %v1633 = vld [vmem:[#allocation3 + $0x390] sm:$0xff]
    %v1634 = vld [vmem:[#allocation3 + $0x398] sm:$0xff]
    %v1635 = vld [vmem:[#allocation3 + $0x3a0] sm:$0xff]
    %v1636 = vld [vmem:[#allocation3 + $0x3a8] sm:$0xff]
    %v1637 = vld [vmem:[#allocation3 + $0x3b0] sm:$0xff]
    %v1638 = vld [vmem:[#allocation3 + $0x3b8] sm:$0xff]
    %v1639 = vld [vmem:[#allocation3 + $0x3c0] sm:$0xff]
    %v1640 = vld [vmem:[#allocation3 + $0x3c8] sm:$0xff]
    %v1641 = vld [vmem:[#allocation3 + $0x3d0] sm:$0xff]
    %v1642 = vld [vmem:[#allocation3 + $0x3d8] sm:$0xff]
    %v1643 = vld [vmem:[#allocation3 + $0x3e0] sm:$0xff]
    %v1644 = vld [vmem:[#allocation3 + $0x3e8] sm:$0xff]
    %v1645 = vld [vmem:[#allocation3 + $0x3f0] sm:$0xff]
    %v1646 = vld [vmem:[#allocation3 + $0x3f8] sm:$0xff]
    %s1647 = scalar_lea.vmem %s4, 8
    %v1648 = vld [vmem:[%s1647] sm:$0xf]
    %v1650 = vlaneseq
    %v1651 = vshrl.u32 %v1650, 7
    %v1652 = vsub.s32 0, %v1651
    %v1653 = vrot.slane %v1648, %v1652
    %v1654 = vlaneseq
    %v1655 = vshrl.u32 %v1654, 7
    %v1656 = vsub.s32 1, %v1655
    %v1657 = vrot.slane %v1648, %v1656
    %v1658 = vlaneseq
    %v1659 = vshrl.u32 %v1658, 7
    %v1660 = vsub.s32 2, %v1659
    %v1661 = vrot.slane %v1648, %v1660
    %v1662 = vlaneseq
    %v1663 = vshrl.u32 %v1662, 7
    %v1664 = vsub.s32 3, %v1663
    %v1665 = vrot.slane %v1648, %v1664
    %1670 = vmatprep.subr.mxu0 %v1520
    %1671 = vmatpush1.msra.mxu0 %v1519
    %1672 = vmatprep.subr.mxu0 %v1524
    %1673 = vmatpush1.msra.mxu0 %v1523
    %1674 = vmatprep.subr.mxu0 %v1528
    %1675 = vmatpush1.msra.mxu0 %v1527
    %1676 = vmatprep.subr.mxu0 %v1532
    %1677 = vmatpush1.msra.mxu0 %v1531
    %1678 = vmatprep.subr.mxu0 %v1536
    %1679 = vmatpush1.msra.mxu0 %v1535
    %1680 = vmatprep.subr.mxu0 %v1540
    %1681 = vmatpush1.msra.mxu0 %v1539
    %1682 = vmatprep.subr.mxu0 %v1544
    %1683 = vmatpush1.msra.mxu0 %v1543
    %1684 = vmatprep.subr.mxu0 %v1548
    %1685 = vmatpush1.msra.mxu0 %v1547
    %1686 = vmatprep.subr.mxu0 %v1552
    %1687 = vmatpush1.msra.mxu0 %v1551
    %1688 = vmatprep.subr.mxu0 %v1556
    %1689 = vmatpush1.msra.mxu0 %v1555
    %1690 = vmatprep.subr.mxu0 %v1560
    %1691 = vmatpush1.msra.mxu0 %v1559
    %1692 = vmatprep.subr.mxu0 %v1564
    %1693 = vmatpush1.msra.mxu0 %v1563
    %1694 = vmatprep.subr.mxu0 %v1568
    %1695 = vmatpush1.msra.mxu0 %v1567
    %1696 = vmatprep.subr.mxu0 %v1572
    %1697 = vmatpush1.msra.mxu0 %v1571
    %1698 = vmatprep.subr.mxu0 %v1576
    %1699 = vmatpush1.msra.mxu0 %v1575
    %1700 = vmatprep.subr.mxu0 %v1580
    %1701 = vmatpush1.msra.mxu0 %v1579
    %1702 = vmatprep.subr.mxu0 %v1584
    %1703 = vmatpush1.msra.mxu0 %v1583
    %1704 = vmatprep.subr.mxu0 %v1588
    %1705 = vmatpush1.msra.mxu0 %v1587
    %1706 = vmatprep.subr.mxu0 %v1592
    %1707 = vmatpush1.msra.mxu0 %v1591
    %1708 = vmatprep.subr.mxu0 %v1596
    %1709 = vmatpush1.msra.mxu0 %v1595
    %1710 = vmatprep.subr.mxu0 %v1600
    %1711 = vmatpush1.msra.mxu0 %v1599
    %1712 = vmatprep.subr.mxu0 %v1604
    %1713 = vmatpush1.msra.mxu0 %v1603
    %1714 = vmatprep.subr.mxu0 %v1608
    %1715 = vmatpush1.msra.mxu0 %v1607
    %1716 = vmatprep.subr.mxu0 %v1612
    %1717 = vmatpush1.msra.mxu0 %v1611
    %1718 = vmatprep.subr.mxu0 %v1616
    %1719 = vmatpush1.msra.mxu0 %v1615
    %1720 = vmatprep.subr.mxu0 %v1620
    %1721 = vmatpush1.msra.mxu0 %v1619
    %1722 = vmatprep.subr.mxu0 %v1624
    %1723 = vmatpush1.msra.mxu0 %v1623
    %1724 = vmatprep.subr.mxu0 %v1628
    %1725 = vmatpush1.msra.mxu0 %v1627
    %1726 = vmatprep.subr.mxu0 %v1632
    %1727 = vmatpush1.msra.mxu0 %v1631
    %1728 = vmatprep.subr.mxu0 %v1636
    %1729 = vmatpush1.msra.mxu0 %v1635
    %1730 = vmatprep.subr.mxu0 %v1640
    %1731 = vmatpush1.msra.mxu0 %v1639
    %1732 = vmatprep.subr.mxu0 %v1644
    %1733 = vmatpush1.msra.mxu0 %v1643
    %1734 = vmatprep.mubr.f32.mxu0 0.0
    %1735 = vmatmul.mubr.f32.gmra.mrb[0].mxu0 %v1112
    %v1736 = vpop.f32.mrb[0].mxu0
    %v1737 = vadd.f32 %v1653, %v1736
    %v1738 = vpop.f32.mrb[0].mxu0
    %v1739 = vadd.f32 %v1657, %v1738
    %1740 = vdwg.mxu0
    %1741 = vmatprep.subr.mxu0 %v1522
    %1742 = vmatpush1.msra.mxu0 %v1521
    %1743 = vmatprep.subr.mxu0 %v1526
    %1744 = vmatpush1.msra.mxu0 %v1525
    %1745 = vmatprep.subr.mxu0 %v1530
    %1746 = vmatpush1.msra.mxu0 %v1529
    %1747 = vmatprep.subr.mxu0 %v1534
    %1748 = vmatpush1.msra.mxu0 %v1533
    %1749 = vmatprep.subr.mxu0 %v1538
    %1750 = vmatpush1.msra.mxu0 %v1537
    %1751 = vmatprep.subr.mxu0 %v1542
    %1752 = vmatpush1.msra.mxu0 %v1541
    %1753 = vmatprep.subr.mxu0 %v1546
    %1754 = vmatpush1.msra.mxu0 %v1545
    %1755 = vmatprep.subr.mxu0 %v1550
    %1756 = vmatpush1.msra.mxu0 %v1549
    %1757 = vmatprep.subr.mxu0 %v1554
    %1758 = vmatpush1.msra.mxu0 %v1553
    %1759 = vmatprep.subr.mxu0 %v1558
    %1760 = vmatpush1.msra.mxu0 %v1557
    %1761 = vmatprep.subr.mxu0 %v1562
    %1762 = vmatpush1.msra.mxu0 %v1561
    %1763 = vmatprep.subr.mxu0 %v1566
    %1764 = vmatpush1.msra.mxu0 %v1565
    %1765 = vmatprep.subr.mxu0 %v1570
    %1766 = vmatpush1.msra.mxu0 %v1569
    %1767 = vmatprep.subr.mxu0 %v1574
    %1768 = vmatpush1.msra.mxu0 %v1573
    %1769 = vmatprep.subr.mxu0 %v1578
    %1770 = vmatpush1.msra.mxu0 %v1577
    %1771 = vmatprep.subr.mxu0 %v1582
    %1772 = vmatpush1.msra.mxu0 %v1581
    %1773 = vmatprep.subr.mxu0 %v1586
    %1774 = vmatpush1.msra.mxu0 %v1585
    %1775 = vmatprep.subr.mxu0 %v1590
    %1776 = vmatpush1.msra.mxu0 %v1589
    %1777 = vmatprep.subr.mxu0 %v1594
    %1778 = vmatpush1.msra.mxu0 %v1593
    %1779 = vmatprep.subr.mxu0 %v1598
    %1780 = vmatpush1.msra.mxu0 %v1597
    %1781 = vmatprep.subr.mxu0 %v1602
    %1782 = vmatpush1.msra.mxu0 %v1601
    %1783 = vmatprep.subr.mxu0 %v1606
    %1784 = vmatpush1.msra.mxu0 %v1605
    %1785 = vmatprep.subr.mxu0 %v1610
    %1786 = vmatpush1.msra.mxu0 %v1609
    %1787 = vmatprep.subr.mxu0 %v1614
    %1788 = vmatpush1.msra.mxu0 %v1613
    %1789 = vmatprep.subr.mxu0 %v1618
    %1790 = vmatpush1.msra.mxu0 %v1617
    %1791 = vmatprep.subr.mxu0 %v1622
    %1792 = vmatpush1.msra.mxu0 %v1621
    %1793 = vmatprep.subr.mxu0 %v1626
    %1794 = vmatpush1.msra.mxu0 %v1625
    %1795 = vmatprep.subr.mxu0 %v1630
    %1796 = vmatpush1.msra.mxu0 %v1629
    %1797 = vmatprep.subr.mxu0 %v1634
    %1798 = vmatpush1.msra.mxu0 %v1633
    %1799 = vmatprep.subr.mxu0 %v1638
    %1800 = vmatpush1.msra.mxu0 %v1637
    %1801 = vmatprep.subr.mxu0 %v1642
    %1802 = vmatpush1.msra.mxu0 %v1641
    %1803 = vmatprep.subr.mxu0 %v1646
    %1804 = vmatpush1.msra.mxu0 %v1645
    %1805 = vmatprep.mubr.f32.mxu0 0.0
    %1806 = vmatmul.mubr.f32.gmra.mrb[0].mxu0 %v1112
    %v1807 = vpop.f32.mrb[0].mxu0
    %v1808 = vadd.f32 %v1661, %v1807
    %v1809 = vpop.f32.mrb[0].mxu0
    %v1810 = vadd.f32 %v1665, %v1809
    %1811 = vdwg.mxu0
    %v1812 = vxor.u32 %v1737, 2147483648
    %v1813 = vxor.u32 %v1739, 2147483648
    %v1814 = vxor.u32 %v1808, 2147483648
    %v1815 = vmul.f32 %v1812, 1.442695
    %v1816 = vpow.pop %v1815
    %v1817 = vmul.f32 %v1813, 1.442695
    %v1818 = vpow.pop %v1817
    %v1819 = vmul.f32 %v1814, 1.442695
    %v1820 = vpow.pop %v1819
    %v1821 = vadd.f32 %v1816, 1.0
    %v1822 = vadd.f32 %v1818, 1.0
    %v1823 = vadd.f32 %v1820, 1.0
    %v1824 = vrcp.pop %v1821
    %v1825 = vmul.f32 1.0, %v1824
    %v1826 = vrcp.pop %v1822
    %v1827 = vmul.f32 1.0, %v1826
    %v1828 = vrcp.pop %v1823
    %v1829 = vmul.f32 1.0, %v1828
    %v1830 = vtanh.pop %v1810
    %v1831 = vmul.f32 %v1827, 0.0
    %v1832 = vmul.f32 %v1825, %v1830
    %v1833 = vadd.f32 %v1831, %v1832
    %v1834 = vtanh.pop %v1833
    %v1835 = vmul.f32 %v1829, %v1834
    %v1836 = vld [vmem:[#allocation5 + $0x60] sm:$0xff]
    %v1837 = vld [vmem:[#allocation5 + $0x68] sm:$0xff]
    %v1838 = vld [vmem:[#allocation5 + $0x70] sm:$0xff]
    %v1839 = vld [vmem:[#allocation5 + $0x78] sm:$0xff]
    %v1840 = vld [vmem:[#allocation7] sm:$0xff]
    %v1841 = vld [vmem:[#allocation7 + $0x8] sm:$0xff]
    %v1842 = vld [vmem:[#allocation7 + $0x10] sm:$0xff]
    %v1843 = vld [vmem:[#allocation7 + $0x18] sm:$0xff]
    %v1844 = vld [vmem:[#allocation7 + $0x20] sm:$0xff]
    %v1845 = vld [vmem:[#allocation7 + $0x28] sm:$0xff]
    %v1846 = vld [vmem:[#allocation7 + $0x30] sm:$0xff]
    %v1847 = vld [vmem:[#allocation7 + $0x38] sm:$0xff]
    %v1848 = vld [vmem:[#allocation7 + $0x40] sm:$0xff]
    %v1849 = vld [vmem:[#allocation7 + $0x48] sm:$0xff]
    %v1850 = vld [vmem:[#allocation7 + $0x50] sm:$0xff]
    %v1851 = vld [vmem:[#allocation7 + $0x58] sm:$0xff]
    %v1852 = vld [vmem:[#allocation7 + $0x60] sm:$0xff]
    %v1853 = vld [vmem:[#allocation7 + $0x68] sm:$0xff]
    %v1854 = vld [vmem:[#allocation7 + $0x70] sm:$0xff]
    %v1855 = vld [vmem:[#allocation7 + $0x78] sm:$0xff]
    %v1856 = vld [vmem:[#allocation7 + $0x80] sm:$0xff]
    %v1857 = vld [vmem:[#allocation7 + $0x88] sm:$0xff]
    %v1858 = vld [vmem:[#allocation7 + $0x90] sm:$0xff]
    %v1859 = vld [vmem:[#allocation7 + $0x98] sm:$0xff]
    %v1860 = vld [vmem:[#allocation7 + $0xa0] sm:$0xff]
    %v1861 = vld [vmem:[#allocation7 + $0xa8] sm:$0xff]
    %v1862 = vld [vmem:[#allocation7 + $0xb0] sm:$0xff]
    %v1863 = vld [vmem:[#allocation7 + $0xb8] sm:$0xff]
    %v1864 = vld [vmem:[#allocation7 + $0xc0] sm:$0xff]
    %v1865 = vld [vmem:[#allocation7 + $0xc8] sm:$0xff]
    %v1866 = vld [vmem:[#allocation7 + $0xd0] sm:$0xff]
    %v1867 = vld [vmem:[#allocation7 + $0xd8] sm:$0xff]
    %v1868 = vld [vmem:[#allocation7 + $0xe0] sm:$0xff]
    %v1869 = vld [vmem:[#allocation7 + $0xe8] sm:$0xff]
    %v1870 = vld [vmem:[#allocation7 + $0xf0] sm:$0xff]
    %v1871 = vld [vmem:[#allocation7 + $0xf8] sm:$0xff]
    %v1872 = vld [vmem:[#allocation7 + $0x100] sm:$0xff]
    %v1873 = vld [vmem:[#allocation7 + $0x108] sm:$0xff]
    %v1874 = vld [vmem:[#allocation7 + $0x110] sm:$0xff]
    %v1875 = vld [vmem:[#allocation7 + $0x118] sm:$0xff]
    %v1876 = vld [vmem:[#allocation7 + $0x120] sm:$0xff]
    %v1877 = vld [vmem:[#allocation7 + $0x128] sm:$0xff]
    %v1878 = vld [vmem:[#allocation7 + $0x130] sm:$0xff]
    %v1879 = vld [vmem:[#allocation7 + $0x138] sm:$0xff]
    %v1880 = vld [vmem:[#allocation7 + $0x140] sm:$0xff]
    %v1881 = vld [vmem:[#allocation7 + $0x148] sm:$0xff]
    %v1882 = vld [vmem:[#allocation7 + $0x150] sm:$0xff]
    %v1883 = vld [vmem:[#allocation7 + $0x158] sm:$0xff]
    %v1884 = vld [vmem:[#allocation7 + $0x160] sm:$0xff]
    %v1885 = vld [vmem:[#allocation7 + $0x168] sm:$0xff]
    %v1886 = vld [vmem:[#allocation7 + $0x170] sm:$0xff]
    %v1887 = vld [vmem:[#allocation7 + $0x178] sm:$0xff]
    %v1888 = vld [vmem:[#allocation7 + $0x180] sm:$0xff]
    %v1889 = vld [vmem:[#allocation7 + $0x188] sm:$0xff]
    %v1890 = vld [vmem:[#allocation7 + $0x190] sm:$0xff]
    %v1891 = vld [vmem:[#allocation7 + $0x198] sm:$0xff]
    %v1892 = vld [vmem:[#allocation7 + $0x1a0] sm:$0xff]
    %v1893 = vld [vmem:[#allocation7 + $0x1a8] sm:$0xff]
    %v1894 = vld [vmem:[#allocation7 + $0x1b0] sm:$0xff]
    %v1895 = vld [vmem:[#allocation7 + $0x1b8] sm:$0xff]
    %v1896 = vld [vmem:[#allocation7 + $0x1c0] sm:$0xff]
    %v1897 = vld [vmem:[#allocation7 + $0x1c8] sm:$0xff]
    %v1898 = vld [vmem:[#allocation7 + $0x1d0] sm:$0xff]
    %v1899 = vld [vmem:[#allocation7 + $0x1d8] sm:$0xff]
    %v1900 = vld [vmem:[#allocation7 + $0x1e0] sm:$0xff]
    %v1901 = vld [vmem:[#allocation7 + $0x1e8] sm:$0xff]
    %v1902 = vld [vmem:[#allocation7 + $0x1f0] sm:$0xff]
    %v1903 = vld [vmem:[#allocation7 + $0x1f8] sm:$0xff]
    %1904 = vmatprep.subr.mxu0 %v1841
    %1905 = vmatpush1.msra.mxu0 %v1840
    %1906 = vmatprep.subr.mxu0 %v1845
    %1907 = vmatpush1.msra.mxu0 %v1844
    %1908 = vmatprep.subr.mxu0 %v1849
    %1909 = vmatpush1.msra.mxu0 %v1848
    %1910 = vmatprep.subr.mxu0 %v1853
    %1911 = vmatpush1.msra.mxu0 %v1852
    %1912 = vmatprep.subr.mxu0 %v1857
    %1913 = vmatpush1.msra.mxu0 %v1856
    %1914 = vmatprep.subr.mxu0 %v1861
    %1915 = vmatpush1.msra.mxu0 %v1860
    %1916 = vmatprep.subr.mxu0 %v1865
    %1917 = vmatpush1.msra.mxu0 %v1864
    %1918 = vmatprep.subr.mxu0 %v1869
    %1919 = vmatpush1.msra.mxu0 %v1868
    %1920 = vmatprep.subr.mxu0 %v1873
    %1921 = vmatpush1.msra.mxu0 %v1872
    %1922 = vmatprep.subr.mxu0 %v1877
    %1923 = vmatpush1.msra.mxu0 %v1876
    %1924 = vmatprep.subr.mxu0 %v1881
    %1925 = vmatpush1.msra.mxu0 %v1880
    %1926 = vmatprep.subr.mxu0 %v1885
    %1927 = vmatpush1.msra.mxu0 %v1884
    %1928 = vmatprep.subr.mxu0 %v1889
    %1929 = vmatpush1.msra.mxu0 %v1888
    %1930 = vmatprep.subr.mxu0 %v1893
    %1931 = vmatpush1.msra.mxu0 %v1892
    %1932 = vmatprep.subr.mxu0 %v1897
    %1933 = vmatpush1.msra.mxu0 %v1896
    %1934 = vmatprep.subr.mxu0 %v1901
    %1935 = vmatpush1.msra.mxu0 %v1900
    %1936 = vmatprep.subr.mxu0 0.0
    %1937 = vmatpush1.msra.mxu0 0.0
    %1938 = vmatprep.subr.mxu0 0.0
    %1939 = vmatpush1.msra.mxu0 0.0
    %1940 = vmatprep.subr.mxu0 0.0
    %1941 = vmatpush1.msra.mxu0 0.0
    %1942 = vmatprep.subr.mxu0 0.0
    %1943 = vmatpush1.msra.mxu0 0.0
    %1944 = vmatprep.subr.mxu0 0.0
    %1945 = vmatpush1.msra.mxu0 0.0
    %1946 = vmatprep.subr.mxu0 0.0
    %1947 = vmatpush1.msra.mxu0 0.0
    %1948 = vmatprep.subr.mxu0 0.0
    %1949 = vmatpush1.msra.mxu0 0.0
    %1950 = vmatprep.subr.mxu0 0.0
    %1951 = vmatpush1.msra.mxu0 0.0
    %1952 = vmatprep.subr.mxu0 0.0
    %1953 = vmatpush1.msra.mxu0 0.0
    %1954 = vmatprep.subr.mxu0 0.0
    %1955 = vmatpush1.msra.mxu0 0.0
    %1956 = vmatprep.subr.mxu0 0.0
    %1957 = vmatpush1.msra.mxu0 0.0
    %1958 = vmatprep.subr.mxu0 0.0
    %1959 = vmatpush1.msra.mxu0 0.0
    %1960 = vmatprep.subr.mxu0 0.0
    %1961 = vmatpush1.msra.mxu0 0.0
    %1962 = vmatprep.subr.mxu0 0.0
    %1963 = vmatpush1.msra.mxu0 0.0
    %1964 = vmatprep.subr.mxu0 0.0
    %1965 = vmatpush1.msra.mxu0 0.0
    %1966 = vmatprep.subr.mxu0 0.0
    %1967 = vmatpush1.msra.mxu0 0.0
    %1968 = vmatprep.mubr.f32.mxu0 0.0
    %1969 = vmatmul.mubr.f32.gmra.mrb[0].mxu0 %v1350
    %v1970 = vpop.f32.mrb[0].mxu0
    %v1971 = vadd.f32 0.0, %v1970
    %v1972 = vpop.f32.mrb[0].mxu0
    %v1973 = vadd.f32 0.0, %v1972
    %1974 = vdwg.mxu0
    %1975 = vmatprep.subr.mxu0 %v1843
    %1976 = vmatpush1.msra.mxu0 %v1842
    %1977 = vmatprep.subr.mxu0 %v1847
    %1978 = vmatpush1.msra.mxu0 %v1846
    %1979 = vmatprep.subr.mxu0 %v1851
    %1980 = vmatpush1.msra.mxu0 %v1850
    %1981 = vmatprep.subr.mxu0 %v1855
    %1982 = vmatpush1.msra.mxu0 %v1854
    %1983 = vmatprep.subr.mxu0 %v1859
    %1984 = vmatpush1.msra.mxu0 %v1858
    %1985 = vmatprep.subr.mxu0 %v1863
    %1986 = vmatpush1.msra.mxu0 %v1862
    %1987 = vmatprep.subr.mxu0 %v1867
    %1988 = vmatpush1.msra.mxu0 %v1866
    %1989 = vmatprep.subr.mxu0 %v1871
    %1990 = vmatpush1.msra.mxu0 %v1870
    %1991 = vmatprep.subr.mxu0 %v1875
    %1992 = vmatpush1.msra.mxu0 %v1874
    %1993 = vmatprep.subr.mxu0 %v1879
    %1994 = vmatpush1.msra.mxu0 %v1878
    %1995 = vmatprep.subr.mxu0 %v1883
    %1996 = vmatpush1.msra.mxu0 %v1882
    %1997 = vmatprep.subr.mxu0 %v1887
    %1998 = vmatpush1.msra.mxu0 %v1886
    %1999 = vmatprep.subr.mxu0 %v1891
    %2000 = vmatpush1.msra.mxu0 %v1890
    %2001 = vmatprep.subr.mxu0 %v1895
    %2002 = vmatpush1.msra.mxu0 %v1894
    %2003 = vmatprep.subr.mxu0 %v1899
    %2004 = vmatpush1.msra.mxu0 %v1898
    %2005 = vmatprep.subr.mxu0 %v1903
    %2006 = vmatpush1.msra.mxu0 %v1902
    %2007 = vmatprep.subr.mxu0 0.0
    %2008 = vmatpush1.msra.mxu0 0.0
    %2009 = vmatprep.subr.mxu0 0.0
    %2010 = vmatpush1.msra.mxu0 0.0
    %2011 = vmatprep.subr.mxu0 0.0
    %2012 = vmatpush1.msra.mxu0 0.0
    %2013 = vmatprep.subr.mxu0 0.0
    %2014 = vmatpush1.msra.mxu0 0.0
    %2015 = vmatprep.subr.mxu0 0.0
    %2016 = vmatpush1.msra.mxu0 0.0
    %2017 = vmatprep.subr.mxu0 0.0
    %2018 = vmatpush1.msra.mxu0 0.0
    %2019 = vmatprep.subr.mxu0 0.0
    %2020 = vmatpush1.msra.mxu0 0.0
    %2021 = vmatprep.subr.mxu0 0.0
    %2022 = vmatpush1.msra.mxu0 0.0
    %2023 = vmatprep.subr.mxu0 0.0
    %2024 = vmatpush1.msra.mxu0 0.0
    %2025 = vmatprep.subr.mxu0 0.0
    %2026 = vmatpush1.msra.mxu0 0.0
    %2027 = vmatprep.subr.mxu0 0.0
    %2028 = vmatpush1.msra.mxu0 0.0
    %2029 = vmatprep.subr.mxu0 0.0
    %2030 = vmatpush1.msra.mxu0 0.0
    %2031 = vmatprep.subr.mxu0 0.0
    %2032 = vmatpush1.msra.mxu0 0.0
    %2033 = vmatprep.subr.mxu0 0.0
    %2034 = vmatpush1.msra.mxu0 0.0
    %2035 = vmatprep.subr.mxu0 0.0
    %2036 = vmatpush1.msra.mxu0 0.0
    %2037 = vmatprep.subr.mxu0 0.0
    %2038 = vmatpush1.msra.mxu0 0.0
    %2039 = vmatprep.mubr.f32.mxu0 0.0
    %2040 = vmatmul.mubr.f32.gmra.mrb[0].mxu0 %v1350
    %v2041 = vpop.f32.mrb[0].mxu0
    %v2042 = vadd.f32 0.0, %v2041
    %v2043 = vpop.f32.mrb[0].mxu0
    %v2044 = vadd.f32 0.0, %v2043
    %2045 = vdwg.mxu0
    %v2046 = vadd.f32 %v1836, %v1971
    %v2047 = vadd.f32 %v1837, %v1973
    %v2048 = vadd.f32 %v1838, %v2042
    %v2049 = vadd.f32 %v1839, %v2044
    %v2050 = vxor.u32 %v2046, 2147483648
    %v2051 = vxor.u32 %v2047, 2147483648
    %v2052 = vxor.u32 %v2048, 2147483648
    %v2053 = vmul.f32 %v2050, 1.442695
    %v2054 = vpow.pop %v2053
    %v2055 = vmul.f32 %v2051, 1.442695
    %v2056 = vpow.pop %v2055
    %v2057 = vmul.f32 %v2052, 1.442695
    %v2058 = vpow.pop %v2057
    %v2059 = vadd.f32 %v2054, 1.0
    %v2060 = vadd.f32 %v2056, 1.0
    %v2061 = vadd.f32 %v2058, 1.0
    %v2062 = vrcp.pop %v2059
    %v2063 = vmul.f32 1.0, %v2062
    %v2064 = vrcp.pop %v2060
    %v2065 = vmul.f32 1.0, %v2064
    %v2066 = vrcp.pop %v2061
    %v2067 = vmul.f32 1.0, %v2066
    %v2068 = vtanh.pop %v2049
    %v2069 = vmul.f32 %v2065, %v1348
    %v2070 = vmul.f32 %v2063, %v2068
    %v2071 = vadd.f32 %v2069, %v2070
    %v2072 = vtanh.pop %v2071
    %v2073 = vmul.f32 %v2067, %v2072
    %v2074 = vld [vmem:[#allocation2] sm:$0xff]
    %v2075 = vld [vmem:[#allocation2 + $0x8] sm:$0xff]
    %v2076 = vld [vmem:[#allocation2 + $0x10] sm:$0xff]
    %v2077 = vld [vmem:[#allocation2 + $0x18] sm:$0xff]
    %v2078 = vld [vmem:[#allocation2 + $0x20] sm:$0xff]
    %v2079 = vld [vmem:[#allocation2 + $0x28] sm:$0xff]
    %v2080 = vld [vmem:[#allocation2 + $0x30] sm:$0xff]
    %v2081 = vld [vmem:[#allocation2 + $0x38] sm:$0xff]
    %v2082 = vld [vmem:[#allocation2 + $0x40] sm:$0xff]
    %v2083 = vld [vmem:[#allocation2 + $0x48] sm:$0xff]
    %v2084 = vld [vmem:[#allocation2 + $0x50] sm:$0xff]
    %v2085 = vld [vmem:[#allocation2 + $0x58] sm:$0xff]
    %v2086 = vld [vmem:[#allocation2 + $0x60] sm:$0xff]
    %v2087 = vld [vmem:[#allocation2 + $0x68] sm:$0xff]
    %v2088 = vld [vmem:[#allocation2 + $0x70] sm:$0xff]
    %v2089 = vld [vmem:[#allocation2 + $0x78] sm:$0xff]
    %v2090 = vld [vmem:[#allocation2 + $0x80] sm:$0xff]
    %v2091 = vld [vmem:[#allocation2 + $0x88] sm:$0xff]
    %v2092 = vld [vmem:[#allocation2 + $0x90] sm:$0xff]
    %v2093 = vld [vmem:[#allocation2 + $0x98] sm:$0xff]
    %v2094 = vld [vmem:[#allocation2 + $0xa0] sm:$0xff]
    %v2095 = vld [vmem:[#allocation2 + $0xa8] sm:$0xff]
    %v2096 = vld [vmem:[#allocation2 + $0xb0] sm:$0xff]
    %v2097 = vld [vmem:[#allocation2 + $0xb8] sm:$0xff]
    %v2098 = vld [vmem:[#allocation2 + $0xc0] sm:$0xff]
    %v2099 = vld [vmem:[#allocation2 + $0xc8] sm:$0xff]
    %v2100 = vld [vmem:[#allocation2 + $0xd0] sm:$0xff]
    %v2101 = vld [vmem:[#allocation2 + $0xd8] sm:$0xff]
    %v2102 = vld [vmem:[#allocation2 + $0xe0] sm:$0xff]
    %v2103 = vld [vmem:[#allocation2 + $0xe8] sm:$0xff]
    %v2104 = vld [vmem:[#allocation2 + $0xf0] sm:$0xff]
    %v2105 = vld [vmem:[#allocation2 + $0xf8] sm:$0xff]
    %v2106 = vld [vmem:[#allocation2 + $0x100] sm:$0xff]
    %v2107 = vld [vmem:[#allocation2 + $0x108] sm:$0xff]
    %v2108 = vld [vmem:[#allocation2 + $0x110] sm:$0xff]
    %v2109 = vld [vmem:[#allocation2 + $0x118] sm:$0xff]
    %v2110 = vld [vmem:[#allocation2 + $0x120] sm:$0xff]
    %v2111 = vld [vmem:[#allocation2 + $0x128] sm:$0xff]
    %v2112 = vld [vmem:[#allocation2 + $0x130] sm:$0xff]
    %v2113 = vld [vmem:[#allocation2 + $0x138] sm:$0xff]
    %v2114 = vld [vmem:[#allocation2 + $0x140] sm:$0xff]
    %v2115 = vld [vmem:[#allocation2 + $0x148] sm:$0xff]
    %v2116 = vld [vmem:[#allocation2 + $0x150] sm:$0xff]
    %v2117 = vld [vmem:[#allocation2 + $0x158] sm:$0xff]
    %v2118 = vld [vmem:[#allocation2 + $0x160] sm:$0xff]
    %v2119 = vld [vmem:[#allocation2 + $0x168] sm:$0xff]
    %v2120 = vld [vmem:[#allocation2 + $0x170] sm:$0xff]
    %v2121 = vld [vmem:[#allocation2 + $0x178] sm:$0xff]
    %v2122 = vld [vmem:[#allocation2 + $0x180] sm:$0xff]
    %v2123 = vld [vmem:[#allocation2 + $0x188] sm:$0xff]
    %v2124 = vld [vmem:[#allocation2 + $0x190] sm:$0xff]
    %v2125 = vld [vmem:[#allocation2 + $0x198] sm:$0xff]
    %v2126 = vld [vmem:[#allocation2 + $0x1a0] sm:$0xff]
    %v2127 = vld [vmem:[#allocation2 + $0x1a8] sm:$0xff]
    %v2128 = vld [vmem:[#allocation2 + $0x1b0] sm:$0xff]
    %v2129 = vld [vmem:[#allocation2 + $0x1b8] sm:$0xff]
    %v2130 = vld [vmem:[#allocation2 + $0x1c0] sm:$0xff]
    %v2131 = vld [vmem:[#allocation2 + $0x1c8] sm:$0xff]
    %v2132 = vld [vmem:[#allocation2 + $0x1d0] sm:$0xff]
    %v2133 = vld [vmem:[#allocation2 + $0x1d8] sm:$0xff]
    %v2134 = vld [vmem:[#allocation2 + $0x1e0] sm:$0xff]
    %v2135 = vld [vmem:[#allocation2 + $0x1e8] sm:$0xff]
    %v2136 = vld [vmem:[#allocation2 + $0x1f0] sm:$0xff]
    %v2137 = vld [vmem:[#allocation2 + $0x1f8] sm:$0xff]
    %v2138 = vld [vmem:[#allocation2 + $0x200] sm:$0xff]
    %v2139 = vld [vmem:[#allocation2 + $0x208] sm:$0xff]
    %v2140 = vld [vmem:[#allocation2 + $0x210] sm:$0xff]
    %v2141 = vld [vmem:[#allocation2 + $0x218] sm:$0xff]
    %v2142 = vld [vmem:[#allocation2 + $0x220] sm:$0xff]
    %v2143 = vld [vmem:[#allocation2 + $0x228] sm:$0xff]
    %v2144 = vld [vmem:[#allocation2 + $0x230] sm:$0xff]
    %v2145 = vld [vmem:[#allocation2 + $0x238] sm:$0xff]
    %v2146 = vld [vmem:[#allocation2 + $0x240] sm:$0xff]
    %v2147 = vld [vmem:[#allocation2 + $0x248] sm:$0xff]
    %v2148 = vld [vmem:[#allocation2 + $0x250] sm:$0xff]
    %v2149 = vld [vmem:[#allocation2 + $0x258] sm:$0xff]
    %v2150 = vld [vmem:[#allocation2 + $0x260] sm:$0xff]
    %v2151 = vld [vmem:[#allocation2 + $0x268] sm:$0xff]
    %v2152 = vld [vmem:[#allocation2 + $0x270] sm:$0xff]
    %v2153 = vld [vmem:[#allocation2 + $0x278] sm:$0xff]
    %v2154 = vld [vmem:[#allocation2 + $0x280] sm:$0xff]
    %v2155 = vld [vmem:[#allocation2 + $0x288] sm:$0xff]
    %v2156 = vld [vmem:[#allocation2 + $0x290] sm:$0xff]
    %v2157 = vld [vmem:[#allocation2 + $0x298] sm:$0xff]
    %v2158 = vld [vmem:[#allocation2 + $0x2a0] sm:$0xff]
    %v2159 = vld [vmem:[#allocation2 + $0x2a8] sm:$0xff]
    %v2160 = vld [vmem:[#allocation2 + $0x2b0] sm:$0xff]
    %v2161 = vld [vmem:[#allocation2 + $0x2b8] sm:$0xff]
    %v2162 = vld [vmem:[#allocation2 + $0x2c0] sm:$0xff]
    %v2163 = vld [vmem:[#allocation2 + $0x2c8] sm:$0xff]
    %v2164 = vld [vmem:[#allocation2 + $0x2d0] sm:$0xff]
    %v2165 = vld [vmem:[#allocation2 + $0x2d8] sm:$0xff]
    %v2166 = vld [vmem:[#allocation2 + $0x2e0] sm:$0xff]
    %v2167 = vld [vmem:[#allocation2 + $0x2e8] sm:$0xff]
    %v2168 = vld [vmem:[#allocation2 + $0x2f0] sm:$0xff]
    %v2169 = vld [vmem:[#allocation2 + $0x2f8] sm:$0xff]
    %v2170 = vld [vmem:[#allocation2 + $0x300] sm:$0xff]
    %v2171 = vld [vmem:[#allocation2 + $0x308] sm:$0xff]
    %v2172 = vld [vmem:[#allocation2 + $0x310] sm:$0xff]
    %v2173 = vld [vmem:[#allocation2 + $0x318] sm:$0xff]
    %v2174 = vld [vmem:[#allocation2 + $0x320] sm:$0xff]
    %v2175 = vld [vmem:[#allocation2 + $0x328] sm:$0xff]
    %v2176 = vld [vmem:[#allocation2 + $0x330] sm:$0xff]
    %v2177 = vld [vmem:[#allocation2 + $0x338] sm:$0xff]
    %v2178 = vld [vmem:[#allocation2 + $0x340] sm:$0xff]
    %v2179 = vld [vmem:[#allocation2 + $0x348] sm:$0xff]
    %v2180 = vld [vmem:[#allocation2 + $0x350] sm:$0xff]
    %v2181 = vld [vmem:[#allocation2 + $0x358] sm:$0xff]
    %v2182 = vld [vmem:[#allocation2 + $0x360] sm:$0xff]
    %v2183 = vld [vmem:[#allocation2 + $0x368] sm:$0xff]
    %v2184 = vld [vmem:[#allocation2 + $0x370] sm:$0xff]
    %v2185 = vld [vmem:[#allocation2 + $0x378] sm:$0xff]
    %v2186 = vld [vmem:[#allocation2 + $0x380] sm:$0xff]
    %v2187 = vld [vmem:[#allocation2 + $0x388] sm:$0xff]
    %v2188 = vld [vmem:[#allocation2 + $0x390] sm:$0xff]
    %v2189 = vld [vmem:[#allocation2 + $0x398] sm:$0xff]
    %v2190 = vld [vmem:[#allocation2 + $0x3a0] sm:$0xff]
    %v2191 = vld [vmem:[#allocation2 + $0x3a8] sm:$0xff]
    %v2192 = vld [vmem:[#allocation2 + $0x3b0] sm:$0xff]
    %v2193 = vld [vmem:[#allocation2 + $0x3b8] sm:$0xff]
    %v2194 = vld [vmem:[#allocation2 + $0x3c0] sm:$0xff]
    %v2195 = vld [vmem:[#allocation2 + $0x3c8] sm:$0xff]
    %v2196 = vld [vmem:[#allocation2 + $0x3d0] sm:$0xff]
    %v2197 = vld [vmem:[#allocation2 + $0x3d8] sm:$0xff]
    %v2198 = vld [vmem:[#allocation2 + $0x3e0] sm:$0xff]
    %v2199 = vld [vmem:[#allocation2 + $0x3e8] sm:$0xff]
    %v2200 = vld [vmem:[#allocation2 + $0x3f0] sm:$0xff]
    %v2201 = vld [vmem:[#allocation2 + $0x3f8] sm:$0xff]
    %v2202 = vld [vmem:[%s924] sm:$0xf]
    %v2204 = vlaneseq
    %v2205 = vshrl.u32 %v2204, 7
    %v2206 = vsub.s32 0, %v2205
    %v2207 = vrot.slane %v2202, %v2206
    %v2208 = vlaneseq
    %v2209 = vshrl.u32 %v2208, 7
    %v2210 = vsub.s32 1, %v2209
    %v2211 = vrot.slane %v2202, %v2210
    %v2212 = vlaneseq
    %v2213 = vshrl.u32 %v2212, 7
    %v2214 = vsub.s32 2, %v2213
    %v2215 = vrot.slane %v2202, %v2214
    %v2216 = vlaneseq
    %v2217 = vshrl.u32 %v2216, 7
    %v2218 = vsub.s32 3, %v2217
    %v2219 = vrot.slane %v2202, %v2218
    %2224 = vmatprep.subr.mxu0 %v2075
    %2225 = vmatpush1.msra.mxu0 %v2074
    %2226 = vmatprep.subr.mxu0 %v2079
    %2227 = vmatpush1.msra.mxu0 %v2078
    %2228 = vmatprep.subr.mxu0 %v2083
    %2229 = vmatpush1.msra.mxu0 %v2082
    %2230 = vmatprep.subr.mxu0 %v2087
    %2231 = vmatpush1.msra.mxu0 %v2086
    %2232 = vmatprep.subr.mxu0 %v2091
    %2233 = vmatpush1.msra.mxu0 %v2090
    %2234 = vmatprep.subr.mxu0 %v2095
    %2235 = vmatpush1.msra.mxu0 %v2094
    %2236 = vmatprep.subr.mxu0 %v2099
    %2237 = vmatpush1.msra.mxu0 %v2098
    %2238 = vmatprep.subr.mxu0 %v2103
    %2239 = vmatpush1.msra.mxu0 %v2102
    %2240 = vmatprep.subr.mxu0 %v2107
    %2241 = vmatpush1.msra.mxu0 %v2106
    %2242 = vmatprep.subr.mxu0 %v2111
    %2243 = vmatpush1.msra.mxu0 %v2110
    %2244 = vmatprep.subr.mxu0 %v2115
    %2245 = vmatpush1.msra.mxu0 %v2114
    %2246 = vmatprep.subr.mxu0 %v2119
    %2247 = vmatpush1.msra.mxu0 %v2118
    %2248 = vmatprep.subr.mxu0 %v2123
    %2249 = vmatpush1.msra.mxu0 %v2122
    %2250 = vmatprep.subr.mxu0 %v2127
    %2251 = vmatpush1.msra.mxu0 %v2126
    %2252 = vmatprep.subr.mxu0 %v2131
    %2253 = vmatpush1.msra.mxu0 %v2130
    %2254 = vmatprep.subr.mxu0 %v2135
    %2255 = vmatpush1.msra.mxu0 %v2134
    %2256 = vmatprep.subr.mxu0 %v2139
    %2257 = vmatpush1.msra.mxu0 %v2138
    %2258 = vmatprep.subr.mxu0 %v2143
    %2259 = vmatpush1.msra.mxu0 %v2142
    %2260 = vmatprep.subr.mxu0 %v2147
    %2261 = vmatpush1.msra.mxu0 %v2146
    %2262 = vmatprep.subr.mxu0 %v2151
    %2263 = vmatpush1.msra.mxu0 %v2150
    %2264 = vmatprep.subr.mxu0 %v2155
    %2265 = vmatpush1.msra.mxu0 %v2154
    %2266 = vmatprep.subr.mxu0 %v2159
    %2267 = vmatpush1.msra.mxu0 %v2158
    %2268 = vmatprep.subr.mxu0 %v2163
    %2269 = vmatpush1.msra.mxu0 %v2162
    %2270 = vmatprep.subr.mxu0 %v2167
    %2271 = vmatpush1.msra.mxu0 %v2166
    %2272 = vmatprep.subr.mxu0 %v2171
    %2273 = vmatpush1.msra.mxu0 %v2170
    %2274 = vmatprep.subr.mxu0 %v2175
    %2275 = vmatpush1.msra.mxu0 %v2174
    %2276 = vmatprep.subr.mxu0 %v2179
    %2277 = vmatpush1.msra.mxu0 %v2178
    %2278 = vmatprep.subr.mxu0 %v2183
    %2279 = vmatpush1.msra.mxu0 %v2182
    %2280 = vmatprep.subr.mxu0 %v2187
    %2281 = vmatpush1.msra.mxu0 %v2186
    %2282 = vmatprep.subr.mxu0 %v2191
    %2283 = vmatpush1.msra.mxu0 %v2190
    %2284 = vmatprep.subr.mxu0 %v2195
    %2285 = vmatpush1.msra.mxu0 %v2194
    %2286 = vmatprep.subr.mxu0 %v2199
    %2287 = vmatpush1.msra.mxu0 %v2198
    %2288 = vmatprep.mubr.f32.mxu0 %v1516
    %2289 = vmatmul.mubr.f32.gmra.mrb[0].mxu0 %v1350
    %v2290 = vpop.f32.mrb[0].mxu0
    %v2291 = vadd.f32 %v2207, %v2290
    %v2292 = vpop.f32.mrb[0].mxu0
    %v2293 = vadd.f32 %v2211, %v2292
    %2294 = vdwg.mxu0
    %2295 = vmatprep.subr.mxu0 %v2077
    %2296 = vmatpush1.msra.mxu0 %v2076
    %2297 = vmatprep.subr.mxu0 %v2081
    %2298 = vmatpush1.msra.mxu0 %v2080
    %2299 = vmatprep.subr.mxu0 %v2085
    %2300 = vmatpush1.msra.mxu0 %v2084
    %2301 = vmatprep.subr.mxu0 %v2089
    %2302 = vmatpush1.msra.mxu0 %v2088
    %2303 = vmatprep.subr.mxu0 %v2093
    %2304 = vmatpush1.msra.mxu0 %v2092
    %2305 = vmatprep.subr.mxu0 %v2097
    %2306 = vmatpush1.msra.mxu0 %v2096
    %2307 = vmatprep.subr.mxu0 %v2101
    %2308 = vmatpush1.msra.mxu0 %v2100
    %2309 = vmatprep.subr.mxu0 %v2105
    %2310 = vmatpush1.msra.mxu0 %v2104
    %2311 = vmatprep.subr.mxu0 %v2109
    %2312 = vmatpush1.msra.mxu0 %v2108
    %2313 = vmatprep.subr.mxu0 %v2113
    %2314 = vmatpush1.msra.mxu0 %v2112
    %2315 = vmatprep.subr.mxu0 %v2117
    %2316 = vmatpush1.msra.mxu0 %v2116
    %2317 = vmatprep.subr.mxu0 %v2121
    %2318 = vmatpush1.msra.mxu0 %v2120
    %2319 = vmatprep.subr.mxu0 %v2125
    %2320 = vmatpush1.msra.mxu0 %v2124
    %2321 = vmatprep.subr.mxu0 %v2129
    %2322 = vmatpush1.msra.mxu0 %v2128
    %2323 = vmatprep.subr.mxu0 %v2133
    %2324 = vmatpush1.msra.mxu0 %v2132
    %2325 = vmatprep.subr.mxu0 %v2137
    %2326 = vmatpush1.msra.mxu0 %v2136
    %2327 = vmatprep.subr.mxu0 %v2141
    %2328 = vmatpush1.msra.mxu0 %v2140
    %2329 = vmatprep.subr.mxu0 %v2145
    %2330 = vmatpush1.msra.mxu0 %v2144
    %2331 = vmatprep.subr.mxu0 %v2149
    %2332 = vmatpush1.msra.mxu0 %v2148
    %2333 = vmatprep.subr.mxu0 %v2153
    %2334 = vmatpush1.msra.mxu0 %v2152
    %2335 = vmatprep.subr.mxu0 %v2157
    %2336 = vmatpush1.msra.mxu0 %v2156
    %2337 = vmatprep.subr.mxu0 %v2161
    %2338 = vmatpush1.msra.mxu0 %v2160
    %2339 = vmatprep.subr.mxu0 %v2165
    %2340 = vmatpush1.msra.mxu0 %v2164
    %2341 = vmatprep.subr.mxu0 %v2169
    %2342 = vmatpush1.msra.mxu0 %v2168
    %2343 = vmatprep.subr.mxu0 %v2173
    %2344 = vmatpush1.msra.mxu0 %v2172
    %2345 = vmatprep.subr.mxu0 %v2177
    %2346 = vmatpush1.msra.mxu0 %v2176
    %2347 = vmatprep.subr.mxu0 %v2181
    %2348 = vmatpush1.msra.mxu0 %v2180
    %2349 = vmatprep.subr.mxu0 %v2185
    %2350 = vmatpush1.msra.mxu0 %v2184
    %2351 = vmatprep.subr.mxu0 %v2189
    %2352 = vmatpush1.msra.mxu0 %v2188
    %2353 = vmatprep.subr.mxu0 %v2193
    %2354 = vmatpush1.msra.mxu0 %v2192
    %2355 = vmatprep.subr.mxu0 %v2197
    %2356 = vmatpush1.msra.mxu0 %v2196
    %2357 = vmatprep.subr.mxu0 %v2201
    %2358 = vmatpush1.msra.mxu0 %v2200
    %2359 = vmatprep.mubr.f32.mxu0 %v1516
    %2360 = vmatmul.mubr.f32.gmra.mrb[0].mxu0 %v1350
    %v2361 = vpop.f32.mrb[0].mxu0
    %v2362 = vadd.f32 %v2215, %v2361
    %v2363 = vpop.f32.mrb[0].mxu0
    %v2364 = vadd.f32 %v2219, %v2363
    %2365 = vdwg.mxu0
    %v2366 = vxor.u32 %v2291, 2147483648
    %v2367 = vxor.u32 %v2293, 2147483648
    %v2368 = vxor.u32 %v2362, 2147483648
    %v2369 = vmul.f32 %v2366, 1.442695
    %v2370 = vpow.pop %v2369
    %v2371 = vmul.f32 %v2367, 1.442695
    %v2372 = vpow.pop %v2371
    %v2373 = vmul.f32 %v2368, 1.442695
    %v2374 = vpow.pop %v2373
    %v2375 = vadd.f32 %v2370, 1.0
    %v2376 = vadd.f32 %v2372, 1.0
    %v2377 = vadd.f32 %v2374, 1.0
    %v2378 = vrcp.pop %v2375
    %v2379 = vmul.f32 1.0, %v2378
    %v2380 = vrcp.pop %v2376
    %v2381 = vmul.f32 1.0, %v2380
    %v2382 = vrcp.pop %v2377
    %v2383 = vmul.f32 1.0, %v2382
    %v2384 = vtanh.pop %v2364
    %v2385 = vmul.f32 %v2381, %v1514
    %v2386 = vmul.f32 %v2379, %v2384
    %v2387 = vadd.f32 %v2385, %v2386
    %v2388 = vtanh.pop %v2387
    %v2389 = vmul.f32 %v2383, %v2388
    %2390 = vmatprep.subr.mxu0 %v1520
    %2391 = vmatpush1.msra.mxu0 %v1519
    %2392 = vmatprep.subr.mxu0 %v1524
    %2393 = vmatpush1.msra.mxu0 %v1523
    %2394 = vmatprep.subr.mxu0 %v1528
    %2395 = vmatpush1.msra.mxu0 %v1527
    %2396 = vmatprep.subr.mxu0 %v1532
    %2397 = vmatpush1.msra.mxu0 %v1531
    %2398 = vmatprep.subr.mxu0 %v1536
    %2399 = vmatpush1.msra.mxu0 %v1535
    %2400 = vmatprep.subr.mxu0 %v1540
    %2401 = vmatpush1.msra.mxu0 %v1539
    %2402 = vmatprep.subr.mxu0 %v1544
    %2403 = vmatpush1.msra.mxu0 %v1543
    %2404 = vmatprep.subr.mxu0 %v1548
    %2405 = vmatpush1.msra.mxu0 %v1547
    %2406 = vmatprep.subr.mxu0 %v1552
    %2407 = vmatpush1.msra.mxu0 %v1551
    %2408 = vmatprep.subr.mxu0 %v1556
    %2409 = vmatpush1.msra.mxu0 %v1555
    %2410 = vmatprep.subr.mxu0 %v1560
    %2411 = vmatpush1.msra.mxu0 %v1559
    %2412 = vmatprep.subr.mxu0 %v1564
    %2413 = vmatpush1.msra.mxu0 %v1563
    %2414 = vmatprep.subr.mxu0 %v1568
    %2415 = vmatpush1.msra.mxu0 %v1567
    %2416 = vmatprep.subr.mxu0 %v1572
    %2417 = vmatpush1.msra.mxu0 %v1571
    %2418 = vmatprep.subr.mxu0 %v1576
    %2419 = vmatpush1.msra.mxu0 %v1575
    %2420 = vmatprep.subr.mxu0 %v1580
    %2421 = vmatpush1.msra.mxu0 %v1579
    %2422 = vmatprep.subr.mxu0 %v1584
    %2423 = vmatpush1.msra.mxu0 %v1583
    %2424 = vmatprep.subr.mxu0 %v1588
    %2425 = vmatpush1.msra.mxu0 %v1587
    %2426 = vmatprep.subr.mxu0 %v1592
    %2427 = vmatpush1.msra.mxu0 %v1591
    %2428 = vmatprep.subr.mxu0 %v1596
    %2429 = vmatpush1.msra.mxu0 %v1595
    %2430 = vmatprep.subr.mxu0 %v1600
    %2431 = vmatpush1.msra.mxu0 %v1599
    %2432 = vmatprep.subr.mxu0 %v1604
    %2433 = vmatpush1.msra.mxu0 %v1603
    %2434 = vmatprep.subr.mxu0 %v1608
    %2435 = vmatpush1.msra.mxu0 %v1607
    %2436 = vmatprep.subr.mxu0 %v1612
    %2437 = vmatpush1.msra.mxu0 %v1611
    %2438 = vmatprep.subr.mxu0 %v1616
    %2439 = vmatpush1.msra.mxu0 %v1615
    %2440 = vmatprep.subr.mxu0 %v1620
    %2441 = vmatpush1.msra.mxu0 %v1619
    %2442 = vmatprep.subr.mxu0 %v1624
    %2443 = vmatpush1.msra.mxu0 %v1623
    %2444 = vmatprep.subr.mxu0 %v1628
    %2445 = vmatpush1.msra.mxu0 %v1627
    %2446 = vmatprep.subr.mxu0 %v1632
    %2447 = vmatpush1.msra.mxu0 %v1631
    %2448 = vmatprep.subr.mxu0 %v1636
    %2449 = vmatpush1.msra.mxu0 %v1635
    %2450 = vmatprep.subr.mxu0 %v1640
    %2451 = vmatpush1.msra.mxu0 %v1639
    %2452 = vmatprep.subr.mxu0 %v1644
    %2453 = vmatpush1.msra.mxu0 %v1643
    %2454 = vmatprep.mubr.f32.mxu0 %v1835
    %2455 = vmatmul.mubr.f32.gmra.mrb[0].mxu0 %v1516
    %v2456 = vpop.f32.mrb[0].mxu0
    %v2457 = vadd.f32 %v1653, %v2456
    %v2458 = vpop.f32.mrb[0].mxu0
    %v2459 = vadd.f32 %v1657, %v2458
    %2460 = vdwg.mxu0
    %2461 = vmatprep.subr.mxu0 %v1522
    %2462 = vmatpush1.msra.mxu0 %v1521
    %2463 = vmatprep.subr.mxu0 %v1526
    %2464 = vmatpush1.msra.mxu0 %v1525
    %2465 = vmatprep.subr.mxu0 %v1530
    %2466 = vmatpush1.msra.mxu0 %v1529
    %2467 = vmatprep.subr.mxu0 %v1534
    %2468 = vmatpush1.msra.mxu0 %v1533
    %2469 = vmatprep.subr.mxu0 %v1538
    %2470 = vmatpush1.msra.mxu0 %v1537
    %2471 = vmatprep.subr.mxu0 %v1542
    %2472 = vmatpush1.msra.mxu0 %v1541
    %2473 = vmatprep.subr.mxu0 %v1546
    %2474 = vmatpush1.msra.mxu0 %v1545
    %2475 = vmatprep.subr.mxu0 %v1550
    %2476 = vmatpush1.msra.mxu0 %v1549
    %2477 = vmatprep.subr.mxu0 %v1554
    %2478 = vmatpush1.msra.mxu0 %v1553
    %2479 = vmatprep.subr.mxu0 %v1558
    %2480 = vmatpush1.msra.mxu0 %v1557
    %2481 = vmatprep.subr.mxu0 %v1562
    %2482 = vmatpush1.msra.mxu0 %v1561
    %2483 = vmatprep.subr.mxu0 %v1566
    %2484 = vmatpush1.msra.mxu0 %v1565
    %2485 = vmatprep.subr.mxu0 %v1570
    %2486 = vmatpush1.msra.mxu0 %v1569
    %2487 = vmatprep.subr.mxu0 %v1574
    %2488 = vmatpush1.msra.mxu0 %v1573
    %2489 = vmatprep.subr.mxu0 %v1578
    %2490 = vmatpush1.msra.mxu0 %v1577
    %2491 = vmatprep.subr.mxu0 %v1582
    %2492 = vmatpush1.msra.mxu0 %v1581
    %2493 = vmatprep.subr.mxu0 %v1586
    %2494 = vmatpush1.msra.mxu0 %v1585
    %2495 = vmatprep.subr.mxu0 %v1590
    %2496 = vmatpush1.msra.mxu0 %v1589
    %2497 = vmatprep.subr.mxu0 %v1594
    %2498 = vmatpush1.msra.mxu0 %v1593
    %2499 = vmatprep.subr.mxu0 %v1598
    %2500 = vmatpush1.msra.mxu0 %v1597
    %2501 = vmatprep.subr.mxu0 %v1602
    %2502 = vmatpush1.msra.mxu0 %v1601
    %2503 = vmatprep.subr.mxu0 %v1606
    %2504 = vmatpush1.msra.mxu0 %v1605
    %2505 = vmatprep.subr.mxu0 %v1610
    %2506 = vmatpush1.msra.mxu0 %v1609
    %2507 = vmatprep.subr.mxu0 %v1614
    %2508 = vmatpush1.msra.mxu0 %v1613
    %2509 = vmatprep.subr.mxu0 %v1618
    %2510 = vmatpush1.msra.mxu0 %v1617
    %2511 = vmatprep.subr.mxu0 %v1622
    %2512 = vmatpush1.msra.mxu0 %v1621
    %2513 = vmatprep.subr.mxu0 %v1626
    %2514 = vmatpush1.msra.mxu0 %v1625
    %2515 = vmatprep.subr.mxu0 %v1630
    %2516 = vmatpush1.msra.mxu0 %v1629
    %2517 = vmatprep.subr.mxu0 %v1634
    %2518 = vmatpush1.msra.mxu0 %v1633
    %2519 = vmatprep.subr.mxu0 %v1638
    %2520 = vmatpush1.msra.mxu0 %v1637
    %2521 = vmatprep.subr.mxu0 %v1642
    %2522 = vmatpush1.msra.mxu0 %v1641
    %2523 = vmatprep.subr.mxu0 %v1646
    %2524 = vmatpush1.msra.mxu0 %v1645
    %2525 = vmatprep.mubr.f32.mxu0 %v1835
    %2526 = vmatmul.mubr.f32.gmra.mrb[0].mxu0 %v1516
    %v2527 = vpop.f32.mrb[0].mxu0
    %v2528 = vadd.f32 %v1661, %v2527
    %v2529 = vpop.f32.mrb[0].mxu0
    %v2530 = vadd.f32 %v1665, %v2529
    %2531 = vdwg.mxu0
    %v2532 = vxor.u32 %v2457, 2147483648
    %v2533 = vxor.u32 %v2459, 2147483648
    %v2534 = vxor.u32 %v2528, 2147483648
    %v2535 = vmul.f32 %v2532, 1.442695
    %v2536 = vpow.pop %v2535
    %v2537 = vmul.f32 %v2533, 1.442695
    %v2538 = vpow.pop %v2537
    %v2539 = vmul.f32 %v2534, 1.442695
    %v2540 = vpow.pop %v2539
    %v2541 = vadd.f32 %v2536, 1.0
    %v2542 = vadd.f32 %v2538, 1.0
    %v2543 = vadd.f32 %v2540, 1.0
    %v2544 = vrcp.pop %v2541
    %v2545 = vmul.f32 1.0, %v2544
    %v2546 = vrcp.pop %v2542
    %v2547 = vmul.f32 1.0, %v2546
    %v2548 = vrcp.pop %v2543
    %v2549 = vmul.f32 1.0, %v2548
    %v2550 = vtanh.pop %v2530
    %v2551 = vmul.f32 %v2547, %v1833
    %v2552 = vmul.f32 %v2545, %v2550
    %v2553 = vadd.f32 %v2551, %v2552
    %v2554 = vtanh.pop %v2553
    %v2555 = vmul.f32 %v2549, %v2554
    %v2556 = vld [vmem:[#allocation5 + $0x80] sm:$0xff]
    %v2557 = vld [vmem:[#allocation5 + $0x88] sm:$0xff]
    %v2558 = vld [vmem:[#allocation5 + $0x90] sm:$0xff]
    %v2559 = vld [vmem:[#allocation5 + $0x98] sm:$0xff]
    %2560 = vmatprep.subr.mxu0 %v1841
    %2561 = vmatpush1.msra.mxu0 %v1840
    %2562 = vmatprep.subr.mxu0 %v1845
    %2563 = vmatpush1.msra.mxu0 %v1844
    %2564 = vmatprep.subr.mxu0 %v1849
    %2565 = vmatpush1.msra.mxu0 %v1848
    %2566 = vmatprep.subr.mxu0 %v1853
    %2567 = vmatpush1.msra.mxu0 %v1852
    %2568 = vmatprep.subr.mxu0 %v1857
    %2569 = vmatpush1.msra.mxu0 %v1856
    %2570 = vmatprep.subr.mxu0 %v1861
    %2571 = vmatpush1.msra.mxu0 %v1860
    %2572 = vmatprep.subr.mxu0 %v1865
    %2573 = vmatpush1.msra.mxu0 %v1864
    %2574 = vmatprep.subr.mxu0 %v1869
    %2575 = vmatpush1.msra.mxu0 %v1868
    %2576 = vmatprep.subr.mxu0 %v1873
    %2577 = vmatpush1.msra.mxu0 %v1872
    %2578 = vmatprep.subr.mxu0 %v1877
    %2579 = vmatpush1.msra.mxu0 %v1876
    %2580 = vmatprep.subr.mxu0 %v1881
    %2581 = vmatpush1.msra.mxu0 %v1880
    %2582 = vmatprep.subr.mxu0 %v1885
    %2583 = vmatpush1.msra.mxu0 %v1884
    %2584 = vmatprep.subr.mxu0 %v1889
    %2585 = vmatpush1.msra.mxu0 %v1888
    %2586 = vmatprep.subr.mxu0 %v1893
    %2587 = vmatpush1.msra.mxu0 %v1892
    %2588 = vmatprep.subr.mxu0 %v1897
    %2589 = vmatpush1.msra.mxu0 %v1896
    %2590 = vmatprep.subr.mxu0 %v1901
    %2591 = vmatpush1.msra.mxu0 %v1900
    %2592 = vmatprep.subr.mxu0 0.0
    %2593 = vmatpush1.msra.mxu0 0.0
    %2594 = vmatprep.subr.mxu0 0.0
    %2595 = vmatpush1.msra.mxu0 0.0
    %2596 = vmatprep.subr.mxu0 0.0
    %2597 = vmatpush1.msra.mxu0 0.0
    %2598 = vmatprep.subr.mxu0 0.0
    %2599 = vmatpush1.msra.mxu0 0.0
    %2600 = vmatprep.subr.mxu0 0.0
    %2601 = vmatpush1.msra.mxu0 0.0
    %2602 = vmatprep.subr.mxu0 0.0
    %2603 = vmatpush1.msra.mxu0 0.0
    %2604 = vmatprep.subr.mxu0 0.0
    %2605 = vmatpush1.msra.mxu0 0.0
    %2606 = vmatprep.subr.mxu0 0.0
    %2607 = vmatpush1.msra.mxu0 0.0
    %2608 = vmatprep.subr.mxu0 0.0
    %2609 = vmatpush1.msra.mxu0 0.0
    %2610 = vmatprep.subr.mxu0 0.0
    %2611 = vmatpush1.msra.mxu0 0.0
    %2612 = vmatprep.subr.mxu0 0.0
    %2613 = vmatpush1.msra.mxu0 0.0
    %2614 = vmatprep.subr.mxu0 0.0
    %2615 = vmatpush1.msra.mxu0 0.0
    %2616 = vmatprep.subr.mxu0 0.0
    %2617 = vmatpush1.msra.mxu0 0.0
    %2618 = vmatprep.subr.mxu0 0.0
    %2619 = vmatpush1.msra.mxu0 0.0
    %2620 = vmatprep.subr.mxu0 0.0
    %2621 = vmatpush1.msra.mxu0 0.0
    %2622 = vmatprep.subr.mxu0 0.0
    %2623 = vmatpush1.msra.mxu0 0.0
    %2624 = vmatprep.mubr.f32.mxu0 0.0
    %2625 = vmatmul.mubr.f32.gmra.mrb[0].mxu0 %v2073
    %v2626 = vpop.f32.mrb[0].mxu0
    %v2627 = vadd.f32 0.0, %v2626
    %v2628 = vpop.f32.mrb[0].mxu0
    %v2629 = vadd.f32 0.0, %v2628
    %2630 = vdwg.mxu0
    %2631 = vmatprep.subr.mxu0 %v1843
    %2632 = vmatpush1.msra.mxu0 %v1842
    %2633 = vmatprep.subr.mxu0 %v1847
    %2634 = vmatpush1.msra.mxu0 %v1846
    %2635 = vmatprep.subr.mxu0 %v1851
    %2636 = vmatpush1.msra.mxu0 %v1850
    %2637 = vmatprep.subr.mxu0 %v1855
    %2638 = vmatpush1.msra.mxu0 %v1854
    %2639 = vmatprep.subr.mxu0 %v1859
    %2640 = vmatpush1.msra.mxu0 %v1858
    %2641 = vmatprep.subr.mxu0 %v1863
    %2642 = vmatpush1.msra.mxu0 %v1862
    %2643 = vmatprep.subr.mxu0 %v1867
    %2644 = vmatpush1.msra.mxu0 %v1866
    %2645 = vmatprep.subr.mxu0 %v1871
    %2646 = vmatpush1.msra.mxu0 %v1870
    %2647 = vmatprep.subr.mxu0 %v1875
    %2648 = vmatpush1.msra.mxu0 %v1874
    %2649 = vmatprep.subr.mxu0 %v1879
    %2650 = vmatpush1.msra.mxu0 %v1878
    %2651 = vmatprep.subr.mxu0 %v1883
    %2652 = vmatpush1.msra.mxu0 %v1882
    %2653 = vmatprep.subr.mxu0 %v1887
    %2654 = vmatpush1.msra.mxu0 %v1886
    %2655 = vmatprep.subr.mxu0 %v1891
    %2656 = vmatpush1.msra.mxu0 %v1890
    %2657 = vmatprep.subr.mxu0 %v1895
    %2658 = vmatpush1.msra.mxu0 %v1894
    %2659 = vmatprep.subr.mxu0 %v1899
    %2660 = vmatpush1.msra.mxu0 %v1898
    %2661 = vmatprep.subr.mxu0 %v1903
    %2662 = vmatpush1.msra.mxu0 %v1902
    %2663 = vmatprep.subr.mxu0 0.0
    %2664 = vmatpush1.msra.mxu0 0.0
    %2665 = vmatprep.subr.mxu0 0.0
    %2666 = vmatpush1.msra.mxu0 0.0
    %2667 = vmatprep.subr.mxu0 0.0
    %2668 = vmatpush1.msra.mxu0 0.0
    %2669 = vmatprep.subr.mxu0 0.0
    %2670 = vmatpush1.msra.mxu0 0.0
    %2671 = vmatprep.subr.mxu0 0.0
    %2672 = vmatpush1.msra.mxu0 0.0
    %2673 = vmatprep.subr.mxu0 0.0
    %2674 = vmatpush1.msra.mxu0 0.0
    %2675 = vmatprep.subr.mxu0 0.0
    %2676 = vmatpush1.msra.mxu0 0.0
    %2677 = vmatprep.subr.mxu0 0.0
    %2678 = vmatpush1.msra.mxu0 0.0
    %2679 = vmatprep.subr.mxu0 0.0
    %2680 = vmatpush1.msra.mxu0 0.0
    %2681 = vmatprep.subr.mxu0 0.0
    %2682 = vmatpush1.msra.mxu0 0.0
    %2683 = vmatprep.subr.mxu0 0.0
    %2684 = vmatpush1.msra.mxu0 0.0
    %2685 = vmatprep.subr.mxu0 0.0
    %2686 = vmatpush1.msra.mxu0 0.0
    %2687 = vmatprep.subr.mxu0 0.0
    %2688 = vmatpush1.msra.mxu0 0.0
    %2689 = vmatprep.subr.mxu0 0.0
    %2690 = vmatpush1.msra.mxu0 0.0
    %2691 = vmatprep.subr.mxu0 0.0
    %2692 = vmatpush1.msra.mxu0 0.0
    %2693 = vmatprep.subr.mxu0 0.0
    %2694 = vmatpush1.msra.mxu0 0.0
    %2695 = vmatprep.mubr.f32.mxu0 0.0
    %2696 = vmatmul.mubr.f32.gmra.mrb[0].mxu0 %v2073
    %v2697 = vpop.f32.mrb[0].mxu0
    %v2698 = vadd.f32 0.0, %v2697
    %v2699 = vpop.f32.mrb[0].mxu0
    %v2700 = vadd.f32 0.0, %v2699
    %2701 = vdwg.mxu0
    %v2702 = vadd.f32 %v2556, %v2627
    %v2703 = vadd.f32 %v2557, %v2629
    %v2704 = vadd.f32 %v2558, %v2698
    %v2705 = vadd.f32 %v2559, %v2700
    %v2706 = vxor.u32 %v2702, 2147483648
    %v2707 = vxor.u32 %v2703, 2147483648
    %v2708 = vxor.u32 %v2704, 2147483648
    %v2709 = vmul.f32 %v2706, 1.442695
    %v2710 = vpow.pop %v2709
    %v2711 = vmul.f32 %v2707, 1.442695
    %v2712 = vpow.pop %v2711
    %v2713 = vmul.f32 %v2708, 1.442695
    %v2714 = vpow.pop %v2713
    %v2715 = vadd.f32 %v2710, 1.0
    %v2716 = vadd.f32 %v2712, 1.0
    %v2717 = vadd.f32 %v2714, 1.0
    %v2718 = vrcp.pop %v2715
    %v2719 = vmul.f32 1.0, %v2718
    %v2720 = vrcp.pop %v2716
    %v2721 = vmul.f32 1.0, %v2720
    %v2722 = vrcp.pop %v2717
    %v2723 = vmul.f32 1.0, %v2722
    %v2724 = vtanh.pop %v2705
    %v2725 = vmul.f32 %v2721, %v2071
    %v2726 = vmul.f32 %v2719, %v2724
    %v2727 = vadd.f32 %v2725, %v2726
    %v2728 = vtanh.pop %v2727
    %v2729 = vmul.f32 %v2723, %v2728
    %2730 = vmatprep.subr.mxu0 %v2075
    %2731 = vmatpush1.msra.mxu0 %v2074
    %2732 = vmatprep.subr.mxu0 %v2079
    %2733 = vmatpush1.msra.mxu0 %v2078
    %2734 = vmatprep.subr.mxu0 %v2083
    %2735 = vmatpush1.msra.mxu0 %v2082
    %2736 = vmatprep.subr.mxu0 %v2087
    %2737 = vmatpush1.msra.mxu0 %v2086
    %2738 = vmatprep.subr.mxu0 %v2091
    %2739 = vmatpush1.msra.mxu0 %v2090
    %2740 = vmatprep.subr.mxu0 %v2095
    %2741 = vmatpush1.msra.mxu0 %v2094
    %2742 = vmatprep.subr.mxu0 %v2099
    %2743 = vmatpush1.msra.mxu0 %v2098
    %2744 = vmatprep.subr.mxu0 %v2103
    %2745 = vmatpush1.msra.mxu0 %v2102
    %2746 = vmatprep.subr.mxu0 %v2107
    %2747 = vmatpush1.msra.mxu0 %v2106
    %2748 = vmatprep.subr.mxu0 %v2111
    %2749 = vmatpush1.msra.mxu0 %v2110
    %2750 = vmatprep.subr.mxu0 %v2115
    %2751 = vmatpush1.msra.mxu0 %v2114
    %2752 = vmatprep.subr.mxu0 %v2119
    %2753 = vmatpush1.msra.mxu0 %v2118
    %2754 = vmatprep.subr.mxu0 %v2123
    %2755 = vmatpush1.msra.mxu0 %v2122
    %2756 = vmatprep.subr.mxu0 %v2127
    %2757 = vmatpush1.msra.mxu0 %v2126
    %2758 = vmatprep.subr.mxu0 %v2131
    %2759 = vmatpush1.msra.mxu0 %v2130
    %2760 = vmatprep.subr.mxu0 %v2135
    %2761 = vmatpush1.msra.mxu0 %v2134
    %2762 = vmatprep.subr.mxu0 %v2139
    %2763 = vmatpush1.msra.mxu0 %v2138
    %2764 = vmatprep.subr.mxu0 %v2143
    %2765 = vmatpush1.msra.mxu0 %v2142
    %2766 = vmatprep.subr.mxu0 %v2147
    %2767 = vmatpush1.msra.mxu0 %v2146
    %2768 = vmatprep.subr.mxu0 %v2151
    %2769 = vmatpush1.msra.mxu0 %v2150
    %2770 = vmatprep.subr.mxu0 %v2155
    %2771 = vmatpush1.msra.mxu0 %v2154
    %2772 = vmatprep.subr.mxu0 %v2159
    %2773 = vmatpush1.msra.mxu0 %v2158
    %2774 = vmatprep.subr.mxu0 %v2163
    %2775 = vmatpush1.msra.mxu0 %v2162
    %2776 = vmatprep.subr.mxu0 %v2167
    %2777 = vmatpush1.msra.mxu0 %v2166
    %2778 = vmatprep.subr.mxu0 %v2171
    %2779 = vmatpush1.msra.mxu0 %v2170
    %2780 = vmatprep.subr.mxu0 %v2175
    %2781 = vmatpush1.msra.mxu0 %v2174
    %2782 = vmatprep.subr.mxu0 %v2179
    %2783 = vmatpush1.msra.mxu0 %v2178
    %2784 = vmatprep.subr.mxu0 %v2183
    %2785 = vmatpush1.msra.mxu0 %v2182
    %2786 = vmatprep.subr.mxu0 %v2187
    %2787 = vmatpush1.msra.mxu0 %v2186
    %2788 = vmatprep.subr.mxu0 %v2191
    %2789 = vmatpush1.msra.mxu0 %v2190
    %2790 = vmatprep.subr.mxu0 %v2195
    %2791 = vmatpush1.msra.mxu0 %v2194
    %2792 = vmatprep.subr.mxu0 %v2199
    %2793 = vmatpush1.msra.mxu0 %v2198
    %2794 = vmatprep.mubr.f32.mxu0 %v2389
    %2795 = vmatmul.mubr.f32.gmra.mrb[0].mxu0 %v2073
    %v2796 = vpop.f32.mrb[0].mxu0
    %v2797 = vadd.f32 %v2207, %v2796
    %v2798 = vpop.f32.mrb[0].mxu0
    %v2799 = vadd.f32 %v2211, %v2798
    %2800 = vdwg.mxu0
    %2801 = vmatprep.subr.mxu0 %v2077
    %2802 = vmatpush1.msra.mxu0 %v2076
    %2803 = vmatprep.subr.mxu0 %v2081
    %2804 = vmatpush1.msra.mxu0 %v2080
    %2805 = vmatprep.subr.mxu0 %v2085
    %2806 = vmatpush1.msra.mxu0 %v2084
    %2807 = vmatprep.subr.mxu0 %v2089
    %2808 = vmatpush1.msra.mxu0 %v2088
    %2809 = vmatprep.subr.mxu0 %v2093
    %2810 = vmatpush1.msra.mxu0 %v2092
    %2811 = vmatprep.subr.mxu0 %v2097
    %2812 = vmatpush1.msra.mxu0 %v2096
    %2813 = vmatprep.subr.mxu0 %v2101
    %2814 = vmatpush1.msra.mxu0 %v2100
    %2815 = vmatprep.subr.mxu0 %v2105
    %2816 = vmatpush1.msra.mxu0 %v2104
    %2817 = vmatprep.subr.mxu0 %v2109
    %2818 = vmatpush1.msra.mxu0 %v2108
    %2819 = vmatprep.subr.mxu0 %v2113
    %2820 = vmatpush1.msra.mxu0 %v2112
    %2821 = vmatprep.subr.mxu0 %v2117
    %2822 = vmatpush1.msra.mxu0 %v2116
    %2823 = vmatprep.subr.mxu0 %v2121
    %2824 = vmatpush1.msra.mxu0 %v2120
    %2825 = vmatprep.subr.mxu0 %v2125
    %2826 = vmatpush1.msra.mxu0 %v2124
    %2827 = vmatprep.subr.mxu0 %v2129
    %2828 = vmatpush1.msra.mxu0 %v2128
    %2829 = vmatprep.subr.mxu0 %v2133
    %2830 = vmatpush1.msra.mxu0 %v2132
    %2831 = vmatprep.subr.mxu0 %v2137
    %2832 = vmatpush1.msra.mxu0 %v2136
    %2833 = vmatprep.subr.mxu0 %v2141
    %2834 = vmatpush1.msra.mxu0 %v2140
    %2835 = vmatprep.subr.mxu0 %v2145
    %2836 = vmatpush1.msra.mxu0 %v2144
    %2837 = vmatprep.subr.mxu0 %v2149
    %2838 = vmatpush1.msra.mxu0 %v2148
    %2839 = vmatprep.subr.mxu0 %v2153
    %2840 = vmatpush1.msra.mxu0 %v2152
    %2841 = vmatprep.subr.mxu0 %v2157
    %2842 = vmatpush1.msra.mxu0 %v2156
    %2843 = vmatprep.subr.mxu0 %v2161
    %2844 = vmatpush1.msra.mxu0 %v2160
    %2845 = vmatprep.subr.mxu0 %v2165
    %2846 = vmatpush1.msra.mxu0 %v2164
    %2847 = vmatprep.subr.mxu0 %v2169
    %2848 = vmatpush1.msra.mxu0 %v2168
    %2849 = vmatprep.subr.mxu0 %v2173
    %2850 = vmatpush1.msra.mxu0 %v2172
    %2851 = vmatprep.subr.mxu0 %v2177
    %2852 = vmatpush1.msra.mxu0 %v2176
    %2853 = vmatprep.subr.mxu0 %v2181
    %2854 = vmatpush1.msra.mxu0 %v2180
    %2855 = vmatprep.subr.mxu0 %v2185
    %2856 = vmatpush1.msra.mxu0 %v2184
    %2857 = vmatprep.subr.mxu0 %v2189
    %2858 = vmatpush1.msra.mxu0 %v2188
    %2859 = vmatprep.subr.mxu0 %v2193
    %2860 = vmatpush1.msra.mxu0 %v2192
    %2861 = vmatprep.subr.mxu0 %v2197
    %2862 = vmatpush1.msra.mxu0 %v2196
    %2863 = vmatprep.subr.mxu0 %v2201
    %2864 = vmatpush1.msra.mxu0 %v2200
    %2865 = vmatprep.mubr.f32.mxu0 %v2389
    %2866 = vmatmul.mubr.f32.gmra.mrb[0].mxu0 %v2073
    %v2867 = vpop.f32.mrb[0].mxu0
    %v2868 = vadd.f32 %v2215, %v2867
    %v2869 = vpop.f32.mrb[0].mxu0
    %v2870 = vadd.f32 %v2219, %v2869
    %2871 = vdwg.mxu0
    %v2872 = vxor.u32 %v2797, 2147483648
    %v2873 = vxor.u32 %v2799, 2147483648
    %v2874 = vxor.u32 %v2868, 2147483648
    %v2875 = vmul.f32 %v2872, 1.442695
    %v2876 = vpow.pop %v2875
    %v2877 = vmul.f32 %v2873, 1.442695
    %v2878 = vpow.pop %v2877
    %v2879 = vmul.f32 %v2874, 1.442695
    %v2880 = vpow.pop %v2879
    %v2881 = vadd.f32 %v2876, 1.0
    %v2882 = vadd.f32 %v2878, 1.0
    %v2883 = vadd.f32 %v2880, 1.0
    %v2884 = vrcp.pop %v2881
    %v2885 = vmul.f32 1.0, %v2884
    %v2886 = vrcp.pop %v2882
    %v2887 = vmul.f32 1.0, %v2886
    %v2888 = vrcp.pop %v2883
    %v2889 = vmul.f32 1.0, %v2888
    %v2890 = vtanh.pop %v2870
    %v2891 = vmul.f32 %v2887, %v2387
    %v2892 = vmul.f32 %v2885, %v2890
    %v2893 = vadd.f32 %v2891, %v2892
    %v2894 = vtanh.pop %v2893
    %v2895 = vmul.f32 %v2889, %v2894
    %2896 = vmatprep.subr.mxu0 %v1520
    %2897 = vmatpush1.msra.mxu0 %v1519
    %2898 = vmatprep.subr.mxu0 %v1524
    %2899 = vmatpush1.msra.mxu0 %v1523
    %2900 = vmatprep.subr.mxu0 %v1528
    %2901 = vmatpush1.msra.mxu0 %v1527
    %2902 = vmatprep.subr.mxu0 %v1532
    %2903 = vmatpush1.msra.mxu0 %v1531
    %2904 = vmatprep.subr.mxu0 %v1536
    %2905 = vmatpush1.msra.mxu0 %v1535
    %2906 = vmatprep.subr.mxu0 %v1540
    %2907 = vmatpush1.msra.mxu0 %v1539
    %2908 = vmatprep.subr.mxu0 %v1544
    %2909 = vmatpush1.msra.mxu0 %v1543
    %2910 = vmatprep.subr.mxu0 %v1548
    %2911 = vmatpush1.msra.mxu0 %v1547
    %2912 = vmatprep.subr.mxu0 %v1552
    %2913 = vmatpush1.msra.mxu0 %v1551
    %2914 = vmatprep.subr.mxu0 %v1556
    %2915 = vmatpush1.msra.mxu0 %v1555
    %2916 = vmatprep.subr.mxu0 %v1560
    %2917 = vmatpush1.msra.mxu0 %v1559
    %2918 = vmatprep.subr.mxu0 %v1564
    %2919 = vmatpush1.msra.mxu0 %v1563
    %2920 = vmatprep.subr.mxu0 %v1568
    %2921 = vmatpush1.msra.mxu0 %v1567
    %2922 = vmatprep.subr.mxu0 %v1572
    %2923 = vmatpush1.msra.mxu0 %v1571
    %2924 = vmatprep.subr.mxu0 %v1576
    %2925 = vmatpush1.msra.mxu0 %v1575
    %2926 = vmatprep.subr.mxu0 %v1580
    %2927 = vmatpush1.msra.mxu0 %v1579
    %2928 = vmatprep.subr.mxu0 %v1584
    %2929 = vmatpush1.msra.mxu0 %v1583
    %2930 = vmatprep.subr.mxu0 %v1588
    %2931 = vmatpush1.msra.mxu0 %v1587
    %2932 = vmatprep.subr.mxu0 %v1592
    %2933 = vmatpush1.msra.mxu0 %v1591
    %2934 = vmatprep.subr.mxu0 %v1596
    %2935 = vmatpush1.msra.mxu0 %v1595
    %2936 = vmatprep.subr.mxu0 %v1600
    %2937 = vmatpush1.msra.mxu0 %v1599
    %2938 = vmatprep.subr.mxu0 %v1604
    %2939 = vmatpush1.msra.mxu0 %v1603
    %2940 = vmatprep.subr.mxu0 %v1608
    %2941 = vmatpush1.msra.mxu0 %v1607
    %2942 = vmatprep.subr.mxu0 %v1612
    %2943 = vmatpush1.msra.mxu0 %v1611
    %2944 = vmatprep.subr.mxu0 %v1616
    %2945 = vmatpush1.msra.mxu0 %v1615
    %2946 = vmatprep.subr.mxu0 %v1620
    %2947 = vmatpush1.msra.mxu0 %v1619
    %2948 = vmatprep.subr.mxu0 %v1624
    %2949 = vmatpush1.msra.mxu0 %v1623
    %2950 = vmatprep.subr.mxu0 %v1628
    %2951 = vmatpush1.msra.mxu0 %v1627
    %2952 = vmatprep.subr.mxu0 %v1632
    %2953 = vmatpush1.msra.mxu0 %v1631
    %2954 = vmatprep.subr.mxu0 %v1636
    %2955 = vmatpush1.msra.mxu0 %v1635
    %2956 = vmatprep.subr.mxu0 %v1640
    %2957 = vmatpush1.msra.mxu0 %v1639
    %2958 = vmatprep.subr.mxu0 %v1644
    %2959 = vmatpush1.msra.mxu0 %v1643
    %2960 = vmatprep.mubr.f32.mxu0 %v2555
    %2961 = vmatmul.mubr.f32.gmra.mrb[0].mxu0 %v2389
    %v2962 = vpop.f32.mrb[0].mxu0
    %v2963 = vadd.f32 %v1653, %v2962
    %v2964 = vpop.f32.mrb[0].mxu0
    %v2965 = vadd.f32 %v1657, %v2964
    %2966 = vdwg.mxu0
    %2967 = vmatprep.subr.mxu0 %v1522
    %2968 = vmatpush1.msra.mxu0 %v1521
    %2969 = vmatprep.subr.mxu0 %v1526
    %2970 = vmatpush1.msra.mxu0 %v1525
    %2971 = vmatprep.subr.mxu0 %v1530
    %2972 = vmatpush1.msra.mxu0 %v1529
    %2973 = vmatprep.subr.mxu0 %v1534
    %2974 = vmatpush1.msra.mxu0 %v1533
    %2975 = vmatprep.subr.mxu0 %v1538
    %2976 = vmatpush1.msra.mxu0 %v1537
    %2977 = vmatprep.subr.mxu0 %v1542
    %2978 = vmatpush1.msra.mxu0 %v1541
    %2979 = vmatprep.subr.mxu0 %v1546
    %2980 = vmatpush1.msra.mxu0 %v1545
    %2981 = vmatprep.subr.mxu0 %v1550
    %2982 = vmatpush1.msra.mxu0 %v1549
    %2983 = vmatprep.subr.mxu0 %v1554
    %2984 = vmatpush1.msra.mxu0 %v1553
    %2985 = vmatprep.subr.mxu0 %v1558
    %2986 = vmatpush1.msra.mxu0 %v1557
    %2987 = vmatprep.subr.mxu0 %v1562
    %2988 = vmatpush1.msra.mxu0 %v1561
    %2989 = vmatprep.subr.mxu0 %v1566
    %2990 = vmatpush1.msra.mxu0 %v1565
    %2991 = vmatprep.subr.mxu0 %v1570
    %2992 = vmatpush1.msra.mxu0 %v1569
    %2993 = vmatprep.subr.mxu0 %v1574
    %2994 = vmatpush1.msra.mxu0 %v1573
    %2995 = vmatprep.subr.mxu0 %v1578
    %2996 = vmatpush1.msra.mxu0 %v1577
    %2997 = vmatprep.subr.mxu0 %v1582
    %2998 = vmatpush1.msra.mxu0 %v1581
    %2999 = vmatprep.subr.mxu0 %v1586
    %3000 = vmatpush1.msra.mxu0 %v1585
    %3001 = vmatprep.subr.mxu0 %v1590
    %3002 = vmatpush1.msra.mxu0 %v1589
    %3003 = vmatprep.subr.mxu0 %v1594
    %3004 = vmatpush1.msra.mxu0 %v1593
    %3005 = vmatprep.subr.mxu0 %v1598
    %3006 = vmatpush1.msra.mxu0 %v1597
    %3007 = vmatprep.subr.mxu0 %v1602
    %3008 = vmatpush1.msra.mxu0 %v1601
    %3009 = vmatprep.subr.mxu0 %v1606
    %3010 = vmatpush1.msra.mxu0 %v1605
    %3011 = vmatprep.subr.mxu0 %v1610
    %3012 = vmatpush1.msra.mxu0 %v1609
    %3013 = vmatprep.subr.mxu0 %v1614
    %3014 = vmatpush1.msra.mxu0 %v1613
    %3015 = vmatprep.subr.mxu0 %v1618
    %3016 = vmatpush1.msra.mxu0 %v1617
    %3017 = vmatprep.subr.mxu0 %v1622
    %3018 = vmatpush1.msra.mxu0 %v1621
    %3019 = vmatprep.subr.mxu0 %v1626
    %3020 = vmatpush1.msra.mxu0 %v1625
    %3021 = vmatprep.subr.mxu0 %v1630
    %3022 = vmatpush1.msra.mxu0 %v1629
    %3023 = vmatprep.subr.mxu0 %v1634
    %3024 = vmatpush1.msra.mxu0 %v1633
    %3025 = vmatprep.subr.mxu0 %v1638
    %3026 = vmatpush1.msra.mxu0 %v1637
    %3027 = vmatprep.subr.mxu0 %v1642
    %3028 = vmatpush1.msra.mxu0 %v1641
    %3029 = vmatprep.subr.mxu0 %v1646
    %3030 = vmatpush1.msra.mxu0 %v1645
    %3031 = vmatprep.mubr.f32.mxu0 %v2555
    %3032 = vmatmul.mubr.f32.gmra.mrb[0].mxu0 %v2389
    %v3033 = vpop.f32.mrb[0].mxu0
    %v3034 = vadd.f32 %v1661, %v3033
    %v3035 = vpop.f32.mrb[0].mxu0
    %v3036 = vadd.f32 %v1665, %v3035
    %3037 = vdwg.mxu0
    %v3038 = vxor.u32 %v2963, 2147483648
    %v3039 = vxor.u32 %v2965, 2147483648
    %v3040 = vxor.u32 %v3034, 2147483648
    %v3041 = vmul.f32 %v3038, 1.442695
    %v3042 = vpow.pop %v3041
    %v3043 = vmul.f32 %v3039, 1.442695
    %v3044 = vpow.pop %v3043
    %v3045 = vmul.f32 %v3040, 1.442695
    %v3046 = vpow.pop %v3045
    %v3047 = vadd.f32 %v3042, 1.0
    %v3048 = vadd.f32 %v3044, 1.0
    %v3049 = vadd.f32 %v3046, 1.0
    %v3050 = vrcp.pop %v3047
    %v3051 = vmul.f32 1.0, %v3050
    %v3052 = vrcp.pop %v3048
    %v3053 = vmul.f32 1.0, %v3052
    %v3054 = vrcp.pop %v3049
    %v3055 = vmul.f32 1.0, %v3054
    %v3056 = vtanh.pop %v3036
    %v3057 = vmul.f32 %v3053, %v2553
    %v3058 = vmul.f32 %v3051, %v3056
    %v3059 = vadd.f32 %v3057, %v3058
    %v3060 = vtanh.pop %v3059
    %v3061 = vmul.f32 %v3055, %v3060
    %v3062 = vld [vmem:[#allocation5 + $0xa0] sm:$0xff]
    %v3063 = vld [vmem:[#allocation5 + $0xa8] sm:$0xff]
    %v3064 = vld [vmem:[#allocation5 + $0xb0] sm:$0xff]
    %v3065 = vld [vmem:[#allocation5 + $0xb8] sm:$0xff]
    %3066 = vmatprep.subr.mxu0 %v1841
    %3067 = vmatpush1.msra.mxu0 %v1840
    %3068 = vmatprep.subr.mxu0 %v1845
    %3069 = vmatpush1.msra.mxu0 %v1844
    %3070 = vmatprep.subr.mxu0 %v1849
    %3071 = vmatpush1.msra.mxu0 %v1848
    %3072 = vmatprep.subr.mxu0 %v1853
    %3073 = vmatpush1.msra.mxu0 %v1852
    %3074 = vmatprep.subr.mxu0 %v1857
    %3075 = vmatpush1.msra.mxu0 %v1856
    %3076 = vmatprep.subr.mxu0 %v1861
    %3077 = vmatpush1.msra.mxu0 %v1860
    %3078 = vmatprep.subr.mxu0 %v1865
    %3079 = vmatpush1.msra.mxu0 %v1864
    %3080 = vmatprep.subr.mxu0 %v1869
    %3081 = vmatpush1.msra.mxu0 %v1868
    %3082 = vmatprep.subr.mxu0 %v1873
    %3083 = vmatpush1.msra.mxu0 %v1872
    %3084 = vmatprep.subr.mxu0 %v1877
    %3085 = vmatpush1.msra.mxu0 %v1876
    %3086 = vmatprep.subr.mxu0 %v1881
    %3087 = vmatpush1.msra.mxu0 %v1880
    %3088 = vmatprep.subr.mxu0 %v1885
    %3089 = vmatpush1.msra.mxu0 %v1884
    %3090 = vmatprep.subr.mxu0 %v1889
    %3091 = vmatpush1.msra.mxu0 %v1888
    %3092 = vmatprep.subr.mxu0 %v1893
    %3093 = vmatpush1.msra.mxu0 %v1892
    %3094 = vmatprep.subr.mxu0 %v1897
    %3095 = vmatpush1.msra.mxu0 %v1896
    %3096 = vmatprep.subr.mxu0 %v1901
    %3097 = vmatpush1.msra.mxu0 %v1900
    %3098 = vmatprep.subr.mxu0 0.0
    %3099 = vmatpush1.msra.mxu0 0.0
    %3100 = vmatprep.subr.mxu0 0.0
    %3101 = vmatpush1.msra.mxu0 0.0
    %3102 = vmatprep.subr.mxu0 0.0
    %3103 = vmatpush1.msra.mxu0 0.0
    %3104 = vmatprep.subr.mxu0 0.0
    %3105 = vmatpush1.msra.mxu0 0.0
    %3106 = vmatprep.subr.mxu0 0.0
    %3107 = vmatpush1.msra.mxu0 0.0
    %3108 = vmatprep.subr.mxu0 0.0
    %3109 = vmatpush1.msra.mxu0 0.0
    %3110 = vmatprep.subr.mxu0 0.0
    %3111 = vmatpush1.msra.mxu0 0.0
    %3112 = vmatprep.subr.mxu0 0.0
    %3113 = vmatpush1.msra.mxu0 0.0
    %3114 = vmatprep.subr.mxu0 0.0
    %3115 = vmatpush1.msra.mxu0 0.0
    %3116 = vmatprep.subr.mxu0 0.0
    %3117 = vmatpush1.msra.mxu0 0.0
    %3118 = vmatprep.subr.mxu0 0.0
    %3119 = vmatpush1.msra.mxu0 0.0
    %3120 = vmatprep.subr.mxu0 0.0
    %3121 = vmatpush1.msra.mxu0 0.0
    %3122 = vmatprep.subr.mxu0 0.0
    %3123 = vmatpush1.msra.mxu0 0.0
    %3124 = vmatprep.subr.mxu0 0.0
    %3125 = vmatpush1.msra.mxu0 0.0
    %3126 = vmatprep.subr.mxu0 0.0
    %3127 = vmatpush1.msra.mxu0 0.0
    %3128 = vmatprep.subr.mxu0 0.0
    %3129 = vmatpush1.msra.mxu0 0.0
    %3130 = vmatprep.mubr.f32.mxu0 0.0
    %3131 = vmatmul.mubr.f32.gmra.mrb[0].mxu0 %v2729
    %v3132 = vpop.f32.mrb[0].mxu0
    %v3133 = vadd.f32 0.0, %v3132
    %v3134 = vpop.f32.mrb[0].mxu0
    %v3135 = vadd.f32 0.0, %v3134
    %3136 = vdwg.mxu0
    %3137 = vmatprep.subr.mxu0 %v1843
    %3138 = vmatpush1.msra.mxu0 %v1842
    %3139 = vmatprep.subr.mxu0 %v1847
    %3140 = vmatpush1.msra.mxu0 %v1846
    %3141 = vmatprep.subr.mxu0 %v1851
    %3142 = vmatpush1.msra.mxu0 %v1850
    %3143 = vmatprep.subr.mxu0 %v1855
    %3144 = vmatpush1.msra.mxu0 %v1854
    %3145 = vmatprep.subr.mxu0 %v1859
    %3146 = vmatpush1.msra.mxu0 %v1858
    %3147 = vmatprep.subr.mxu0 %v1863
    %3148 = vmatpush1.msra.mxu0 %v1862
    %3149 = vmatprep.subr.mxu0 %v1867
    %3150 = vmatpush1.msra.mxu0 %v1866
    %3151 = vmatprep.subr.mxu0 %v1871
    %3152 = vmatpush1.msra.mxu0 %v1870
    %3153 = vmatprep.subr.mxu0 %v1875
    %3154 = vmatpush1.msra.mxu0 %v1874
    %3155 = vmatprep.subr.mxu0 %v1879
    %3156 = vmatpush1.msra.mxu0 %v1878
    %3157 = vmatprep.subr.mxu0 %v1883
    %3158 = vmatpush1.msra.mxu0 %v1882
    %3159 = vmatprep.subr.mxu0 %v1887
    %3160 = vmatpush1.msra.mxu0 %v1886
    %3161 = vmatprep.subr.mxu0 %v1891
    %3162 = vmatpush1.msra.mxu0 %v1890
    %3163 = vmatprep.subr.mxu0 %v1895
    %3164 = vmatpush1.msra.mxu0 %v1894
    %3165 = vmatprep.subr.mxu0 %v1899
    %3166 = vmatpush1.msra.mxu0 %v1898
    %3167 = vmatprep.subr.mxu0 %v1903
    %3168 = vmatpush1.msra.mxu0 %v1902
    %3169 = vmatprep.subr.mxu0 0.0
    %3170 = vmatpush1.msra.mxu0 0.0
    %3171 = vmatprep.subr.mxu0 0.0
    %3172 = vmatpush1.msra.mxu0 0.0
    %3173 = vmatprep.subr.mxu0 0.0
    %3174 = vmatpush1.msra.mxu0 0.0
    %3175 = vmatprep.subr.mxu0 0.0
    %3176 = vmatpush1.msra.mxu0 0.0
    %3177 = vmatprep.subr.mxu0 0.0
    %3178 = vmatpush1.msra.mxu0 0.0
    %3179 = vmatprep.subr.mxu0 0.0
    %3180 = vmatpush1.msra.mxu0 0.0
    %3181 = vmatprep.subr.mxu0 0.0
    %3182 = vmatpush1.msra.mxu0 0.0
    %3183 = vmatprep.subr.mxu0 0.0
    %3184 = vmatpush1.msra.mxu0 0.0
    %3185 = vmatprep.subr.mxu0 0.0
    %3186 = vmatpush1.msra.mxu0 0.0
    %3187 = vmatprep.subr.mxu0 0.0
    %3188 = vmatpush1.msra.mxu0 0.0
    %3189 = vmatprep.subr.mxu0 0.0
    %3190 = vmatpush1.msra.mxu0 0.0
    %3191 = vmatprep.subr.mxu0 0.0
    %3192 = vmatpush1.msra.mxu0 0.0
    %3193 = vmatprep.subr.mxu0 0.0
    %3194 = vmatpush1.msra.mxu0 0.0
    %3195 = vmatprep.subr.mxu0 0.0
    %3196 = vmatpush1.msra.mxu0 0.0
    %3197 = vmatprep.subr.mxu0 0.0
    %3198 = vmatpush1.msra.mxu0 0.0
    %3199 = vmatprep.subr.mxu0 0.0
    %3200 = vmatpush1.msra.mxu0 0.0
    %3201 = vmatprep.mubr.f32.mxu0 0.0
    %3202 = vmatmul.mubr.f32.gmra.mrb[0].mxu0 %v2729
    %v3203 = vpop.f32.mrb[0].mxu0
    %v3204 = vadd.f32 0.0, %v3203
    %v3205 = vpop.f32.mrb[0].mxu0
    %v3206 = vadd.f32 0.0, %v3205
    %3207 = vdwg.mxu0
    %v3208 = vadd.f32 %v3062, %v3133
    %v3209 = vadd.f32 %v3063, %v3135
    %v3210 = vadd.f32 %v3064, %v3204
    %v3211 = vadd.f32 %v3065, %v3206
    %v3212 = vxor.u32 %v3208, 2147483648
    %v3213 = vxor.u32 %v3209, 2147483648
    %v3214 = vxor.u32 %v3210, 2147483648
    %v3215 = vmul.f32 %v3212, 1.442695
    %v3216 = vpow.pop %v3215
    %v3217 = vmul.f32 %v3213, 1.442695
    %v3218 = vpow.pop %v3217
    %v3219 = vmul.f32 %v3214, 1.442695
    %v3220 = vpow.pop %v3219
    %v3221 = vadd.f32 %v3216, 1.0
    %v3222 = vadd.f32 %v3218, 1.0
    %v3223 = vadd.f32 %v3220, 1.0
    %v3224 = vrcp.pop %v3221
    %v3225 = vmul.f32 1.0, %v3224
    %v3226 = vrcp.pop %v3222
    %v3227 = vmul.f32 1.0, %v3226
    %v3228 = vrcp.pop %v3223
    %v3229 = vmul.f32 1.0, %v3228
    %v3230 = vtanh.pop %v3211
    %v3231 = vmul.f32 %v3227, %v2727
    %v3232 = vmul.f32 %v3225, %v3230
    %v3233 = vadd.f32 %v3231, %v3232
    %v3234 = vtanh.pop %v3233
    %v3235 = vmul.f32 %v3229, %v3234
    %3236 = vmatprep.subr.mxu0 %v2075
    %3237 = vmatpush1.msra.mxu0 %v2074
    %3238 = vmatprep.subr.mxu0 %v2079
    %3239 = vmatpush1.msra.mxu0 %v2078
    %3240 = vmatprep.subr.mxu0 %v2083
    %3241 = vmatpush1.msra.mxu0 %v2082
    %3242 = vmatprep.subr.mxu0 %v2087
    %3243 = vmatpush1.msra.mxu0 %v2086
    %3244 = vmatprep.subr.mxu0 %v2091
    %3245 = vmatpush1.msra.mxu0 %v2090
    %3246 = vmatprep.subr.mxu0 %v2095
    %3247 = vmatpush1.msra.mxu0 %v2094
    %3248 = vmatprep.subr.mxu0 %v2099
    %3249 = vmatpush1.msra.mxu0 %v2098
    %3250 = vmatprep.subr.mxu0 %v2103
    %3251 = vmatpush1.msra.mxu0 %v2102
    %3252 = vmatprep.subr.mxu0 %v2107
    %3253 = vmatpush1.msra.mxu0 %v2106
    %3254 = vmatprep.subr.mxu0 %v2111
    %3255 = vmatpush1.msra.mxu0 %v2110
    %3256 = vmatprep.subr.mxu0 %v2115
    %3257 = vmatpush1.msra.mxu0 %v2114
    %3258 = vmatprep.subr.mxu0 %v2119
    %3259 = vmatpush1.msra.mxu0 %v2118
    %3260 = vmatprep.subr.mxu0 %v2123
    %3261 = vmatpush1.msra.mxu0 %v2122
    %3262 = vmatprep.subr.mxu0 %v2127
    %3263 = vmatpush1.msra.mxu0 %v2126
    %3264 = vmatprep.subr.mxu0 %v2131
    %3265 = vmatpush1.msra.mxu0 %v2130
    %3266 = vmatprep.subr.mxu0 %v2135
    %3267 = vmatpush1.msra.mxu0 %v2134
    %3268 = vmatprep.subr.mxu0 %v2139
    %3269 = vmatpush1.msra.mxu0 %v2138
    %3270 = vmatprep.subr.mxu0 %v2143
    %3271 = vmatpush1.msra.mxu0 %v2142
    %3272 = vmatprep.subr.mxu0 %v2147
    %3273 = vmatpush1.msra.mxu0 %v2146
    %3274 = vmatprep.subr.mxu0 %v2151
    %3275 = vmatpush1.msra.mxu0 %v2150
    %3276 = vmatprep.subr.mxu0 %v2155
    %3277 = vmatpush1.msra.mxu0 %v2154
    %3278 = vmatprep.subr.mxu0 %v2159
    %3279 = vmatpush1.msra.mxu0 %v2158
    %3280 = vmatprep.subr.mxu0 %v2163
    %3281 = vmatpush1.msra.mxu0 %v2162
    %3282 = vmatprep.subr.mxu0 %v2167
    %3283 = vmatpush1.msra.mxu0 %v2166
    %3284 = vmatprep.subr.mxu0 %v2171
    %3285 = vmatpush1.msra.mxu0 %v2170
    %3286 = vmatprep.subr.mxu0 %v2175
    %3287 = vmatpush1.msra.mxu0 %v2174
    %3288 = vmatprep.subr.mxu0 %v2179
    %3289 = vmatpush1.msra.mxu0 %v2178
    %3290 = vmatprep.subr.mxu0 %v2183
    %3291 = vmatpush1.msra.mxu0 %v2182
    %3292 = vmatprep.subr.mxu0 %v2187
    %3293 = vmatpush1.msra.mxu0 %v2186
    %3294 = vmatprep.subr.mxu0 %v2191
    %3295 = vmatpush1.msra.mxu0 %v2190
    %3296 = vmatprep.subr.mxu0 %v2195
    %3297 = vmatpush1.msra.mxu0 %v2194
    %3298 = vmatprep.subr.mxu0 %v2199
    %3299 = vmatpush1.msra.mxu0 %v2198
    %3300 = vmatprep.mubr.f32.mxu0 %v2895
    %3301 = vmatmul.mubr.f32.gmra.mrb[0].mxu0 %v2729
    %v3302 = vpop.f32.mrb[0].mxu0
    %v3303 = vadd.f32 %v2207, %v3302
    %v3304 = vpop.f32.mrb[0].mxu0
    %v3305 = vadd.f32 %v2211, %v3304
    %3306 = vdwg.mxu0
    %3307 = vmatprep.subr.mxu0 %v2077
    %3308 = vmatpush1.msra.mxu0 %v2076
    %3309 = vmatprep.subr.mxu0 %v2081
    %3310 = vmatpush1.msra.mxu0 %v2080
    %3311 = vmatprep.subr.mxu0 %v2085
    %3312 = vmatpush1.msra.mxu0 %v2084
    %3313 = vmatprep.subr.mxu0 %v2089
    %3314 = vmatpush1.msra.mxu0 %v2088
    %3315 = vmatprep.subr.mxu0 %v2093
    %3316 = vmatpush1.msra.mxu0 %v2092
    %3317 = vmatprep.subr.mxu0 %v2097
    %3318 = vmatpush1.msra.mxu0 %v2096
    %3319 = vmatprep.subr.mxu0 %v2101
    %3320 = vmatpush1.msra.mxu0 %v2100
    %3321 = vmatprep.subr.mxu0 %v2105
    %3322 = vmatpush1.msra.mxu0 %v2104
    %3323 = vmatprep.subr.mxu0 %v2109
    %3324 = vmatpush1.msra.mxu0 %v2108
    %3325 = vmatprep.subr.mxu0 %v2113
    %3326 = vmatpush1.msra.mxu0 %v2112
    %3327 = vmatprep.subr.mxu0 %v2117
    %3328 = vmatpush1.msra.mxu0 %v2116
    %3329 = vmatprep.subr.mxu0 %v2121
    %3330 = vmatpush1.msra.mxu0 %v2120
    %3331 = vmatprep.subr.mxu0 %v2125
    %3332 = vmatpush1.msra.mxu0 %v2124
    %3333 = vmatprep.subr.mxu0 %v2129
    %3334 = vmatpush1.msra.mxu0 %v2128
    %3335 = vmatprep.subr.mxu0 %v2133
    %3336 = vmatpush1.msra.mxu0 %v2132
    %3337 = vmatprep.subr.mxu0 %v2137
    %3338 = vmatpush1.msra.mxu0 %v2136
    %3339 = vmatprep.subr.mxu0 %v2141
    %3340 = vmatpush1.msra.mxu0 %v2140
    %3341 = vmatprep.subr.mxu0 %v2145
    %3342 = vmatpush1.msra.mxu0 %v2144
    %3343 = vmatprep.subr.mxu0 %v2149
    %3344 = vmatpush1.msra.mxu0 %v2148
    %3345 = vmatprep.subr.mxu0 %v2153
    %3346 = vmatpush1.msra.mxu0 %v2152
    %3347 = vmatprep.subr.mxu0 %v2157
    %3348 = vmatpush1.msra.mxu0 %v2156
    %3349 = vmatprep.subr.mxu0 %v2161
    %3350 = vmatpush1.msra.mxu0 %v2160
    %3351 = vmatprep.subr.mxu0 %v2165
    %3352 = vmatpush1.msra.mxu0 %v2164
    %3353 = vmatprep.subr.mxu0 %v2169
    %3354 = vmatpush1.msra.mxu0 %v2168
    %3355 = vmatprep.subr.mxu0 %v2173
    %3356 = vmatpush1.msra.mxu0 %v2172
    %3357 = vmatprep.subr.mxu0 %v2177
    %3358 = vmatpush1.msra.mxu0 %v2176
    %3359 = vmatprep.subr.mxu0 %v2181
    %3360 = vmatpush1.msra.mxu0 %v2180
    %3361 = vmatprep.subr.mxu0 %v2185
    %3362 = vmatpush1.msra.mxu0 %v2184
    %3363 = vmatprep.subr.mxu0 %v2189
    %3364 = vmatpush1.msra.mxu0 %v2188
    %3365 = vmatprep.subr.mxu0 %v2193
    %3366 = vmatpush1.msra.mxu0 %v2192
    %3367 = vmatprep.subr.mxu0 %v2197
    %3368 = vmatpush1.msra.mxu0 %v2196
    %3369 = vmatprep.subr.mxu0 %v2201
    %3370 = vmatpush1.msra.mxu0 %v2200
    %3371 = vmatprep.mubr.f32.mxu0 %v2895
    %3372 = vmatmul.mubr.f32.gmra.mrb[0].mxu0 %v2729
    %v3373 = vpop.f32.mrb[0].mxu0
    %v3374 = vadd.f32 %v2215, %v3373
    %v3375 = vpop.f32.mrb[0].mxu0
    %v3376 = vadd.f32 %v2219, %v3375
    %3377 = vdwg.mxu0
    %v3378 = vxor.u32 %v3303, 2147483648
    %v3379 = vxor.u32 %v3305, 2147483648
    %v3380 = vxor.u32 %v3374, 2147483648
    %v3381 = vmul.f32 %v3378, 1.442695
    %v3382 = vpow.pop %v3381
    %v3383 = vmul.f32 %v3379, 1.442695
    %v3384 = vpow.pop %v3383
    %v3385 = vmul.f32 %v3380, 1.442695
    %v3386 = vpow.pop %v3385
    %v3387 = vadd.f32 %v3382, 1.0
    %v3388 = vadd.f32 %v3384, 1.0
    %v3389 = vadd.f32 %v3386, 1.0
    %v3390 = vrcp.pop %v3387
    %v3391 = vmul.f32 1.0, %v3390
    %v3392 = vrcp.pop %v3388
    %v3393 = vmul.f32 1.0, %v3392
    %v3394 = vrcp.pop %v3389
    %v3395 = vmul.f32 1.0, %v3394
    %v3396 = vtanh.pop %v3376
    %v3397 = vmul.f32 %v3393, %v2893
    %v3398 = vmul.f32 %v3391, %v3396
    %v3399 = vadd.f32 %v3397, %v3398
    %v3400 = vtanh.pop %v3399
    %v3401 = vmul.f32 %v3395, %v3400
    %3402 = vmatprep.subr.mxu0 %v1520
    %3403 = vmatpush1.msra.mxu0 %v1519
    %3404 = vmatprep.subr.mxu0 %v1524
    %3405 = vmatpush1.msra.mxu0 %v1523
    %3406 = vmatprep.subr.mxu0 %v1528
    %3407 = vmatpush1.msra.mxu0 %v1527
    %3408 = vmatprep.subr.mxu0 %v1532
    %3409 = vmatpush1.msra.mxu0 %v1531
    %3410 = vmatprep.subr.mxu0 %v1536
    %3411 = vmatpush1.msra.mxu0 %v1535
    %3412 = vmatprep.subr.mxu0 %v1540
    %3413 = vmatpush1.msra.mxu0 %v1539
    %3414 = vmatprep.subr.mxu0 %v1544
    %3415 = vmatpush1.msra.mxu0 %v1543
    %3416 = vmatprep.subr.mxu0 %v1548
    %3417 = vmatpush1.msra.mxu0 %v1547
    %3418 = vmatprep.subr.mxu0 %v1552
    %3419 = vmatpush1.msra.mxu0 %v1551
    %3420 = vmatprep.subr.mxu0 %v1556
    %3421 = vmatpush1.msra.mxu0 %v1555
    %3422 = vmatprep.subr.mxu0 %v1560
    %3423 = vmatpush1.msra.mxu0 %v1559
    %3424 = vmatprep.subr.mxu0 %v1564
    %3425 = vmatpush1.msra.mxu0 %v1563
    %3426 = vmatprep.subr.mxu0 %v1568
    %3427 = vmatpush1.msra.mxu0 %v1567
    %3428 = vmatprep.subr.mxu0 %v1572
    %3429 = vmatpush1.msra.mxu0 %v1571
    %3430 = vmatprep.subr.mxu0 %v1576
    %3431 = vmatpush1.msra.mxu0 %v1575
    %3432 = vmatprep.subr.mxu0 %v1580
    %3433 = vmatpush1.msra.mxu0 %v1579
    %3434 = vmatprep.subr.mxu0 %v1584
    %3435 = vmatpush1.msra.mxu0 %v1583
    %3436 = vmatprep.subr.mxu0 %v1588
    %3437 = vmatpush1.msra.mxu0 %v1587
    %3438 = vmatprep.subr.mxu0 %v1592
    %3439 = vmatpush1.msra.mxu0 %v1591
    %3440 = vmatprep.subr.mxu0 %v1596
    %3441 = vmatpush1.msra.mxu0 %v1595
    %3442 = vmatprep.subr.mxu0 %v1600
    %3443 = vmatpush1.msra.mxu0 %v1599
    %3444 = vmatprep.subr.mxu0 %v1604
    %3445 = vmatpush1.msra.mxu0 %v1603
    %3446 = vmatprep.subr.mxu0 %v1608
    %3447 = vmatpush1.msra.mxu0 %v1607
    %3448 = vmatprep.subr.mxu0 %v1612
    %3449 = vmatpush1.msra.mxu0 %v1611
    %3450 = vmatprep.subr.mxu0 %v1616
    %3451 = vmatpush1.msra.mxu0 %v1615
    %3452 = vmatprep.subr.mxu0 %v1620
    %3453 = vmatpush1.msra.mxu0 %v1619
    %3454 = vmatprep.subr.mxu0 %v1624
    %3455 = vmatpush1.msra.mxu0 %v1623
    %3456 = vmatprep.subr.mxu0 %v1628
    %3457 = vmatpush1.msra.mxu0 %v1627
    %3458 = vmatprep.subr.mxu0 %v1632
    %3459 = vmatpush1.msra.mxu0 %v1631
    %3460 = vmatprep.subr.mxu0 %v1636
    %3461 = vmatpush1.msra.mxu0 %v1635
    %3462 = vmatprep.subr.mxu0 %v1640
    %3463 = vmatpush1.msra.mxu0 %v1639
    %3464 = vmatprep.subr.mxu0 %v1644
    %3465 = vmatpush1.msra.mxu0 %v1643
    %3466 = vmatprep.mubr.f32.mxu0 %v3061
    %3467 = vmatmul.mubr.f32.gmra.mrb[0].mxu0 %v2895
    %v3468 = vpop.f32.mrb[0].mxu0
    %v3469 = vadd.f32 %v1653, %v3468
    %v3470 = vpop.f32.mrb[0].mxu0
    %v3471 = vadd.f32 %v1657, %v3470
    %3472 = vdwg.mxu0
    %3473 = vmatprep.subr.mxu0 %v1522
    %3474 = vmatpush1.msra.mxu0 %v1521
    %3475 = vmatprep.subr.mxu0 %v1526
    %3476 = vmatpush1.msra.mxu0 %v1525
    %3477 = vmatprep.subr.mxu0 %v1530
    %3478 = vmatpush1.msra.mxu0 %v1529
    %3479 = vmatprep.subr.mxu0 %v1534
    %3480 = vmatpush1.msra.mxu0 %v1533
    %3481 = vmatprep.subr.mxu0 %v1538
    %3482 = vmatpush1.msra.mxu0 %v1537
    %3483 = vmatprep.subr.mxu0 %v1542
    %3484 = vmatpush1.msra.mxu0 %v1541
    %3485 = vmatprep.subr.mxu0 %v1546
    %3486 = vmatpush1.msra.mxu0 %v1545
    %3487 = vmatprep.subr.mxu0 %v1550
    %3488 = vmatpush1.msra.mxu0 %v1549
    %3489 = vmatprep.subr.mxu0 %v1554
    %3490 = vmatpush1.msra.mxu0 %v1553
    %3491 = vmatprep.subr.mxu0 %v1558
    %3492 = vmatpush1.msra.mxu0 %v1557
    %3493 = vmatprep.subr.mxu0 %v1562
    %3494 = vmatpush1.msra.mxu0 %v1561
    %3495 = vmatprep.subr.mxu0 %v1566
    %3496 = vmatpush1.msra.mxu0 %v1565
    %3497 = vmatprep.subr.mxu0 %v1570
    %3498 = vmatpush1.msra.mxu0 %v1569
    %3499 = vmatprep.subr.mxu0 %v1574
    %3500 = vmatpush1.msra.mxu0 %v1573
    %3501 = vmatprep.subr.mxu0 %v1578
    %3502 = vmatpush1.msra.mxu0 %v1577
    %3503 = vmatprep.subr.mxu0 %v1582
    %3504 = vmatpush1.msra.mxu0 %v1581
    %3505 = vmatprep.subr.mxu0 %v1586
    %3506 = vmatpush1.msra.mxu0 %v1585
    %3507 = vmatprep.subr.mxu0 %v1590
    %3508 = vmatpush1.msra.mxu0 %v1589
    %3509 = vmatprep.subr.mxu0 %v1594
    %3510 = vmatpush1.msra.mxu0 %v1593
    %3511 = vmatprep.subr.mxu0 %v1598
    %3512 = vmatpush1.msra.mxu0 %v1597
    %3513 = vmatprep.subr.mxu0 %v1602
    %3514 = vmatpush1.msra.mxu0 %v1601
    %3515 = vmatprep.subr.mxu0 %v1606
    %3516 = vmatpush1.msra.mxu0 %v1605
    %3517 = vmatprep.subr.mxu0 %v1610
    %3518 = vmatpush1.msra.mxu0 %v1609
    %3519 = vmatprep.subr.mxu0 %v1614
    %3520 = vmatpush1.msra.mxu0 %v1613
    %3521 = vmatprep.subr.mxu0 %v1618
    %3522 = vmatpush1.msra.mxu0 %v1617
    %3523 = vmatprep.subr.mxu0 %v1622
    %3524 = vmatpush1.msra.mxu0 %v1621
    %3525 = vmatprep.subr.mxu0 %v1626
    %3526 = vmatpush1.msra.mxu0 %v1625
    %3527 = vmatprep.subr.mxu0 %v1630
    %3528 = vmatpush1.msra.mxu0 %v1629
    %3529 = vmatprep.subr.mxu0 %v1634
    %3530 = vmatpush1.msra.mxu0 %v1633
    %3531 = vmatprep.subr.mxu0 %v1638
    %3532 = vmatpush1.msra.mxu0 %v1637
    %3533 = vmatprep.subr.mxu0 %v1642
    %3534 = vmatpush1.msra.mxu0 %v1641
    %3535 = vmatprep.subr.mxu0 %v1646
    %3536 = vmatpush1.msra.mxu0 %v1645
    %3537 = vmatprep.mubr.f32.mxu0 %v3061
    %3538 = vmatmul.mubr.f32.gmra.mrb[0].mxu0 %v2895
    %v3539 = vpop.f32.mrb[0].mxu0
    %v3540 = vadd.f32 %v1661, %v3539
    %v3541 = vpop.f32.mrb[0].mxu0
    %v3542 = vadd.f32 %v1665, %v3541
    %3543 = vdwg.mxu0
    %v3544 = vxor.u32 %v3469, 2147483648
    %v3545 = vxor.u32 %v3471, 2147483648
    %v3546 = vxor.u32 %v3540, 2147483648
    %v3547 = vmul.f32 %v3544, 1.442695
    %v3548 = vpow.pop %v3547
    %v3549 = vmul.f32 %v3545, 1.442695
    %v3550 = vpow.pop %v3549
    %v3551 = vmul.f32 %v3546, 1.442695
    %v3552 = vpow.pop %v3551
    %v3553 = vadd.f32 %v3548, 1.0
    %v3554 = vadd.f32 %v3550, 1.0
    %v3555 = vadd.f32 %v3552, 1.0
    %v3556 = vrcp.pop %v3553
    %v3557 = vmul.f32 1.0, %v3556
    %v3558 = vrcp.pop %v3554
    %v3559 = vmul.f32 1.0, %v3558
    %v3560 = vrcp.pop %v3555
    %v3561 = vmul.f32 1.0, %v3560
    %v3562 = vtanh.pop %v3542
    %v3563 = vmul.f32 %v3559, %v3059
    %v3564 = vmul.f32 %v3557, %v3562
    %v3565 = vadd.f32 %v3563, %v3564
    %v3566 = vtanh.pop %v3565
    %v3567 = vmul.f32 %v3561, %v3566
    %v3568 = vld [vmem:[#allocation5 + $0xc0] sm:$0xff]
    %v3569 = vld [vmem:[#allocation5 + $0xc8] sm:$0xff]
    %v3570 = vld [vmem:[#allocation5 + $0xd0] sm:$0xff]
    %v3571 = vld [vmem:[#allocation5 + $0xd8] sm:$0xff]
    %3572 = vmatprep.subr.mxu0 %v1841
    %3573 = vmatpush1.msra.mxu0 %v1840
    %3574 = vmatprep.subr.mxu0 %v1845
    %3575 = vmatpush1.msra.mxu0 %v1844
    %3576 = vmatprep.subr.mxu0 %v1849
    %3577 = vmatpush1.msra.mxu0 %v1848
    %3578 = vmatprep.subr.mxu0 %v1853
    %3579 = vmatpush1.msra.mxu0 %v1852
    %3580 = vmatprep.subr.mxu0 %v1857
    %3581 = vmatpush1.msra.mxu0 %v1856
    %3582 = vmatprep.subr.mxu0 %v1861
    %3583 = vmatpush1.msra.mxu0 %v1860
    %3584 = vmatprep.subr.mxu0 %v1865
    %3585 = vmatpush1.msra.mxu0 %v1864
    %3586 = vmatprep.subr.mxu0 %v1869
    %3587 = vmatpush1.msra.mxu0 %v1868
    %3588 = vmatprep.subr.mxu0 %v1873
    %3589 = vmatpush1.msra.mxu0 %v1872
    %3590 = vmatprep.subr.mxu0 %v1877
    %3591 = vmatpush1.msra.mxu0 %v1876
    %3592 = vmatprep.subr.mxu0 %v1881
    %3593 = vmatpush1.msra.mxu0 %v1880
    %3594 = vmatprep.subr.mxu0 %v1885
    %3595 = vmatpush1.msra.mxu0 %v1884
    %3596 = vmatprep.subr.mxu0 %v1889
    %3597 = vmatpush1.msra.mxu0 %v1888
    %3598 = vmatprep.subr.mxu0 %v1893
    %3599 = vmatpush1.msra.mxu0 %v1892
    %3600 = vmatprep.subr.mxu0 %v1897
    %3601 = vmatpush1.msra.mxu0 %v1896
    %3602 = vmatprep.subr.mxu0 %v1901
    %3603 = vmatpush1.msra.mxu0 %v1900
    %3604 = vmatprep.subr.mxu0 0.0
    %3605 = vmatpush1.msra.mxu0 0.0
    %3606 = vmatprep.subr.mxu0 0.0
    %3607 = vmatpush1.msra.mxu0 0.0
    %3608 = vmatprep.subr.mxu0 0.0
    %3609 = vmatpush1.msra.mxu0 0.0
    %3610 = vmatprep.subr.mxu0 0.0
    %3611 = vmatpush1.msra.mxu0 0.0
    %3612 = vmatprep.subr.mxu0 0.0
    %3613 = vmatpush1.msra.mxu0 0.0
    %3614 = vmatprep.subr.mxu0 0.0
    %3615 = vmatpush1.msra.mxu0 0.0
    %3616 = vmatprep.subr.mxu0 0.0
    %3617 = vmatpush1.msra.mxu0 0.0
    %3618 = vmatprep.subr.mxu0 0.0
    %3619 = vmatpush1.msra.mxu0 0.0
    %3620 = vmatprep.subr.mxu0 0.0
    %3621 = vmatpush1.msra.mxu0 0.0
    %3622 = vmatprep.subr.mxu0 0.0
    %3623 = vmatpush1.msra.mxu0 0.0
    %3624 = vmatprep.subr.mxu0 0.0
    %3625 = vmatpush1.msra.mxu0 0.0
    %3626 = vmatprep.subr.mxu0 0.0
    %3627 = vmatpush1.msra.mxu0 0.0
    %3628 = vmatprep.subr.mxu0 0.0
    %3629 = vmatpush1.msra.mxu0 0.0
    %3630 = vmatprep.subr.mxu0 0.0
    %3631 = vmatpush1.msra.mxu0 0.0
    %3632 = vmatprep.subr.mxu0 0.0
    %3633 = vmatpush1.msra.mxu0 0.0
    %3634 = vmatprep.subr.mxu0 0.0
    %3635 = vmatpush1.msra.mxu0 0.0
    %3636 = vmatprep.mubr.f32.mxu0 0.0
    %3637 = vmatmul.mubr.f32.gmra.mrb[0].mxu0 %v3235
    %v3638 = vpop.f32.mrb[0].mxu0
    %v3639 = vadd.f32 0.0, %v3638
    %v3640 = vpop.f32.mrb[0].mxu0
    %v3641 = vadd.f32 0.0, %v3640
    %3642 = vdwg.mxu0
    %3643 = vmatprep.subr.mxu0 %v1843
    %3644 = vmatpush1.msra.mxu0 %v1842
    %3645 = vmatprep.subr.mxu0 %v1847
    %3646 = vmatpush1.msra.mxu0 %v1846
    %3647 = vmatprep.subr.mxu0 %v1851
    %3648 = vmatpush1.msra.mxu0 %v1850
    %3649 = vmatprep.subr.mxu0 %v1855
    %3650 = vmatpush1.msra.mxu0 %v1854
    %3651 = vmatprep.subr.mxu0 %v1859
    %3652 = vmatpush1.msra.mxu0 %v1858
    %3653 = vmatprep.subr.mxu0 %v1863
    %3654 = vmatpush1.msra.mxu0 %v1862
    %3655 = vmatprep.subr.mxu0 %v1867
    %3656 = vmatpush1.msra.mxu0 %v1866
    %3657 = vmatprep.subr.mxu0 %v1871
    %3658 = vmatpush1.msra.mxu0 %v1870
    %3659 = vmatprep.subr.mxu0 %v1875
    %3660 = vmatpush1.msra.mxu0 %v1874
    %3661 = vmatprep.subr.mxu0 %v1879
    %3662 = vmatpush1.msra.mxu0 %v1878
    %3663 = vmatprep.subr.mxu0 %v1883
    %3664 = vmatpush1.msra.mxu0 %v1882
    %3665 = vmatprep.subr.mxu0 %v1887
    %3666 = vmatpush1.msra.mxu0 %v1886
    %3667 = vmatprep.subr.mxu0 %v1891
    %3668 = vmatpush1.msra.mxu0 %v1890
    %3669 = vmatprep.subr.mxu0 %v1895
    %3670 = vmatpush1.msra.mxu0 %v1894
    %3671 = vmatprep.subr.mxu0 %v1899
    %3672 = vmatpush1.msra.mxu0 %v1898
    %3673 = vmatprep.subr.mxu0 %v1903
    %3674 = vmatpush1.msra.mxu0 %v1902
    %3675 = vmatprep.subr.mxu0 0.0
    %3676 = vmatpush1.msra.mxu0 0.0
    %3677 = vmatprep.subr.mxu0 0.0
    %3678 = vmatpush1.msra.mxu0 0.0
    %3679 = vmatprep.subr.mxu0 0.0
    %3680 = vmatpush1.msra.mxu0 0.0
    %3681 = vmatprep.subr.mxu0 0.0
    %3682 = vmatpush1.msra.mxu0 0.0
    %3683 = vmatprep.subr.mxu0 0.0
    %3684 = vmatpush1.msra.mxu0 0.0
    %3685 = vmatprep.subr.mxu0 0.0
    %3686 = vmatpush1.msra.mxu0 0.0
    %3687 = vmatprep.subr.mxu0 0.0
    %3688 = vmatpush1.msra.mxu0 0.0
    %3689 = vmatprep.subr.mxu0 0.0
    %3690 = vmatpush1.msra.mxu0 0.0
    %3691 = vmatprep.subr.mxu0 0.0
    %3692 = vmatpush1.msra.mxu0 0.0
    %3693 = vmatprep.subr.mxu0 0.0
    %3694 = vmatpush1.msra.mxu0 0.0
    %3695 = vmatprep.subr.mxu0 0.0
    %3696 = vmatpush1.msra.mxu0 0.0
    %3697 = vmatprep.subr.mxu0 0.0
    %3698 = vmatpush1.msra.mxu0 0.0
    %3699 = vmatprep.subr.mxu0 0.0
    %3700 = vmatpush1.msra.mxu0 0.0
    %3701 = vmatprep.subr.mxu0 0.0
    %3702 = vmatpush1.msra.mxu0 0.0
    %3703 = vmatprep.subr.mxu0 0.0
    %3704 = vmatpush1.msra.mxu0 0.0
    %3705 = vmatprep.subr.mxu0 0.0
    %3706 = vmatpush1.msra.mxu0 0.0
    %3707 = vmatprep.mubr.f32.mxu0 0.0
    %3708 = vmatmul.mubr.f32.gmra.mrb[0].mxu0 %v3235
    %v3709 = vpop.f32.mrb[0].mxu0
    %v3710 = vadd.f32 0.0, %v3709
    %v3711 = vpop.f32.mrb[0].mxu0
    %v3712 = vadd.f32 0.0, %v3711
    %3713 = vdwg.mxu0
    %v3714 = vadd.f32 %v3568, %v3639
    %v3715 = vadd.f32 %v3569, %v3641
    %v3716 = vadd.f32 %v3570, %v3710
    %v3717 = vadd.f32 %v3571, %v3712
    %v3718 = vxor.u32 %v3714, 2147483648
    %v3719 = vxor.u32 %v3715, 2147483648
    %v3720 = vxor.u32 %v3716, 2147483648
    %v3721 = vmul.f32 %v3718, 1.442695
    %v3722 = vpow.pop %v3721
    %v3723 = vmul.f32 %v3719, 1.442695
    %v3724 = vpow.pop %v3723
    %v3725 = vmul.f32 %v3720, 1.442695
    %v3726 = vpow.pop %v3725
    %v3727 = vadd.f32 %v3722, 1.0
    %v3728 = vadd.f32 %v3724, 1.0
    %v3729 = vadd.f32 %v3726, 1.0
    %v3730 = vrcp.pop %v3727
    %v3731 = vmul.f32 1.0, %v3730
    %v3732 = vrcp.pop %v3728
    %v3733 = vmul.f32 1.0, %v3732
    %v3734 = vrcp.pop %v3729
    %v3735 = vmul.f32 1.0, %v3734
    %v3736 = vtanh.pop %v3717
    %v3737 = vmul.f32 %v3733, %v3233
    %v3738 = vmul.f32 %v3731, %v3736
    %v3739 = vadd.f32 %v3737, %v3738
    %v3740 = vtanh.pop %v3739
    %v3741 = vmul.f32 %v3735, %v3740
    %3742 = vmatprep.subr.mxu0 %v2075
    %3743 = vmatpush1.msra.mxu0 %v2074
    %3744 = vmatprep.subr.mxu0 %v2079
    %3745 = vmatpush1.msra.mxu0 %v2078
    %3746 = vmatprep.subr.mxu0 %v2083
    %3747 = vmatpush1.msra.mxu0 %v2082
    %3748 = vmatprep.subr.mxu0 %v2087
    %3749 = vmatpush1.msra.mxu0 %v2086
    %3750 = vmatprep.subr.mxu0 %v2091
    %3751 = vmatpush1.msra.mxu0 %v2090
    %3752 = vmatprep.subr.mxu0 %v2095
    %3753 = vmatpush1.msra.mxu0 %v2094
    %3754 = vmatprep.subr.mxu0 %v2099
    %3755 = vmatpush1.msra.mxu0 %v2098
    %3756 = vmatprep.subr.mxu0 %v2103
    %3757 = vmatpush1.msra.mxu0 %v2102
    %3758 = vmatprep.subr.mxu0 %v2107
    %3759 = vmatpush1.msra.mxu0 %v2106
    %3760 = vmatprep.subr.mxu0 %v2111
    %3761 = vmatpush1.msra.mxu0 %v2110
    %3762 = vmatprep.subr.mxu0 %v2115
    %3763 = vmatpush1.msra.mxu0 %v2114
    %3764 = vmatprep.subr.mxu0 %v2119
    %3765 = vmatpush1.msra.mxu0 %v2118
    %3766 = vmatprep.subr.mxu0 %v2123
    %3767 = vmatpush1.msra.mxu0 %v2122
    %3768 = vmatprep.subr.mxu0 %v2127
    %3769 = vmatpush1.msra.mxu0 %v2126
    %3770 = vmatprep.subr.mxu0 %v2131
    %3771 = vmatpush1.msra.mxu0 %v2130
    %3772 = vmatprep.subr.mxu0 %v2135
    %3773 = vmatpush1.msra.mxu0 %v2134
    %3774 = vmatprep.subr.mxu0 %v2139
    %3775 = vmatpush1.msra.mxu0 %v2138
    %3776 = vmatprep.subr.mxu0 %v2143
    %3777 = vmatpush1.msra.mxu0 %v2142
    %3778 = vmatprep.subr.mxu0 %v2147
    %3779 = vmatpush1.msra.mxu0 %v2146
    %3780 = vmatprep.subr.mxu0 %v2151
    %3781 = vmatpush1.msra.mxu0 %v2150
    %3782 = vmatprep.subr.mxu0 %v2155
    %3783 = vmatpush1.msra.mxu0 %v2154
    %3784 = vmatprep.subr.mxu0 %v2159
    %3785 = vmatpush1.msra.mxu0 %v2158
    %3786 = vmatprep.subr.mxu0 %v2163
    %3787 = vmatpush1.msra.mxu0 %v2162
    %3788 = vmatprep.subr.mxu0 %v2167
    %3789 = vmatpush1.msra.mxu0 %v2166
    %3790 = vmatprep.subr.mxu0 %v2171
    %3791 = vmatpush1.msra.mxu0 %v2170
    %3792 = vmatprep.subr.mxu0 %v2175
    %3793 = vmatpush1.msra.mxu0 %v2174
    %3794 = vmatprep.subr.mxu0 %v2179
    %3795 = vmatpush1.msra.mxu0 %v2178
    %3796 = vmatprep.subr.mxu0 %v2183
    %3797 = vmatpush1.msra.mxu0 %v2182
    %3798 = vmatprep.subr.mxu0 %v2187
    %3799 = vmatpush1.msra.mxu0 %v2186
    %3800 = vmatprep.subr.mxu0 %v2191
    %3801 = vmatpush1.msra.mxu0 %v2190
    %3802 = vmatprep.subr.mxu0 %v2195
    %3803 = vmatpush1.msra.mxu0 %v2194
    %3804 = vmatprep.subr.mxu0 %v2199
    %3805 = vmatpush1.msra.mxu0 %v2198
    %3806 = vmatprep.mubr.f32.mxu0 %v3401
    %3807 = vmatmul.mubr.f32.gmra.mrb[0].mxu0 %v3235
    %v3808 = vpop.f32.mrb[0].mxu0
    %v3809 = vadd.f32 %v2207, %v3808
    %v3810 = vpop.f32.mrb[0].mxu0
    %v3811 = vadd.f32 %v2211, %v3810
    %3812 = vdwg.mxu0
    %3813 = vmatprep.subr.mxu0 %v2077
    %3814 = vmatpush1.msra.mxu0 %v2076
    %3815 = vmatprep.subr.mxu0 %v2081
    %3816 = vmatpush1.msra.mxu0 %v2080
    %3817 = vmatprep.subr.mxu0 %v2085
    %3818 = vmatpush1.msra.mxu0 %v2084
    %3819 = vmatprep.subr.mxu0 %v2089
    %3820 = vmatpush1.msra.mxu0 %v2088
    %3821 = vmatprep.subr.mxu0 %v2093
    %3822 = vmatpush1.msra.mxu0 %v2092
    %3823 = vmatprep.subr.mxu0 %v2097
    %3824 = vmatpush1.msra.mxu0 %v2096
    %3825 = vmatprep.subr.mxu0 %v2101
    %3826 = vmatpush1.msra.mxu0 %v2100
    %3827 = vmatprep.subr.mxu0 %v2105
    %3828 = vmatpush1.msra.mxu0 %v2104
    %3829 = vmatprep.subr.mxu0 %v2109
    %3830 = vmatpush1.msra.mxu0 %v2108
    %3831 = vmatprep.subr.mxu0 %v2113
    %3832 = vmatpush1.msra.mxu0 %v2112
    %3833 = vmatprep.subr.mxu0 %v2117
    %3834 = vmatpush1.msra.mxu0 %v2116
    %3835 = vmatprep.subr.mxu0 %v2121
    %3836 = vmatpush1.msra.mxu0 %v2120
    %3837 = vmatprep.subr.mxu0 %v2125
    %3838 = vmatpush1.msra.mxu0 %v2124
    %3839 = vmatprep.subr.mxu0 %v2129
    %3840 = vmatpush1.msra.mxu0 %v2128
    %3841 = vmatprep.subr.mxu0 %v2133
    %3842 = vmatpush1.msra.mxu0 %v2132
    %3843 = vmatprep.subr.mxu0 %v2137
    %3844 = vmatpush1.msra.mxu0 %v2136
    %3845 = vmatprep.subr.mxu0 %v2141
    %3846 = vmatpush1.msra.mxu0 %v2140
    %3847 = vmatprep.subr.mxu0 %v2145
    %3848 = vmatpush1.msra.mxu0 %v2144
    %3849 = vmatprep.subr.mxu0 %v2149
    %3850 = vmatpush1.msra.mxu0 %v2148
    %3851 = vmatprep.subr.mxu0 %v2153
    %3852 = vmatpush1.msra.mxu0 %v2152
    %3853 = vmatprep.subr.mxu0 %v2157
    %3854 = vmatpush1.msra.mxu0 %v2156
    %3855 = vmatprep.subr.mxu0 %v2161
    %3856 = vmatpush1.msra.mxu0 %v2160
    %3857 = vmatprep.subr.mxu0 %v2165
    %3858 = vmatpush1.msra.mxu0 %v2164
    %3859 = vmatprep.subr.mxu0 %v2169
    %3860 = vmatpush1.msra.mxu0 %v2168
    %3861 = vmatprep.subr.mxu0 %v2173
    %3862 = vmatpush1.msra.mxu0 %v2172
    %3863 = vmatprep.subr.mxu0 %v2177
    %3864 = vmatpush1.msra.mxu0 %v2176
    %3865 = vmatprep.subr.mxu0 %v2181
    %3866 = vmatpush1.msra.mxu0 %v2180
    %3867 = vmatprep.subr.mxu0 %v2185
    %3868 = vmatpush1.msra.mxu0 %v2184
    %3869 = vmatprep.subr.mxu0 %v2189
    %3870 = vmatpush1.msra.mxu0 %v2188
    %3871 = vmatprep.subr.mxu0 %v2193
    %3872 = vmatpush1.msra.mxu0 %v2192
    %3873 = vmatprep.subr.mxu0 %v2197
    %3874 = vmatpush1.msra.mxu0 %v2196
    %3875 = vmatprep.subr.mxu0 %v2201
    %3876 = vmatpush1.msra.mxu0 %v2200
    %3877 = vmatprep.mubr.f32.mxu0 %v3401
    %3878 = vmatmul.mubr.f32.gmra.mrb[0].mxu0 %v3235
    %v3879 = vpop.f32.mrb[0].mxu0
    %v3880 = vadd.f32 %v2215, %v3879
    %v3881 = vpop.f32.mrb[0].mxu0
    %v3882 = vadd.f32 %v2219, %v3881
    %3883 = vdwg.mxu0
    %v3884 = vxor.u32 %v3809, 2147483648
    %v3885 = vxor.u32 %v3811, 2147483648
    %v3886 = vxor.u32 %v3880, 2147483648
    %v3887 = vmul.f32 %v3884, 1.442695
    %v3888 = vpow.pop %v3887
    %v3889 = vmul.f32 %v3885, 1.442695
    %v3890 = vpow.pop %v3889
    %v3891 = vmul.f32 %v3886, 1.442695
    %v3892 = vpow.pop %v3891
    %v3893 = vadd.f32 %v3888, 1.0
    %v3894 = vadd.f32 %v3890, 1.0
    %v3895 = vadd.f32 %v3892, 1.0
    %v3896 = vrcp.pop %v3893
    %v3897 = vmul.f32 1.0, %v3896
    %v3898 = vrcp.pop %v3894
    %v3899 = vmul.f32 1.0, %v3898
    %v3900 = vrcp.pop %v3895
    %v3901 = vmul.f32 1.0, %v3900
    %v3902 = vtanh.pop %v3882
    %v3903 = vmul.f32 %v3899, %v3399
    %v3904 = vmul.f32 %v3897, %v3902
    %v3905 = vadd.f32 %v3903, %v3904
    %v3906 = vtanh.pop %v3905
    %v3907 = vmul.f32 %v3901, %v3906
    %3908 = vmatprep.subr.mxu0 %v1520
    %3909 = vmatpush1.msra.mxu0 %v1519
    %3910 = vmatprep.subr.mxu0 %v1524
    %3911 = vmatpush1.msra.mxu0 %v1523
    %3912 = vmatprep.subr.mxu0 %v1528
    %3913 = vmatpush1.msra.mxu0 %v1527
    %3914 = vmatprep.subr.mxu0 %v1532
    %3915 = vmatpush1.msra.mxu0 %v1531
    %3916 = vmatprep.subr.mxu0 %v1536
    %3917 = vmatpush1.msra.mxu0 %v1535
    %3918 = vmatprep.subr.mxu0 %v1540
    %3919 = vmatpush1.msra.mxu0 %v1539
    %3920 = vmatprep.subr.mxu0 %v1544
    %3921 = vmatpush1.msra.mxu0 %v1543
    %3922 = vmatprep.subr.mxu0 %v1548
    %3923 = vmatpush1.msra.mxu0 %v1547
    %3924 = vmatprep.subr.mxu0 %v1552
    %3925 = vmatpush1.msra.mxu0 %v1551
    %3926 = vmatprep.subr.mxu0 %v1556
    %3927 = vmatpush1.msra.mxu0 %v1555
    %3928 = vmatprep.subr.mxu0 %v1560
    %3929 = vmatpush1.msra.mxu0 %v1559
    %3930 = vmatprep.subr.mxu0 %v1564
    %3931 = vmatpush1.msra.mxu0 %v1563
    %3932 = vmatprep.subr.mxu0 %v1568
    %3933 = vmatpush1.msra.mxu0 %v1567
    %3934 = vmatprep.subr.mxu0 %v1572
    %3935 = vmatpush1.msra.mxu0 %v1571
    %3936 = vmatprep.subr.mxu0 %v1576
    %3937 = vmatpush1.msra.mxu0 %v1575
    %3938 = vmatprep.subr.mxu0 %v1580
    %3939 = vmatpush1.msra.mxu0 %v1579
    %3940 = vmatprep.subr.mxu0 %v1584
    %3941 = vmatpush1.msra.mxu0 %v1583
    %3942 = vmatprep.subr.mxu0 %v1588
    %3943 = vmatpush1.msra.mxu0 %v1587
    %3944 = vmatprep.subr.mxu0 %v1592
    %3945 = vmatpush1.msra.mxu0 %v1591
    %3946 = vmatprep.subr.mxu0 %v1596
    %3947 = vmatpush1.msra.mxu0 %v1595
    %3948 = vmatprep.subr.mxu0 %v1600
    %3949 = vmatpush1.msra.mxu0 %v1599
    %3950 = vmatprep.subr.mxu0 %v1604
    %3951 = vmatpush1.msra.mxu0 %v1603
    %3952 = vmatprep.subr.mxu0 %v1608
    %3953 = vmatpush1.msra.mxu0 %v1607
    %3954 = vmatprep.subr.mxu0 %v1612
    %3955 = vmatpush1.msra.mxu0 %v1611
    %3956 = vmatprep.subr.mxu0 %v1616
    %3957 = vmatpush1.msra.mxu0 %v1615
    %3958 = vmatprep.subr.mxu0 %v1620
    %3959 = vmatpush1.msra.mxu0 %v1619
    %3960 = vmatprep.subr.mxu0 %v1624
    %3961 = vmatpush1.msra.mxu0 %v1623
    %3962 = vmatprep.subr.mxu0 %v1628
    %3963 = vmatpush1.msra.mxu0 %v1627
    %3964 = vmatprep.subr.mxu0 %v1632
    %3965 = vmatpush1.msra.mxu0 %v1631
    %3966 = vmatprep.subr.mxu0 %v1636
    %3967 = vmatpush1.msra.mxu0 %v1635
    %3968 = vmatprep.subr.mxu0 %v1640
    %3969 = vmatpush1.msra.mxu0 %v1639
    %3970 = vmatprep.subr.mxu0 %v1644
    %3971 = vmatpush1.msra.mxu0 %v1643
    %3972 = vmatprep.mubr.f32.mxu0 %v3567
    %3973 = vmatmul.mubr.f32.gmra.mrb[0].mxu0 %v3401
    %v3974 = vpop.f32.mrb[0].mxu0
    %v3975 = vadd.f32 %v1653, %v3974
    %v3976 = vpop.f32.mrb[0].mxu0
    %v3977 = vadd.f32 %v1657, %v3976
    %3978 = vdwg.mxu0
    %3979 = vmatprep.subr.mxu0 %v1522
    %3980 = vmatpush1.msra.mxu0 %v1521
    %3981 = vmatprep.subr.mxu0 %v1526
    %3982 = vmatpush1.msra.mxu0 %v1525
    %3983 = vmatprep.subr.mxu0 %v1530
    %3984 = vmatpush1.msra.mxu0 %v1529
    %3985 = vmatprep.subr.mxu0 %v1534
    %3986 = vmatpush1.msra.mxu0 %v1533
    %3987 = vmatprep.subr.mxu0 %v1538
    %3988 = vmatpush1.msra.mxu0 %v1537
    %3989 = vmatprep.subr.mxu0 %v1542
    %3990 = vmatpush1.msra.mxu0 %v1541
    %3991 = vmatprep.subr.mxu0 %v1546
    %3992 = vmatpush1.msra.mxu0 %v1545
    %3993 = vmatprep.subr.mxu0 %v1550
    %3994 = vmatpush1.msra.mxu0 %v1549
    %3995 = vmatprep.subr.mxu0 %v1554
    %3996 = vmatpush1.msra.mxu0 %v1553
    %3997 = vmatprep.subr.mxu0 %v1558
    %3998 = vmatpush1.msra.mxu0 %v1557
    %3999 = vmatprep.subr.mxu0 %v1562
    %4000 = vmatpush1.msra.mxu0 %v1561
    %4001 = vmatprep.subr.mxu0 %v1566
    %4002 = vmatpush1.msra.mxu0 %v1565
    %4003 = vmatprep.subr.mxu0 %v1570
    %4004 = vmatpush1.msra.mxu0 %v1569
    %4005 = vmatprep.subr.mxu0 %v1574
    %4006 = vmatpush1.msra.mxu0 %v1573
    %4007 = vmatprep.subr.mxu0 %v1578
    %4008 = vmatpush1.msra.mxu0 %v1577
    %4009 = vmatprep.subr.mxu0 %v1582
    %4010 = vmatpush1.msra.mxu0 %v1581
    %4011 = vmatprep.subr.mxu0 %v1586
    %4012 = vmatpush1.msra.mxu0 %v1585
    %4013 = vmatprep.subr.mxu0 %v1590
    %4014 = vmatpush1.msra.mxu0 %v1589
    %4015 = vmatprep.subr.mxu0 %v1594
    %4016 = vmatpush1.msra.mxu0 %v1593
    %4017 = vmatprep.subr.mxu0 %v1598
    %4018 = vmatpush1.msra.mxu0 %v1597
    %4019 = vmatprep.subr.mxu0 %v1602
    %4020 = vmatpush1.msra.mxu0 %v1601
    %4021 = vmatprep.subr.mxu0 %v1606
    %4022 = vmatpush1.msra.mxu0 %v1605
    %4023 = vmatprep.subr.mxu0 %v1610
    %4024 = vmatpush1.msra.mxu0 %v1609
    %4025 = vmatprep.subr.mxu0 %v1614
    %4026 = vmatpush1.msra.mxu0 %v1613
    %4027 = vmatprep.subr.mxu0 %v1618
    %4028 = vmatpush1.msra.mxu0 %v1617
    %4029 = vmatprep.subr.mxu0 %v1622
    %4030 = vmatpush1.msra.mxu0 %v1621
    %4031 = vmatprep.subr.mxu0 %v1626
    %4032 = vmatpush1.msra.mxu0 %v1625
    %4033 = vmatprep.subr.mxu0 %v1630
    %4034 = vmatpush1.msra.mxu0 %v1629
    %4035 = vmatprep.subr.mxu0 %v1634
    %4036 = vmatpush1.msra.mxu0 %v1633
    %4037 = vmatprep.subr.mxu0 %v1638
    %4038 = vmatpush1.msra.mxu0 %v1637
    %4039 = vmatprep.subr.mxu0 %v1642
    %4040 = vmatpush1.msra.mxu0 %v1641
    %4041 = vmatprep.subr.mxu0 %v1646
    %4042 = vmatpush1.msra.mxu0 %v1645
    %4043 = vmatprep.mubr.f32.mxu0 %v3567
    %4044 = vmatmul.mubr.f32.gmra.mrb[0].mxu0 %v3401
    %v4045 = vpop.f32.mrb[0].mxu0
    %v4046 = vadd.f32 %v1661, %v4045
    %v4047 = vpop.f32.mrb[0].mxu0
    %v4048 = vadd.f32 %v1665, %v4047
    %4049 = vdwg.mxu0
    %v4050 = vxor.u32 %v3975, 2147483648
    %v4051 = vxor.u32 %v3977, 2147483648
    %v4052 = vxor.u32 %v4046, 2147483648
    %v4053 = vmul.f32 %v4050, 1.442695
    %v4054 = vpow.pop %v4053
    %v4055 = vmul.f32 %v4051, 1.442695
    %v4056 = vpow.pop %v4055
    %v4057 = vmul.f32 %v4052, 1.442695
    %v4058 = vpow.pop %v4057
    %v4059 = vadd.f32 %v4054, 1.0
    %v4060 = vadd.f32 %v4056, 1.0
    %v4061 = vadd.f32 %v4058, 1.0
    %v4062 = vrcp.pop %v4059
    %v4063 = vmul.f32 1.0, %v4062
    %v4064 = vrcp.pop %v4060
    %v4065 = vmul.f32 1.0, %v4064
    %v4066 = vrcp.pop %v4061
    %v4067 = vmul.f32 1.0, %v4066
    %v4068 = vtanh.pop %v4048
    %v4069 = vmul.f32 %v4065, %v3565
    %v4070 = vmul.f32 %v4063, %v4068
    %v4071 = vadd.f32 %v4069, %v4070
    %v4072 = vtanh.pop %v4071
    %v4073 = vmul.f32 %v4067, %v4072
    %v4074 = vld [vmem:[#allocation5 + $0xe0] sm:$0xff]
    %v4075 = vld [vmem:[#allocation5 + $0xe8] sm:$0xff]
    %v4076 = vld [vmem:[#allocation5 + $0xf0] sm:$0xff]
    %v4077 = vld [vmem:[#allocation5 + $0xf8] sm:$0xff]
    %4078 = vmatprep.subr.mxu0 %v1841
    %4079 = vmatpush1.msra.mxu0 %v1840
    %4080 = vmatprep.subr.mxu0 %v1845
    %4081 = vmatpush1.msra.mxu0 %v1844
    %4082 = vmatprep.subr.mxu0 %v1849
    %4083 = vmatpush1.msra.mxu0 %v1848
    %4084 = vmatprep.subr.mxu0 %v1853
    %4085 = vmatpush1.msra.mxu0 %v1852
    %4086 = vmatprep.subr.mxu0 %v1857
    %4087 = vmatpush1.msra.mxu0 %v1856
    %4088 = vmatprep.subr.mxu0 %v1861
    %4089 = vmatpush1.msra.mxu0 %v1860
    %4090 = vmatprep.subr.mxu0 %v1865
    %4091 = vmatpush1.msra.mxu0 %v1864
    %4092 = vmatprep.subr.mxu0 %v1869
    %4093 = vmatpush1.msra.mxu0 %v1868
    %4094 = vmatprep.subr.mxu0 %v1873
    %4095 = vmatpush1.msra.mxu0 %v1872
    %4096 = vmatprep.subr.mxu0 %v1877
    %4097 = vmatpush1.msra.mxu0 %v1876
    %4098 = vmatprep.subr.mxu0 %v1881
    %4099 = vmatpush1.msra.mxu0 %v1880
    %4100 = vmatprep.subr.mxu0 %v1885
    %4101 = vmatpush1.msra.mxu0 %v1884
    %4102 = vmatprep.subr.mxu0 %v1889
    %4103 = vmatpush1.msra.mxu0 %v1888
    %4104 = vmatprep.subr.mxu0 %v1893
    %4105 = vmatpush1.msra.mxu0 %v1892
    %4106 = vmatprep.subr.mxu0 %v1897
    %4107 = vmatpush1.msra.mxu0 %v1896
    %4108 = vmatprep.subr.mxu0 %v1901
    %4109 = vmatpush1.msra.mxu0 %v1900
    %4110 = vmatprep.subr.mxu0 0.0
    %4111 = vmatpush1.msra.mxu0 0.0
    %4112 = vmatprep.subr.mxu0 0.0
    %4113 = vmatpush1.msra.mxu0 0.0
    %4114 = vmatprep.subr.mxu0 0.0
    %4115 = vmatpush1.msra.mxu0 0.0
    %4116 = vmatprep.subr.mxu0 0.0
    %4117 = vmatpush1.msra.mxu0 0.0
    %4118 = vmatprep.subr.mxu0 0.0
    %4119 = vmatpush1.msra.mxu0 0.0
    %4120 = vmatprep.subr.mxu0 0.0
    %4121 = vmatpush1.msra.mxu0 0.0
    %4122 = vmatprep.subr.mxu0 0.0
    %4123 = vmatpush1.msra.mxu0 0.0
    %4124 = vmatprep.subr.mxu0 0.0
    %4125 = vmatpush1.msra.mxu0 0.0
    %4126 = vmatprep.subr.mxu0 0.0
    %4127 = vmatpush1.msra.mxu0 0.0
    %4128 = vmatprep.subr.mxu0 0.0
    %4129 = vmatpush1.msra.mxu0 0.0
    %4130 = vmatprep.subr.mxu0 0.0
    %4131 = vmatpush1.msra.mxu0 0.0
    %4132 = vmatprep.subr.mxu0 0.0
    %4133 = vmatpush1.msra.mxu0 0.0
    %4134 = vmatprep.subr.mxu0 0.0
    %4135 = vmatpush1.msra.mxu0 0.0
    %4136 = vmatprep.subr.mxu0 0.0
    %4137 = vmatpush1.msra.mxu0 0.0
    %4138 = vmatprep.subr.mxu0 0.0
    %4139 = vmatpush1.msra.mxu0 0.0
    %4140 = vmatprep.subr.mxu0 0.0
    %4141 = vmatpush1.msra.mxu0 0.0
    %4142 = vmatprep.mubr.f32.mxu0 0.0
    %4143 = vmatmul.mubr.f32.gmra.mrb[0].mxu0 %v3741
    %v4144 = vpop.f32.mrb[0].mxu0
    %v4145 = vadd.f32 0.0, %v4144
    %v4146 = vpop.f32.mrb[0].mxu0
    %v4147 = vadd.f32 0.0, %v4146
    %4148 = vdwg.mxu0
    %4149 = vmatprep.subr.mxu0 %v1843
    %4150 = vmatpush1.msra.mxu0 %v1842
    %4151 = vmatprep.subr.mxu0 %v1847
    %4152 = vmatpush1.msra.mxu0 %v1846
    %4153 = vmatprep.subr.mxu0 %v1851
    %4154 = vmatpush1.msra.mxu0 %v1850
    %4155 = vmatprep.subr.mxu0 %v1855
    %4156 = vmatpush1.msra.mxu0 %v1854
    %4157 = vmatprep.subr.mxu0 %v1859
    %4158 = vmatpush1.msra.mxu0 %v1858
    %4159 = vmatprep.subr.mxu0 %v1863
    %4160 = vmatpush1.msra.mxu0 %v1862
    %4161 = vmatprep.subr.mxu0 %v1867
    %4162 = vmatpush1.msra.mxu0 %v1866
    %4163 = vmatprep.subr.mxu0 %v1871
    %4164 = vmatpush1.msra.mxu0 %v1870
    %4165 = vmatprep.subr.mxu0 %v1875
    %4166 = vmatpush1.msra.mxu0 %v1874
    %4167 = vmatprep.subr.mxu0 %v1879
    %4168 = vmatpush1.msra.mxu0 %v1878
    %4169 = vmatprep.subr.mxu0 %v1883
    %4170 = vmatpush1.msra.mxu0 %v1882
    %4171 = vmatprep.subr.mxu0 %v1887
    %4172 = vmatpush1.msra.mxu0 %v1886
    %4173 = vmatprep.subr.mxu0 %v1891
    %4174 = vmatpush1.msra.mxu0 %v1890
    %4175 = vmatprep.subr.mxu0 %v1895
    %4176 = vmatpush1.msra.mxu0 %v1894
    %4177 = vmatprep.subr.mxu0 %v1899
    %4178 = vmatpush1.msra.mxu0 %v1898
    %4179 = vmatprep.subr.mxu0 %v1903
    %4180 = vmatpush1.msra.mxu0 %v1902
    %4181 = vmatprep.subr.mxu0 0.0
    %4182 = vmatpush1.msra.mxu0 0.0
    %4183 = vmatprep.subr.mxu0 0.0
    %4184 = vmatpush1.msra.mxu0 0.0
    %4185 = vmatprep.subr.mxu0 0.0
    %4186 = vmatpush1.msra.mxu0 0.0
    %4187 = vmatprep.subr.mxu0 0.0
    %4188 = vmatpush1.msra.mxu0 0.0
    %4189 = vmatprep.subr.mxu0 0.0
    %4190 = vmatpush1.msra.mxu0 0.0
    %4191 = vmatprep.subr.mxu0 0.0
    %4192 = vmatpush1.msra.mxu0 0.0
    %4193 = vmatprep.subr.mxu0 0.0
    %4194 = vmatpush1.msra.mxu0 0.0
    %4195 = vmatprep.subr.mxu0 0.0
    %4196 = vmatpush1.msra.mxu0 0.0
    %4197 = vmatprep.subr.mxu0 0.0
    %4198 = vmatpush1.msra.mxu0 0.0
    %4199 = vmatprep.subr.mxu0 0.0
    %4200 = vmatpush1.msra.mxu0 0.0
    %4201 = vmatprep.subr.mxu0 0.0
    %4202 = vmatpush1.msra.mxu0 0.0
    %4203 = vmatprep.subr.mxu0 0.0
    %4204 = vmatpush1.msra.mxu0 0.0
    %4205 = vmatprep.subr.mxu0 0.0
    %4206 = vmatpush1.msra.mxu0 0.0
    %4207 = vmatprep.subr.mxu0 0.0
    %4208 = vmatpush1.msra.mxu0 0.0
    %4209 = vmatprep.subr.mxu0 0.0
    %4210 = vmatpush1.msra.mxu0 0.0
    %4211 = vmatprep.subr.mxu0 0.0
    %4212 = vmatpush1.msra.mxu0 0.0
    %4213 = vmatprep.mubr.f32.mxu0 0.0
    %4214 = vmatmul.mubr.f32.gmra.mrb[0].mxu0 %v3741
    %v4215 = vpop.f32.mrb[0].mxu0
    %v4216 = vadd.f32 0.0, %v4215
    %v4217 = vpop.f32.mrb[0].mxu0
    %v4218 = vadd.f32 0.0, %v4217
    %4219 = vdwg.mxu0
    %v4220 = vadd.f32 %v4074, %v4145
    %v4221 = vadd.f32 %v4075, %v4147
    %v4222 = vadd.f32 %v4076, %v4216
    %v4223 = vadd.f32 %v4077, %v4218
    %v4224 = vxor.u32 %v4220, 2147483648
    %v4225 = vxor.u32 %v4221, 2147483648
    %v4226 = vxor.u32 %v4222, 2147483648
    %v4227 = vmul.f32 %v4224, 1.442695
    %v4228 = vpow.pop %v4227
    %v4229 = vmul.f32 %v4225, 1.442695
    %v4230 = vpow.pop %v4229
    %v4231 = vmul.f32 %v4226, 1.442695
    %v4232 = vpow.pop %v4231
    %v4233 = vadd.f32 %v4228, 1.0
    %v4234 = vadd.f32 %v4230, 1.0
    %v4235 = vadd.f32 %v4232, 1.0
    %v4236 = vrcp.pop %v4233
    %v4237 = vmul.f32 1.0, %v4236
    %v4238 = vrcp.pop %v4234
    %v4239 = vmul.f32 1.0, %v4238
    %v4240 = vrcp.pop %v4235
    %v4241 = vmul.f32 1.0, %v4240
    %v4242 = vtanh.pop %v4223
    %v4243 = vmul.f32 %v4239, %v3739
    %v4244 = vmul.f32 %v4237, %v4242
    %v4245 = vadd.f32 %v4243, %v4244
    %v4246 = vtanh.pop %v4245
    %v4247 = vmul.f32 %v4241, %v4246
    %4248 = vmatprep.subr.mxu0 %v2075
    %4249 = vmatpush1.msra.mxu0 %v2074
    %4250 = vmatprep.subr.mxu0 %v2079
    %4251 = vmatpush1.msra.mxu0 %v2078
    %4252 = vmatprep.subr.mxu0 %v2083
    %4253 = vmatpush1.msra.mxu0 %v2082
    %4254 = vmatprep.subr.mxu0 %v2087
    %4255 = vmatpush1.msra.mxu0 %v2086
    %4256 = vmatprep.subr.mxu0 %v2091
    %4257 = vmatpush1.msra.mxu0 %v2090
    %4258 = vmatprep.subr.mxu0 %v2095
    %4259 = vmatpush1.msra.mxu0 %v2094
    %4260 = vmatprep.subr.mxu0 %v2099
    %4261 = vmatpush1.msra.mxu0 %v2098
    %4262 = vmatprep.subr.mxu0 %v2103
    %4263 = vmatpush1.msra.mxu0 %v2102
    %4264 = vmatprep.subr.mxu0 %v2107
    %4265 = vmatpush1.msra.mxu0 %v2106
    %4266 = vmatprep.subr.mxu0 %v2111
    %4267 = vmatpush1.msra.mxu0 %v2110
    %4268 = vmatprep.subr.mxu0 %v2115
    %4269 = vmatpush1.msra.mxu0 %v2114
    %4270 = vmatprep.subr.mxu0 %v2119
    %4271 = vmatpush1.msra.mxu0 %v2118
    %4272 = vmatprep.subr.mxu0 %v2123
    %4273 = vmatpush1.msra.mxu0 %v2122
    %4274 = vmatprep.subr.mxu0 %v2127
    %4275 = vmatpush1.msra.mxu0 %v2126
    %4276 = vmatprep.subr.mxu0 %v2131
    %4277 = vmatpush1.msra.mxu0 %v2130
    %4278 = vmatprep.subr.mxu0 %v2135
    %4279 = vmatpush1.msra.mxu0 %v2134
    %4280 = vmatprep.subr.mxu0 %v2139
    %4281 = vmatpush1.msra.mxu0 %v2138
    %4282 = vmatprep.subr.mxu0 %v2143
    %4283 = vmatpush1.msra.mxu0 %v2142
    %4284 = vmatprep.subr.mxu0 %v2147
    %4285 = vmatpush1.msra.mxu0 %v2146
    %4286 = vmatprep.subr.mxu0 %v2151
    %4287 = vmatpush1.msra.mxu0 %v2150
    %4288 = vmatprep.subr.mxu0 %v2155
    %4289 = vmatpush1.msra.mxu0 %v2154
    %4290 = vmatprep.subr.mxu0 %v2159
    %4291 = vmatpush1.msra.mxu0 %v2158
    %4292 = vmatprep.subr.mxu0 %v2163
    %4293 = vmatpush1.msra.mxu0 %v2162
    %4294 = vmatprep.subr.mxu0 %v2167
    %4295 = vmatpush1.msra.mxu0 %v2166
    %4296 = vmatprep.subr.mxu0 %v2171
    %4297 = vmatpush1.msra.mxu0 %v2170
    %4298 = vmatprep.subr.mxu0 %v2175
    %4299 = vmatpush1.msra.mxu0 %v2174
    %4300 = vmatprep.subr.mxu0 %v2179
    %4301 = vmatpush1.msra.mxu0 %v2178
    %4302 = vmatprep.subr.mxu0 %v2183
    %4303 = vmatpush1.msra.mxu0 %v2182
    %4304 = vmatprep.subr.mxu0 %v2187
    %4305 = vmatpush1.msra.mxu0 %v2186
    %4306 = vmatprep.subr.mxu0 %v2191
    %4307 = vmatpush1.msra.mxu0 %v2190
    %4308 = vmatprep.subr.mxu0 %v2195
    %4309 = vmatpush1.msra.mxu0 %v2194
    %4310 = vmatprep.subr.mxu0 %v2199
    %4311 = vmatpush1.msra.mxu0 %v2198
    %4312 = vmatprep.mubr.f32.mxu0 %v3907
    %4313 = vmatmul.mubr.f32.gmra.mrb[0].mxu0 %v3741
    %v4314 = vpop.f32.mrb[0].mxu0
    %v4315 = vadd.f32 %v2207, %v4314
    %v4316 = vpop.f32.mrb[0].mxu0
    %v4317 = vadd.f32 %v2211, %v4316
    %4318 = vdwg.mxu0
    %4319 = vmatprep.subr.mxu0 %v2077
    %4320 = vmatpush1.msra.mxu0 %v2076
    %4321 = vmatprep.subr.mxu0 %v2081
    %4322 = vmatpush1.msra.mxu0 %v2080
    %4323 = vmatprep.subr.mxu0 %v2085
    %4324 = vmatpush1.msra.mxu0 %v2084
    %4325 = vmatprep.subr.mxu0 %v2089
    %4326 = vmatpush1.msra.mxu0 %v2088
    %4327 = vmatprep.subr.mxu0 %v2093
    %4328 = vmatpush1.msra.mxu0 %v2092
    %4329 = vmatprep.subr.mxu0 %v2097
    %4330 = vmatpush1.msra.mxu0 %v2096
    %4331 = vmatprep.subr.mxu0 %v2101
    %4332 = vmatpush1.msra.mxu0 %v2100
    %4333 = vmatprep.subr.mxu0 %v2105
    %4334 = vmatpush1.msra.mxu0 %v2104
    %4335 = vmatprep.subr.mxu0 %v2109
    %4336 = vmatpush1.msra.mxu0 %v2108
    %4337 = vmatprep.subr.mxu0 %v2113
    %4338 = vmatpush1.msra.mxu0 %v2112
    %4339 = vmatprep.subr.mxu0 %v2117
    %4340 = vmatpush1.msra.mxu0 %v2116
    %4341 = vmatprep.subr.mxu0 %v2121
    %4342 = vmatpush1.msra.mxu0 %v2120
    %4343 = vmatprep.subr.mxu0 %v2125
    %4344 = vmatpush1.msra.mxu0 %v2124
    %4345 = vmatprep.subr.mxu0 %v2129
    %4346 = vmatpush1.msra.mxu0 %v2128
    %4347 = vmatprep.subr.mxu0 %v2133
    %4348 = vmatpush1.msra.mxu0 %v2132
    %4349 = vmatprep.subr.mxu0 %v2137
    %4350 = vmatpush1.msra.mxu0 %v2136
    %4351 = vmatprep.subr.mxu0 %v2141
    %4352 = vmatpush1.msra.mxu0 %v2140
    %4353 = vmatprep.subr.mxu0 %v2145
    %4354 = vmatpush1.msra.mxu0 %v2144
    %4355 = vmatprep.subr.mxu0 %v2149
    %4356 = vmatpush1.msra.mxu0 %v2148
    %4357 = vmatprep.subr.mxu0 %v2153
    %4358 = vmatpush1.msra.mxu0 %v2152
    %4359 = vmatprep.subr.mxu0 %v2157
    %4360 = vmatpush1.msra.mxu0 %v2156
    %4361 = vmatprep.subr.mxu0 %v2161
    %4362 = vmatpush1.msra.mxu0 %v2160
    %4363 = vmatprep.subr.mxu0 %v2165
    %4364 = vmatpush1.msra.mxu0 %v2164
    %4365 = vmatprep.subr.mxu0 %v2169
    %4366 = vmatpush1.msra.mxu0 %v2168
    %4367 = vmatprep.subr.mxu0 %v2173
    %4368 = vmatpush1.msra.mxu0 %v2172
    %4369 = vmatprep.subr.mxu0 %v2177
    %4370 = vmatpush1.msra.mxu0 %v2176
    %4371 = vmatprep.subr.mxu0 %v2181
    %4372 = vmatpush1.msra.mxu0 %v2180
    %4373 = vmatprep.subr.mxu0 %v2185
    %4374 = vmatpush1.msra.mxu0 %v2184
    %4375 = vmatprep.subr.mxu0 %v2189
    %4376 = vmatpush1.msra.mxu0 %v2188
    %4377 = vmatprep.subr.mxu0 %v2193
    %4378 = vmatpush1.msra.mxu0 %v2192
    %4379 = vmatprep.subr.mxu0 %v2197
    %4380 = vmatpush1.msra.mxu0 %v2196
    %4381 = vmatprep.subr.mxu0 %v2201
    %4382 = vmatpush1.msra.mxu0 %v2200
    %4383 = vmatprep.mubr.f32.mxu0 %v3907
    %4384 = vmatmul.mubr.f32.gmra.mrb[0].mxu0 %v3741
    %v4385 = vpop.f32.mrb[0].mxu0
    %v4386 = vadd.f32 %v2215, %v4385
    %v4387 = vpop.f32.mrb[0].mxu0
    %v4388 = vadd.f32 %v2219, %v4387
    %4389 = vdwg.mxu0
    %v4390 = vxor.u32 %v4315, 2147483648
    %v4391 = vxor.u32 %v4317, 2147483648
    %v4392 = vxor.u32 %v4386, 2147483648
    %v4393 = vmul.f32 %v4390, 1.442695
    %v4394 = vpow.pop %v4393
    %v4395 = vmul.f32 %v4391, 1.442695
    %v4396 = vpow.pop %v4395
    %v4397 = vmul.f32 %v4392, 1.442695
    %v4398 = vpow.pop %v4397
    %v4399 = vadd.f32 %v4394, 1.0
    %v4400 = vadd.f32 %v4396, 1.0
    %v4401 = vadd.f32 %v4398, 1.0
    %v4402 = vrcp.pop %v4399
    %v4403 = vmul.f32 1.0, %v4402
    %v4404 = vrcp.pop %v4400
    %v4405 = vmul.f32 1.0, %v4404
    %v4406 = vrcp.pop %v4401
    %v4407 = vmul.f32 1.0, %v4406
    %v4408 = vtanh.pop %v4388
    %v4409 = vmul.f32 %v4405, %v3905
    %v4410 = vmul.f32 %v4403, %v4408
    %v4411 = vadd.f32 %v4409, %v4410
    %v4412 = vtanh.pop %v4411
    %v4413 = vmul.f32 %v4407, %v4412
    %4414 = vmatprep.subr.mxu0 %v1520
    %4415 = vmatpush1.msra.mxu0 %v1519
    %4416 = vmatprep.subr.mxu0 %v1524
    %4417 = vmatpush1.msra.mxu0 %v1523
    %4418 = vmatprep.subr.mxu0 %v1528
    %4419 = vmatpush1.msra.mxu0 %v1527
    %4420 = vmatprep.subr.mxu0 %v1532
    %4421 = vmatpush1.msra.mxu0 %v1531
    %4422 = vmatprep.subr.mxu0 %v1536
    %4423 = vmatpush1.msra.mxu0 %v1535
    %4424 = vmatprep.subr.mxu0 %v1540
    %4425 = vmatpush1.msra.mxu0 %v1539
    %4426 = vmatprep.subr.mxu0 %v1544
    %4427 = vmatpush1.msra.mxu0 %v1543
    %4428 = vmatprep.subr.mxu0 %v1548
    %4429 = vmatpush1.msra.mxu0 %v1547
    %4430 = vmatprep.subr.mxu0 %v1552
    %4431 = vmatpush1.msra.mxu0 %v1551
    %4432 = vmatprep.subr.mxu0 %v1556
    %4433 = vmatpush1.msra.mxu0 %v1555
    %4434 = vmatprep.subr.mxu0 %v1560
    %4435 = vmatpush1.msra.mxu0 %v1559
    %4436 = vmatprep.subr.mxu0 %v1564
    %4437 = vmatpush1.msra.mxu0 %v1563
    %4438 = vmatprep.subr.mxu0 %v1568
    %4439 = vmatpush1.msra.mxu0 %v1567
    %4440 = vmatprep.subr.mxu0 %v1572
    %4441 = vmatpush1.msra.mxu0 %v1571
    %4442 = vmatprep.subr.mxu0 %v1576
    %4443 = vmatpush1.msra.mxu0 %v1575
    %4444 = vmatprep.subr.mxu0 %v1580
    %4445 = vmatpush1.msra.mxu0 %v1579
    %4446 = vmatprep.subr.mxu0 %v1584
    %4447 = vmatpush1.msra.mxu0 %v1583
    %4448 = vmatprep.subr.mxu0 %v1588
    %4449 = vmatpush1.msra.mxu0 %v1587
    %4450 = vmatprep.subr.mxu0 %v1592
    %4451 = vmatpush1.msra.mxu0 %v1591
    %4452 = vmatprep.subr.mxu0 %v1596
    %4453 = vmatpush1.msra.mxu0 %v1595
    %4454 = vmatprep.subr.mxu0 %v1600
    %4455 = vmatpush1.msra.mxu0 %v1599
    %4456 = vmatprep.subr.mxu0 %v1604
    %4457 = vmatpush1.msra.mxu0 %v1603
    %4458 = vmatprep.subr.mxu0 %v1608
    %4459 = vmatpush1.msra.mxu0 %v1607
    %4460 = vmatprep.subr.mxu0 %v1612
    %4461 = vmatpush1.msra.mxu0 %v1611
    %4462 = vmatprep.subr.mxu0 %v1616
    %4463 = vmatpush1.msra.mxu0 %v1615
    %4464 = vmatprep.subr.mxu0 %v1620
    %4465 = vmatpush1.msra.mxu0 %v1619
    %4466 = vmatprep.subr.mxu0 %v1624
    %4467 = vmatpush1.msra.mxu0 %v1623
    %4468 = vmatprep.subr.mxu0 %v1628
    %4469 = vmatpush1.msra.mxu0 %v1627
    %4470 = vmatprep.subr.mxu0 %v1632
    %4471 = vmatpush1.msra.mxu0 %v1631
    %4472 = vmatprep.subr.mxu0 %v1636
    %4473 = vmatpush1.msra.mxu0 %v1635
    %4474 = vmatprep.subr.mxu0 %v1640
    %4475 = vmatpush1.msra.mxu0 %v1639
    %4476 = vmatprep.subr.mxu0 %v1644
    %4477 = vmatpush1.msra.mxu0 %v1643
    %4478 = vmatprep.mubr.f32.mxu0 %v4073
    %4479 = vmatmul.mubr.f32.gmra.mrb[0].mxu0 %v3907
    %v4480 = vpop.f32.mrb[0].mxu0
    %v4481 = vadd.f32 %v1653, %v4480
    %v4482 = vpop.f32.mrb[0].mxu0
    %v4483 = vadd.f32 %v1657, %v4482
    %4484 = vdwg.mxu0
    %4485 = vmatprep.subr.mxu0 %v1522
    %4486 = vmatpush1.msra.mxu0 %v1521
    %4487 = vmatprep.subr.mxu0 %v1526
    %4488 = vmatpush1.msra.mxu0 %v1525
    %4489 = vmatprep.subr.mxu0 %v1530
    %4490 = vmatpush1.msra.mxu0 %v1529
    %4491 = vmatprep.subr.mxu0 %v1534
    %4492 = vmatpush1.msra.mxu0 %v1533
    %4493 = vmatprep.subr.mxu0 %v1538
    %4494 = vmatpush1.msra.mxu0 %v1537
    %4495 = vmatprep.subr.mxu0 %v1542
    %4496 = vmatpush1.msra.mxu0 %v1541
    %4497 = vmatprep.subr.mxu0 %v1546
    %4498 = vmatpush1.msra.mxu0 %v1545
    %4499 = vmatprep.subr.mxu0 %v1550
    %4500 = vmatpush1.msra.mxu0 %v1549
    %4501 = vmatprep.subr.mxu0 %v1554
    %4502 = vmatpush1.msra.mxu0 %v1553
    %4503 = vmatprep.subr.mxu0 %v1558
    %4504 = vmatpush1.msra.mxu0 %v1557
    %4505 = vmatprep.subr.mxu0 %v1562
    %4506 = vmatpush1.msra.mxu0 %v1561
    %4507 = vmatprep.subr.mxu0 %v1566
    %4508 = vmatpush1.msra.mxu0 %v1565
    %4509 = vmatprep.subr.mxu0 %v1570
    %4510 = vmatpush1.msra.mxu0 %v1569
    %4511 = vmatprep.subr.mxu0 %v1574
    %4512 = vmatpush1.msra.mxu0 %v1573
    %4513 = vmatprep.subr.mxu0 %v1578
    %4514 = vmatpush1.msra.mxu0 %v1577
    %4515 = vmatprep.subr.mxu0 %v1582
    %4516 = vmatpush1.msra.mxu0 %v1581
    %4517 = vmatprep.subr.mxu0 %v1586
    %4518 = vmatpush1.msra.mxu0 %v1585
    %4519 = vmatprep.subr.mxu0 %v1590
    %4520 = vmatpush1.msra.mxu0 %v1589
    %4521 = vmatprep.subr.mxu0 %v1594
    %4522 = vmatpush1.msra.mxu0 %v1593
    %4523 = vmatprep.subr.mxu0 %v1598
    %4524 = vmatpush1.msra.mxu0 %v1597
    %4525 = vmatprep.subr.mxu0 %v1602
    %4526 = vmatpush1.msra.mxu0 %v1601
    %4527 = vmatprep.subr.mxu0 %v1606
    %4528 = vmatpush1.msra.mxu0 %v1605
    %4529 = vmatprep.subr.mxu0 %v1610
    %4530 = vmatpush1.msra.mxu0 %v1609
    %4531 = vmatprep.subr.mxu0 %v1614
    %4532 = vmatpush1.msra.mxu0 %v1613
    %4533 = vmatprep.subr.mxu0 %v1618
    %4534 = vmatpush1.msra.mxu0 %v1617
    %4535 = vmatprep.subr.mxu0 %v1622
    %4536 = vmatpush1.msra.mxu0 %v1621
    %4537 = vmatprep.subr.mxu0 %v1626
    %4538 = vmatpush1.msra.mxu0 %v1625
    %4539 = vmatprep.subr.mxu0 %v1630
    %4540 = vmatpush1.msra.mxu0 %v1629
    %4541 = vmatprep.subr.mxu0 %v1634
    %4542 = vmatpush1.msra.mxu0 %v1633
    %4543 = vmatprep.subr.mxu0 %v1638
    %4544 = vmatpush1.msra.mxu0 %v1637
    %4545 = vmatprep.subr.mxu0 %v1642
    %4546 = vmatpush1.msra.mxu0 %v1641
    %4547 = vmatprep.subr.mxu0 %v1646
    %4548 = vmatpush1.msra.mxu0 %v1645
    %4549 = vmatprep.mubr.f32.mxu0 %v4073
    %4550 = vmatmul.mubr.f32.gmra.mrb[0].mxu0 %v3907
    %v4551 = vpop.f32.mrb[0].mxu0
    %v4552 = vadd.f32 %v1661, %v4551
    %v4553 = vpop.f32.mrb[0].mxu0
    %v4554 = vadd.f32 %v1665, %v4553
    %4555 = vdwg.mxu0
    %v4556 = vxor.u32 %v4481, 2147483648
    %v4557 = vxor.u32 %v4483, 2147483648
    %v4558 = vxor.u32 %v4552, 2147483648
    %v4559 = vmul.f32 %v4556, 1.442695
    %v4560 = vpow.pop %v4559
    %v4561 = vmul.f32 %v4557, 1.442695
    %v4562 = vpow.pop %v4561
    %v4563 = vmul.f32 %v4558, 1.442695
    %v4564 = vpow.pop %v4563
    %v4565 = vadd.f32 %v4560, 1.0
    %v4566 = vadd.f32 %v4562, 1.0
    %v4567 = vadd.f32 %v4564, 1.0
    %v4568 = vrcp.pop %v4565
    %v4569 = vmul.f32 1.0, %v4568
    %v4570 = vrcp.pop %v4566
    %v4571 = vmul.f32 1.0, %v4570
    %v4572 = vrcp.pop %v4567
    %v4573 = vmul.f32 1.0, %v4572
    %v4574 = vtanh.pop %v4554
    %v4575 = vmul.f32 %v4571, %v4071
    %v4576 = vmul.f32 %v4569, %v4574
    %v4577 = vadd.f32 %v4575, %v4576
    %v4578 = vtanh.pop %v4577
    %v4579 = vmul.f32 %v4573, %v4578
    %4580 = vmatprep.subr.mxu0 %v2075
    %4581 = vmatpush1.msra.mxu0 %v2074
    %4582 = vmatprep.subr.mxu0 %v2079
    %4583 = vmatpush1.msra.mxu0 %v2078
    %4584 = vmatprep.subr.mxu0 %v2083
    %4585 = vmatpush1.msra.mxu0 %v2082
    %4586 = vmatprep.subr.mxu0 %v2087
    %4587 = vmatpush1.msra.mxu0 %v2086
    %4588 = vmatprep.subr.mxu0 %v2091
    %4589 = vmatpush1.msra.mxu0 %v2090
    %4590 = vmatprep.subr.mxu0 %v2095
    %4591 = vmatpush1.msra.mxu0 %v2094
    %4592 = vmatprep.subr.mxu0 %v2099
    %4593 = vmatpush1.msra.mxu0 %v2098
    %4594 = vmatprep.subr.mxu0 %v2103
    %4595 = vmatpush1.msra.mxu0 %v2102
    %4596 = vmatprep.subr.mxu0 %v2107
    %4597 = vmatpush1.msra.mxu0 %v2106
    %4598 = vmatprep.subr.mxu0 %v2111
    %4599 = vmatpush1.msra.mxu0 %v2110
    %4600 = vmatprep.subr.mxu0 %v2115
    %4601 = vmatpush1.msra.mxu0 %v2114
    %4602 = vmatprep.subr.mxu0 %v2119
    %4603 = vmatpush1.msra.mxu0 %v2118
    %4604 = vmatprep.subr.mxu0 %v2123
    %4605 = vmatpush1.msra.mxu0 %v2122
    %4606 = vmatprep.subr.mxu0 %v2127
    %4607 = vmatpush1.msra.mxu0 %v2126
    %4608 = vmatprep.subr.mxu0 %v2131
    %4609 = vmatpush1.msra.mxu0 %v2130
    %4610 = vmatprep.subr.mxu0 %v2135
    %4611 = vmatpush1.msra.mxu0 %v2134
    %4612 = vmatprep.subr.mxu0 %v2139
    %4613 = vmatpush1.msra.mxu0 %v2138
    %4614 = vmatprep.subr.mxu0 %v2143
    %4615 = vmatpush1.msra.mxu0 %v2142
    %4616 = vmatprep.subr.mxu0 %v2147
    %4617 = vmatpush1.msra.mxu0 %v2146
    %4618 = vmatprep.subr.mxu0 %v2151
    %4619 = vmatpush1.msra.mxu0 %v2150
    %4620 = vmatprep.subr.mxu0 %v2155
    %4621 = vmatpush1.msra.mxu0 %v2154
    %4622 = vmatprep.subr.mxu0 %v2159
    %4623 = vmatpush1.msra.mxu0 %v2158
    %4624 = vmatprep.subr.mxu0 %v2163
    %4625 = vmatpush1.msra.mxu0 %v2162
    %4626 = vmatprep.subr.mxu0 %v2167
    %4627 = vmatpush1.msra.mxu0 %v2166
    %4628 = vmatprep.subr.mxu0 %v2171
    %4629 = vmatpush1.msra.mxu0 %v2170
    %4630 = vmatprep.subr.mxu0 %v2175
    %4631 = vmatpush1.msra.mxu0 %v2174
    %4632 = vmatprep.subr.mxu0 %v2179
    %4633 = vmatpush1.msra.mxu0 %v2178
    %4634 = vmatprep.subr.mxu0 %v2183
    %4635 = vmatpush1.msra.mxu0 %v2182
    %4636 = vmatprep.subr.mxu0 %v2187
    %4637 = vmatpush1.msra.mxu0 %v2186
    %4638 = vmatprep.subr.mxu0 %v2191
    %4639 = vmatpush1.msra.mxu0 %v2190
    %4640 = vmatprep.subr.mxu0 %v2195
    %4641 = vmatpush1.msra.mxu0 %v2194
    %4642 = vmatprep.subr.mxu0 %v2199
    %4643 = vmatpush1.msra.mxu0 %v2198
    %4644 = vmatprep.mubr.f32.mxu0 %v4413
    %4645 = vmatmul.mubr.f32.gmra.mrb[0].mxu0 %v4247
    %v4646 = vpop.f32.mrb[0].mxu0
    %v4647 = vadd.f32 %v2207, %v4646
    %v4648 = vpop.f32.mrb[0].mxu0
    %v4649 = vadd.f32 %v2211, %v4648
    %4650 = vdwg.mxu0
    %4651 = vmatprep.subr.mxu0 %v2077
    %4652 = vmatpush1.msra.mxu0 %v2076
    %4653 = vmatprep.subr.mxu0 %v2081
    %4654 = vmatpush1.msra.mxu0 %v2080
    %4655 = vmatprep.subr.mxu0 %v2085
    %4656 = vmatpush1.msra.mxu0 %v2084
    %4657 = vmatprep.subr.mxu0 %v2089
    %4658 = vmatpush1.msra.mxu0 %v2088
    %4659 = vmatprep.subr.mxu0 %v2093
    %4660 = vmatpush1.msra.mxu0 %v2092
    %4661 = vmatprep.subr.mxu0 %v2097
    %4662 = vmatpush1.msra.mxu0 %v2096
    %4663 = vmatprep.subr.mxu0 %v2101
    %4664 = vmatpush1.msra.mxu0 %v2100
    %4665 = vmatprep.subr.mxu0 %v2105
    %4666 = vmatpush1.msra.mxu0 %v2104
    %4667 = vmatprep.subr.mxu0 %v2109
    %4668 = vmatpush1.msra.mxu0 %v2108
    %4669 = vmatprep.subr.mxu0 %v2113
    %4670 = vmatpush1.msra.mxu0 %v2112
    %4671 = vmatprep.subr.mxu0 %v2117
    %4672 = vmatpush1.msra.mxu0 %v2116
    %4673 = vmatprep.subr.mxu0 %v2121
    %4674 = vmatpush1.msra.mxu0 %v2120
    %4675 = vmatprep.subr.mxu0 %v2125
    %4676 = vmatpush1.msra.mxu0 %v2124
    %4677 = vmatprep.subr.mxu0 %v2129
    %4678 = vmatpush1.msra.mxu0 %v2128
    %4679 = vmatprep.subr.mxu0 %v2133
    %4680 = vmatpush1.msra.mxu0 %v2132
    %4681 = vmatprep.subr.mxu0 %v2137
    %4682 = vmatpush1.msra.mxu0 %v2136
    %4683 = vmatprep.subr.mxu0 %v2141
    %4684 = vmatpush1.msra.mxu0 %v2140
    %4685 = vmatprep.subr.mxu0 %v2145
    %4686 = vmatpush1.msra.mxu0 %v2144
    %4687 = vmatprep.subr.mxu0 %v2149
    %4688 = vmatpush1.msra.mxu0 %v2148
    %4689 = vmatprep.subr.mxu0 %v2153
    %4690 = vmatpush1.msra.mxu0 %v2152
    %4691 = vmatprep.subr.mxu0 %v2157
    %4692 = vmatpush1.msra.mxu0 %v2156
    %4693 = vmatprep.subr.mxu0 %v2161
    %4694 = vmatpush1.msra.mxu0 %v2160
    %4695 = vmatprep.subr.mxu0 %v2165
    %4696 = vmatpush1.msra.mxu0 %v2164
    %4697 = vmatprep.subr.mxu0 %v2169
    %4698 = vmatpush1.msra.mxu0 %v2168
    %4699 = vmatprep.subr.mxu0 %v2173
    %4700 = vmatpush1.msra.mxu0 %v2172
    %4701 = vmatprep.subr.mxu0 %v2177
    %4702 = vmatpush1.msra.mxu0 %v2176
    %4703 = vmatprep.subr.mxu0 %v2181
    %4704 = vmatpush1.msra.mxu0 %v2180
    %4705 = vmatprep.subr.mxu0 %v2185
    %4706 = vmatpush1.msra.mxu0 %v2184
    %4707 = vmatprep.subr.mxu0 %v2189
    %4708 = vmatpush1.msra.mxu0 %v2188
    %4709 = vmatprep.subr.mxu0 %v2193
    %4710 = vmatpush1.msra.mxu0 %v2192
    %4711 = vmatprep.subr.mxu0 %v2197
    %4712 = vmatpush1.msra.mxu0 %v2196
    %4713 = vmatprep.subr.mxu0 %v2201
    %4714 = vmatpush1.msra.mxu0 %v2200
    %4715 = vmatprep.mubr.f32.mxu0 %v4413
    %4716 = vmatmul.mubr.f32.gmra.mrb[0].mxu0 %v4247
    %v4717 = vpop.f32.mrb[0].mxu0
    %v4718 = vadd.f32 %v2215, %v4717
    %v4719 = vpop.f32.mrb[0].mxu0
    %v4720 = vadd.f32 %v2219, %v4719
    %4721 = vdwg.mxu0
    %v4722 = vxor.u32 %v4647, 2147483648
    %v4723 = vxor.u32 %v4649, 2147483648
    %v4724 = vxor.u32 %v4718, 2147483648
    %v4725 = vmul.f32 %v4722, 1.442695
    %v4726 = vpow.pop %v4725
    %v4727 = vmul.f32 %v4723, 1.442695
    %v4728 = vpow.pop %v4727
    %v4729 = vmul.f32 %v4724, 1.442695
    %v4730 = vpow.pop %v4729
    %v4731 = vadd.f32 %v4726, 1.0
    %v4732 = vadd.f32 %v4728, 1.0
    %v4733 = vadd.f32 %v4730, 1.0
    %v4734 = vrcp.pop %v4731
    %v4735 = vmul.f32 1.0, %v4734
    %v4736 = vrcp.pop %v4732
    %v4737 = vmul.f32 1.0, %v4736
    %v4738 = vrcp.pop %v4733
    %v4739 = vmul.f32 1.0, %v4738
    %v4740 = vtanh.pop %v4720
    %v4741 = vmul.f32 %v4737, %v4411
    %v4742 = vmul.f32 %v4735, %v4740
    %v4743 = vadd.f32 %v4741, %v4742
    %v4744 = vtanh.pop %v4743
    %v4745 = vmul.f32 %v4739, %v4744
    %4746 = vmatprep.subr.mxu0 %v1520
    %4747 = vmatpush1.msra.mxu0 %v1519
    %4748 = vmatprep.subr.mxu0 %v1524
    %4749 = vmatpush1.msra.mxu0 %v1523
    %4750 = vmatprep.subr.mxu0 %v1528
    %4751 = vmatpush1.msra.mxu0 %v1527
    %4752 = vmatprep.subr.mxu0 %v1532
    %4753 = vmatpush1.msra.mxu0 %v1531
    %4754 = vmatprep.subr.mxu0 %v1536
    %4755 = vmatpush1.msra.mxu0 %v1535
    %4756 = vmatprep.subr.mxu0 %v1540
    %4757 = vmatpush1.msra.mxu0 %v1539
    %4758 = vmatprep.subr.mxu0 %v1544
    %4759 = vmatpush1.msra.mxu0 %v1543
    %4760 = vmatprep.subr.mxu0 %v1548
    %4761 = vmatpush1.msra.mxu0 %v1547
    %4762 = vmatprep.subr.mxu0 %v1552
    %4763 = vmatpush1.msra.mxu0 %v1551
    %4764 = vmatprep.subr.mxu0 %v1556
    %4765 = vmatpush1.msra.mxu0 %v1555
    %4766 = vmatprep.subr.mxu0 %v1560
    %4767 = vmatpush1.msra.mxu0 %v1559
    %4768 = vmatprep.subr.mxu0 %v1564
    %4769 = vmatpush1.msra.mxu0 %v1563
    %4770 = vmatprep.subr.mxu0 %v1568
    %4771 = vmatpush1.msra.mxu0 %v1567
    %4772 = vmatprep.subr.mxu0 %v1572
    %4773 = vmatpush1.msra.mxu0 %v1571
    %4774 = vmatprep.subr.mxu0 %v1576
    %4775 = vmatpush1.msra.mxu0 %v1575
    %4776 = vmatprep.subr.mxu0 %v1580
    %4777 = vmatpush1.msra.mxu0 %v1579
    %4778 = vmatprep.subr.mxu0 %v1584
    %4779 = vmatpush1.msra.mxu0 %v1583
    %4780 = vmatprep.subr.mxu0 %v1588
    %4781 = vmatpush1.msra.mxu0 %v1587
    %4782 = vmatprep.subr.mxu0 %v1592
    %4783 = vmatpush1.msra.mxu0 %v1591
    %4784 = vmatprep.subr.mxu0 %v1596
    %4785 = vmatpush1.msra.mxu0 %v1595
    %4786 = vmatprep.subr.mxu0 %v1600
    %4787 = vmatpush1.msra.mxu0 %v1599
    %4788 = vmatprep.subr.mxu0 %v1604
    %4789 = vmatpush1.msra.mxu0 %v1603
    %4790 = vmatprep.subr.mxu0 %v1608
    %4791 = vmatpush1.msra.mxu0 %v1607
    %4792 = vmatprep.subr.mxu0 %v1612
    %4793 = vmatpush1.msra.mxu0 %v1611
    %4794 = vmatprep.subr.mxu0 %v1616
    %4795 = vmatpush1.msra.mxu0 %v1615
    %4796 = vmatprep.subr.mxu0 %v1620
    %4797 = vmatpush1.msra.mxu0 %v1619
    %4798 = vmatprep.subr.mxu0 %v1624
    %4799 = vmatpush1.msra.mxu0 %v1623
    %4800 = vmatprep.subr.mxu0 %v1628
    %4801 = vmatpush1.msra.mxu0 %v1627
    %4802 = vmatprep.subr.mxu0 %v1632
    %4803 = vmatpush1.msra.mxu0 %v1631
    %4804 = vmatprep.subr.mxu0 %v1636
    %4805 = vmatpush1.msra.mxu0 %v1635
    %4806 = vmatprep.subr.mxu0 %v1640
    %4807 = vmatpush1.msra.mxu0 %v1639
    %4808 = vmatprep.subr.mxu0 %v1644
    %4809 = vmatpush1.msra.mxu0 %v1643
    %4810 = vmatprep.mubr.f32.mxu0 %v4579
    %4811 = vmatmul.mubr.f32.gmra.mrb[0].mxu0 %v4413
    %v4812 = vpop.f32.mrb[0].mxu0
    %v4813 = vadd.f32 %v1653, %v4812
    %v4814 = vpop.f32.mrb[0].mxu0
    %v4815 = vadd.f32 %v1657, %v4814
    %4816 = vdwg.mxu0
    %4817 = vmatprep.subr.mxu0 %v1522
    %4818 = vmatpush1.msra.mxu0 %v1521
    %4819 = vmatprep.subr.mxu0 %v1526
    %4820 = vmatpush1.msra.mxu0 %v1525
    %4821 = vmatprep.subr.mxu0 %v1530
    %4822 = vmatpush1.msra.mxu0 %v1529
    %4823 = vmatprep.subr.mxu0 %v1534
    %4824 = vmatpush1.msra.mxu0 %v1533
    %4825 = vmatprep.subr.mxu0 %v1538
    %4826 = vmatpush1.msra.mxu0 %v1537
    %4827 = vmatprep.subr.mxu0 %v1542
    %4828 = vmatpush1.msra.mxu0 %v1541
    %4829 = vmatprep.subr.mxu0 %v1546
    %4830 = vmatpush1.msra.mxu0 %v1545
    %4831 = vmatprep.subr.mxu0 %v1550
    %4832 = vmatpush1.msra.mxu0 %v1549
    %4833 = vmatprep.subr.mxu0 %v1554
    %4834 = vmatpush1.msra.mxu0 %v1553
    %4835 = vmatprep.subr.mxu0 %v1558
    %4836 = vmatpush1.msra.mxu0 %v1557
    %4837 = vmatprep.subr.mxu0 %v1562
    %4838 = vmatpush1.msra.mxu0 %v1561
    %4839 = vmatprep.subr.mxu0 %v1566
    %4840 = vmatpush1.msra.mxu0 %v1565
    %4841 = vmatprep.subr.mxu0 %v1570
    %4842 = vmatpush1.msra.mxu0 %v1569
    %4843 = vmatprep.subr.mxu0 %v1574
    %4844 = vmatpush1.msra.mxu0 %v1573
    %4845 = vmatprep.subr.mxu0 %v1578
    %4846 = vmatpush1.msra.mxu0 %v1577
    %4847 = vmatprep.subr.mxu0 %v1582
    %4848 = vmatpush1.msra.mxu0 %v1581
    %4849 = vmatprep.subr.mxu0 %v1586
    %4850 = vmatpush1.msra.mxu0 %v1585
    %4851 = vmatprep.subr.mxu0 %v1590
    %4852 = vmatpush1.msra.mxu0 %v1589
    %4853 = vmatprep.subr.mxu0 %v1594
    %4854 = vmatpush1.msra.mxu0 %v1593
    %4855 = vmatprep.subr.mxu0 %v1598
    %4856 = vmatpush1.msra.mxu0 %v1597
    %4857 = vmatprep.subr.mxu0 %v1602
    %4858 = vmatpush1.msra.mxu0 %v1601
    %4859 = vmatprep.subr.mxu0 %v1606
    %4860 = vmatpush1.msra.mxu0 %v1605
    %4861 = vmatprep.subr.mxu0 %v1610
    %4862 = vmatpush1.msra.mxu0 %v1609
    %4863 = vmatprep.subr.mxu0 %v1614
    %4864 = vmatpush1.msra.mxu0 %v1613
    %4865 = vmatprep.subr.mxu0 %v1618
    %4866 = vmatpush1.msra.mxu0 %v1617
    %4867 = vmatprep.subr.mxu0 %v1622
    %4868 = vmatpush1.msra.mxu0 %v1621
    %4869 = vmatprep.subr.mxu0 %v1626
    %4870 = vmatpush1.msra.mxu0 %v1625
    %4871 = vmatprep.subr.mxu0 %v1630
    %4872 = vmatpush1.msra.mxu0 %v1629
    %4873 = vmatprep.subr.mxu0 %v1634
    %4874 = vmatpush1.msra.mxu0 %v1633
    %4875 = vmatprep.subr.mxu0 %v1638
    %4876 = vmatpush1.msra.mxu0 %v1637
    %4877 = vmatprep.subr.mxu0 %v1642
    %4878 = vmatpush1.msra.mxu0 %v1641
    %4879 = vmatprep.subr.mxu0 %v1646
    %4880 = vmatpush1.msra.mxu0 %v1645
    %4881 = vmatprep.mubr.f32.mxu0 %v4579
    %4882 = vmatmul.mubr.f32.gmra.mrb[0].mxu0 %v4413
    %v4883 = vpop.f32.mrb[0].mxu0
    %v4884 = vadd.f32 %v1661, %v4883
    %v4885 = vpop.f32.mrb[0].mxu0
    %v4886 = vadd.f32 %v1665, %v4885
    %4887 = vdwg.mxu0
    %v4888 = vxor.u32 %v4813, 2147483648
    %v4889 = vxor.u32 %v4815, 2147483648
    %v4890 = vxor.u32 %v4884, 2147483648
    %v4891 = vmul.f32 %v4888, 1.442695
    %v4892 = vpow.pop %v4891
    %v4893 = vmul.f32 %v4889, 1.442695
    %v4894 = vpow.pop %v4893
    %v4895 = vmul.f32 %v4890, 1.442695
    %v4896 = vpow.pop %v4895
    %v4897 = vadd.f32 %v4892, 1.0
    %v4898 = vadd.f32 %v4894, 1.0
    %v4899 = vadd.f32 %v4896, 1.0
    %v4900 = vrcp.pop %v4897
    %v4901 = vmul.f32 1.0, %v4900
    %v4902 = vrcp.pop %v4898
    %v4903 = vmul.f32 1.0, %v4902
    %v4904 = vrcp.pop %v4899
    %v4905 = vmul.f32 1.0, %v4904
    %v4906 = vtanh.pop %v4886
    %v4907 = vmul.f32 %v4903, %v4577
    %v4908 = vmul.f32 %v4901, %v4906
    %v4909 = vadd.f32 %v4907, %v4908
    %v4910 = vtanh.pop %v4909
    %v4911 = vmul.f32 %v4905, %v4910
    %4912 = vmatprep.subr.mxu0 %v1520
    %4913 = vmatpush1.msra.mxu0 %v1519
    %4914 = vmatprep.subr.mxu0 %v1524
    %4915 = vmatpush1.msra.mxu0 %v1523
    %4916 = vmatprep.subr.mxu0 %v1528
    %4917 = vmatpush1.msra.mxu0 %v1527
    %4918 = vmatprep.subr.mxu0 %v1532
    %4919 = vmatpush1.msra.mxu0 %v1531
    %4920 = vmatprep.subr.mxu0 %v1536
    %4921 = vmatpush1.msra.mxu0 %v1535
    %4922 = vmatprep.subr.mxu0 %v1540
    %4923 = vmatpush1.msra.mxu0 %v1539
    %4924 = vmatprep.subr.mxu0 %v1544
    %4925 = vmatpush1.msra.mxu0 %v1543
    %4926 = vmatprep.subr.mxu0 %v1548
    %4927 = vmatpush1.msra.mxu0 %v1547
    %4928 = vmatprep.subr.mxu0 %v1552
    %4929 = vmatpush1.msra.mxu0 %v1551
    %4930 = vmatprep.subr.mxu0 %v1556
    %4931 = vmatpush1.msra.mxu0 %v1555
    %4932 = vmatprep.subr.mxu0 %v1560
    %4933 = vmatpush1.msra.mxu0 %v1559
    %4934 = vmatprep.subr.mxu0 %v1564
    %4935 = vmatpush1.msra.mxu0 %v1563
    %4936 = vmatprep.subr.mxu0 %v1568
    %4937 = vmatpush1.msra.mxu0 %v1567
    %4938 = vmatprep.subr.mxu0 %v1572
    %4939 = vmatpush1.msra.mxu0 %v1571
    %4940 = vmatprep.subr.mxu0 %v1576
    %4941 = vmatpush1.msra.mxu0 %v1575
    %4942 = vmatprep.subr.mxu0 %v1580
    %4943 = vmatpush1.msra.mxu0 %v1579
    %4944 = vmatprep.subr.mxu0 %v1584
    %4945 = vmatpush1.msra.mxu0 %v1583
    %4946 = vmatprep.subr.mxu0 %v1588
    %4947 = vmatpush1.msra.mxu0 %v1587
    %4948 = vmatprep.subr.mxu0 %v1592
    %4949 = vmatpush1.msra.mxu0 %v1591
    %4950 = vmatprep.subr.mxu0 %v1596
    %4951 = vmatpush1.msra.mxu0 %v1595
    %4952 = vmatprep.subr.mxu0 %v1600
    %4953 = vmatpush1.msra.mxu0 %v1599
    %4954 = vmatprep.subr.mxu0 %v1604
    %4955 = vmatpush1.msra.mxu0 %v1603
    %4956 = vmatprep.subr.mxu0 %v1608
    %4957 = vmatpush1.msra.mxu0 %v1607
    %4958 = vmatprep.subr.mxu0 %v1612
    %4959 = vmatpush1.msra.mxu0 %v1611
    %4960 = vmatprep.subr.mxu0 %v1616
    %4961 = vmatpush1.msra.mxu0 %v1615
    %4962 = vmatprep.subr.mxu0 %v1620
    %4963 = vmatpush1.msra.mxu0 %v1619
    %4964 = vmatprep.subr.mxu0 %v1624
    %4965 = vmatpush1.msra.mxu0 %v1623
    %4966 = vmatprep.subr.mxu0 %v1628
    %4967 = vmatpush1.msra.mxu0 %v1627
    %4968 = vmatprep.subr.mxu0 %v1632
    %4969 = vmatpush1.msra.mxu0 %v1631
    %4970 = vmatprep.subr.mxu0 %v1636
    %4971 = vmatpush1.msra.mxu0 %v1635
    %4972 = vmatprep.subr.mxu0 %v1640
    %4973 = vmatpush1.msra.mxu0 %v1639
    %4974 = vmatprep.subr.mxu0 %v1644
    %4975 = vmatpush1.msra.mxu0 %v1643
    %4976 = vmatprep.mubr.f32.mxu0 %v4911
    %4977 = vmatmul.mubr.f32.gmra.mrb[0].mxu0 %v4745
    %v4978 = vpop.f32.mrb[0].mxu0
    %v4979 = vadd.f32 %v1653, %v4978
    %v4980 = vpop.f32.mrb[0].mxu0
    %v4981 = vadd.f32 %v1657, %v4980
    %4982 = vdwg.mxu0
    %4983 = vmatprep.subr.mxu0 %v1522
    %4984 = vmatpush1.msra.mxu0 %v1521
    %4985 = vmatprep.subr.mxu0 %v1526
    %4986 = vmatpush1.msra.mxu0 %v1525
    %4987 = vmatprep.subr.mxu0 %v1530
    %4988 = vmatpush1.msra.mxu0 %v1529
    %4989 = vmatprep.subr.mxu0 %v1534
    %4990 = vmatpush1.msra.mxu0 %v1533
    %4991 = vmatprep.subr.mxu0 %v1538
    %4992 = vmatpush1.msra.mxu0 %v1537
    %4993 = vmatprep.subr.mxu0 %v1542
    %4994 = vmatpush1.msra.mxu0 %v1541
    %4995 = vmatprep.subr.mxu0 %v1546
    %4996 = vmatpush1.msra.mxu0 %v1545
    %4997 = vmatprep.subr.mxu0 %v1550
    %4998 = vmatpush1.msra.mxu0 %v1549
    %4999 = vmatprep.subr.mxu0 %v1554
    %5000 = vmatpush1.msra.mxu0 %v1553
    %5001 = vmatprep.subr.mxu0 %v1558
    %5002 = vmatpush1.msra.mxu0 %v1557
    %5003 = vmatprep.subr.mxu0 %v1562
    %5004 = vmatpush1.msra.mxu0 %v1561
    %5005 = vmatprep.subr.mxu0 %v1566
    %5006 = vmatpush1.msra.mxu0 %v1565
    %5007 = vmatprep.subr.mxu0 %v1570
    %5008 = vmatpush1.msra.mxu0 %v1569
    %5009 = vmatprep.subr.mxu0 %v1574
    %5010 = vmatpush1.msra.mxu0 %v1573
    %5011 = vmatprep.subr.mxu0 %v1578
    %5012 = vmatpush1.msra.mxu0 %v1577
    %5013 = vmatprep.subr.mxu0 %v1582
    %5014 = vmatpush1.msra.mxu0 %v1581
    %5015 = vmatprep.subr.mxu0 %v1586
    %5016 = vmatpush1.msra.mxu0 %v1585
    %5017 = vmatprep.subr.mxu0 %v1590
    %5018 = vmatpush1.msra.mxu0 %v1589
    %5019 = vmatprep.subr.mxu0 %v1594
    %5020 = vmatpush1.msra.mxu0 %v1593
    %5021 = vmatprep.subr.mxu0 %v1598
    %5022 = vmatpush1.msra.mxu0 %v1597
    %5023 = vmatprep.subr.mxu0 %v1602
    %5024 = vmatpush1.msra.mxu0 %v1601
    %5025 = vmatprep.subr.mxu0 %v1606
    %5026 = vmatpush1.msra.mxu0 %v1605
    %5027 = vmatprep.subr.mxu0 %v1610
    %5028 = vmatpush1.msra.mxu0 %v1609
    %5029 = vmatprep.subr.mxu0 %v1614
    %5030 = vmatpush1.msra.mxu0 %v1613
    %5031 = vmatprep.subr.mxu0 %v1618
    %5032 = vmatpush1.msra.mxu0 %v1617
    %5033 = vmatprep.subr.mxu0 %v1622
    %5034 = vmatpush1.msra.mxu0 %v1621
    %5035 = vmatprep.subr.mxu0 %v1626
    %5036 = vmatpush1.msra.mxu0 %v1625
    %5037 = vmatprep.subr.mxu0 %v1630
    %5038 = vmatpush1.msra.mxu0 %v1629
    %5039 = vmatprep.subr.mxu0 %v1634
    %5040 = vmatpush1.msra.mxu0 %v1633
    %5041 = vmatprep.subr.mxu0 %v1638
    %5042 = vmatpush1.msra.mxu0 %v1637
    %5043 = vmatprep.subr.mxu0 %v1642
    %5044 = vmatpush1.msra.mxu0 %v1641
    %5045 = vmatprep.subr.mxu0 %v1646
    %5046 = vmatpush1.msra.mxu0 %v1645
    %5047 = vmatprep.mubr.f32.mxu0 %v4911
    %5048 = vmatmul.mubr.f32.gmra.mrb[0].mxu0 %v4745
    %v5049 = vpop.f32.mrb[0].mxu0
    %v5050 = vadd.f32 %v1661, %v5049
    %v5051 = vpop.f32.mrb[0].mxu0
    %v5052 = vadd.f32 %v1665, %v5051
    %5053 = vdwg.mxu0
    %v5054 = vxor.u32 %v4979, 2147483648
    %v5055 = vxor.u32 %v4981, 2147483648
    %v5056 = vxor.u32 %v5050, 2147483648
    %v5057 = vmul.f32 %v5054, 1.442695
    %v5058 = vpow.pop %v5057
    %v5059 = vmul.f32 %v5055, 1.442695
    %v5060 = vpow.pop %v5059
    %v5061 = vmul.f32 %v5056, 1.442695
    %v5062 = vpow.pop %v5061
    %v5063 = vadd.f32 %v5058, 1.0
    %v5064 = vadd.f32 %v5060, 1.0
    %v5065 = vadd.f32 %v5062, 1.0
    %v5066 = vrcp.pop %v5063
    %v5067 = vmul.f32 1.0, %v5066
    %v5068 = vrcp.pop %v5064
    %v5069 = vmul.f32 1.0, %v5068
    %v5070 = vrcp.pop %v5065
    %v5071 = vmul.f32 1.0, %v5070
    %v5072 = vtanh.pop %v5052
    %v5073 = vmul.f32 %v5069, %v4909
    %v5074 = vmul.f32 %v5067, %v5072
    %v5075 = vadd.f32 %v5073, %v5074
    %v5076 = vtanh.pop %v5075
    %v5077 = vmul.f32 %v5071, %v5076
    %v5078 = vld [vmem:[%s5] sm:$0x1]
    %v5080 = vlaneseq
    %v5081 = vshrl.u32 %v5080, 7
    %v5082 = vsub.s32 0, %v5081
    %v5083 = vrot.slane %v5078, %v5082
    %v5085 = vmul.f32 %v5077, %v5083
    %5086 = vadd.xlane.f32.xlu0 %v5085
    %v5087 = vpop.xlane.xlu0 %5086
    %s5088 = sld [smem:[#allocation6]]
    %v5089 = vstv %s5088
    %v5090 = vadd.f32 %v5087, %v5089
    %5091 = vst [vmem:[%s7] sm:$0xff] %v5090
    // Predicated region
    $region38: #{model_forward.1} parent=1 // pred_check
      _
    $region39: #{model_forward.1} parent=1 // pred_check_branch
      %5093 = sbr.rel (0) target = $region41
    $region40: #{model_forward.1} parent=1 // pred_region
      _
    $region41: #{model_forward.1} parent=1 // pred_fallthru
      _
    // Predicated region
    $region42: #{model_forward.1} parent=1 // pred_check
      _
    $region43: #{model_forward.1} parent=1 // pred_check_branch
      %5095 = sbr.rel (0) target = $region45
    $region44: #{model_forward.1} parent=1 // pred_region
      _
    $region45: #{model_forward.1} parent=1 // pred_fallthru
      _
    %5096 = vsyncpa [#allocation8], 1
  %5097 = vsyncmov [#allocation4]
  %s5098 = vpop.sfrf %5097
  %p5099 = scmp.eq.s32.totalorder %s5098, 0
  %p5100 = pneg %p5099
  %5102 = shalt.err (%p5100)
  %s5103 = scalar_lea.sflag [#allocation4], 1
  %5104 = vsyncmov %s5103
  %s5105 = vpop.sfrf %5104
  %p5106 = scmp.eq.s32.totalorder %s5105, 0
  %p5107 = pneg %p5106
  %5109 = shalt.err (%p5107)

</llo_original>
